<compile_context>
chip_gen: v5e
topology: v5e:2x2
jax: 0.10.0
libtpu: 0.0.40
codegen_flags: <defaults>
</compile_context>

<pallas_src>
import functools

import jax
import jax.numpy as jnp
from jax.experimental import pallas as pl
from jax.experimental.pallas import tpu as pltpu

_TAPS = tuple((kh, kw) for kh in range(3) for kw in range(3))


# ---------------------------------------------------------------------------
# Fused kernel: conv1..conv4 (+relu+pool) + 3-layer MLP, one batch tile / step.
# ---------------------------------------------------------------------------
def _fused_cnn_kernel(
    x1_ref,                        # (Bt, 256, 9) bf16  conv1 im2col patches
    w1_ref, b1_ref,                # (9, 32) bf16,     (1, 32) f32
    w2_ref, b2_ref,                # (288, 64) bf16,   (1, 64) f32
    w3_ref, b3_ref,                # (576, 128) bf16,  (1, 128) f32
    w4_ref, b4_ref,                # (1152, 256) bf16, (1, 256) f32
    f1w_ref, f1b_ref,              # (256, 256) bf16,  (1, 256) f32
    f2w_ref, f2b_ref,              # (256, 128) bf16,  (1, 128) f32
    f3w_ref, f3b_ref,              # (128, 128) bf16,  (1, 128) f32  (lane-padded)
    o_ref,                         # (Bt, 128) f32     (lane-dense; cols 10..127 junk)
    p2_ref, p3_ref, p4_ref,        # f32 zero-haloed padded-activation scratch
    c2_ref, c3_ref, c4_ref,        # bf16 im2col patch scratch
):
    Bt = x1_ref.shape[0]

    def pool2x2(y, H, W, C):
        # y: (Bt*H*W, C), rows in (b, h, w) row-major order -> (Bt, H//2, W//2, C)
        y = jnp.max(y.reshape(Bt * H * (W // 2), 2, C), axis=1)       # pool W
        y = jnp.max(y.reshape(Bt * (H // 2), 2, W // 2, C), axis=1)   # pool H
        return y.reshape(Bt, H // 2, W // 2, C)

    # ---- conv1: single MXU matmul on pre-built (Bt*256, 9) bf16 patches ----
    y = jnp.dot(x1_ref[...].reshape(Bt * 256, 9), w1_ref[...],
                preferred_element_type=jnp.float32)                   # (Bt*256, 32) f32
    y = jnp.maximum(y + b1_ref[...], 0.0)
    act = pool2x2(y, 16, 16, 32)                                      # (Bt, 8, 8, 32) f32

    # ---- conv2..conv4: in-VMEM pad=1 + im2col -> one bf16 MXU matmul each ----
    def conv_block(x_nhwc, pad_ref, pat_ref, w_ref, b_ref):
        _, H, W, Cin = x_nhwc.shape
        Cout = w_ref.shape[1]
        # Zero the halo every step (NOT gated on program_id==0): with the batch
        # grid axis marked "parallel", a 2-TC chip (v7x) has cores that never
        # run grid step 0 and would otherwise read uninitialized VMEM halos.
        pad_ref[...] = jnp.zeros_like(pad_ref)
        pad_ref[:, 1:H + 1, 1:W + 1, :] = x_nhwc
        xp = pad_ref[...]                                             # (Bt, H+2, W+2, Cin)
        # build the (Bt*H*W, 9*Cin) bf16 patch tile once
        for t, (kh, kw) in enumerate(_TAPS):
            pat_ref[:, t * Cin:(t + 1) * Cin] = (
                xp[:, kh:kh + H, kw:kw + W, :]
                .reshape(Bt * H * W, Cin).astype(pat_ref.dtype))
        y = jnp.dot(pat_ref[...], w_ref[...],
                    preferred_element_type=jnp.float32)               # (Bt*H*W, Cout) f32
        y = jnp.maximum(y + b_ref[...], 0.0)
        return pool2x2(y, H, W, Cout)

    act = conv_block(act, p2_ref, c2_ref, w2_ref, b2_ref)             # (Bt, 4, 4, 64)
    act = conv_block(act, p3_ref, c3_ref, w3_ref, b3_ref)             # (Bt, 2, 2, 128)
    act = conv_block(act, p4_ref, c4_ref, w4_ref, b4_ref)             # (Bt, 1, 1, 256)

    # ---- fused MLP head (bf16 MXU operands, f32 accumulation) ----
    h = act.reshape(Bt, 256)
    h = jnp.maximum(
        jnp.dot(h.astype(jnp.bfloat16), f1w_ref[...],
                preferred_element_type=jnp.float32) + f1b_ref[...], 0.0)
    h = jnp.maximum(
        jnp.dot(h.astype(jnp.bfloat16), f2w_ref[...],
                preferred_element_type=jnp.float32) + f2b_ref[...], 0.0)
    out = jnp.dot(h.astype(jnp.bfloat16), f3w_ref[...],
                  preferred_element_type=jnp.float32) + f3b_ref[...]
    o_ref[...] = out.astype(o_ref.dtype)                              # lane-dense (Bt, 128)


def _full_spec(shape):
    # whole-array block, same VMEM-resident block for every grid step
    return pl.BlockSpec(shape, lambda *_: (0,) * len(shape))


@functools.partial(jax.jit, static_argnames=("batch_tile",))
def cnn_forward(params, x_nchw, batch_tile=128):
    B, Cin, H, W = x_nchw.shape
    assert (Cin, H, W) == (1, 16, 16), "CNN expects (B, 1, 16, 16) input"
    x = x_nchw[:, 0].astype(jnp.float32)                              # (B, 16, 16)

    if B <= batch_tile:
        Bt = B                       # single grid step; blocks span the full batch
    else:
        assert batch_tile % 8 == 0, "batch_tile must be a multiple of 8 when tiling"
        Bt = batch_tile
    Bp = ((B + Bt - 1) // Bt) * Bt
    if Bp != B:
        x = jnp.concatenate([x, jnp.zeros((Bp - B, 16, 16), jnp.float32)], axis=0)

    # conv1 im2col in the wrapper (pure layout plumbing): (Bp, 256, 9) bf16.
    xp = jnp.pad(x, ((0, 0), (1, 1), (1, 1)))                         # (Bp, 18, 18)
    x1 = jnp.stack([xp[:, kh:kh + 16, kw:kw + 16] for kh, kw in _TAPS],
                   axis=-1).reshape(Bp, 256, 9).astype(jnp.bfloat16)

    bf = lambda a: a.astype(jnp.bfloat16)
    row = lambda b: b.astype(jnp.float32).reshape(1, -1)
    # conv weights as (9*Cin, Cout) im2col matrices (row = (kh*3+kw)*Cin + c).
    w1 = bf(params["c1w"].reshape(9 * 1, 32))
    w2 = bf(params["c2w"].reshape(9 * 32, 64))
    w3 = bf(params["c3w"].reshape(9 * 64, 128))
    w4 = bf(params["c4w"].reshape(9 * 128, 256))
    f1w, f2w = bf(params["f1w"]), bf(params["f2w"])
    # Lane-dense classifier: zero-pad (128, 10) -> (128, 128); sliced after call.
    f3w = bf(jnp.zeros((128, 128), jnp.float32).at[:, :10].set(params["f3w"]))
    f3b = jnp.zeros((1, 128), jnp.float32).at[0, :10].set(params["f3b"])

    # VMEM budget: per-sample scratch + double-buffered IO + f32 temporaries,
    # plus resident bf16 weights; clamped to fit v7x's 64 MiB/TC with headroom.
    per_sample = (
        (10 * 10 * 32 + 6 * 6 * 64 + 4 * 4 * 128) * 4        # padded-act scratch (f32)
        + (64 * 288 + 16 * 576 + 4 * 1152) * 2               # im2col scratch (bf16)
        + 2 * (256 * 9 * 2 + 128 * 4)                        # double-buffered in/out
        + 96 * 1024)                                         # f32 temporaries headroom
    vmem_limit = min(max(4 * (1 << 20) + Bt * per_sample, 32 * (1 << 20)),
                     56 * (1 << 20))

    out = pl.pallas_call(
        _fused_cnn_kernel,
        out_shape=jax.ShapeDtypeStruct((Bp, 128), jnp.float32),
        grid=(Bp // Bt,),
        in_specs=[
            pl.BlockSpec((Bt, 256, 9), lambda i: (i, 0, 0)),
            _full_spec((9, 32)),      _full_spec((1, 32)),
            _full_spec((288, 64)),    _full_spec((1, 64)),
            _full_spec((576, 128)),   _full_spec((1, 128)),
            _full_spec((1152, 256)),  _full_spec((1, 256)),
            _full_spec((256, 256)),   _full_spec((1, 256)),
            _full_spec((256, 128)),   _full_spec((1, 128)),
            _full_spec((128, 128)),   _full_spec((1, 128)),
        ],
        out_specs=pl.BlockSpec((Bt, 128), lambda i: (i, 0)),
        scratch_shapes=[
            pltpu.VMEM((Bt, 10, 10, 32), jnp.float32),    # conv2 padded activation
            pltpu.VMEM((Bt, 6, 6, 64), jnp.float32),      # conv3 padded activation
            pltpu.VMEM((Bt, 4, 4, 128), jnp.float32),     # conv4 padded activation
            pltpu.VMEM((Bt * 64, 9 * 32), jnp.bfloat16),  # conv2 im2col patches
            pltpu.VMEM((Bt * 16, 9 * 64), jnp.bfloat16),  # conv3 im2col patches
            pltpu.VMEM((Bt * 4, 9 * 128), jnp.bfloat16),  # conv4 im2col patches
        ],
        compiler_params=pltpu.CompilerParams(
            dimension_semantics=("parallel",),
            vmem_limit_bytes=vmem_limit,
        ),
    )(x1, w1, row(params["c1b"]), w2, row(params["c2b"]),
      w3, row(params["c3b"]), w4, row(params["c4b"]),
      f1w, row(params["f1b"]), f2w, row(params["f2b"]),
      f3w, f3b)
    return out[:B, :10]


# ---------------------------------------------------------------------------
# Deterministic synthetic parameters + pure-JAX reference (for a sanity check).
# ---------------------------------------------------------------------------
def init_params(key):
    def conv_w(k, cin, cout):
        s = 1.0 / jnp.sqrt(cin * 9.0)
        return jax.random.uniform(k, (3, 3, cin, cout), jnp.float32, -s, s)

    def lin_w(k, fin, fout):
        s = 1.0 / jnp.sqrt(float(fin))
        return jax.random.uniform(k, (fin, fout), jnp.float32, -s, s)

    def bias(k, n, fan_in):
        s = 1.0 / jnp.sqrt(float(fan_in))
        return jax.random.uniform(k, (n,), jnp.float32, -s, s)

    ks = jax.random.split(key, 14)
    return {
        "c1w": conv_w(ks[0], 1, 32),    "c1b": bias(ks[7], 32, 9),
        "c2w": conv_w(ks[1], 32, 64),   "c2b": bias(ks[8], 64, 9 * 32),
        "c3w": conv_w(ks[2], 64, 128),  "c3b": bias(ks[9], 128, 9 * 64),
        "c4w": conv_w(ks[3], 128, 256), "c4b": bias(ks[10], 256, 9 * 128),
        "f1w": lin_w(ks[4], 256, 256),  "f1b": bias(ks[11], 256, 256),
        "f2w": lin_w(ks[5], 256, 128),  "f2b": bias(ks[12], 128, 256),
        "f3w": lin_w(ks[6], 128, 10),   "f3b": bias(ks[13], 10, 128),
    }


def reference_forward(params, x_nchw):
    x = jnp.transpose(x_nchw, (0, 2, 3, 1)).astype(jnp.float32)

    def conv_block(x, w, b):
        y = jax.lax.conv_general_dilated(
            x, w, window_strides=(1, 1), padding="SAME",
            dimension_numbers=("NHWC", "HWIO", "NHWC"))
        y = jnp.maximum(y + b, 0.0)
        B, H, W, C = y.shape
        return y.reshape(B, H // 2, 2, W // 2, 2, C).max(axis=(2, 4))

    x = conv_block(x, params["c1w"], params["c1b"])
    x = conv_block(x, params["c2w"], params["c2b"])
    x = conv_block(x, params["c3w"], params["c3b"])
    x = conv_block(x, params["c4w"], params["c4b"])
    x = x.reshape(x.shape[0], 256)
    x = jnp.maximum(x @ params["f1w"] + params["f1b"], 0.0)
    x = jnp.maximum(x @ params["f2w"] + params["f2b"], 0.0)
    return x @ params["f3w"] + params["f3b"]


if __name__ == "__main__":
    key = jax.random.PRNGKey(0)
    pkey, xkey = jax.random.split(key)
    params = init_params(pkey)
    # Input implied by the module: 1 channel, 16x16 spatial (4 pools -> 1x1).
    x = jax.random.normal(xkey, (2, 1, 16, 16), jnp.float32)

    out = cnn_forward(params, x)
    jax.block_until_ready(out)
    assert out.shape == (2, 10)

    ref = reference_forward(params, x)
    max_err = float(jnp.max(jnp.abs(out - ref)))
    assert max_err < 5e-2, f"kernel/reference mismatch: max_err={max_err}"

    print("KERNEL_OK")
</pallas_src>

<mosaic_0001>
module attributes {stable_mosaic.version = 11 : i64} {
  func.func @_fused_cnn_kernel(%arg0: i32, %arg1: memref<2x256x9xbf16, #tpu.memory_space<vmem>>, %arg2: memref<9x32xbf16, #tpu.memory_space<vmem>>, %arg3: memref<1x32xf32, #tpu.memory_space<vmem>>, %arg4: memref<288x64xbf16, #tpu.memory_space<vmem>>, %arg5: memref<1x64xf32, #tpu.memory_space<vmem>>, %arg6: memref<576x128xbf16, #tpu.memory_space<vmem>>, %arg7: memref<1x128xf32, #tpu.memory_space<vmem>>, %arg8: memref<1152x256xbf16, #tpu.memory_space<vmem>>, %arg9: memref<1x256xf32, #tpu.memory_space<vmem>>, %arg10: memref<256x256xbf16, #tpu.memory_space<vmem>>, %arg11: memref<1x256xf32, #tpu.memory_space<vmem>>, %arg12: memref<256x128xbf16, #tpu.memory_space<vmem>>, %arg13: memref<1x128xf32, #tpu.memory_space<vmem>>, %arg14: memref<128x128xbf16, #tpu.memory_space<vmem>>, %arg15: memref<1x128xf32, #tpu.memory_space<vmem>>, %arg16: memref<2x128xf32, #tpu.memory_space<vmem>>, %arg17: memref<2x10x10x32xf32, #tpu.memory_space<vmem>>, %arg18: memref<2x6x6x64xf32, #tpu.memory_space<vmem>>, %arg19: memref<2x4x4x128xf32, #tpu.memory_space<vmem>>, %arg20: memref<128x288xbf16, #tpu.memory_space<vmem>>, %arg21: memref<32x576xbf16, #tpu.memory_space<vmem>>, %arg22: memref<8x1152xbf16, #tpu.memory_space<vmem>>) attributes {dimension_semantics = [#tpu.dimension_semantics<parallel>], iteration_bounds = array<i64: 1>, scalar_prefetch = 0 : i64, scratch_operands = 6 : i64, tpu.core_type = #tpu.core_type<tc>, window_params = [{transform_indices = @transform_0, window_bounds = array<i64: 2, 256, 9>}, {pipeline_mode = #tpu.pipeline_mode<synchronous>, transform_indices = @transform_1, window_bounds = array<i64: 9, 32>}, {pipeline_mode = #tpu.pipeline_mode<synchronous>, transform_indices = @transform_2, window_bounds = array<i64: 1, 32>}, {pipeline_mode = #tpu.pipeline_mode<synchronous>, transform_indices = @transform_3, window_bounds = array<i64: 288, 64>}, {pipeline_mode = #tpu.pipeline_mode<synchronous>, transform_indices = @transform_4, window_bounds = array<i64: 1, 64>}, {pipeline_mode = #tpu.pipeline_mode<synchronous>, transform_indices = @transform_5, window_bounds = array<i64: 576, 128>}, {pipeline_mode = #tpu.pipeline_mode<synchronous>, transform_indices = @transform_6, window_bounds = array<i64: 1, 128>}, {pipeline_mode = #tpu.pipeline_mode<synchronous>, transform_indices = @transform_7, window_bounds = array<i64: 1152, 256>}, {pipeline_mode = #tpu.pipeline_mode<synchronous>, transform_indices = @transform_8, window_bounds = array<i64: 1, 256>}, {pipeline_mode = #tpu.pipeline_mode<synchronous>, transform_indices = @transform_9, window_bounds = array<i64: 256, 256>}, {pipeline_mode = #tpu.pipeline_mode<synchronous>, transform_indices = @transform_10, window_bounds = array<i64: 1, 256>}, {pipeline_mode = #tpu.pipeline_mode<synchronous>, transform_indices = @transform_11, window_bounds = array<i64: 256, 128>}, {pipeline_mode = #tpu.pipeline_mode<synchronous>, transform_indices = @transform_12, window_bounds = array<i64: 1, 128>}, {pipeline_mode = #tpu.pipeline_mode<synchronous>, transform_indices = @transform_13, window_bounds = array<i64: 128, 128>}, {pipeline_mode = #tpu.pipeline_mode<synchronous>, transform_indices = @transform_14, window_bounds = array<i64: 1, 128>}, {transform_indices = @transform_15, window_bounds = array<i64: 2, 128>}]} {
    %c0 = arith.constant 0 : index
    %c0_0 = arith.constant 0 : index
    %c0_1 = arith.constant 0 : index
    %0 = vector.load %arg1[%c0, %c0_0, %c0_1] : memref<2x256x9xbf16, #tpu.memory_space<vmem>>, vector<2x256x9xbf16>
    %1 = vector.shape_cast %0 : vector<2x256x9xbf16> to vector<512x9xbf16>
    %c0_2 = arith.constant 0 : index
    %c0_3 = arith.constant 0 : index
    %2 = vector.load %arg2[%c0_2, %c0_3] : memref<9x32xbf16, #tpu.memory_space<vmem>>, vector<9x32xbf16>
    %cst = arith.constant dense<0.000000e+00> : vector<512x32xf32>
    %3 = tpu.matmul %1, %2, %cst {dimension_numbers = #tpu.dot_dimension_numbers<[1], [0], [0], [1], [0, 0, 1, 1], [], []>} : vector<512x9xbf16>, vector<9x32xbf16>, vector<512x32xf32> -> vector<512x32xf32>
    %c0_4 = arith.constant 0 : index
    %c0_5 = arith.constant 0 : index
    %4 = vector.load %arg3[%c0_4, %c0_5] : memref<1x32xf32, #tpu.memory_space<vmem>>, vector<1x32xf32>
    %5 = vector.broadcast %4 : vector<1x32xf32> to vector<512x32xf32>
    %6 = arith.addf %3, %5 : vector<512x32xf32>
    %cst_6 = arith.constant 0.000000e+00 : f32
    %7 = vector.broadcast %cst_6 : f32 to vector<512x32xf32>
    %8 = arith.maximumf %6, %7 : vector<512x32xf32>
    %9 = vector.shape_cast %8 : vector<512x32xf32> to vector<256x2x32xf32>
    %cst_7 = arith.constant dense<0xFF800000> : vector<256x32xf32>
    %10 = vector.multi_reduction <maximumf>, %9, %cst_7 [1] : vector<256x2x32xf32> to vector<256x32xf32>
    %11 = vector.shape_cast %10 : vector<256x32xf32> to vector<16x2x8x32xf32>
    %cst_8 = arith.constant dense<0xFF800000> : vector<16x8x32xf32>
    %12 = vector.multi_reduction <maximumf>, %11, %cst_8 [1] : vector<16x2x8x32xf32> to vector<16x8x32xf32>
    %13 = vector.shape_cast %12 : vector<16x8x32xf32> to vector<2x8x8x32xf32>
    %cst_9 = arith.constant 0.000000e+00 : f32
    %14 = vector.broadcast %cst_9 : f32 to vector<2x10x10x32xf32>
    %c0_10 = arith.constant 0 : index
    %c0_11 = arith.constant 0 : index
    %c0_12 = arith.constant 0 : index
    %c0_13 = arith.constant 0 : index
    %15 = vector.load %arg17[%c0_10, %c0_11, %c0_12, %c0_13] : memref<2x10x10x32xf32, #tpu.memory_space<vmem>>, vector<2x10x10x32xf32>
    tpu.vector_store %arg17[%c0_10, %c0_11, %c0_12, %c0_13], %14 {strides = array<i32>} : memref<2x10x10x32xf32, #tpu.memory_space<vmem>>, vector<2x10x10x32xf32>,
    %c0_14 = arith.constant 0 : index
    %c1 = arith.constant 1 : index
    %c1_15 = arith.constant 1 : index
    %c0_16 = arith.constant 0 : index
    %16 = vector.load %arg17[%c0_14, %c1, %c1_15, %c0_16] : memref<2x10x10x32xf32, #tpu.memory_space<vmem>>, vector<2x8x8x32xf32>
    tpu.vector_store %arg17[%c0_14, %c1, %c1_15, %c0_16], %13 {strides = array<i32>} : memref<2x10x10x32xf32, #tpu.memory_space<vmem>>, vector<2x8x8x32xf32>,
    %c0_17 = arith.constant 0 : index
    %c0_18 = arith.constant 0 : index
    %c0_19 = arith.constant 0 : index
    %c0_20 = arith.constant 0 : index
    %17 = vector.load %arg17[%c0_17, %c0_18, %c0_19, %c0_20] : memref<2x10x10x32xf32, #tpu.memory_space<vmem>>, vector<2x10x10x32xf32>
    %18 = vector.extract_strided_slice %17 {offsets = [0, 0, 0, 0], sizes = [2, 8, 8, 32], strides = [1, 1, 1, 1]} : vector<2x10x10x32xf32> to vector<2x8x8x32xf32>
    %19 = vector.shape_cast %18 : vector<2x8x8x32xf32> to vector<128x32xf32>
    %20 = arith.truncf %19 : vector<128x32xf32> to vector<128x32xbf16>
    %c0_21 = arith.constant 0 : index
    %c0_22 = arith.constant 0 : index
    %21 = vector.load %arg20[%c0_21, %c0_22] : memref<128x288xbf16, #tpu.memory_space<vmem>>, vector<128x32xbf16>
    tpu.vector_store %arg20[%c0_21, %c0_22], %20 {strides = array<i32>} : memref<128x288xbf16, #tpu.memory_space<vmem>>, vector<128x32xbf16>,
    %22 = vector.extract_strided_slice %17 {offsets = [0, 0, 1, 0], sizes = [2, 8, 8, 32], strides = [1, 1, 1, 1]} : vector<2x10x10x32xf32> to vector<2x8x8x32xf32>
    %23 = vector.shape_cast %22 : vector<2x8x8x32xf32> to vector<128x32xf32>
    %24 = arith.truncf %23 : vector<128x32xf32> to vector<128x32xbf16>
    %c0_23 = arith.constant 0 : index
    %c32 = arith.constant 32 : index
    %25 = vector.load %arg20[%c0_23, %c32] : memref<128x288xbf16, #tpu.memory_space<vmem>>, vector<128x32xbf16>
    tpu.vector_store %arg20[%c0_23, %c32], %24 {strides = array<i32>} : memref<128x288xbf16, #tpu.memory_space<vmem>>, vector<128x32xbf16>,
    %26 = vector.extract_strided_slice %17 {offsets = [0, 0, 2, 0], sizes = [2, 8, 8, 32], strides = [1, 1, 1, 1]} : vector<2x10x10x32xf32> to vector<2x8x8x32xf32>
    %27 = vector.shape_cast %26 : vector<2x8x8x32xf32> to vector<128x32xf32>
    %28 = arith.truncf %27 : vector<128x32xf32> to vector<128x32xbf16>
    %c0_24 = arith.constant 0 : index
    %c64 = arith.constant 64 : index
    %29 = vector.load %arg20[%c0_24, %c64] : memref<128x288xbf16, #tpu.memory_space<vmem>>, vector<128x32xbf16>
    tpu.vector_store %arg20[%c0_24, %c64], %28 {strides = array<i32>} : memref<128x288xbf16, #tpu.memory_space<vmem>>, vector<128x32xbf16>,
    %30 = vector.extract_strided_slice %17 {offsets = [0, 1, 0, 0], sizes = [2, 8, 8, 32], strides = [1, 1, 1, 1]} : vector<2x10x10x32xf32> to vector<2x8x8x32xf32>
    %31 = vector.shape_cast %30 : vector<2x8x8x32xf32> to vector<128x32xf32>
    %32 = arith.truncf %31 : vector<128x32xf32> to vector<128x32xbf16>
    %c0_25 = arith.constant 0 : index
    %c96 = arith.constant 96 : index
    %33 = vector.load %arg20[%c0_25, %c96] : memref<128x288xbf16, #tpu.memory_space<vmem>>, vector<128x32xbf16>
    tpu.vector_store %arg20[%c0_25, %c96], %32 {strides = array<i32>} : memref<128x288xbf16, #tpu.memory_space<vmem>>, vector<128x32xbf16>,
    %34 = vector.extract_strided_slice %17 {offsets = [0, 1, 1, 0], sizes = [2, 8, 8, 32], strides = [1, 1, 1, 1]} : vector<2x10x10x32xf32> to vector<2x8x8x32xf32>
    %35 = vector.shape_cast %34 : vector<2x8x8x32xf32> to vector<128x32xf32>
    %36 = arith.truncf %35 : vector<128x32xf32> to vector<128x32xbf16>
    %c0_26 = arith.constant 0 : index
    %c128 = arith.constant 128 : index
    %37 = vector.load %arg20[%c0_26, %c128] : memref<128x288xbf16, #tpu.memory_space<vmem>>, vector<128x32xbf16>
    tpu.vector_store %arg20[%c0_26, %c128], %36 {strides = array<i32>} : memref<128x288xbf16, #tpu.memory_space<vmem>>, vector<128x32xbf16>,
    %38 = vector.extract_strided_slice %17 {offsets = [0, 1, 2, 0], sizes = [2, 8, 8, 32], strides = [1, 1, 1, 1]} : vector<2x10x10x32xf32> to vector<2x8x8x32xf32>
    %39 = vector.shape_cast %38 : vector<2x8x8x32xf32> to vector<128x32xf32>
    %40 = arith.truncf %39 : vector<128x32xf32> to vector<128x32xbf16>
    %c0_27 = arith.constant 0 : index
    %c160 = arith.constant 160 : index
    %41 = vector.load %arg20[%c0_27, %c160] : memref<128x288xbf16, #tpu.memory_space<vmem>>, vector<128x32xbf16>
    tpu.vector_store %arg20[%c0_27, %c160], %40 {strides = array<i32>} : memref<128x288xbf16, #tpu.memory_space<vmem>>, vector<128x32xbf16>,
    %42 = vector.extract_strided_slice %17 {offsets = [0, 2, 0, 0], sizes = [2, 8, 8, 32], strides = [1, 1, 1, 1]} : vector<2x10x10x32xf32> to vector<2x8x8x32xf32>
    %43 = vector.shape_cast %42 : vector<2x8x8x32xf32> to vector<128x32xf32>
    %44 = arith.truncf %43 : vector<128x32xf32> to vector<128x32xbf16>
    %c0_28 = arith.constant 0 : index
    %c192 = arith.constant 192 : index
    %45 = vector.load %arg20[%c0_28, %c192] : memref<128x288xbf16, #tpu.memory_space<vmem>>, vector<128x32xbf16>
    tpu.vector_store %arg20[%c0_28, %c192], %44 {strides = array<i32>} : memref<128x288xbf16, #tpu.memory_space<vmem>>, vector<128x32xbf16>,
    %46 = vector.extract_strided_slice %17 {offsets = [0, 2, 1, 0], sizes = [2, 8, 8, 32], strides = [1, 1, 1, 1]} : vector<2x10x10x32xf32> to vector<2x8x8x32xf32>
    %47 = vector.shape_cast %46 : vector<2x8x8x32xf32> to vector<128x32xf32>
    %48 = arith.truncf %47 : vector<128x32xf32> to vector<128x32xbf16>
    %c0_29 = arith.constant 0 : index
    %c224 = arith.constant 224 : index
    %49 = vector.load %arg20[%c0_29, %c224] : memref<128x288xbf16, #tpu.memory_space<vmem>>, vector<128x32xbf16>
    tpu.vector_store %arg20[%c0_29, %c224], %48 {strides = array<i32>} : memref<128x288xbf16, #tpu.memory_space<vmem>>, vector<128x32xbf16>,
    %50 = vector.extract_strided_slice %17 {offsets = [0, 2, 2, 0], sizes = [2, 8, 8, 32], strides = [1, 1, 1, 1]} : vector<2x10x10x32xf32> to vector<2x8x8x32xf32>
    %51 = vector.shape_cast %50 : vector<2x8x8x32xf32> to vector<128x32xf32>
    %52 = arith.truncf %51 : vector<128x32xf32> to vector<128x32xbf16>
    %c0_30 = arith.constant 0 : index
    %c256 = arith.constant 256 : index
    %53 = vector.load %arg20[%c0_30, %c256] : memref<128x288xbf16, #tpu.memory_space<vmem>>, vector<128x32xbf16>
    tpu.vector_store %arg20[%c0_30, %c256], %52 {strides = array<i32>} : memref<128x288xbf16, #tpu.memory_space<vmem>>, vector<128x32xbf16>,
    %c0_31 = arith.constant 0 : index
    %c0_32 = arith.constant 0 : index
    %54 = vector.load %arg20[%c0_31, %c0_32] : memref<128x288xbf16, #tpu.memory_space<vmem>>, vector<128x288xbf16>
    %c0_33 = arith.constant 0 : index
    %c0_34 = arith.constant 0 : index
    %55 = vector.load %arg4[%c0_33, %c0_34] : memref<288x64xbf16, #tpu.memory_space<vmem>>, vector<288x64xbf16>
    %cst_35 = arith.constant dense<0.000000e+00> : vector<128x64xf32>
    %56 = tpu.matmul %54, %55, %cst_35 {dimension_numbers = #tpu.dot_dimension_numbers<[1], [0], [0], [1], [0, 0, 1, 1], [], []>} : vector<128x288xbf16>, vector<288x64xbf16>, vector<128x64xf32> -> vector<128x64xf32>
    %c0_36 = arith.constant 0 : index
    %c0_37 = arith.constant 0 : index
    %57 = vector.load %arg5[%c0_36, %c0_37] : memref<1x64xf32, #tpu.memory_space<vmem>>, vector<1x64xf32>
    %58 = vector.broadcast %57 : vector<1x64xf32> to vector<128x64xf32>
    %59 = arith.addf %56, %58 : vector<128x64xf32>
    %cst_38 = arith.constant 0.000000e+00 : f32
    %60 = vector.broadcast %cst_38 : f32 to vector<128x64xf32>
    %61 = arith.maximumf %59, %60 : vector<128x64xf32>
    %62 = vector.shape_cast %61 : vector<128x64xf32> to vector<64x2x64xf32>
    %cst_39 = arith.constant dense<0xFF800000> : vector<64x64xf32>
    %63 = vector.multi_reduction <maximumf>, %62, %cst_39 [1] : vector<64x2x64xf32> to vector<64x64xf32>
    %64 = vector.shape_cast %63 : vector<64x64xf32> to vector<8x2x4x64xf32>
    %cst_40 = arith.constant dense<0xFF800000> : vector<8x4x64xf32>
    %65 = vector.multi_reduction <maximumf>, %64, %cst_40 [1] : vector<8x2x4x64xf32> to vector<8x4x64xf32>
    %66 = vector.shape_cast %65 : vector<8x4x64xf32> to vector<2x4x4x64xf32>
    %cst_41 = arith.constant 0.000000e+00 : f32
    %67 = vector.broadcast %cst_41 : f32 to vector<2x6x6x64xf32>
    %c0_42 = arith.constant 0 : index
    %c0_43 = arith.constant 0 : index
    %c0_44 = arith.constant 0 : index
    %c0_45 = arith.constant 0 : index
    %68 = vector.load %arg18[%c0_42, %c0_43, %c0_44, %c0_45] : memref<2x6x6x64xf32, #tpu.memory_space<vmem>>, vector<2x6x6x64xf32>
    tpu.vector_store %arg18[%c0_42, %c0_43, %c0_44, %c0_45], %67 {strides = array<i32>} : memref<2x6x6x64xf32, #tpu.memory_space<vmem>>, vector<2x6x6x64xf32>,
    %c0_46 = arith.constant 0 : index
    %c1_47 = arith.constant 1 : index
    %c1_48 = arith.constant 1 : index
    %c0_49 = arith.constant 0 : index
    %69 = vector.load %arg18[%c0_46, %c1_47, %c1_48, %c0_49] : memref<2x6x6x64xf32, #tpu.memory_space<vmem>>, vector<2x4x4x64xf32>
    tpu.vector_store %arg18[%c0_46, %c1_47, %c1_48, %c0_49], %66 {strides = array<i32>} : memref<2x6x6x64xf32, #tpu.memory_space<vmem>>, vector<2x4x4x64xf32>,
    %c0_50 = arith.constant 0 : index
    %c0_51 = arith.constant 0 : index
    %c0_52 = arith.constant 0 : index
    %c0_53 = arith.constant 0 : index
    %70 = vector.load %arg18[%c0_50, %c0_51, %c0_52, %c0_53] : memref<2x6x6x64xf32, #tpu.memory_space<vmem>>, vector<2x6x6x64xf32>
    %71 = vector.extract_strided_slice %70 {offsets = [0, 0, 0, 0], sizes = [2, 4, 4, 64], strides = [1, 1, 1, 1]} : vector<2x6x6x64xf32> to vector<2x4x4x64xf32>
    %72 = vector.shape_cast %71 : vector<2x4x4x64xf32> to vector<32x64xf32>
    %73 = arith.truncf %72 : vector<32x64xf32> to vector<32x64xbf16>
    %c0_54 = arith.constant 0 : index
    %c0_55 = arith.constant 0 : index
    %74 = vector.load %arg21[%c0_54, %c0_55] : memref<32x576xbf16, #tpu.memory_space<vmem>>, vector<32x64xbf16>
    tpu.vector_store %arg21[%c0_54, %c0_55], %73 {strides = array<i32>} : memref<32x576xbf16, #tpu.memory_space<vmem>>, vector<32x64xbf16>,
    %75 = vector.extract_strided_slice %70 {offsets = [0, 0, 1, 0], sizes = [2, 4, 4, 64], strides = [1, 1, 1, 1]} : vector<2x6x6x64xf32> to vector<2x4x4x64xf32>
    %76 = vector.shape_cast %75 : vector<2x4x4x64xf32> to vector<32x64xf32>
    %77 = arith.truncf %76 : vector<32x64xf32> to vector<32x64xbf16>
    %c0_56 = arith.constant 0 : index
    %c64_57 = arith.constant 64 : index
    %78 = vector.load %arg21[%c0_56, %c64_57] : memref<32x576xbf16, #tpu.memory_space<vmem>>, vector<32x64xbf16>
    tpu.vector_store %arg21[%c0_56, %c64_57], %77 {strides = array<i32>} : memref<32x576xbf16, #tpu.memory_space<vmem>>, vector<32x64xbf16>,
    %79 = vector.extract_strided_slice %70 {offsets = [0, 0, 2, 0], sizes = [2, 4, 4, 64], strides = [1, 1, 1, 1]} : vector<2x6x6x64xf32> to vector<2x4x4x64xf32>
    %80 = vector.shape_cast %79 : vector<2x4x4x64xf32> to vector<32x64xf32>
    %81 = arith.truncf %80 : vector<32x64xf32> to vector<32x64xbf16>
    %c0_58 = arith.constant 0 : index
    %c128_59 = arith.constant 128 : index
    %82 = vector.load %arg21[%c0_58, %c128_59] : memref<32x576xbf16, #tpu.memory_space<vmem>>, vector<32x64xbf16>
    tpu.vector_store %arg21[%c0_58, %c128_59], %81 {strides = array<i32>} : memref<32x576xbf16, #tpu.memory_space<vmem>>, vector<32x64xbf16>,
    %83 = vector.extract_strided_slice %70 {offsets = [0, 1, 0, 0], sizes = [2, 4, 4, 64], strides = [1, 1, 1, 1]} : vector<2x6x6x64xf32> to vector<2x4x4x64xf32>
    %84 = vector.shape_cast %83 : vector<2x4x4x64xf32> to vector<32x64xf32>
    %85 = arith.truncf %84 : vector<32x64xf32> to vector<32x64xbf16>
    %c0_60 = arith.constant 0 : index
    %c192_61 = arith.constant 192 : index
    %86 = vector.load %arg21[%c0_60, %c192_61] : memref<32x576xbf16, #tpu.memory_space<vmem>>, vector<32x64xbf16>
    tpu.vector_store %arg21[%c0_60, %c192_61], %85 {strides = array<i32>} : memref<32x576xbf16, #tpu.memory_space<vmem>>, vector<32x64xbf16>,
    %87 = vector.extract_strided_slice %70 {offsets = [0, 1, 1, 0], sizes = [2, 4, 4, 64], strides = [1, 1, 1, 1]} : vector<2x6x6x64xf32> to vector<2x4x4x64xf32>
    %88 = vector.shape_cast %87 : vector<2x4x4x64xf32> to vector<32x64xf32>
    %89 = arith.truncf %88 : vector<32x64xf32> to vector<32x64xbf16>
    %c0_62 = arith.constant 0 : index
    %c256_63 = arith.constant 256 : index
    %90 = vector.load %arg21[%c0_62, %c256_63] : memref<32x576xbf16, #tpu.memory_space<vmem>>, vector<32x64xbf16>
    tpu.vector_store %arg21[%c0_62, %c256_63], %89 {strides = array<i32>} : memref<32x576xbf16, #tpu.memory_space<vmem>>, vector<32x64xbf16>,
    %91 = vector.extract_strided_slice %70 {offsets = [0, 1, 2, 0], sizes = [2, 4, 4, 64], strides = [1, 1, 1, 1]} : vector<2x6x6x64xf32> to vector<2x4x4x64xf32>
    %92 = vector.shape_cast %91 : vector<2x4x4x64xf32> to vector<32x64xf32>
    %93 = arith.truncf %92 : vector<32x64xf32> to vector<32x64xbf16>
    %c0_64 = arith.constant 0 : index
    %c320 = arith.constant 320 : index
    %94 = vector.load %arg21[%c0_64, %c320] : memref<32x576xbf16, #tpu.memory_space<vmem>>, vector<32x64xbf16>
    tpu.vector_store %arg21[%c0_64, %c320], %93 {strides = array<i32>} : memref<32x576xbf16, #tpu.memory_space<vmem>>, vector<32x64xbf16>,
    %95 = vector.extract_strided_slice %70 {offsets = [0, 2, 0, 0], sizes = [2, 4, 4, 64], strides = [1, 1, 1, 1]} : vector<2x6x6x64xf32> to vector<2x4x4x64xf32>
    %96 = vector.shape_cast %95 : vector<2x4x4x64xf32> to vector<32x64xf32>
    %97 = arith.truncf %96 : vector<32x64xf32> to vector<32x64xbf16>
    %c0_65 = arith.constant 0 : index
    %c384 = arith.constant 384 : index
    %98 = vector.load %arg21[%c0_65, %c384] : memref<32x576xbf16, #tpu.memory_space<vmem>>, vector<32x64xbf16>
    tpu.vector_store %arg21[%c0_65, %c384], %97 {strides = array<i32>} : memref<32x576xbf16, #tpu.memory_space<vmem>>, vector<32x64xbf16>,
    %99 = vector.extract_strided_slice %70 {offsets = [0, 2, 1, 0], sizes = [2, 4, 4, 64], strides = [1, 1, 1, 1]} : vector<2x6x6x64xf32> to vector<2x4x4x64xf32>
    %100 = vector.shape_cast %99 : vector<2x4x4x64xf32> to vector<32x64xf32>
    %101 = arith.truncf %100 : vector<32x64xf32> to vector<32x64xbf16>
    %c0_66 = arith.constant 0 : index
    %c448 = arith.constant 448 : index
    %102 = vector.load %arg21[%c0_66, %c448] : memref<32x576xbf16, #tpu.memory_space<vmem>>, vector<32x64xbf16>
    tpu.vector_store %arg21[%c0_66, %c448], %101 {strides = array<i32>} : memref<32x576xbf16, #tpu.memory_space<vmem>>, vector<32x64xbf16>,
    %103 = vector.extract_strided_slice %70 {offsets = [0, 2, 2, 0], sizes = [2, 4, 4, 64], strides = [1, 1, 1, 1]} : vector<2x6x6x64xf32> to vector<2x4x4x64xf32>
    %104 = vector.shape_cast %103 : vector<2x4x4x64xf32> to vector<32x64xf32>
    %105 = arith.truncf %104 : vector<32x64xf32> to vector<32x64xbf16>
    %c0_67 = arith.constant 0 : index
    %c512 = arith.constant 512 : index
    %106 = vector.load %arg21[%c0_67, %c512] : memref<32x576xbf16, #tpu.memory_space<vmem>>, vector<32x64xbf16>
    tpu.vector_store %arg21[%c0_67, %c512], %105 {strides = array<i32>} : memref<32x576xbf16, #tpu.memory_space<vmem>>, vector<32x64xbf16>,
    %c0_68 = arith.constant 0 : index
    %c0_69 = arith.constant 0 : index
    %107 = vector.load %arg21[%c0_68, %c0_69] : memref<32x576xbf16, #tpu.memory_space<vmem>>, vector<32x576xbf16>
    %c0_70 = arith.constant 0 : index
    %c0_71 = arith.constant 0 : index
    %108 = vector.load %arg6[%c0_70, %c0_71] : memref<576x128xbf16, #tpu.memory_space<vmem>>, vector<576x128xbf16>
    %cst_72 = arith.constant dense<0.000000e+00> : vector<32x128xf32>
    %109 = tpu.matmul %107, %108, %cst_72 {dimension_numbers = #tpu.dot_dimension_numbers<[1], [0], [0], [1], [0, 0, 1, 1], [], []>} : vector<32x576xbf16>, vector<576x128xbf16>, vector<32x128xf32> -> vector<32x128xf32>
    %c0_73 = arith.constant 0 : index
    %c0_74 = arith.constant 0 : index
    %110 = vector.load %arg7[%c0_73, %c0_74] : memref<1x128xf32, #tpu.memory_space<vmem>>, vector<1x128xf32>
    %111 = vector.broadcast %110 : vector<1x128xf32> to vector<32x128xf32>
    %112 = arith.addf %109, %111 : vector<32x128xf32>
    %cst_75 = arith.constant 0.000000e+00 : f32
    %113 = vector.broadcast %cst_75 : f32 to vector<32x128xf32>
    %114 = arith.maximumf %112, %113 : vector<32x128xf32>
    %115 = vector.shape_cast %114 : vector<32x128xf32> to vector<16x2x128xf32>
    %cst_76 = arith.constant dense<0xFF800000> : vector<16x128xf32>
    %116 = vector.multi_reduction <maximumf>, %115, %cst_76 [1] : vector<16x2x128xf32> to vector<16x128xf32>
    %117 = vector.shape_cast %116 : vector<16x128xf32> to vector<4x2x2x128xf32>
    %cst_77 = arith.constant dense<0xFF800000> : vector<4x2x128xf32>
    %118 = vector.multi_reduction <maximumf>, %117, %cst_77 [1] : vector<4x2x2x128xf32> to vector<4x2x128xf32>
    %119 = vector.shape_cast %118 : vector<4x2x128xf32> to vector<2x2x2x128xf32>
    %cst_78 = arith.constant 0.000000e+00 : f32
    %120 = vector.broadcast %cst_78 : f32 to vector<2x4x4x128xf32>
    %c0_79 = arith.constant 0 : index
    %c0_80 = arith.constant 0 : index
    %c0_81 = arith.constant 0 : index
    %c0_82 = arith.constant 0 : index
    %121 = vector.load %arg19[%c0_79, %c0_80, %c0_81, %c0_82] : memref<2x4x4x128xf32, #tpu.memory_space<vmem>>, vector<2x4x4x128xf32>
    tpu.vector_store %arg19[%c0_79, %c0_80, %c0_81, %c0_82], %120 {strides = array<i32>} : memref<2x4x4x128xf32, #tpu.memory_space<vmem>>, vector<2x4x4x128xf32>,
    %c0_83 = arith.constant 0 : index
    %c1_84 = arith.constant 1 : index
    %c1_85 = arith.constant 1 : index
    %c0_86 = arith.constant 0 : index
    %122 = vector.load %arg19[%c0_83, %c1_84, %c1_85, %c0_86] : memref<2x4x4x128xf32, #tpu.memory_space<vmem>>, vector<2x2x2x128xf32>
    tpu.vector_store %arg19[%c0_83, %c1_84, %c1_85, %c0_86], %119 {strides = array<i32>} : memref<2x4x4x128xf32, #tpu.memory_space<vmem>>, vector<2x2x2x128xf32>,
    %c0_87 = arith.constant 0 : index
    %c0_88 = arith.constant 0 : index
    %c0_89 = arith.constant 0 : index
    %c0_90 = arith.constant 0 : index
    %123 = vector.load %arg19[%c0_87, %c0_88, %c0_89, %c0_90] : memref<2x4x4x128xf32, #tpu.memory_space<vmem>>, vector<2x4x4x128xf32>
    %124 = vector.extract_strided_slice %123 {offsets = [0, 0, 0, 0], sizes = [2, 2, 2, 128], strides = [1, 1, 1, 1]} : vector<2x4x4x128xf32> to vector<2x2x2x128xf32>
    %125 = vector.shape_cast %124 : vector<2x2x2x128xf32> to vector<8x128xf32>
    %126 = arith.truncf %125 : vector<8x128xf32> to vector<8x128xbf16>
    %c0_91 = arith.constant 0 : index
    %c0_92 = arith.constant 0 : index
    %127 = vector.load %arg22[%c0_91, %c0_92] : memref<8x1152xbf16, #tpu.memory_space<vmem>>, vector<8x128xbf16>
    tpu.vector_store %arg22[%c0_91, %c0_92], %126 {strides = array<i32>} : memref<8x1152xbf16, #tpu.memory_space<vmem>>, vector<8x128xbf16>,
    %128 = vector.extract_strided_slice %123 {offsets = [0, 0, 1, 0], sizes = [2, 2, 2, 128], strides = [1, 1, 1, 1]} : vector<2x4x4x128xf32> to vector<2x2x2x128xf32>
    %129 = vector.shape_cast %128 : vector<2x2x2x128xf32> to vector<8x128xf32>
    %130 = arith.truncf %129 : vector<8x128xf32> to vector<8x128xbf16>
    %c0_93 = arith.constant 0 : index
    %c128_94 = arith.constant 128 : index
    %131 = vector.load %arg22[%c0_93, %c128_94] : memref<8x1152xbf16, #tpu.memory_space<vmem>>, vector<8x128xbf16>
    tpu.vector_store %arg22[%c0_93, %c128_94], %130 {strides = array<i32>} : memref<8x1152xbf16, #tpu.memory_space<vmem>>, vector<8x128xbf16>,
    %132 = vector.extract_strided_slice %123 {offsets = [0, 0, 2, 0], sizes = [2, 2, 2, 128], strides = [1, 1, 1, 1]} : vector<2x4x4x128xf32> to vector<2x2x2x128xf32>
    %133 = vector.shape_cast %132 : vector<2x2x2x128xf32> to vector<8x128xf32>
    %134 = arith.truncf %133 : vector<8x128xf32> to vector<8x128xbf16>
    %c0_95 = arith.constant 0 : index
    %c256_96 = arith.constant 256 : index
    %135 = vector.load %arg22[%c0_95, %c256_96] : memref<8x1152xbf16, #tpu.memory_space<vmem>>, vector<8x128xbf16>
    tpu.vector_store %arg22[%c0_95, %c256_96], %134 {strides = array<i32>} : memref<8x1152xbf16, #tpu.memory_space<vmem>>, vector<8x128xbf16>,
    %136 = vector.extract_strided_slice %123 {offsets = [0, 1, 0, 0], sizes = [2, 2, 2, 128], strides = [1, 1, 1, 1]} : vector<2x4x4x128xf32> to vector<2x2x2x128xf32>
    %137 = vector.shape_cast %136 : vector<2x2x2x128xf32> to vector<8x128xf32>
    %138 = arith.truncf %137 : vector<8x128xf32> to vector<8x128xbf16>
    %c0_97 = arith.constant 0 : index
    %c384_98 = arith.constant 384 : index
    %139 = vector.load %arg22[%c0_97, %c384_98] : memref<8x1152xbf16, #tpu.memory_space<vmem>>, vector<8x128xbf16>
    tpu.vector_store %arg22[%c0_97, %c384_98], %138 {strides = array<i32>} : memref<8x1152xbf16, #tpu.memory_space<vmem>>, vector<8x128xbf16>,
    %140 = vector.extract_strided_slice %123 {offsets = [0, 1, 1, 0], sizes = [2, 2, 2, 128], strides = [1, 1, 1, 1]} : vector<2x4x4x128xf32> to vector<2x2x2x128xf32>
    %141 = vector.shape_cast %140 : vector<2x2x2x128xf32> to vector<8x128xf32>
    %142 = arith.truncf %141 : vector<8x128xf32> to vector<8x128xbf16>
    %c0_99 = arith.constant 0 : index
    %c512_100 = arith.constant 512 : index
    %143 = vector.load %arg22[%c0_99, %c512_100] : memref<8x1152xbf16, #tpu.memory_space<vmem>>, vector<8x128xbf16>
    tpu.vector_store %arg22[%c0_99, %c512_100], %142 {strides = array<i32>} : memref<8x1152xbf16, #tpu.memory_space<vmem>>, vector<8x128xbf16>,
    %144 = vector.extract_strided_slice %123 {offsets = [0, 1, 2, 0], sizes = [2, 2, 2, 128], strides = [1, 1, 1, 1]} : vector<2x4x4x128xf32> to vector<2x2x2x128xf32>
    %145 = vector.shape_cast %144 : vector<2x2x2x128xf32> to vector<8x128xf32>
    %146 = arith.truncf %145 : vector<8x128xf32> to vector<8x128xbf16>
    %c0_101 = arith.constant 0 : index
    %c640 = arith.constant 640 : index
    %147 = vector.load %arg22[%c0_101, %c640] : memref<8x1152xbf16, #tpu.memory_space<vmem>>, vector<8x128xbf16>
    tpu.vector_store %arg22[%c0_101, %c640], %146 {strides = array<i32>} : memref<8x1152xbf16, #tpu.memory_space<vmem>>, vector<8x128xbf16>,
    %148 = vector.extract_strided_slice %123 {offsets = [0, 2, 0, 0], sizes = [2, 2, 2, 128], strides = [1, 1, 1, 1]} : vector<2x4x4x128xf32> to vector<2x2x2x128xf32>
    %149 = vector.shape_cast %148 : vector<2x2x2x128xf32> to vector<8x128xf32>
    %150 = arith.truncf %149 : vector<8x128xf32> to vector<8x128xbf16>
    %c0_102 = arith.constant 0 : index
    %c768 = arith.constant 768 : index
    %151 = vector.load %arg22[%c0_102, %c768] : memref<8x1152xbf16, #tpu.memory_space<vmem>>, vector<8x128xbf16>
    tpu.vector_store %arg22[%c0_102, %c768], %150 {strides = array<i32>} : memref<8x1152xbf16, #tpu.memory_space<vmem>>, vector<8x128xbf16>,
    %152 = vector.extract_strided_slice %123 {offsets = [0, 2, 1, 0], sizes = [2, 2, 2, 128], strides = [1, 1, 1, 1]} : vector<2x4x4x128xf32> to vector<2x2x2x128xf32>
    %153 = vector.shape_cast %152 : vector<2x2x2x128xf32> to vector<8x128xf32>
    %154 = arith.truncf %153 : vector<8x128xf32> to vector<8x128xbf16>
    %c0_103 = arith.constant 0 : index
    %c896 = arith.constant 896 : index
    %155 = vector.load %arg22[%c0_103, %c896] : memref<8x1152xbf16, #tpu.memory_space<vmem>>, vector<8x128xbf16>
    tpu.vector_store %arg22[%c0_103, %c896], %154 {strides = array<i32>} : memref<8x1152xbf16, #tpu.memory_space<vmem>>, vector<8x128xbf16>,
    %156 = vector.extract_strided_slice %123 {offsets = [0, 2, 2, 0], sizes = [2, 2, 2, 128], strides = [1, 1, 1, 1]} : vector<2x4x4x128xf32> to vector<2x2x2x128xf32>
    %157 = vector.shape_cast %156 : vector<2x2x2x128xf32> to vector<8x128xf32>
    %158 = arith.truncf %157 : vector<8x128xf32> to vector<8x128xbf16>
    %c0_104 = arith.constant 0 : index
    %c1024 = arith.constant 1024 : index
    %159 = vector.load %arg22[%c0_104, %c1024] : memref<8x1152xbf16, #tpu.memory_space<vmem>>, vector<8x128xbf16>
    tpu.vector_store %arg22[%c0_104, %c1024], %158 {strides = array<i32>} : memref<8x1152xbf16, #tpu.memory_space<vmem>>, vector<8x128xbf16>,
    %c0_105 = arith.constant 0 : index
    %c0_106 = arith.constant 0 : index
    %160 = vector.load %arg22[%c0_105, %c0_106] : memref<8x1152xbf16, #tpu.memory_space<vmem>>, vector<8x1152xbf16>
    %c0_107 = arith.constant 0 : index
    %c0_108 = arith.constant 0 : index
    %161 = vector.load %arg8[%c0_107, %c0_108] : memref<1152x256xbf16, #tpu.memory_space<vmem>>, vector<1152x256xbf16>
    %cst_109 = arith.constant dense<0.000000e+00> : vector<8x256xf32>
    %162 = tpu.matmul %160, %161, %cst_109 {dimension_numbers = #tpu.dot_dimension_numbers<[1], [0], [0], [1], [0, 0, 1, 1], [], []>} : vector<8x1152xbf16>, vector<1152x256xbf16>, vector<8x256xf32> -> vector<8x256xf32>
    %c0_110 = arith.constant 0 : index
    %c0_111 = arith.constant 0 : index
    %163 = vector.load %arg9[%c0_110, %c0_111] : memref<1x256xf32, #tpu.memory_space<vmem>>, vector<1x256xf32>
    %164 = vector.broadcast %163 : vector<1x256xf32> to vector<8x256xf32>
    %165 = arith.addf %162, %164 : vector<8x256xf32>
    %cst_112 = arith.constant 0.000000e+00 : f32
    %166 = vector.broadcast %cst_112 : f32 to vector<8x256xf32>
    %167 = arith.maximumf %165, %166 : vector<8x256xf32>
    %168 = vector.shape_cast %167 : vector<8x256xf32> to vector<4x2x256xf32>
    %cst_113 = arith.constant dense<0xFF800000> : vector<4x256xf32>
    %169 = vector.multi_reduction <maximumf>, %168, %cst_113 [1] : vector<4x2x256xf32> to vector<4x256xf32>
    %170 = vector.shape_cast %169 : vector<4x256xf32> to vector<2x2x1x256xf32>
    %cst_114 = arith.constant dense<0xFF800000> : vector<2x1x256xf32>
    %171 = vector.multi_reduction <maximumf>, %170, %cst_114 [1] : vector<2x2x1x256xf32> to vector<2x1x256xf32>
    %172 = vector.shape_cast %171 : vector<2x1x256xf32> to vector<2x1x1x256xf32>
    %173 = vector.shape_cast %172 : vector<2x1x1x256xf32> to vector<2x256xf32>
    %174 = arith.truncf %173 : vector<2x256xf32> to vector<2x256xbf16>
    %c0_115 = arith.constant 0 : index
    %c0_116 = arith.constant 0 : index
    %175 = vector.load %arg10[%c0_115, %c0_116] : memref<256x256xbf16, #tpu.memory_space<vmem>>, vector<256x256xbf16>
    %cst_117 = arith.constant dense<0.000000e+00> : vector<2x256xf32>
    %176 = tpu.matmul %174, %175, %cst_117 {dimension_numbers = #tpu.dot_dimension_numbers<[1], [0], [0], [1], [0, 0, 1, 1], [], []>} : vector<2x256xbf16>, vector<256x256xbf16>, vector<2x256xf32> -> vector<2x256xf32>
    %c0_118 = arith.constant 0 : index
    %c0_119 = arith.constant 0 : index
    %177 = vector.load %arg11[%c0_118, %c0_119] : memref<1x256xf32, #tpu.memory_space<vmem>>, vector<1x256xf32>
    %178 = vector.broadcast %177 : vector<1x256xf32> to vector<2x256xf32>
    %179 = arith.addf %176, %178 : vector<2x256xf32>
    %cst_120 = arith.constant 0.000000e+00 : f32
    %180 = vector.broadcast %cst_120 : f32 to vector<2x256xf32>
    %181 = arith.maximumf %179, %180 : vector<2x256xf32>
    %182 = arith.truncf %181 : vector<2x256xf32> to vector<2x256xbf16>
    %c0_121 = arith.constant 0 : index
    %c0_122 = arith.constant 0 : index
    %183 = vector.load %arg12[%c0_121, %c0_122] : memref<256x128xbf16, #tpu.memory_space<vmem>>, vector<256x128xbf16>
    %cst_123 = arith.constant dense<0.000000e+00> : vector<2x128xf32>
    %184 = tpu.matmul %182, %183, %cst_123 {dimension_numbers = #tpu.dot_dimension_numbers<[1], [0], [0], [1], [0, 0, 1, 1], [], []>} : vector<2x256xbf16>, vector<256x128xbf16>, vector<2x128xf32> -> vector<2x128xf32>
    %c0_124 = arith.constant 0 : index
    %c0_125 = arith.constant 0 : index
    %185 = vector.load %arg13[%c0_124, %c0_125] : memref<1x128xf32, #tpu.memory_space<vmem>>, vector<1x128xf32>
    %186 = vector.broadcast %185 : vector<1x128xf32> to vector<2x128xf32>
    %187 = arith.addf %184, %186 : vector<2x128xf32>
    %cst_126 = arith.constant 0.000000e+00 : f32
    %188 = vector.broadcast %cst_126 : f32 to vector<2x128xf32>
    %189 = arith.maximumf %187, %188 : vector<2x128xf32>
    %190 = arith.truncf %189 : vector<2x128xf32> to vector<2x128xbf16>
    %c0_127 = arith.constant 0 : index
    %c0_128 = arith.constant 0 : index
    %191 = vector.load %arg14[%c0_127, %c0_128] : memref<128x128xbf16, #tpu.memory_space<vmem>>, vector<128x128xbf16>
    %cst_129 = arith.constant dense<0.000000e+00> : vector<2x128xf32>
    %192 = tpu.matmul %190, %191, %cst_129 {dimension_numbers = #tpu.dot_dimension_numbers<[1], [0], [0], [1], [0, 0, 1, 1], [], []>} : vector<2x128xbf16>, vector<128x128xbf16>, vector<2x128xf32> -> vector<2x128xf32>
    %c0_130 = arith.constant 0 : index
    %c0_131 = arith.constant 0 : index
    %193 = vector.load %arg15[%c0_130, %c0_131] : memref<1x128xf32, #tpu.memory_space<vmem>>, vector<1x128xf32>
    %194 = vector.broadcast %193 : vector<1x128xf32> to vector<2x128xf32>
    %195 = arith.addf %192, %194 : vector<2x128xf32>
    %c0_132 = arith.constant 0 : index
    %c0_133 = arith.constant 0 : index
    %196 = vector.load %arg16[%c0_132, %c0_133] : memref<2x128xf32, #tpu.memory_space<vmem>>, vector<2x128xf32>
    tpu.vector_store %arg16[%c0_132, %c0_133], %195 {strides = array<i32>} : memref<2x128xf32, #tpu.memory_space<vmem>>, vector<2x128xf32>,
    return
  }
  func.func @transform_0(%arg0: i32) -> (i32, i32, i32) {
    %c0_i32 = arith.constant 0 : i32
    %c0_i32_0 = arith.constant 0 : i32
    %c0_i32_1 = arith.constant 0 : i32
    return %arg0, %c0_i32, %c0_i32_0 : i32, i32, i32
  }
  func.func @transform_1(%arg0: i32) -> (i32, i32) {
    %c0_i32 = arith.constant 0 : i32
    %c0_i32_0 = arith.constant 0 : i32
    %c0_i32_1 = arith.constant 0 : i32
    return %c0_i32, %c0_i32_0 : i32, i32
  }
  func.func @transform_2(%arg0: i32) -> (i32, i32) {
    %c0_i32 = arith.constant 0 : i32
    %c0_i32_0 = arith.constant 0 : i32
    %c0_i32_1 = arith.constant 0 : i32
    return %c0_i32, %c0_i32_0 : i32, i32
  }
  func.func @transform_3(%arg0: i32) -> (i32, i32) {
    %c0_i32 = arith.constant 0 : i32
    %c0_i32_0 = arith.constant 0 : i32
    %c0_i32_1 = arith.constant 0 : i32
    return %c0_i32, %c0_i32_0 : i32, i32
  }
  func.func @transform_4(%arg0: i32) -> (i32, i32) {
    %c0_i32 = arith.constant 0 : i32
    %c0_i32_0 = arith.constant 0 : i32
    %c0_i32_1 = arith.constant 0 : i32
    return %c0_i32, %c0_i32_0 : i32, i32
  }
  func.func @transform_5(%arg0: i32) -> (i32, i32) {
    %c0_i32 = arith.constant 0 : i32
    %c0_i32_0 = arith.constant 0 : i32
    %c0_i32_1 = arith.constant 0 : i32
    return %c0_i32, %c0_i32_0 : i32, i32
  }
  func.func @transform_6(%arg0: i32) -> (i32, i32) {
    %c0_i32 = arith.constant 0 : i32
    %c0_i32_0 = arith.constant 0 : i32
    %c0_i32_1 = arith.constant 0 : i32
    return %c0_i32, %c0_i32_0 : i32, i32
  }
  func.func @transform_7(%arg0: i32) -> (i32, i32) {
    %c0_i32 = arith.constant 0 : i32
    %c0_i32_0 = arith.constant 0 : i32
    %c0_i32_1 = arith.constant 0 : i32
    return %c0_i32, %c0_i32_0 : i32, i32
  }
  func.func @transform_8(%arg0: i32) -> (i32, i32) {
    %c0_i32 = arith.constant 0 : i32
    %c0_i32_0 = arith.constant 0 : i32
    %c0_i32_1 = arith.constant 0 : i32
    return %c0_i32, %c0_i32_0 : i32, i32
  }
  func.func @transform_9(%arg0: i32) -> (i32, i32) {
    %c0_i32 = arith.constant 0 : i32
    %c0_i32_0 = arith.constant 0 : i32
    %c0_i32_1 = arith.constant 0 : i32
    return %c0_i32, %c0_i32_0 : i32, i32
  }
  func.func @transform_10(%arg0: i32) -> (i32, i32) {
    %c0_i32 = arith.constant 0 : i32
    %c0_i32_0 = arith.constant 0 : i32
    %c0_i32_1 = arith.constant 0 : i32
    return %c0_i32, %c0_i32_0 : i32, i32
  }
  func.func @transform_11(%arg0: i32) -> (i32, i32) {
    %c0_i32 = arith.constant 0 : i32
    %c0_i32_0 = arith.constant 0 : i32
    %c0_i32_1 = arith.constant 0 : i32
    return %c0_i32, %c0_i32_0 : i32, i32
  }
  func.func @transform_12(%arg0: i32) -> (i32, i32) {
    %c0_i32 = arith.constant 0 : i32
    %c0_i32_0 = arith.constant 0 : i32
    %c0_i32_1 = arith.constant 0 : i32
    return %c0_i32, %c0_i32_0 : i32, i32
  }
  func.func @transform_13(%arg0: i32) -> (i32, i32) {
    %c0_i32 = arith.constant 0 : i32
    %c0_i32_0 = arith.constant 0 : i32
    %c0_i32_1 = arith.constant 0 : i32
    return %c0_i32, %c0_i32_0 : i32, i32
  }
  func.func @transform_14(%arg0: i32) -> (i32, i32) {
    %c0_i32 = arith.constant 0 : i32
    %c0_i32_0 = arith.constant 0 : i32
    %c0_i32_1 = arith.constant 0 : i32
    return %c0_i32, %c0_i32_0 : i32, i32
  }
  func.func @transform_15(%arg0: i32) -> (i32, i32) {
    %c0_i32 = arith.constant 0 : i32
    %c0_i32_0 = arith.constant 0 : i32
    return %arg0, %c0_i32 : i32, i32
  }
}

</mosaic_0001>

<llo_original>
// kernel: cnn_forward.1
$region0: #{cnn_forward.1}
  #allocation0 [shape = 'u32[]', space=smem, size = 0x4, offset = 0x4, fixed_abs, tag = 'smem constant byte address 0x4 - core index']
  #allocation1 [shape = 'u32[72,128]{1,0:T(1,128)}', space=vmem, size = 0x9000, scoped, tag = 'internal scratch']
  #allocation2 [shape = 'f32[2,10,10,32]{3,2,1,0:T(8,128)}', space=vmem, size = 0x28000, scoped, tag = 'scratch operand']
  #allocation3 [shape = 'f32[2,6,6,64]{3,2,1,0:T(8,128)}', space=vmem, size = 0xc000, scoped, tag = 'scratch operand']
  #allocation4 [shape = 'f32[2,4,4,128]{3,2,1,0:T(4,128)}', space=vmem, size = 0x4000, scoped, tag = 'scratch operand']
  #allocation5 [shape = 'bf16[128,288]{1,0:T(8,128)(2,1)}', space=vmem, size = 0x18000, scoped, tag = 'scratch operand']
  #allocation6 [shape = 'bf16[32,576]{1,0:T(8,128)(2,1)}', space=vmem, size = 0xa000, scoped, tag = 'scratch operand']
  #allocation7 [shape = 'bf16[8,1152]{1,0:T(8,128)(2,1)}', space=vmem, size = 0x4800, scoped, tag = 'scratch operand']
  %s0 = inlined_call_operand.vmem [shape: bf16[2,256,9], index: 0, kind: input, shape index: {}]
  %s1 = inlined_call_operand.vmem [shape: bf16[9,32], index: 1, kind: input, shape index: {}]
  %s2 = inlined_call_operand.vmem [shape: f32[1,32], index: 2, kind: input, shape index: {}]
  %s3 = inlined_call_operand.vmem [shape: bf16[288,64], index: 3, kind: input, shape index: {}]
  %s4 = inlined_call_operand.vmem [shape: f32[1,64], index: 4, kind: input, shape index: {}]
  %s5 = inlined_call_operand.vmem [shape: bf16[576,128], index: 5, kind: input, shape index: {}]
  %s6 = inlined_call_operand.vmem [shape: f32[1,128], index: 6, kind: input, shape index: {}]
  %s7 = inlined_call_operand.vmem [shape: bf16[1152,256], index: 7, kind: input, shape index: {}]
  %s8 = inlined_call_operand.vmem [shape: f32[1,256], index: 8, kind: input, shape index: {}]
  %s9 = inlined_call_operand.vmem [shape: bf16[256,256], index: 9, kind: input, shape index: {}]
  %s10 = inlined_call_operand.vmem [shape: f32[1,256], index: 10, kind: input, shape index: {}]
  %s11 = inlined_call_operand.vmem [shape: bf16[256,128], index: 11, kind: input, shape index: {}]
  %s12 = inlined_call_operand.vmem [shape: f32[1,128], index: 12, kind: input, shape index: {}]
  %s13 = inlined_call_operand.vmem [shape: bf16[128,128], index: 13, kind: input, shape index: {}]
  %s14 = inlined_call_operand.vmem [shape: f32[1,128], index: 14, kind: input, shape index: {}]
  %s15 = inlined_call_operand.hbm [shape: f32[2,128], index: 15, kind: output, shape index: {}]
  %s16 = sld [smem:[#allocation0]]
  $region70: #{cnn_forward.1} parent=0
    _
  %s18 = ssub.s32 1, %s16
  %s19 = scalar_select 0, %s18, %s16
  $region1: #{cnn_forward.1} parent=0
    #allocation8 [shape = 'u8[1024]{0}', space=vmem, size = 0x400, scoped, tag = 'output window, operand 0, single buffered']
    #allocation9 [shape = 's32[1]{0}', space=sflag, size = 0x4, scoped, tag = 'scoped memory for cnn_forward.1']
    %20 = vsyncpa [#allocation9], 0
    // Predicated region
    $region2: #{cnn_forward.1} parent=1 // pred_check
      _
    $region3: #{cnn_forward.1} parent=1 // pred_check_branch
      %22 = sbr.rel (0) target = $region5
    $region4: #{cnn_forward.1} parent=1 // pred_region
      _
    $region5: #{cnn_forward.1} parent=1 // pred_fallthru
      _
    // Predicated region
    $region6: #{cnn_forward.1} parent=1 // pred_check
      _
    $region7: #{cnn_forward.1} parent=1 // pred_check_branch
      %24 = sbr.rel (0) target = $region9
    $region8: #{cnn_forward.1} parent=1 // pred_region
      _
    $region9: #{cnn_forward.1} parent=1 // pred_fallthru
      _
    // Predicated region
    $region10: #{cnn_forward.1} parent=1 // pred_check
      _
    $region11: #{cnn_forward.1} parent=1 // pred_check_branch
      %26 = sbr.rel (0) target = $region13
    $region12: #{cnn_forward.1} parent=1 // pred_region
      _
    $region13: #{cnn_forward.1} parent=1 // pred_fallthru
      _
    // Predicated region
    $region14: #{cnn_forward.1} parent=1 // pred_check
      _
    $region15: #{cnn_forward.1} parent=1 // pred_check_branch
      %28 = sbr.rel (0) target = $region17
    $region16: #{cnn_forward.1} parent=1 // pred_region
      _
    $region17: #{cnn_forward.1} parent=1 // pred_fallthru
      _
    // Predicated region
    $region18: #{cnn_forward.1} parent=1 // pred_check
      _
    $region19: #{cnn_forward.1} parent=1 // pred_check_branch
      %30 = sbr.rel (0) target = $region21
    $region20: #{cnn_forward.1} parent=1 // pred_region
      _
    $region21: #{cnn_forward.1} parent=1 // pred_fallthru
      _
    // Predicated region
    $region22: #{cnn_forward.1} parent=1 // pred_check
      _
    $region23: #{cnn_forward.1} parent=1 // pred_check_branch
      %32 = sbr.rel (0) target = $region25
    $region24: #{cnn_forward.1} parent=1 // pred_region
      _
    $region25: #{cnn_forward.1} parent=1 // pred_fallthru
      _
    // Predicated region
    $region26: #{cnn_forward.1} parent=1 // pred_check
      _
    $region27: #{cnn_forward.1} parent=1 // pred_check_branch
      %34 = sbr.rel (0) target = $region29
    $region28: #{cnn_forward.1} parent=1 // pred_region
      _
    $region29: #{cnn_forward.1} parent=1 // pred_fallthru
      _
    // Predicated region
    $region30: #{cnn_forward.1} parent=1 // pred_check
      _
    $region31: #{cnn_forward.1} parent=1 // pred_check_branch
      %36 = sbr.rel (0) target = $region33
    $region32: #{cnn_forward.1} parent=1 // pred_region
      _
    $region33: #{cnn_forward.1} parent=1 // pred_fallthru
      _
    // Predicated region
    $region34: #{cnn_forward.1} parent=1 // pred_check
      _
    $region35: #{cnn_forward.1} parent=1 // pred_check_branch
      %38 = sbr.rel (0) target = $region37
    $region36: #{cnn_forward.1} parent=1 // pred_region
      _
    $region37: #{cnn_forward.1} parent=1 // pred_fallthru
      _
    // Predicated region
    $region38: #{cnn_forward.1} parent=1 // pred_check
      _
    $region39: #{cnn_forward.1} parent=1 // pred_check_branch
      %40 = sbr.rel (0) target = $region41
    $region40: #{cnn_forward.1} parent=1 // pred_region
      _
    $region41: #{cnn_forward.1} parent=1 // pred_fallthru
      _
    // Predicated region
    $region42: #{cnn_forward.1} parent=1 // pred_check
      _
    $region43: #{cnn_forward.1} parent=1 // pred_check_branch
      %42 = sbr.rel (0) target = $region45
    $region44: #{cnn_forward.1} parent=1 // pred_region
      _
    $region45: #{cnn_forward.1} parent=1 // pred_fallthru
      _
    // Predicated region
    $region46: #{cnn_forward.1} parent=1 // pred_check
      _
    $region47: #{cnn_forward.1} parent=1 // pred_check_branch
      %44 = sbr.rel (0) target = $region49
    $region48: #{cnn_forward.1} parent=1 // pred_region
      _
    $region49: #{cnn_forward.1} parent=1 // pred_fallthru
      _
    // Predicated region
    $region50: #{cnn_forward.1} parent=1 // pred_check
      _
    $region51: #{cnn_forward.1} parent=1 // pred_check_branch
      %46 = sbr.rel (0) target = $region53
    $region52: #{cnn_forward.1} parent=1 // pred_region
      _
    $region53: #{cnn_forward.1} parent=1 // pred_fallthru
      _
    // Predicated region
    $region54: #{cnn_forward.1} parent=1 // pred_check
      _
    $region55: #{cnn_forward.1} parent=1 // pred_check_branch
      %48 = sbr.rel (0) target = $region57
    $region56: #{cnn_forward.1} parent=1 // pred_region
      _
    $region57: #{cnn_forward.1} parent=1 // pred_fallthru
      _
    // Predicated region
    $region58: #{cnn_forward.1} parent=1 // pred_check
      _
    $region59: #{cnn_forward.1} parent=1 // pred_check_branch
      %50 = sbr.rel (0) target = $region61
    $region60: #{cnn_forward.1} parent=1 // pred_region
      _
    $region61: #{cnn_forward.1} parent=1 // pred_fallthru
      _
    %v52 = vld [vmem:[%s0] sm:$0xf]
    %v53 = vld [vmem:[%s0 + $0x4] sm:$0xf]
    %v54 = vld [vmem:[%s0 + $0x8] sm:$0xf]
    %v55 = vld [vmem:[%s0 + $0xc] sm:$0xf]
    %v56 = vld [vmem:[%s0 + $0x10] sm:$0xf]
    %v57 = vld [vmem:[%s0 + $0x14] sm:$0xf]
    %v58 = vld [vmem:[%s0 + $0x18] sm:$0xf]
    %v59 = vld [vmem:[%s0 + $0x1c] sm:$0xf]
    %v60 = vld [vmem:[%s0 + $0x20] sm:$0xf]
    %v61 = vld [vmem:[%s0 + $0x24] sm:$0xf]
    %v62 = vld [vmem:[%s0 + $0x28] sm:$0xf]
    %v63 = vld [vmem:[%s0 + $0x2c] sm:$0xf]
    %v64 = vld [vmem:[%s0 + $0x30] sm:$0xf]
    %v65 = vld [vmem:[%s0 + $0x34] sm:$0xf]
    %v66 = vld [vmem:[%s0 + $0x38] sm:$0xf]
    %v67 = vld [vmem:[%s0 + $0x3c] sm:$0xf]
    %v68 = vld [vmem:[%s0 + $0x40] sm:$0xf]
    %v69 = vld [vmem:[%s0 + $0x44] sm:$0xf]
    %v70 = vld [vmem:[%s0 + $0x48] sm:$0xf]
    %v71 = vld [vmem:[%s0 + $0x4c] sm:$0xf]
    %v72 = vld [vmem:[%s0 + $0x50] sm:$0xf]
    %v73 = vld [vmem:[%s0 + $0x54] sm:$0xf]
    %v74 = vld [vmem:[%s0 + $0x58] sm:$0xf]
    %v75 = vld [vmem:[%s0 + $0x5c] sm:$0xf]
    %v76 = vld [vmem:[%s0 + $0x60] sm:$0xf]
    %v77 = vld [vmem:[%s0 + $0x64] sm:$0xf]
    %v78 = vld [vmem:[%s0 + $0x68] sm:$0xf]
    %v79 = vld [vmem:[%s0 + $0x6c] sm:$0xf]
    %v80 = vld [vmem:[%s0 + $0x70] sm:$0xf]
    %v81 = vld [vmem:[%s0 + $0x74] sm:$0xf]
    %v82 = vld [vmem:[%s0 + $0x78] sm:$0xf]
    %v83 = vld [vmem:[%s0 + $0x7c] sm:$0xf]
    %v84 = vld [vmem:[%s0 + $0x80] sm:$0xf]
    %v85 = vld [vmem:[%s0 + $0x84] sm:$0xf]
    %v86 = vld [vmem:[%s0 + $0x88] sm:$0xf]
    %v87 = vld [vmem:[%s0 + $0x8c] sm:$0xf]
    %v88 = vld [vmem:[%s0 + $0x90] sm:$0xf]
    %v89 = vld [vmem:[%s0 + $0x94] sm:$0xf]
    %v90 = vld [vmem:[%s0 + $0x98] sm:$0xf]
    %v91 = vld [vmem:[%s0 + $0x9c] sm:$0xf]
    %v92 = vld [vmem:[%s0 + $0xa0] sm:$0xf]
    %v93 = vld [vmem:[%s0 + $0xa4] sm:$0xf]
    %v94 = vld [vmem:[%s0 + $0xa8] sm:$0xf]
    %v95 = vld [vmem:[%s0 + $0xac] sm:$0xf]
    %v96 = vld [vmem:[%s0 + $0xb0] sm:$0xf]
    %v97 = vld [vmem:[%s0 + $0xb4] sm:$0xf]
    %v98 = vld [vmem:[%s0 + $0xb8] sm:$0xf]
    %v99 = vld [vmem:[%s0 + $0xbc] sm:$0xf]
    %v100 = vld [vmem:[%s0 + $0xc0] sm:$0xf]
    %v101 = vld [vmem:[%s0 + $0xc4] sm:$0xf]
    %v102 = vld [vmem:[%s0 + $0xc8] sm:$0xf]
    %v103 = vld [vmem:[%s0 + $0xcc] sm:$0xf]
    %v104 = vld [vmem:[%s0 + $0xd0] sm:$0xf]
    %v105 = vld [vmem:[%s0 + $0xd4] sm:$0xf]
    %v106 = vld [vmem:[%s0 + $0xd8] sm:$0xf]
    %v107 = vld [vmem:[%s0 + $0xdc] sm:$0xf]
    %v108 = vld [vmem:[%s0 + $0xe0] sm:$0xf]
    %v109 = vld [vmem:[%s0 + $0xe4] sm:$0xf]
    %v110 = vld [vmem:[%s0 + $0xe8] sm:$0xf]
    %v111 = vld [vmem:[%s0 + $0xec] sm:$0xf]
    %v112 = vld [vmem:[%s0 + $0xf0] sm:$0xf]
    %v113 = vld [vmem:[%s0 + $0xf4] sm:$0xf]
    %v114 = vld [vmem:[%s0 + $0xf8] sm:$0xf]
    %v115 = vld [vmem:[%s0 + $0xfc] sm:$0xf]
    %v116 = vld [vmem:[%s1] sm:$0xf]
    %v117 = vld [vmem:[%s1 + $0x4] sm:$0x1]
    %v118 = vld [vmem:[%s2] sm:$0x1]
    %v120 = vperm.slane %v118, 0
    %v186 = vunpack.c.l.b16 %v52
    %v187 = vunpack.c.l.b16 %v53
    %v188 = vunpack.c.l.b16 %v54
    %v189 = vunpack.c.l.b16 %v55
    %v190 = vunpack.c.l.b16 %v56
    %v191 = vunpack.c.l.b16 %v57
    %v192 = vunpack.c.l.b16 %v58
    %v193 = vunpack.c.l.b16 %v59
    %v194 = vunpack.c.l.b16 %v60
    %v195 = vunpack.c.l.b16 %v61
    %v196 = vunpack.c.l.b16 %v62
    %v197 = vunpack.c.l.b16 %v63
    %v198 = vunpack.c.l.b16 %v64
    %v199 = vunpack.c.l.b16 %v65
    %v200 = vunpack.c.l.b16 %v66
    %v201 = vunpack.c.l.b16 %v67
    %v202 = vunpack.c.l.b16 %v68
    %v203 = vunpack.c.l.b16 %v69
    %v204 = vunpack.c.l.b16 %v70
    %v205 = vunpack.c.l.b16 %v71
    %v206 = vunpack.c.l.b16 %v72
    %v207 = vunpack.c.l.b16 %v73
    %v208 = vunpack.c.l.b16 %v74
    %v209 = vunpack.c.l.b16 %v75
    %v210 = vunpack.c.l.b16 %v76
    %v211 = vunpack.c.l.b16 %v77
    %v212 = vunpack.c.l.b16 %v78
    %v213 = vunpack.c.l.b16 %v79
    %v214 = vunpack.c.l.b16 %v80
    %v215 = vunpack.c.l.b16 %v81
    %v216 = vunpack.c.l.b16 %v82
    %v217 = vunpack.c.l.b16 %v83
    %v218 = vunpack.c.l.b16 %v84
    %v219 = vunpack.c.l.b16 %v85
    %v220 = vunpack.c.l.b16 %v86
    %v221 = vunpack.c.l.b16 %v87
    %v222 = vunpack.c.l.b16 %v88
    %v223 = vunpack.c.l.b16 %v89
    %v224 = vunpack.c.l.b16 %v90
    %v225 = vunpack.c.l.b16 %v91
    %v226 = vunpack.c.l.b16 %v92
    %v227 = vunpack.c.l.b16 %v93
    %v228 = vunpack.c.l.b16 %v94
    %v229 = vunpack.c.l.b16 %v95
    %v230 = vunpack.c.l.b16 %v96
    %v231 = vunpack.c.l.b16 %v97
    %v232 = vunpack.c.l.b16 %v98
    %v233 = vunpack.c.l.b16 %v99
    %v234 = vunpack.c.l.b16 %v100
    %v235 = vunpack.c.l.b16 %v101
    %v236 = vunpack.c.l.b16 %v102
    %v237 = vunpack.c.l.b16 %v103
    %v238 = vunpack.c.l.b16 %v104
    %v239 = vunpack.c.l.b16 %v105
    %v240 = vunpack.c.l.b16 %v106
    %v241 = vunpack.c.l.b16 %v107
    %v242 = vunpack.c.l.b16 %v108
    %v243 = vunpack.c.l.b16 %v109
    %v244 = vunpack.c.l.b16 %v110
    %v245 = vunpack.c.l.b16 %v111
    %v246 = vunpack.c.l.b16 %v112
    %v247 = vunpack.c.l.b16 %v113
    %v248 = vunpack.c.l.b16 %v114
    %v249 = vunpack.c.l.b16 %v115
    %v250 = vpack.c.b16 %v187, %v186
    %v251 = vpack.c.b16 %v189, %v188
    %v252 = vpack.c.b16 %v191, %v190
    %v253 = vpack.c.b16 %v193, %v192
    %v254 = vpack.c.b16 %v195, %v194
    %v255 = vpack.c.b16 %v197, %v196
    %v256 = vpack.c.b16 %v199, %v198
    %v257 = vpack.c.b16 %v201, %v200
    %v258 = vpack.c.b16 %v203, %v202
    %v259 = vpack.c.b16 %v205, %v204
    %v260 = vpack.c.b16 %v207, %v206
    %v261 = vpack.c.b16 %v209, %v208
    %v262 = vpack.c.b16 %v211, %v210
    %v263 = vpack.c.b16 %v213, %v212
    %v264 = vpack.c.b16 %v215, %v214
    %v265 = vpack.c.b16 %v217, %v216
    %v266 = vpack.c.b16 %v219, %v218
    %v267 = vpack.c.b16 %v221, %v220
    %v268 = vpack.c.b16 %v223, %v222
    %v269 = vpack.c.b16 %v225, %v224
    %v270 = vpack.c.b16 %v227, %v226
    %v271 = vpack.c.b16 %v229, %v228
    %v272 = vpack.c.b16 %v231, %v230
    %v273 = vpack.c.b16 %v233, %v232
    %v274 = vpack.c.b16 %v235, %v234
    %v275 = vpack.c.b16 %v237, %v236
    %v276 = vpack.c.b16 %v239, %v238
    %v277 = vpack.c.b16 %v241, %v240
    %v278 = vpack.c.b16 %v243, %v242
    %v279 = vpack.c.b16 %v245, %v244
    %v280 = vpack.c.b16 %v247, %v246
    %v281 = vpack.c.b16 %v249, %v248
    %v284 = vunpack.c.l.b16 %v116
    %v285 = vunpack.c.l.b16 %v117
    %v286 = vpack.c.b16 %v285, %v284
    %vm287 = vcmask 72704
    %v289 = vsel %vm287, %v250, 0
    %v292 = vsel %vm287, %v251, 0
    %v295 = vsel %vm287, %v252, 0
    %v298 = vsel %vm287, %v253, 0
    %v301 = vsel %vm287, %v254, 0
    %v304 = vsel %vm287, %v255, 0
    %v307 = vsel %vm287, %v256, 0
    %v310 = vsel %vm287, %v257, 0
    %v313 = vsel %vm287, %v258, 0
    %v316 = vsel %vm287, %v259, 0
    %v319 = vsel %vm287, %v260, 0
    %v322 = vsel %vm287, %v261, 0
    %v325 = vsel %vm287, %v262, 0
    %v328 = vsel %vm287, %v263, 0
    %v331 = vsel %vm287, %v264, 0
    %v334 = vsel %vm287, %v265, 0
    %v337 = vsel %vm287, %v266, 0
    %v340 = vsel %vm287, %v267, 0
    %v343 = vsel %vm287, %v268, 0
    %v346 = vsel %vm287, %v269, 0
    %v349 = vsel %vm287, %v270, 0
    %v352 = vsel %vm287, %v271, 0
    %v355 = vsel %vm287, %v272, 0
    %v358 = vsel %vm287, %v273, 0
    %v361 = vsel %vm287, %v274, 0
    %v364 = vsel %vm287, %v275, 0
    %v367 = vsel %vm287, %v276, 0
    %v370 = vsel %vm287, %v277, 0
    %v373 = vsel %vm287, %v278, 0
    %v376 = vsel %vm287, %v279, 0
    %v379 = vsel %vm287, %v280, 0
    %v382 = vsel %vm287, %v281, 0
    %vm384 = vcmask 1043456
    %vm385 = vcmask 1044480
    %v386 = vsel %vm384, 4294967295, 65535
    %v387 = vsel %vm385, %v386, 0
    %v389 = vand.u32 %v286, %v387
    %391 = vmatpush.bf16.msra.mxu0 0
    %392 = vmatpush.bf16.msra.mxu0 0
    %393 = vmatpush.bf16.msra.mxu0 0
    %394 = vmatpush.bf16.msra.mxu0 0
    %395 = vmatpush.bf16.msra.mxu0 0
    %396 = vmatpush.bf16.msra.mxu0 0
    %397 = vmatpush.bf16.msra.mxu0 0
    %398 = vmatpush.bf16.msra.mxu0 %v389
    %399 = vmatmul.bf16.gmra.mxu0 %v289
    %v400 = vpop.f32.mrf.mxu0
    %v401 = vadd.f32 %v120, %v400
    %v402 = vpop.f32.mrf.mxu0
    %v403 = vadd.f32 %v120, %v402
    %404 = vmatmul.bf16.gmra.mxu0 %v292
    %v405 = vpop.f32.mrf.mxu0
    %v406 = vadd.f32 %v120, %v405
    %v407 = vpop.f32.mrf.mxu0
    %v408 = vadd.f32 %v120, %v407
    %409 = vmatmul.bf16.gmra.mxu0 %v295
    %v410 = vpop.f32.mrf.mxu0
    %v411 = vadd.f32 %v120, %v410
    %v412 = vpop.f32.mrf.mxu0
    %v413 = vadd.f32 %v120, %v412
    %414 = vmatmul.bf16.gmra.mxu0 %v298
    %v415 = vpop.f32.mrf.mxu0
    %v416 = vadd.f32 %v120, %v415
    %v417 = vpop.f32.mrf.mxu0
    %v418 = vadd.f32 %v120, %v417
    %419 = vmatmul.bf16.gmra.mxu0 %v301
    %v420 = vpop.f32.mrf.mxu0
    %v421 = vadd.f32 %v120, %v420
    %v422 = vpop.f32.mrf.mxu0
    %v423 = vadd.f32 %v120, %v422
    %424 = vmatmul.bf16.gmra.mxu0 %v304
    %v425 = vpop.f32.mrf.mxu0
    %v426 = vadd.f32 %v120, %v425
    %v427 = vpop.f32.mrf.mxu0
    %v428 = vadd.f32 %v120, %v427
    %429 = vmatmul.bf16.gmra.mxu0 %v307
    %v430 = vpop.f32.mrf.mxu0
    %v431 = vadd.f32 %v120, %v430
    %v432 = vpop.f32.mrf.mxu0
    %v433 = vadd.f32 %v120, %v432
    %434 = vmatmul.bf16.gmra.mxu0 %v310
    %v435 = vpop.f32.mrf.mxu0
    %v436 = vadd.f32 %v120, %v435
    %v437 = vpop.f32.mrf.mxu0
    %v438 = vadd.f32 %v120, %v437
    %439 = vmatmul.bf16.gmra.mxu0 %v313
    %v440 = vpop.f32.mrf.mxu0
    %v441 = vadd.f32 %v120, %v440
    %v442 = vpop.f32.mrf.mxu0
    %v443 = vadd.f32 %v120, %v442
    %444 = vmatmul.bf16.gmra.mxu0 %v316
    %v445 = vpop.f32.mrf.mxu0
    %v446 = vadd.f32 %v120, %v445
    %v447 = vpop.f32.mrf.mxu0
    %v448 = vadd.f32 %v120, %v447
    %449 = vmatmul.bf16.gmra.mxu0 %v319
    %v450 = vpop.f32.mrf.mxu0
    %v451 = vadd.f32 %v120, %v450
    %v452 = vpop.f32.mrf.mxu0
    %v453 = vadd.f32 %v120, %v452
    %454 = vmatmul.bf16.gmra.mxu0 %v322
    %v455 = vpop.f32.mrf.mxu0
    %v456 = vadd.f32 %v120, %v455
    %v457 = vpop.f32.mrf.mxu0
    %v458 = vadd.f32 %v120, %v457
    %459 = vmatmul.bf16.gmra.mxu0 %v325
    %v460 = vpop.f32.mrf.mxu0
    %v461 = vadd.f32 %v120, %v460
    %v462 = vpop.f32.mrf.mxu0
    %v463 = vadd.f32 %v120, %v462
    %464 = vmatmul.bf16.gmra.mxu0 %v328
    %v465 = vpop.f32.mrf.mxu0
    %v466 = vadd.f32 %v120, %v465
    %v467 = vpop.f32.mrf.mxu0
    %v468 = vadd.f32 %v120, %v467
    %469 = vmatmul.bf16.gmra.mxu0 %v331
    %v470 = vpop.f32.mrf.mxu0
    %v471 = vadd.f32 %v120, %v470
    %v472 = vpop.f32.mrf.mxu0
    %v473 = vadd.f32 %v120, %v472
    %474 = vmatmul.bf16.gmra.mxu0 %v334
    %v475 = vpop.f32.mrf.mxu0
    %v476 = vadd.f32 %v120, %v475
    %v477 = vpop.f32.mrf.mxu0
    %v478 = vadd.f32 %v120, %v477
    %479 = vmatmul.bf16.gmra.mxu0 %v337
    %v480 = vpop.f32.mrf.mxu0
    %v481 = vadd.f32 %v120, %v480
    %v482 = vpop.f32.mrf.mxu0
    %v483 = vadd.f32 %v120, %v482
    %484 = vmatmul.bf16.gmra.mxu0 %v340
    %v485 = vpop.f32.mrf.mxu0
    %v486 = vadd.f32 %v120, %v485
    %v487 = vpop.f32.mrf.mxu0
    %v488 = vadd.f32 %v120, %v487
    %489 = vmatmul.bf16.gmra.mxu0 %v343
    %v490 = vpop.f32.mrf.mxu0
    %v491 = vadd.f32 %v120, %v490
    %v492 = vpop.f32.mrf.mxu0
    %v493 = vadd.f32 %v120, %v492
    %494 = vmatmul.bf16.gmra.mxu0 %v346
    %v495 = vpop.f32.mrf.mxu0
    %v496 = vadd.f32 %v120, %v495
    %v497 = vpop.f32.mrf.mxu0
    %v498 = vadd.f32 %v120, %v497
    %499 = vmatmul.bf16.gmra.mxu0 %v349
    %v500 = vpop.f32.mrf.mxu0
    %v501 = vadd.f32 %v120, %v500
    %v502 = vpop.f32.mrf.mxu0
    %v503 = vadd.f32 %v120, %v502
    %504 = vmatmul.bf16.gmra.mxu0 %v352
    %v505 = vpop.f32.mrf.mxu0
    %v506 = vadd.f32 %v120, %v505
    %v507 = vpop.f32.mrf.mxu0
    %v508 = vadd.f32 %v120, %v507
    %509 = vmatmul.bf16.gmra.mxu0 %v355
    %v510 = vpop.f32.mrf.mxu0
    %v511 = vadd.f32 %v120, %v510
    %v512 = vpop.f32.mrf.mxu0
    %v513 = vadd.f32 %v120, %v512
    %514 = vmatmul.bf16.gmra.mxu0 %v358
    %v515 = vpop.f32.mrf.mxu0
    %v516 = vadd.f32 %v120, %v515
    %v517 = vpop.f32.mrf.mxu0
    %v518 = vadd.f32 %v120, %v517
    %519 = vmatmul.bf16.gmra.mxu0 %v361
    %v520 = vpop.f32.mrf.mxu0
    %v521 = vadd.f32 %v120, %v520
    %v522 = vpop.f32.mrf.mxu0
    %v523 = vadd.f32 %v120, %v522
    %524 = vmatmul.bf16.gmra.mxu0 %v364
    %v525 = vpop.f32.mrf.mxu0
    %v526 = vadd.f32 %v120, %v525
    %v527 = vpop.f32.mrf.mxu0
    %v528 = vadd.f32 %v120, %v527
    %529 = vmatmul.bf16.gmra.mxu0 %v367
    %v530 = vpop.f32.mrf.mxu0
    %v531 = vadd.f32 %v120, %v530
    %v532 = vpop.f32.mrf.mxu0
    %v533 = vadd.f32 %v120, %v532
    %534 = vmatmul.bf16.gmra.mxu0 %v370
    %v535 = vpop.f32.mrf.mxu0
    %v536 = vadd.f32 %v120, %v535
    %v537 = vpop.f32.mrf.mxu0
    %v538 = vadd.f32 %v120, %v537
    %539 = vmatmul.bf16.gmra.mxu0 %v373
    %v540 = vpop.f32.mrf.mxu0
    %v541 = vadd.f32 %v120, %v540
    %v542 = vpop.f32.mrf.mxu0
    %v543 = vadd.f32 %v120, %v542
    %544 = vmatmul.bf16.gmra.mxu0 %v376
    %v545 = vpop.f32.mrf.mxu0
    %v546 = vadd.f32 %v120, %v545
    %v547 = vpop.f32.mrf.mxu0
    %v548 = vadd.f32 %v120, %v547
    %549 = vmatmul.bf16.gmra.mxu0 %v379
    %v550 = vpop.f32.mrf.mxu0
    %v551 = vadd.f32 %v120, %v550
    %v552 = vpop.f32.mrf.mxu0
    %v553 = vadd.f32 %v120, %v552
    %554 = vmatmul.bf16.gmra.mxu0 %v382
    %v555 = vpop.f32.mrf.mxu0
    %v556 = vadd.f32 %v120, %v555
    %v557 = vpop.f32.mrf.mxu0
    %v558 = vadd.f32 %v120, %v557
    %559 = vdwg.mxu0
    %v560 = vmax.f32 %v401, 0.0
    %v561 = vmax.f32 %v403, 0.0
    %v562 = vmax.f32 %v406, 0.0
    %v563 = vmax.f32 %v408, 0.0
    %v564 = vmax.f32 %v411, 0.0
    %v565 = vmax.f32 %v413, 0.0
    %v566 = vmax.f32 %v416, 0.0
    %v567 = vmax.f32 %v418, 0.0
    %v568 = vmax.f32 %v421, 0.0
    %v569 = vmax.f32 %v423, 0.0
    %v570 = vmax.f32 %v426, 0.0
    %v571 = vmax.f32 %v428, 0.0
    %v572 = vmax.f32 %v431, 0.0
    %v573 = vmax.f32 %v433, 0.0
    %v574 = vmax.f32 %v436, 0.0
    %v575 = vmax.f32 %v438, 0.0
    %v576 = vmax.f32 %v441, 0.0
    %v577 = vmax.f32 %v443, 0.0
    %v578 = vmax.f32 %v446, 0.0
    %v579 = vmax.f32 %v448, 0.0
    %v580 = vmax.f32 %v451, 0.0
    %v581 = vmax.f32 %v453, 0.0
    %v582 = vmax.f32 %v456, 0.0
    %v583 = vmax.f32 %v458, 0.0
    %v584 = vmax.f32 %v461, 0.0
    %v585 = vmax.f32 %v463, 0.0
    %v586 = vmax.f32 %v466, 0.0
    %v587 = vmax.f32 %v468, 0.0
    %v588 = vmax.f32 %v471, 0.0
    %v589 = vmax.f32 %v473, 0.0
    %v590 = vmax.f32 %v476, 0.0
    %v591 = vmax.f32 %v478, 0.0
    %v592 = vmax.f32 %v481, 0.0
    %v593 = vmax.f32 %v483, 0.0
    %v594 = vmax.f32 %v486, 0.0
    %v595 = vmax.f32 %v488, 0.0
    %v596 = vmax.f32 %v491, 0.0
    %v597 = vmax.f32 %v493, 0.0
    %v598 = vmax.f32 %v496, 0.0
    %v599 = vmax.f32 %v498, 0.0
    %v600 = vmax.f32 %v501, 0.0
    %v601 = vmax.f32 %v503, 0.0
    %v602 = vmax.f32 %v506, 0.0
    %v603 = vmax.f32 %v508, 0.0
    %v604 = vmax.f32 %v511, 0.0
    %v605 = vmax.f32 %v513, 0.0
    %v606 = vmax.f32 %v516, 0.0
    %v607 = vmax.f32 %v518, 0.0
    %v608 = vmax.f32 %v521, 0.0
    %v609 = vmax.f32 %v523, 0.0
    %v610 = vmax.f32 %v526, 0.0
    %v611 = vmax.f32 %v528, 0.0
    %v612 = vmax.f32 %v531, 0.0
    %v613 = vmax.f32 %v533, 0.0
    %v614 = vmax.f32 %v536, 0.0
    %v615 = vmax.f32 %v538, 0.0
    %v616 = vmax.f32 %v541, 0.0
    %v617 = vmax.f32 %v543, 0.0
    %v618 = vmax.f32 %v546, 0.0
    %v619 = vmax.f32 %v548, 0.0
    %v620 = vmax.f32 %v551, 0.0
    %v621 = vmax.f32 %v553, 0.0
    %v622 = vmax.f32 %v556, 0.0
    %v623 = vmax.f32 %v558, 0.0
    %v688 = vrot.slane %v560, 2
    %v689 = vrot.slane %v560, 4
    %v690 = vrot.slane %v560, 6
    %v691 = vrot.slane %v561, 2
    %v692 = vrot.slane %v561, 4
    %v693 = vrot.slane %v561, 6
    %v694 = vrot.slane %v562, 2
    %v695 = vrot.slane %v562, 4
    %v696 = vrot.slane %v562, 6
    %v697 = vrot.slane %v563, 2
    %v698 = vrot.slane %v563, 4
    %v699 = vrot.slane %v563, 6
    %v700 = vrot.slane %v564, 2
    %v701 = vrot.slane %v564, 4
    %v702 = vrot.slane %v564, 6
    %v703 = vrot.slane %v565, 2
    %v704 = vrot.slane %v565, 4
    %v705 = vrot.slane %v565, 6
    %v706 = vrot.slane %v566, 2
    %v707 = vrot.slane %v566, 4
    %v708 = vrot.slane %v566, 6
    %v709 = vrot.slane %v567, 2
    %v710 = vrot.slane %v567, 4
    %v711 = vrot.slane %v567, 6
    %v712 = vrot.slane %v568, 2
    %v713 = vrot.slane %v568, 4
    %v714 = vrot.slane %v568, 6
    %v715 = vrot.slane %v569, 2
    %v716 = vrot.slane %v569, 4
    %v717 = vrot.slane %v569, 6
    %v718 = vrot.slane %v570, 2
    %v719 = vrot.slane %v570, 4
    %v720 = vrot.slane %v570, 6
    %v721 = vrot.slane %v571, 2
    %v722 = vrot.slane %v571, 4
    %v723 = vrot.slane %v571, 6
    %v724 = vrot.slane %v572, 2
    %v725 = vrot.slane %v572, 4
    %v726 = vrot.slane %v572, 6
    %v727 = vrot.slane %v573, 2
    %v728 = vrot.slane %v573, 4
    %v729 = vrot.slane %v573, 6
    %v730 = vrot.slane %v574, 2
    %v731 = vrot.slane %v574, 4
    %v732 = vrot.slane %v574, 6
    %v733 = vrot.slane %v575, 2
    %v734 = vrot.slane %v575, 4
    %v735 = vrot.slane %v575, 6
    %v736 = vrot.slane %v576, 2
    %v737 = vrot.slane %v576, 4
    %v738 = vrot.slane %v576, 6
    %v739 = vrot.slane %v577, 2
    %v740 = vrot.slane %v577, 4
    %v741 = vrot.slane %v577, 6
    %v742 = vrot.slane %v578, 2
    %v743 = vrot.slane %v578, 4
    %v744 = vrot.slane %v578, 6
    %v745 = vrot.slane %v579, 2
    %v746 = vrot.slane %v579, 4
    %v747 = vrot.slane %v579, 6
    %v748 = vrot.slane %v580, 2
    %v749 = vrot.slane %v580, 4
    %v750 = vrot.slane %v580, 6
    %v751 = vrot.slane %v581, 2
    %v752 = vrot.slane %v581, 4
    %v753 = vrot.slane %v581, 6
    %v754 = vrot.slane %v582, 2
    %v755 = vrot.slane %v582, 4
    %v756 = vrot.slane %v582, 6
    %v757 = vrot.slane %v583, 2
    %v758 = vrot.slane %v583, 4
    %v759 = vrot.slane %v583, 6
    %v760 = vrot.slane %v584, 2
    %v761 = vrot.slane %v584, 4
    %v762 = vrot.slane %v584, 6
    %v763 = vrot.slane %v585, 2
    %v764 = vrot.slane %v585, 4
    %v765 = vrot.slane %v585, 6
    %v766 = vrot.slane %v586, 2
    %v767 = vrot.slane %v586, 4
    %v768 = vrot.slane %v586, 6
    %v769 = vrot.slane %v587, 2
    %v770 = vrot.slane %v587, 4
    %v771 = vrot.slane %v587, 6
    %v772 = vrot.slane %v588, 2
    %v773 = vrot.slane %v588, 4
    %v774 = vrot.slane %v588, 6
    %v775 = vrot.slane %v589, 2
    %v776 = vrot.slane %v589, 4
    %v777 = vrot.slane %v589, 6
    %v778 = vrot.slane %v590, 2
    %v779 = vrot.slane %v590, 4
    %v780 = vrot.slane %v590, 6
    %v781 = vrot.slane %v591, 2
    %v782 = vrot.slane %v591, 4
    %v783 = vrot.slane %v591, 6
    %v784 = vrot.slane %v592, 2
    %v785 = vrot.slane %v592, 4
    %v786 = vrot.slane %v592, 6
    %v787 = vrot.slane %v593, 2
    %v788 = vrot.slane %v593, 4
    %v789 = vrot.slane %v593, 6
    %v790 = vrot.slane %v594, 2
    %v791 = vrot.slane %v594, 4
    %v792 = vrot.slane %v594, 6
    %v793 = vrot.slane %v595, 2
    %v794 = vrot.slane %v595, 4
    %v795 = vrot.slane %v595, 6
    %v796 = vrot.slane %v596, 2
    %v797 = vrot.slane %v596, 4
    %v798 = vrot.slane %v596, 6
    %v799 = vrot.slane %v597, 2
    %v800 = vrot.slane %v597, 4
    %v801 = vrot.slane %v597, 6
    %v802 = vrot.slane %v598, 2
    %v803 = vrot.slane %v598, 4
    %v804 = vrot.slane %v598, 6
    %v805 = vrot.slane %v599, 2
    %v806 = vrot.slane %v599, 4
    %v807 = vrot.slane %v599, 6
    %v808 = vrot.slane %v600, 2
    %v809 = vrot.slane %v600, 4
    %v810 = vrot.slane %v600, 6
    %v811 = vrot.slane %v601, 2
    %v812 = vrot.slane %v601, 4
    %v813 = vrot.slane %v601, 6
    %v814 = vrot.slane %v602, 2
    %v815 = vrot.slane %v602, 4
    %v816 = vrot.slane %v602, 6
    %v817 = vrot.slane %v603, 2
    %v818 = vrot.slane %v603, 4
    %v819 = vrot.slane %v603, 6
    %v820 = vrot.slane %v604, 2
    %v821 = vrot.slane %v604, 4
    %v822 = vrot.slane %v604, 6
    %v823 = vrot.slane %v605, 2
    %v824 = vrot.slane %v605, 4
    %v825 = vrot.slane %v605, 6
    %v826 = vrot.slane %v606, 2
    %v827 = vrot.slane %v606, 4
    %v828 = vrot.slane %v606, 6
    %v829 = vrot.slane %v607, 2
    %v830 = vrot.slane %v607, 4
    %v831 = vrot.slane %v607, 6
    %v832 = vrot.slane %v608, 2
    %v833 = vrot.slane %v608, 4
    %v834 = vrot.slane %v608, 6
    %v835 = vrot.slane %v609, 2
    %v836 = vrot.slane %v609, 4
    %v837 = vrot.slane %v609, 6
    %v838 = vrot.slane %v610, 2
    %v839 = vrot.slane %v610, 4
    %v840 = vrot.slane %v610, 6
    %v841 = vrot.slane %v611, 2
    %v842 = vrot.slane %v611, 4
    %v843 = vrot.slane %v611, 6
    %v844 = vrot.slane %v612, 2
    %v845 = vrot.slane %v612, 4
    %v846 = vrot.slane %v612, 6
    %v847 = vrot.slane %v613, 2
    %v848 = vrot.slane %v613, 4
    %v849 = vrot.slane %v613, 6
    %v850 = vrot.slane %v614, 2
    %v851 = vrot.slane %v614, 4
    %v852 = vrot.slane %v614, 6
    %v853 = vrot.slane %v615, 2
    %v854 = vrot.slane %v615, 4
    %v855 = vrot.slane %v615, 6
    %v856 = vrot.slane %v616, 2
    %v857 = vrot.slane %v616, 4
    %v858 = vrot.slane %v616, 6
    %v859 = vrot.slane %v617, 2
    %v860 = vrot.slane %v617, 4
    %v861 = vrot.slane %v617, 6
    %v862 = vrot.slane %v618, 2
    %v863 = vrot.slane %v618, 4
    %v864 = vrot.slane %v618, 6
    %v865 = vrot.slane %v619, 2
    %v866 = vrot.slane %v619, 4
    %v867 = vrot.slane %v619, 6
    %v868 = vrot.slane %v620, 2
    %v869 = vrot.slane %v620, 4
    %v870 = vrot.slane %v620, 6
    %v871 = vrot.slane %v621, 2
    %v872 = vrot.slane %v621, 4
    %v873 = vrot.slane %v621, 6
    %v874 = vrot.slane %v622, 2
    %v875 = vrot.slane %v622, 4
    %v876 = vrot.slane %v622, 6
    %v877 = vrot.slane %v623, 2
    %v878 = vrot.slane %v623, 4
    %v879 = vrot.slane %v623, 6
    %vm1072 = vcmask 254976
    %v1073 = vsel %vm1072, %v560, -inf
    %v1074 = vrot.slane %v1073, 4
    %v1075 = vmax.f32 %v1073, %v1074
    %v1076 = vrot.slane %v1075, 2
    %v1077 = vmax.f32 %v1075, %v1076
    %v1078 = vrot.slane %v1077, 1
    %v1079 = vmax.f32 %v1077, %v1078
    %v1080 = vsel %vm1072, %v688, -inf
    %v1081 = vrot.slane %v1080, 4
    %v1082 = vmax.f32 %v1080, %v1081
    %v1083 = vrot.slane %v1082, 2
    %v1084 = vmax.f32 %v1082, %v1083
    %v1085 = vrot.slane %v1084, 1
    %v1086 = vmax.f32 %v1084, %v1085
    %v1087 = vsel %vm1072, %v689, -inf
    %v1088 = vrot.slane %v1087, 4
    %v1089 = vmax.f32 %v1087, %v1088
    %v1090 = vrot.slane %v1089, 2
    %v1091 = vmax.f32 %v1089, %v1090
    %v1092 = vrot.slane %v1091, 1
    %v1093 = vmax.f32 %v1091, %v1092
    %v1094 = vsel %vm1072, %v690, -inf
    %v1095 = vrot.slane %v1094, 4
    %v1096 = vmax.f32 %v1094, %v1095
    %v1097 = vrot.slane %v1096, 2
    %v1098 = vmax.f32 %v1096, %v1097
    %v1099 = vrot.slane %v1098, 1
    %v1100 = vmax.f32 %v1098, %v1099
    %v1101 = vsel %vm1072, %v561, -inf
    %v1102 = vrot.slane %v1101, 4
    %v1103 = vmax.f32 %v1101, %v1102
    %v1104 = vrot.slane %v1103, 2
    %v1105 = vmax.f32 %v1103, %v1104
    %v1106 = vrot.slane %v1105, 1
    %v1107 = vmax.f32 %v1105, %v1106
    %v1108 = vsel %vm1072, %v691, -inf
    %v1109 = vrot.slane %v1108, 4
    %v1110 = vmax.f32 %v1108, %v1109
    %v1111 = vrot.slane %v1110, 2
    %v1112 = vmax.f32 %v1110, %v1111
    %v1113 = vrot.slane %v1112, 1
    %v1114 = vmax.f32 %v1112, %v1113
    %v1115 = vsel %vm1072, %v692, -inf
    %v1116 = vrot.slane %v1115, 4
    %v1117 = vmax.f32 %v1115, %v1116
    %v1118 = vrot.slane %v1117, 2
    %v1119 = vmax.f32 %v1117, %v1118
    %v1120 = vrot.slane %v1119, 1
    %v1121 = vmax.f32 %v1119, %v1120
    %v1122 = vsel %vm1072, %v693, -inf
    %v1123 = vrot.slane %v1122, 4
    %v1124 = vmax.f32 %v1122, %v1123
    %v1125 = vrot.slane %v1124, 2
    %v1126 = vmax.f32 %v1124, %v1125
    %v1127 = vrot.slane %v1126, 1
    %v1128 = vmax.f32 %v1126, %v1127
    %v1129 = vsel %vm1072, %v562, -inf
    %v1130 = vrot.slane %v1129, 4
    %v1131 = vmax.f32 %v1129, %v1130
    %v1132 = vrot.slane %v1131, 2
    %v1133 = vmax.f32 %v1131, %v1132
    %v1134 = vrot.slane %v1133, 1
    %v1135 = vmax.f32 %v1133, %v1134
    %v1136 = vsel %vm1072, %v694, -inf
    %v1137 = vrot.slane %v1136, 4
    %v1138 = vmax.f32 %v1136, %v1137
    %v1139 = vrot.slane %v1138, 2
    %v1140 = vmax.f32 %v1138, %v1139
    %v1141 = vrot.slane %v1140, 1
    %v1142 = vmax.f32 %v1140, %v1141
    %v1143 = vsel %vm1072, %v695, -inf
    %v1144 = vrot.slane %v1143, 4
    %v1145 = vmax.f32 %v1143, %v1144
    %v1146 = vrot.slane %v1145, 2
    %v1147 = vmax.f32 %v1145, %v1146
    %v1148 = vrot.slane %v1147, 1
    %v1149 = vmax.f32 %v1147, %v1148
    %v1150 = vsel %vm1072, %v696, -inf
    %v1151 = vrot.slane %v1150, 4
    %v1152 = vmax.f32 %v1150, %v1151
    %v1153 = vrot.slane %v1152, 2
    %v1154 = vmax.f32 %v1152, %v1153
    %v1155 = vrot.slane %v1154, 1
    %v1156 = vmax.f32 %v1154, %v1155
    %v1157 = vsel %vm1072, %v563, -inf
    %v1158 = vrot.slane %v1157, 4
    %v1159 = vmax.f32 %v1157, %v1158
    %v1160 = vrot.slane %v1159, 2
    %v1161 = vmax.f32 %v1159, %v1160
    %v1162 = vrot.slane %v1161, 1
    %v1163 = vmax.f32 %v1161, %v1162
    %v1164 = vsel %vm1072, %v697, -inf
    %v1165 = vrot.slane %v1164, 4
    %v1166 = vmax.f32 %v1164, %v1165
    %v1167 = vrot.slane %v1166, 2
    %v1168 = vmax.f32 %v1166, %v1167
    %v1169 = vrot.slane %v1168, 1
    %v1170 = vmax.f32 %v1168, %v1169
    %v1171 = vsel %vm1072, %v698, -inf
    %v1172 = vrot.slane %v1171, 4
    %v1173 = vmax.f32 %v1171, %v1172
    %v1174 = vrot.slane %v1173, 2
    %v1175 = vmax.f32 %v1173, %v1174
    %v1176 = vrot.slane %v1175, 1
    %v1177 = vmax.f32 %v1175, %v1176
    %v1178 = vsel %vm1072, %v699, -inf
    %v1179 = vrot.slane %v1178, 4
    %v1180 = vmax.f32 %v1178, %v1179
    %v1181 = vrot.slane %v1180, 2
    %v1182 = vmax.f32 %v1180, %v1181
    %v1183 = vrot.slane %v1182, 1
    %v1184 = vmax.f32 %v1182, %v1183
    %v1185 = vsel %vm1072, %v564, -inf
    %v1186 = vrot.slane %v1185, 4
    %v1187 = vmax.f32 %v1185, %v1186
    %v1188 = vrot.slane %v1187, 2
    %v1189 = vmax.f32 %v1187, %v1188
    %v1190 = vrot.slane %v1189, 1
    %v1191 = vmax.f32 %v1189, %v1190
    %v1192 = vsel %vm1072, %v700, -inf
    %v1193 = vrot.slane %v1192, 4
    %v1194 = vmax.f32 %v1192, %v1193
    %v1195 = vrot.slane %v1194, 2
    %v1196 = vmax.f32 %v1194, %v1195
    %v1197 = vrot.slane %v1196, 1
    %v1198 = vmax.f32 %v1196, %v1197
    %v1199 = vsel %vm1072, %v701, -inf
    %v1200 = vrot.slane %v1199, 4
    %v1201 = vmax.f32 %v1199, %v1200
    %v1202 = vrot.slane %v1201, 2
    %v1203 = vmax.f32 %v1201, %v1202
    %v1204 = vrot.slane %v1203, 1
    %v1205 = vmax.f32 %v1203, %v1204
    %v1206 = vsel %vm1072, %v702, -inf
    %v1207 = vrot.slane %v1206, 4
    %v1208 = vmax.f32 %v1206, %v1207
    %v1209 = vrot.slane %v1208, 2
    %v1210 = vmax.f32 %v1208, %v1209
    %v1211 = vrot.slane %v1210, 1
    %v1212 = vmax.f32 %v1210, %v1211
    %v1213 = vsel %vm1072, %v565, -inf
    %v1214 = vrot.slane %v1213, 4
    %v1215 = vmax.f32 %v1213, %v1214
    %v1216 = vrot.slane %v1215, 2
    %v1217 = vmax.f32 %v1215, %v1216
    %v1218 = vrot.slane %v1217, 1
    %v1219 = vmax.f32 %v1217, %v1218
    %v1220 = vsel %vm1072, %v703, -inf
    %v1221 = vrot.slane %v1220, 4
    %v1222 = vmax.f32 %v1220, %v1221
    %v1223 = vrot.slane %v1222, 2
    %v1224 = vmax.f32 %v1222, %v1223
    %v1225 = vrot.slane %v1224, 1
    %v1226 = vmax.f32 %v1224, %v1225
    %v1227 = vsel %vm1072, %v704, -inf
    %v1228 = vrot.slane %v1227, 4
    %v1229 = vmax.f32 %v1227, %v1228
    %v1230 = vrot.slane %v1229, 2
    %v1231 = vmax.f32 %v1229, %v1230
    %v1232 = vrot.slane %v1231, 1
    %v1233 = vmax.f32 %v1231, %v1232
    %v1234 = vsel %vm1072, %v705, -inf
    %v1235 = vrot.slane %v1234, 4
    %v1236 = vmax.f32 %v1234, %v1235
    %v1237 = vrot.slane %v1236, 2
    %v1238 = vmax.f32 %v1236, %v1237
    %v1239 = vrot.slane %v1238, 1
    %v1240 = vmax.f32 %v1238, %v1239
    %v1241 = vsel %vm1072, %v566, -inf
    %v1242 = vrot.slane %v1241, 4
    %v1243 = vmax.f32 %v1241, %v1242
    %v1244 = vrot.slane %v1243, 2
    %v1245 = vmax.f32 %v1243, %v1244
    %v1246 = vrot.slane %v1245, 1
    %v1247 = vmax.f32 %v1245, %v1246
    %v1248 = vsel %vm1072, %v706, -inf
    %v1249 = vrot.slane %v1248, 4
    %v1250 = vmax.f32 %v1248, %v1249
    %v1251 = vrot.slane %v1250, 2
    %v1252 = vmax.f32 %v1250, %v1251
    %v1253 = vrot.slane %v1252, 1
    %v1254 = vmax.f32 %v1252, %v1253
    %v1255 = vsel %vm1072, %v707, -inf
    %v1256 = vrot.slane %v1255, 4
    %v1257 = vmax.f32 %v1255, %v1256
    %v1258 = vrot.slane %v1257, 2
    %v1259 = vmax.f32 %v1257, %v1258
    %v1260 = vrot.slane %v1259, 1
    %v1261 = vmax.f32 %v1259, %v1260
    %v1262 = vsel %vm1072, %v708, -inf
    %v1263 = vrot.slane %v1262, 4
    %v1264 = vmax.f32 %v1262, %v1263
    %v1265 = vrot.slane %v1264, 2
    %v1266 = vmax.f32 %v1264, %v1265
    %v1267 = vrot.slane %v1266, 1
    %v1268 = vmax.f32 %v1266, %v1267
    %v1269 = vsel %vm1072, %v567, -inf
    %v1270 = vrot.slane %v1269, 4
    %v1271 = vmax.f32 %v1269, %v1270
    %v1272 = vrot.slane %v1271, 2
    %v1273 = vmax.f32 %v1271, %v1272
    %v1274 = vrot.slane %v1273, 1
    %v1275 = vmax.f32 %v1273, %v1274
    %v1276 = vsel %vm1072, %v709, -inf
    %v1277 = vrot.slane %v1276, 4
    %v1278 = vmax.f32 %v1276, %v1277
    %v1279 = vrot.slane %v1278, 2
    %v1280 = vmax.f32 %v1278, %v1279
    %v1281 = vrot.slane %v1280, 1
    %v1282 = vmax.f32 %v1280, %v1281
    %v1283 = vsel %vm1072, %v710, -inf
    %v1284 = vrot.slane %v1283, 4
    %v1285 = vmax.f32 %v1283, %v1284
    %v1286 = vrot.slane %v1285, 2
    %v1287 = vmax.f32 %v1285, %v1286
    %v1288 = vrot.slane %v1287, 1
    %v1289 = vmax.f32 %v1287, %v1288
    %v1290 = vsel %vm1072, %v711, -inf
    %v1291 = vrot.slane %v1290, 4
    %v1292 = vmax.f32 %v1290, %v1291
    %v1293 = vrot.slane %v1292, 2
    %v1294 = vmax.f32 %v1292, %v1293
    %v1295 = vrot.slane %v1294, 1
    %v1296 = vmax.f32 %v1294, %v1295
    %v1297 = vsel %vm1072, %v568, -inf
    %v1298 = vrot.slane %v1297, 4
    %v1299 = vmax.f32 %v1297, %v1298
    %v1300 = vrot.slane %v1299, 2
    %v1301 = vmax.f32 %v1299, %v1300
    %v1302 = vrot.slane %v1301, 1
    %v1303 = vmax.f32 %v1301, %v1302
    %v1304 = vsel %vm1072, %v712, -inf
    %v1305 = vrot.slane %v1304, 4
    %v1306 = vmax.f32 %v1304, %v1305
    %v1307 = vrot.slane %v1306, 2
    %v1308 = vmax.f32 %v1306, %v1307
    %v1309 = vrot.slane %v1308, 1
    %v1310 = vmax.f32 %v1308, %v1309
    %v1311 = vsel %vm1072, %v713, -inf
    %v1312 = vrot.slane %v1311, 4
    %v1313 = vmax.f32 %v1311, %v1312
    %v1314 = vrot.slane %v1313, 2
    %v1315 = vmax.f32 %v1313, %v1314
    %v1316 = vrot.slane %v1315, 1
    %v1317 = vmax.f32 %v1315, %v1316
    %v1318 = vsel %vm1072, %v714, -inf
    %v1319 = vrot.slane %v1318, 4
    %v1320 = vmax.f32 %v1318, %v1319
    %v1321 = vrot.slane %v1320, 2
    %v1322 = vmax.f32 %v1320, %v1321
    %v1323 = vrot.slane %v1322, 1
    %v1324 = vmax.f32 %v1322, %v1323
    %v1325 = vsel %vm1072, %v569, -inf
    %v1326 = vrot.slane %v1325, 4
    %v1327 = vmax.f32 %v1325, %v1326
    %v1328 = vrot.slane %v1327, 2
    %v1329 = vmax.f32 %v1327, %v1328
    %v1330 = vrot.slane %v1329, 1
    %v1331 = vmax.f32 %v1329, %v1330
    %v1332 = vsel %vm1072, %v715, -inf
    %v1333 = vrot.slane %v1332, 4
    %v1334 = vmax.f32 %v1332, %v1333
    %v1335 = vrot.slane %v1334, 2
    %v1336 = vmax.f32 %v1334, %v1335
    %v1337 = vrot.slane %v1336, 1
    %v1338 = vmax.f32 %v1336, %v1337
    %v1339 = vsel %vm1072, %v716, -inf
    %v1340 = vrot.slane %v1339, 4
    %v1341 = vmax.f32 %v1339, %v1340
    %v1342 = vrot.slane %v1341, 2
    %v1343 = vmax.f32 %v1341, %v1342
    %v1344 = vrot.slane %v1343, 1
    %v1345 = vmax.f32 %v1343, %v1344
    %v1346 = vsel %vm1072, %v717, -inf
    %v1347 = vrot.slane %v1346, 4
    %v1348 = vmax.f32 %v1346, %v1347
    %v1349 = vrot.slane %v1348, 2
    %v1350 = vmax.f32 %v1348, %v1349
    %v1351 = vrot.slane %v1350, 1
    %v1352 = vmax.f32 %v1350, %v1351
    %v1353 = vsel %vm1072, %v570, -inf
    %v1354 = vrot.slane %v1353, 4
    %v1355 = vmax.f32 %v1353, %v1354
    %v1356 = vrot.slane %v1355, 2
    %v1357 = vmax.f32 %v1355, %v1356
    %v1358 = vrot.slane %v1357, 1
    %v1359 = vmax.f32 %v1357, %v1358
    %v1360 = vsel %vm1072, %v718, -inf
    %v1361 = vrot.slane %v1360, 4
    %v1362 = vmax.f32 %v1360, %v1361
    %v1363 = vrot.slane %v1362, 2
    %v1364 = vmax.f32 %v1362, %v1363
    %v1365 = vrot.slane %v1364, 1
    %v1366 = vmax.f32 %v1364, %v1365
    %v1367 = vsel %vm1072, %v719, -inf
    %v1368 = vrot.slane %v1367, 4
    %v1369 = vmax.f32 %v1367, %v1368
    %v1370 = vrot.slane %v1369, 2
    %v1371 = vmax.f32 %v1369, %v1370
    %v1372 = vrot.slane %v1371, 1
    %v1373 = vmax.f32 %v1371, %v1372
    %v1374 = vsel %vm1072, %v720, -inf
    %v1375 = vrot.slane %v1374, 4
    %v1376 = vmax.f32 %v1374, %v1375
    %v1377 = vrot.slane %v1376, 2
    %v1378 = vmax.f32 %v1376, %v1377
    %v1379 = vrot.slane %v1378, 1
    %v1380 = vmax.f32 %v1378, %v1379
    %v1381 = vsel %vm1072, %v571, -inf
    %v1382 = vrot.slane %v1381, 4
    %v1383 = vmax.f32 %v1381, %v1382
    %v1384 = vrot.slane %v1383, 2
    %v1385 = vmax.f32 %v1383, %v1384
    %v1386 = vrot.slane %v1385, 1
    %v1387 = vmax.f32 %v1385, %v1386
    %v1388 = vsel %vm1072, %v721, -inf
    %v1389 = vrot.slane %v1388, 4
    %v1390 = vmax.f32 %v1388, %v1389
    %v1391 = vrot.slane %v1390, 2
    %v1392 = vmax.f32 %v1390, %v1391
    %v1393 = vrot.slane %v1392, 1
    %v1394 = vmax.f32 %v1392, %v1393
    %v1395 = vsel %vm1072, %v722, -inf
    %v1396 = vrot.slane %v1395, 4
    %v1397 = vmax.f32 %v1395, %v1396
    %v1398 = vrot.slane %v1397, 2
    %v1399 = vmax.f32 %v1397, %v1398
    %v1400 = vrot.slane %v1399, 1
    %v1401 = vmax.f32 %v1399, %v1400
    %v1402 = vsel %vm1072, %v723, -inf
    %v1403 = vrot.slane %v1402, 4
    %v1404 = vmax.f32 %v1402, %v1403
    %v1405 = vrot.slane %v1404, 2
    %v1406 = vmax.f32 %v1404, %v1405
    %v1407 = vrot.slane %v1406, 1
    %v1408 = vmax.f32 %v1406, %v1407
    %v1409 = vsel %vm1072, %v572, -inf
    %v1410 = vrot.slane %v1409, 4
    %v1411 = vmax.f32 %v1409, %v1410
    %v1412 = vrot.slane %v1411, 2
    %v1413 = vmax.f32 %v1411, %v1412
    %v1414 = vrot.slane %v1413, 1
    %v1415 = vmax.f32 %v1413, %v1414
    %v1416 = vsel %vm1072, %v724, -inf
    %v1417 = vrot.slane %v1416, 4
    %v1418 = vmax.f32 %v1416, %v1417
    %v1419 = vrot.slane %v1418, 2
    %v1420 = vmax.f32 %v1418, %v1419
    %v1421 = vrot.slane %v1420, 1
    %v1422 = vmax.f32 %v1420, %v1421
    %v1423 = vsel %vm1072, %v725, -inf
    %v1424 = vrot.slane %v1423, 4
    %v1425 = vmax.f32 %v1423, %v1424
    %v1426 = vrot.slane %v1425, 2
    %v1427 = vmax.f32 %v1425, %v1426
    %v1428 = vrot.slane %v1427, 1
    %v1429 = vmax.f32 %v1427, %v1428
    %v1430 = vsel %vm1072, %v726, -inf
    %v1431 = vrot.slane %v1430, 4
    %v1432 = vmax.f32 %v1430, %v1431
    %v1433 = vrot.slane %v1432, 2
    %v1434 = vmax.f32 %v1432, %v1433
    %v1435 = vrot.slane %v1434, 1
    %v1436 = vmax.f32 %v1434, %v1435
    %v1437 = vsel %vm1072, %v573, -inf
    %v1438 = vrot.slane %v1437, 4
    %v1439 = vmax.f32 %v1437, %v1438
    %v1440 = vrot.slane %v1439, 2
    %v1441 = vmax.f32 %v1439, %v1440
    %v1442 = vrot.slane %v1441, 1
    %v1443 = vmax.f32 %v1441, %v1442
    %v1444 = vsel %vm1072, %v727, -inf
    %v1445 = vrot.slane %v1444, 4
    %v1446 = vmax.f32 %v1444, %v1445
    %v1447 = vrot.slane %v1446, 2
    %v1448 = vmax.f32 %v1446, %v1447
    %v1449 = vrot.slane %v1448, 1
    %v1450 = vmax.f32 %v1448, %v1449
    %v1451 = vsel %vm1072, %v728, -inf
    %v1452 = vrot.slane %v1451, 4
    %v1453 = vmax.f32 %v1451, %v1452
    %v1454 = vrot.slane %v1453, 2
    %v1455 = vmax.f32 %v1453, %v1454
    %v1456 = vrot.slane %v1455, 1
    %v1457 = vmax.f32 %v1455, %v1456
    %v1458 = vsel %vm1072, %v729, -inf
    %v1459 = vrot.slane %v1458, 4
    %v1460 = vmax.f32 %v1458, %v1459
    %v1461 = vrot.slane %v1460, 2
    %v1462 = vmax.f32 %v1460, %v1461
    %v1463 = vrot.slane %v1462, 1
    %v1464 = vmax.f32 %v1462, %v1463
    %v1465 = vsel %vm1072, %v574, -inf
    %v1466 = vrot.slane %v1465, 4
    %v1467 = vmax.f32 %v1465, %v1466
    %v1468 = vrot.slane %v1467, 2
    %v1469 = vmax.f32 %v1467, %v1468
    %v1470 = vrot.slane %v1469, 1
    %v1471 = vmax.f32 %v1469, %v1470
    %v1472 = vsel %vm1072, %v730, -inf
    %v1473 = vrot.slane %v1472, 4
    %v1474 = vmax.f32 %v1472, %v1473
    %v1475 = vrot.slane %v1474, 2
    %v1476 = vmax.f32 %v1474, %v1475
    %v1477 = vrot.slane %v1476, 1
    %v1478 = vmax.f32 %v1476, %v1477
    %v1479 = vsel %vm1072, %v731, -inf
    %v1480 = vrot.slane %v1479, 4
    %v1481 = vmax.f32 %v1479, %v1480
    %v1482 = vrot.slane %v1481, 2
    %v1483 = vmax.f32 %v1481, %v1482
    %v1484 = vrot.slane %v1483, 1
    %v1485 = vmax.f32 %v1483, %v1484
    %v1486 = vsel %vm1072, %v732, -inf
    %v1487 = vrot.slane %v1486, 4
    %v1488 = vmax.f32 %v1486, %v1487
    %v1489 = vrot.slane %v1488, 2
    %v1490 = vmax.f32 %v1488, %v1489
    %v1491 = vrot.slane %v1490, 1
    %v1492 = vmax.f32 %v1490, %v1491
    %v1493 = vsel %vm1072, %v575, -inf
    %v1494 = vrot.slane %v1493, 4
    %v1495 = vmax.f32 %v1493, %v1494
    %v1496 = vrot.slane %v1495, 2
    %v1497 = vmax.f32 %v1495, %v1496
    %v1498 = vrot.slane %v1497, 1
    %v1499 = vmax.f32 %v1497, %v1498
    %v1500 = vsel %vm1072, %v733, -inf
    %v1501 = vrot.slane %v1500, 4
    %v1502 = vmax.f32 %v1500, %v1501
    %v1503 = vrot.slane %v1502, 2
    %v1504 = vmax.f32 %v1502, %v1503
    %v1505 = vrot.slane %v1504, 1
    %v1506 = vmax.f32 %v1504, %v1505
    %v1507 = vsel %vm1072, %v734, -inf
    %v1508 = vrot.slane %v1507, 4
    %v1509 = vmax.f32 %v1507, %v1508
    %v1510 = vrot.slane %v1509, 2
    %v1511 = vmax.f32 %v1509, %v1510
    %v1512 = vrot.slane %v1511, 1
    %v1513 = vmax.f32 %v1511, %v1512
    %v1514 = vsel %vm1072, %v735, -inf
    %v1515 = vrot.slane %v1514, 4
    %v1516 = vmax.f32 %v1514, %v1515
    %v1517 = vrot.slane %v1516, 2
    %v1518 = vmax.f32 %v1516, %v1517
    %v1519 = vrot.slane %v1518, 1
    %v1520 = vmax.f32 %v1518, %v1519
    %v1521 = vsel %vm1072, %v576, -inf
    %v1522 = vrot.slane %v1521, 4
    %v1523 = vmax.f32 %v1521, %v1522
    %v1524 = vrot.slane %v1523, 2
    %v1525 = vmax.f32 %v1523, %v1524
    %v1526 = vrot.slane %v1525, 1
    %v1527 = vmax.f32 %v1525, %v1526
    %v1528 = vsel %vm1072, %v736, -inf
    %v1529 = vrot.slane %v1528, 4
    %v1530 = vmax.f32 %v1528, %v1529
    %v1531 = vrot.slane %v1530, 2
    %v1532 = vmax.f32 %v1530, %v1531
    %v1533 = vrot.slane %v1532, 1
    %v1534 = vmax.f32 %v1532, %v1533
    %v1535 = vsel %vm1072, %v737, -inf
    %v1536 = vrot.slane %v1535, 4
    %v1537 = vmax.f32 %v1535, %v1536
    %v1538 = vrot.slane %v1537, 2
    %v1539 = vmax.f32 %v1537, %v1538
    %v1540 = vrot.slane %v1539, 1
    %v1541 = vmax.f32 %v1539, %v1540
    %v1542 = vsel %vm1072, %v738, -inf
    %v1543 = vrot.slane %v1542, 4
    %v1544 = vmax.f32 %v1542, %v1543
    %v1545 = vrot.slane %v1544, 2
    %v1546 = vmax.f32 %v1544, %v1545
    %v1547 = vrot.slane %v1546, 1
    %v1548 = vmax.f32 %v1546, %v1547
    %v1549 = vsel %vm1072, %v577, -inf
    %v1550 = vrot.slane %v1549, 4
    %v1551 = vmax.f32 %v1549, %v1550
    %v1552 = vrot.slane %v1551, 2
    %v1553 = vmax.f32 %v1551, %v1552
    %v1554 = vrot.slane %v1553, 1
    %v1555 = vmax.f32 %v1553, %v1554
    %v1556 = vsel %vm1072, %v739, -inf
    %v1557 = vrot.slane %v1556, 4
    %v1558 = vmax.f32 %v1556, %v1557
    %v1559 = vrot.slane %v1558, 2
    %v1560 = vmax.f32 %v1558, %v1559
    %v1561 = vrot.slane %v1560, 1
    %v1562 = vmax.f32 %v1560, %v1561
    %v1563 = vsel %vm1072, %v740, -inf
    %v1564 = vrot.slane %v1563, 4
    %v1565 = vmax.f32 %v1563, %v1564
    %v1566 = vrot.slane %v1565, 2
    %v1567 = vmax.f32 %v1565, %v1566
    %v1568 = vrot.slane %v1567, 1
    %v1569 = vmax.f32 %v1567, %v1568
    %v1570 = vsel %vm1072, %v741, -inf
    %v1571 = vrot.slane %v1570, 4
    %v1572 = vmax.f32 %v1570, %v1571
    %v1573 = vrot.slane %v1572, 2
    %v1574 = vmax.f32 %v1572, %v1573
    %v1575 = vrot.slane %v1574, 1
    %v1576 = vmax.f32 %v1574, %v1575
    %v1577 = vsel %vm1072, %v578, -inf
    %v1578 = vrot.slane %v1577, 4
    %v1579 = vmax.f32 %v1577, %v1578
    %v1580 = vrot.slane %v1579, 2
    %v1581 = vmax.f32 %v1579, %v1580
    %v1582 = vrot.slane %v1581, 1
    %v1583 = vmax.f32 %v1581, %v1582
    %v1584 = vsel %vm1072, %v742, -inf
    %v1585 = vrot.slane %v1584, 4
    %v1586 = vmax.f32 %v1584, %v1585
    %v1587 = vrot.slane %v1586, 2
    %v1588 = vmax.f32 %v1586, %v1587
    %v1589 = vrot.slane %v1588, 1
    %v1590 = vmax.f32 %v1588, %v1589
    %v1591 = vsel %vm1072, %v743, -inf
    %v1592 = vrot.slane %v1591, 4
    %v1593 = vmax.f32 %v1591, %v1592
    %v1594 = vrot.slane %v1593, 2
    %v1595 = vmax.f32 %v1593, %v1594
    %v1596 = vrot.slane %v1595, 1
    %v1597 = vmax.f32 %v1595, %v1596
    %v1598 = vsel %vm1072, %v744, -inf
    %v1599 = vrot.slane %v1598, 4
    %v1600 = vmax.f32 %v1598, %v1599
    %v1601 = vrot.slane %v1600, 2
    %v1602 = vmax.f32 %v1600, %v1601
    %v1603 = vrot.slane %v1602, 1
    %v1604 = vmax.f32 %v1602, %v1603
    %v1605 = vsel %vm1072, %v579, -inf
    %v1606 = vrot.slane %v1605, 4
    %v1607 = vmax.f32 %v1605, %v1606
    %v1608 = vrot.slane %v1607, 2
    %v1609 = vmax.f32 %v1607, %v1608
    %v1610 = vrot.slane %v1609, 1
    %v1611 = vmax.f32 %v1609, %v1610
    %v1612 = vsel %vm1072, %v745, -inf
    %v1613 = vrot.slane %v1612, 4
    %v1614 = vmax.f32 %v1612, %v1613
    %v1615 = vrot.slane %v1614, 2
    %v1616 = vmax.f32 %v1614, %v1615
    %v1617 = vrot.slane %v1616, 1
    %v1618 = vmax.f32 %v1616, %v1617
    %v1619 = vsel %vm1072, %v746, -inf
    %v1620 = vrot.slane %v1619, 4
    %v1621 = vmax.f32 %v1619, %v1620
    %v1622 = vrot.slane %v1621, 2
    %v1623 = vmax.f32 %v1621, %v1622
    %v1624 = vrot.slane %v1623, 1
    %v1625 = vmax.f32 %v1623, %v1624
    %v1626 = vsel %vm1072, %v747, -inf
    %v1627 = vrot.slane %v1626, 4
    %v1628 = vmax.f32 %v1626, %v1627
    %v1629 = vrot.slane %v1628, 2
    %v1630 = vmax.f32 %v1628, %v1629
    %v1631 = vrot.slane %v1630, 1
    %v1632 = vmax.f32 %v1630, %v1631
    %v1633 = vsel %vm1072, %v580, -inf
    %v1634 = vrot.slane %v1633, 4
    %v1635 = vmax.f32 %v1633, %v1634
    %v1636 = vrot.slane %v1635, 2
    %v1637 = vmax.f32 %v1635, %v1636
    %v1638 = vrot.slane %v1637, 1
    %v1639 = vmax.f32 %v1637, %v1638
    %v1640 = vsel %vm1072, %v748, -inf
    %v1641 = vrot.slane %v1640, 4
    %v1642 = vmax.f32 %v1640, %v1641
    %v1643 = vrot.slane %v1642, 2
    %v1644 = vmax.f32 %v1642, %v1643
    %v1645 = vrot.slane %v1644, 1
    %v1646 = vmax.f32 %v1644, %v1645
    %v1647 = vsel %vm1072, %v749, -inf
    %v1648 = vrot.slane %v1647, 4
    %v1649 = vmax.f32 %v1647, %v1648
    %v1650 = vrot.slane %v1649, 2
    %v1651 = vmax.f32 %v1649, %v1650
    %v1652 = vrot.slane %v1651, 1
    %v1653 = vmax.f32 %v1651, %v1652
    %v1654 = vsel %vm1072, %v750, -inf
    %v1655 = vrot.slane %v1654, 4
    %v1656 = vmax.f32 %v1654, %v1655
    %v1657 = vrot.slane %v1656, 2
    %v1658 = vmax.f32 %v1656, %v1657
    %v1659 = vrot.slane %v1658, 1
    %v1660 = vmax.f32 %v1658, %v1659
    %v1661 = vsel %vm1072, %v581, -inf
    %v1662 = vrot.slane %v1661, 4
    %v1663 = vmax.f32 %v1661, %v1662
    %v1664 = vrot.slane %v1663, 2
    %v1665 = vmax.f32 %v1663, %v1664
    %v1666 = vrot.slane %v1665, 1
    %v1667 = vmax.f32 %v1665, %v1666
    %v1668 = vsel %vm1072, %v751, -inf
    %v1669 = vrot.slane %v1668, 4
    %v1670 = vmax.f32 %v1668, %v1669
    %v1671 = vrot.slane %v1670, 2
    %v1672 = vmax.f32 %v1670, %v1671
    %v1673 = vrot.slane %v1672, 1
    %v1674 = vmax.f32 %v1672, %v1673
    %v1675 = vsel %vm1072, %v752, -inf
    %v1676 = vrot.slane %v1675, 4
    %v1677 = vmax.f32 %v1675, %v1676
    %v1678 = vrot.slane %v1677, 2
    %v1679 = vmax.f32 %v1677, %v1678
    %v1680 = vrot.slane %v1679, 1
    %v1681 = vmax.f32 %v1679, %v1680
    %v1682 = vsel %vm1072, %v753, -inf
    %v1683 = vrot.slane %v1682, 4
    %v1684 = vmax.f32 %v1682, %v1683
    %v1685 = vrot.slane %v1684, 2
    %v1686 = vmax.f32 %v1684, %v1685
    %v1687 = vrot.slane %v1686, 1
    %v1688 = vmax.f32 %v1686, %v1687
    %v1689 = vsel %vm1072, %v582, -inf
    %v1690 = vrot.slane %v1689, 4
    %v1691 = vmax.f32 %v1689, %v1690
    %v1692 = vrot.slane %v1691, 2
    %v1693 = vmax.f32 %v1691, %v1692
    %v1694 = vrot.slane %v1693, 1
    %v1695 = vmax.f32 %v1693, %v1694
    %v1696 = vsel %vm1072, %v754, -inf
    %v1697 = vrot.slane %v1696, 4
    %v1698 = vmax.f32 %v1696, %v1697
    %v1699 = vrot.slane %v1698, 2
    %v1700 = vmax.f32 %v1698, %v1699
    %v1701 = vrot.slane %v1700, 1
    %v1702 = vmax.f32 %v1700, %v1701
    %v1703 = vsel %vm1072, %v755, -inf
    %v1704 = vrot.slane %v1703, 4
    %v1705 = vmax.f32 %v1703, %v1704
    %v1706 = vrot.slane %v1705, 2
    %v1707 = vmax.f32 %v1705, %v1706
    %v1708 = vrot.slane %v1707, 1
    %v1709 = vmax.f32 %v1707, %v1708
    %v1710 = vsel %vm1072, %v756, -inf
    %v1711 = vrot.slane %v1710, 4
    %v1712 = vmax.f32 %v1710, %v1711
    %v1713 = vrot.slane %v1712, 2
    %v1714 = vmax.f32 %v1712, %v1713
    %v1715 = vrot.slane %v1714, 1
    %v1716 = vmax.f32 %v1714, %v1715
    %v1717 = vsel %vm1072, %v583, -inf
    %v1718 = vrot.slane %v1717, 4
    %v1719 = vmax.f32 %v1717, %v1718
    %v1720 = vrot.slane %v1719, 2
    %v1721 = vmax.f32 %v1719, %v1720
    %v1722 = vrot.slane %v1721, 1
    %v1723 = vmax.f32 %v1721, %v1722
    %v1724 = vsel %vm1072, %v757, -inf
    %v1725 = vrot.slane %v1724, 4
    %v1726 = vmax.f32 %v1724, %v1725
    %v1727 = vrot.slane %v1726, 2
    %v1728 = vmax.f32 %v1726, %v1727
    %v1729 = vrot.slane %v1728, 1
    %v1730 = vmax.f32 %v1728, %v1729
    %v1731 = vsel %vm1072, %v758, -inf
    %v1732 = vrot.slane %v1731, 4
    %v1733 = vmax.f32 %v1731, %v1732
    %v1734 = vrot.slane %v1733, 2
    %v1735 = vmax.f32 %v1733, %v1734
    %v1736 = vrot.slane %v1735, 1
    %v1737 = vmax.f32 %v1735, %v1736
    %v1738 = vsel %vm1072, %v759, -inf
    %v1739 = vrot.slane %v1738, 4
    %v1740 = vmax.f32 %v1738, %v1739
    %v1741 = vrot.slane %v1740, 2
    %v1742 = vmax.f32 %v1740, %v1741
    %v1743 = vrot.slane %v1742, 1
    %v1744 = vmax.f32 %v1742, %v1743
    %v1745 = vsel %vm1072, %v584, -inf
    %v1746 = vrot.slane %v1745, 4
    %v1747 = vmax.f32 %v1745, %v1746
    %v1748 = vrot.slane %v1747, 2
    %v1749 = vmax.f32 %v1747, %v1748
    %v1750 = vrot.slane %v1749, 1
    %v1751 = vmax.f32 %v1749, %v1750
    %v1752 = vsel %vm1072, %v760, -inf
    %v1753 = vrot.slane %v1752, 4
    %v1754 = vmax.f32 %v1752, %v1753
    %v1755 = vrot.slane %v1754, 2
    %v1756 = vmax.f32 %v1754, %v1755
    %v1757 = vrot.slane %v1756, 1
    %v1758 = vmax.f32 %v1756, %v1757
    %v1759 = vsel %vm1072, %v761, -inf
    %v1760 = vrot.slane %v1759, 4
    %v1761 = vmax.f32 %v1759, %v1760
    %v1762 = vrot.slane %v1761, 2
    %v1763 = vmax.f32 %v1761, %v1762
    %v1764 = vrot.slane %v1763, 1
    %v1765 = vmax.f32 %v1763, %v1764
    %v1766 = vsel %vm1072, %v762, -inf
    %v1767 = vrot.slane %v1766, 4
    %v1768 = vmax.f32 %v1766, %v1767
    %v1769 = vrot.slane %v1768, 2
    %v1770 = vmax.f32 %v1768, %v1769
    %v1771 = vrot.slane %v1770, 1
    %v1772 = vmax.f32 %v1770, %v1771
    %v1773 = vsel %vm1072, %v585, -inf
    %v1774 = vrot.slane %v1773, 4
    %v1775 = vmax.f32 %v1773, %v1774
    %v1776 = vrot.slane %v1775, 2
    %v1777 = vmax.f32 %v1775, %v1776
    %v1778 = vrot.slane %v1777, 1
    %v1779 = vmax.f32 %v1777, %v1778
    %v1780 = vsel %vm1072, %v763, -inf
    %v1781 = vrot.slane %v1780, 4
    %v1782 = vmax.f32 %v1780, %v1781
    %v1783 = vrot.slane %v1782, 2
    %v1784 = vmax.f32 %v1782, %v1783
    %v1785 = vrot.slane %v1784, 1
    %v1786 = vmax.f32 %v1784, %v1785
    %v1787 = vsel %vm1072, %v764, -inf
    %v1788 = vrot.slane %v1787, 4
    %v1789 = vmax.f32 %v1787, %v1788
    %v1790 = vrot.slane %v1789, 2
    %v1791 = vmax.f32 %v1789, %v1790
    %v1792 = vrot.slane %v1791, 1
    %v1793 = vmax.f32 %v1791, %v1792
    %v1794 = vsel %vm1072, %v765, -inf
    %v1795 = vrot.slane %v1794, 4
    %v1796 = vmax.f32 %v1794, %v1795
    %v1797 = vrot.slane %v1796, 2
    %v1798 = vmax.f32 %v1796, %v1797
    %v1799 = vrot.slane %v1798, 1
    %v1800 = vmax.f32 %v1798, %v1799
    %v1801 = vsel %vm1072, %v586, -inf
    %v1802 = vrot.slane %v1801, 4
    %v1803 = vmax.f32 %v1801, %v1802
    %v1804 = vrot.slane %v1803, 2
    %v1805 = vmax.f32 %v1803, %v1804
    %v1806 = vrot.slane %v1805, 1
    %v1807 = vmax.f32 %v1805, %v1806
    %v1808 = vsel %vm1072, %v766, -inf
    %v1809 = vrot.slane %v1808, 4
    %v1810 = vmax.f32 %v1808, %v1809
    %v1811 = vrot.slane %v1810, 2
    %v1812 = vmax.f32 %v1810, %v1811
    %v1813 = vrot.slane %v1812, 1
    %v1814 = vmax.f32 %v1812, %v1813
    %v1815 = vsel %vm1072, %v767, -inf
    %v1816 = vrot.slane %v1815, 4
    %v1817 = vmax.f32 %v1815, %v1816
    %v1818 = vrot.slane %v1817, 2
    %v1819 = vmax.f32 %v1817, %v1818
    %v1820 = vrot.slane %v1819, 1
    %v1821 = vmax.f32 %v1819, %v1820
    %v1822 = vsel %vm1072, %v768, -inf
    %v1823 = vrot.slane %v1822, 4
    %v1824 = vmax.f32 %v1822, %v1823
    %v1825 = vrot.slane %v1824, 2
    %v1826 = vmax.f32 %v1824, %v1825
    %v1827 = vrot.slane %v1826, 1
    %v1828 = vmax.f32 %v1826, %v1827
    %v1829 = vsel %vm1072, %v587, -inf
    %v1830 = vrot.slane %v1829, 4
    %v1831 = vmax.f32 %v1829, %v1830
    %v1832 = vrot.slane %v1831, 2
    %v1833 = vmax.f32 %v1831, %v1832
    %v1834 = vrot.slane %v1833, 1
    %v1835 = vmax.f32 %v1833, %v1834
    %v1836 = vsel %vm1072, %v769, -inf
    %v1837 = vrot.slane %v1836, 4
    %v1838 = vmax.f32 %v1836, %v1837
    %v1839 = vrot.slane %v1838, 2
    %v1840 = vmax.f32 %v1838, %v1839
    %v1841 = vrot.slane %v1840, 1
    %v1842 = vmax.f32 %v1840, %v1841
    %v1843 = vsel %vm1072, %v770, -inf
    %v1844 = vrot.slane %v1843, 4
    %v1845 = vmax.f32 %v1843, %v1844
    %v1846 = vrot.slane %v1845, 2
    %v1847 = vmax.f32 %v1845, %v1846
    %v1848 = vrot.slane %v1847, 1
    %v1849 = vmax.f32 %v1847, %v1848
    %v1850 = vsel %vm1072, %v771, -inf
    %v1851 = vrot.slane %v1850, 4
    %v1852 = vmax.f32 %v1850, %v1851
    %v1853 = vrot.slane %v1852, 2
    %v1854 = vmax.f32 %v1852, %v1853
    %v1855 = vrot.slane %v1854, 1
    %v1856 = vmax.f32 %v1854, %v1855
    %v1857 = vsel %vm1072, %v588, -inf
    %v1858 = vrot.slane %v1857, 4
    %v1859 = vmax.f32 %v1857, %v1858
    %v1860 = vrot.slane %v1859, 2
    %v1861 = vmax.f32 %v1859, %v1860
    %v1862 = vrot.slane %v1861, 1
    %v1863 = vmax.f32 %v1861, %v1862
    %v1864 = vsel %vm1072, %v772, -inf
    %v1865 = vrot.slane %v1864, 4
    %v1866 = vmax.f32 %v1864, %v1865
    %v1867 = vrot.slane %v1866, 2
    %v1868 = vmax.f32 %v1866, %v1867
    %v1869 = vrot.slane %v1868, 1
    %v1870 = vmax.f32 %v1868, %v1869
    %v1871 = vsel %vm1072, %v773, -inf
    %v1872 = vrot.slane %v1871, 4
    %v1873 = vmax.f32 %v1871, %v1872
    %v1874 = vrot.slane %v1873, 2
    %v1875 = vmax.f32 %v1873, %v1874
    %v1876 = vrot.slane %v1875, 1
    %v1877 = vmax.f32 %v1875, %v1876
    %v1878 = vsel %vm1072, %v774, -inf
    %v1879 = vrot.slane %v1878, 4
    %v1880 = vmax.f32 %v1878, %v1879
    %v1881 = vrot.slane %v1880, 2
    %v1882 = vmax.f32 %v1880, %v1881
    %v1883 = vrot.slane %v1882, 1
    %v1884 = vmax.f32 %v1882, %v1883
    %v1885 = vsel %vm1072, %v589, -inf
    %v1886 = vrot.slane %v1885, 4
    %v1887 = vmax.f32 %v1885, %v1886
    %v1888 = vrot.slane %v1887, 2
    %v1889 = vmax.f32 %v1887, %v1888
    %v1890 = vrot.slane %v1889, 1
    %v1891 = vmax.f32 %v1889, %v1890
    %v1892 = vsel %vm1072, %v775, -inf
    %v1893 = vrot.slane %v1892, 4
    %v1894 = vmax.f32 %v1892, %v1893
    %v1895 = vrot.slane %v1894, 2
    %v1896 = vmax.f32 %v1894, %v1895
    %v1897 = vrot.slane %v1896, 1
    %v1898 = vmax.f32 %v1896, %v1897
    %v1899 = vsel %vm1072, %v776, -inf
    %v1900 = vrot.slane %v1899, 4
    %v1901 = vmax.f32 %v1899, %v1900
    %v1902 = vrot.slane %v1901, 2
    %v1903 = vmax.f32 %v1901, %v1902
    %v1904 = vrot.slane %v1903, 1
    %v1905 = vmax.f32 %v1903, %v1904
    %v1906 = vsel %vm1072, %v777, -inf
    %v1907 = vrot.slane %v1906, 4
    %v1908 = vmax.f32 %v1906, %v1907
    %v1909 = vrot.slane %v1908, 2
    %v1910 = vmax.f32 %v1908, %v1909
    %v1911 = vrot.slane %v1910, 1
    %v1912 = vmax.f32 %v1910, %v1911
    %v1913 = vsel %vm1072, %v590, -inf
    %v1914 = vrot.slane %v1913, 4
    %v1915 = vmax.f32 %v1913, %v1914
    %v1916 = vrot.slane %v1915, 2
    %v1917 = vmax.f32 %v1915, %v1916
    %v1918 = vrot.slane %v1917, 1
    %v1919 = vmax.f32 %v1917, %v1918
    %v1920 = vsel %vm1072, %v778, -inf
    %v1921 = vrot.slane %v1920, 4
    %v1922 = vmax.f32 %v1920, %v1921
    %v1923 = vrot.slane %v1922, 2
    %v1924 = vmax.f32 %v1922, %v1923
    %v1925 = vrot.slane %v1924, 1
    %v1926 = vmax.f32 %v1924, %v1925
    %v1927 = vsel %vm1072, %v779, -inf
    %v1928 = vrot.slane %v1927, 4
    %v1929 = vmax.f32 %v1927, %v1928
    %v1930 = vrot.slane %v1929, 2
    %v1931 = vmax.f32 %v1929, %v1930
    %v1932 = vrot.slane %v1931, 1
    %v1933 = vmax.f32 %v1931, %v1932
    %v1934 = vsel %vm1072, %v780, -inf
    %v1935 = vrot.slane %v1934, 4
    %v1936 = vmax.f32 %v1934, %v1935
    %v1937 = vrot.slane %v1936, 2
    %v1938 = vmax.f32 %v1936, %v1937
    %v1939 = vrot.slane %v1938, 1
    %v1940 = vmax.f32 %v1938, %v1939
    %v1941 = vsel %vm1072, %v591, -inf
    %v1942 = vrot.slane %v1941, 4
    %v1943 = vmax.f32 %v1941, %v1942
    %v1944 = vrot.slane %v1943, 2
    %v1945 = vmax.f32 %v1943, %v1944
    %v1946 = vrot.slane %v1945, 1
    %v1947 = vmax.f32 %v1945, %v1946
    %v1948 = vsel %vm1072, %v781, -inf
    %v1949 = vrot.slane %v1948, 4
    %v1950 = vmax.f32 %v1948, %v1949
    %v1951 = vrot.slane %v1950, 2
    %v1952 = vmax.f32 %v1950, %v1951
    %v1953 = vrot.slane %v1952, 1
    %v1954 = vmax.f32 %v1952, %v1953
    %v1955 = vsel %vm1072, %v782, -inf
    %v1956 = vrot.slane %v1955, 4
    %v1957 = vmax.f32 %v1955, %v1956
    %v1958 = vrot.slane %v1957, 2
    %v1959 = vmax.f32 %v1957, %v1958
    %v1960 = vrot.slane %v1959, 1
    %v1961 = vmax.f32 %v1959, %v1960
    %v1962 = vsel %vm1072, %v783, -inf
    %v1963 = vrot.slane %v1962, 4
    %v1964 = vmax.f32 %v1962, %v1963
    %v1965 = vrot.slane %v1964, 2
    %v1966 = vmax.f32 %v1964, %v1965
    %v1967 = vrot.slane %v1966, 1
    %v1968 = vmax.f32 %v1966, %v1967
    %v1969 = vsel %vm1072, %v592, -inf
    %v1970 = vrot.slane %v1969, 4
    %v1971 = vmax.f32 %v1969, %v1970
    %v1972 = vrot.slane %v1971, 2
    %v1973 = vmax.f32 %v1971, %v1972
    %v1974 = vrot.slane %v1973, 1
    %v1975 = vmax.f32 %v1973, %v1974
    %v1976 = vsel %vm1072, %v784, -inf
    %v1977 = vrot.slane %v1976, 4
    %v1978 = vmax.f32 %v1976, %v1977
    %v1979 = vrot.slane %v1978, 2
    %v1980 = vmax.f32 %v1978, %v1979
    %v1981 = vrot.slane %v1980, 1
    %v1982 = vmax.f32 %v1980, %v1981
    %v1983 = vsel %vm1072, %v785, -inf
    %v1984 = vrot.slane %v1983, 4
    %v1985 = vmax.f32 %v1983, %v1984
    %v1986 = vrot.slane %v1985, 2
    %v1987 = vmax.f32 %v1985, %v1986
    %v1988 = vrot.slane %v1987, 1
    %v1989 = vmax.f32 %v1987, %v1988
    %v1990 = vsel %vm1072, %v786, -inf
    %v1991 = vrot.slane %v1990, 4
    %v1992 = vmax.f32 %v1990, %v1991
    %v1993 = vrot.slane %v1992, 2
    %v1994 = vmax.f32 %v1992, %v1993
    %v1995 = vrot.slane %v1994, 1
    %v1996 = vmax.f32 %v1994, %v1995
    %v1997 = vsel %vm1072, %v593, -inf
    %v1998 = vrot.slane %v1997, 4
    %v1999 = vmax.f32 %v1997, %v1998
    %v2000 = vrot.slane %v1999, 2
    %v2001 = vmax.f32 %v1999, %v2000
    %v2002 = vrot.slane %v2001, 1
    %v2003 = vmax.f32 %v2001, %v2002
    %v2004 = vsel %vm1072, %v787, -inf
    %v2005 = vrot.slane %v2004, 4
    %v2006 = vmax.f32 %v2004, %v2005
    %v2007 = vrot.slane %v2006, 2
    %v2008 = vmax.f32 %v2006, %v2007
    %v2009 = vrot.slane %v2008, 1
    %v2010 = vmax.f32 %v2008, %v2009
    %v2011 = vsel %vm1072, %v788, -inf
    %v2012 = vrot.slane %v2011, 4
    %v2013 = vmax.f32 %v2011, %v2012
    %v2014 = vrot.slane %v2013, 2
    %v2015 = vmax.f32 %v2013, %v2014
    %v2016 = vrot.slane %v2015, 1
    %v2017 = vmax.f32 %v2015, %v2016
    %v2018 = vsel %vm1072, %v789, -inf
    %v2019 = vrot.slane %v2018, 4
    %v2020 = vmax.f32 %v2018, %v2019
    %v2021 = vrot.slane %v2020, 2
    %v2022 = vmax.f32 %v2020, %v2021
    %v2023 = vrot.slane %v2022, 1
    %v2024 = vmax.f32 %v2022, %v2023
    %v2025 = vsel %vm1072, %v594, -inf
    %v2026 = vrot.slane %v2025, 4
    %v2027 = vmax.f32 %v2025, %v2026
    %v2028 = vrot.slane %v2027, 2
    %v2029 = vmax.f32 %v2027, %v2028
    %v2030 = vrot.slane %v2029, 1
    %v2031 = vmax.f32 %v2029, %v2030
    %v2032 = vsel %vm1072, %v790, -inf
    %v2033 = vrot.slane %v2032, 4
    %v2034 = vmax.f32 %v2032, %v2033
    %v2035 = vrot.slane %v2034, 2
    %v2036 = vmax.f32 %v2034, %v2035
    %v2037 = vrot.slane %v2036, 1
    %v2038 = vmax.f32 %v2036, %v2037
    %v2039 = vsel %vm1072, %v791, -inf
    %v2040 = vrot.slane %v2039, 4
    %v2041 = vmax.f32 %v2039, %v2040
    %v2042 = vrot.slane %v2041, 2
    %v2043 = vmax.f32 %v2041, %v2042
    %v2044 = vrot.slane %v2043, 1
    %v2045 = vmax.f32 %v2043, %v2044
    %v2046 = vsel %vm1072, %v792, -inf
    %v2047 = vrot.slane %v2046, 4
    %v2048 = vmax.f32 %v2046, %v2047
    %v2049 = vrot.slane %v2048, 2
    %v2050 = vmax.f32 %v2048, %v2049
    %v2051 = vrot.slane %v2050, 1
    %v2052 = vmax.f32 %v2050, %v2051
    %v2053 = vsel %vm1072, %v595, -inf
    %v2054 = vrot.slane %v2053, 4
    %v2055 = vmax.f32 %v2053, %v2054
    %v2056 = vrot.slane %v2055, 2
    %v2057 = vmax.f32 %v2055, %v2056
    %v2058 = vrot.slane %v2057, 1
    %v2059 = vmax.f32 %v2057, %v2058
    %v2060 = vsel %vm1072, %v793, -inf
    %v2061 = vrot.slane %v2060, 4
    %v2062 = vmax.f32 %v2060, %v2061
    %v2063 = vrot.slane %v2062, 2
    %v2064 = vmax.f32 %v2062, %v2063
    %v2065 = vrot.slane %v2064, 1
    %v2066 = vmax.f32 %v2064, %v2065
    %v2067 = vsel %vm1072, %v794, -inf
    %v2068 = vrot.slane %v2067, 4
    %v2069 = vmax.f32 %v2067, %v2068
    %v2070 = vrot.slane %v2069, 2
    %v2071 = vmax.f32 %v2069, %v2070
    %v2072 = vrot.slane %v2071, 1
    %v2073 = vmax.f32 %v2071, %v2072
    %v2074 = vsel %vm1072, %v795, -inf
    %v2075 = vrot.slane %v2074, 4
    %v2076 = vmax.f32 %v2074, %v2075
    %v2077 = vrot.slane %v2076, 2
    %v2078 = vmax.f32 %v2076, %v2077
    %v2079 = vrot.slane %v2078, 1
    %v2080 = vmax.f32 %v2078, %v2079
    %v2081 = vsel %vm1072, %v596, -inf
    %v2082 = vrot.slane %v2081, 4
    %v2083 = vmax.f32 %v2081, %v2082
    %v2084 = vrot.slane %v2083, 2
    %v2085 = vmax.f32 %v2083, %v2084
    %v2086 = vrot.slane %v2085, 1
    %v2087 = vmax.f32 %v2085, %v2086
    %v2088 = vsel %vm1072, %v796, -inf
    %v2089 = vrot.slane %v2088, 4
    %v2090 = vmax.f32 %v2088, %v2089
    %v2091 = vrot.slane %v2090, 2
    %v2092 = vmax.f32 %v2090, %v2091
    %v2093 = vrot.slane %v2092, 1
    %v2094 = vmax.f32 %v2092, %v2093
    %v2095 = vsel %vm1072, %v797, -inf
    %v2096 = vrot.slane %v2095, 4
    %v2097 = vmax.f32 %v2095, %v2096
    %v2098 = vrot.slane %v2097, 2
    %v2099 = vmax.f32 %v2097, %v2098
    %v2100 = vrot.slane %v2099, 1
    %v2101 = vmax.f32 %v2099, %v2100
    %v2102 = vsel %vm1072, %v798, -inf
    %v2103 = vrot.slane %v2102, 4
    %v2104 = vmax.f32 %v2102, %v2103
    %v2105 = vrot.slane %v2104, 2
    %v2106 = vmax.f32 %v2104, %v2105
    %v2107 = vrot.slane %v2106, 1
    %v2108 = vmax.f32 %v2106, %v2107
    %v2109 = vsel %vm1072, %v597, -inf
    %v2110 = vrot.slane %v2109, 4
    %v2111 = vmax.f32 %v2109, %v2110
    %v2112 = vrot.slane %v2111, 2
    %v2113 = vmax.f32 %v2111, %v2112
    %v2114 = vrot.slane %v2113, 1
    %v2115 = vmax.f32 %v2113, %v2114
    %v2116 = vsel %vm1072, %v799, -inf
    %v2117 = vrot.slane %v2116, 4
    %v2118 = vmax.f32 %v2116, %v2117
    %v2119 = vrot.slane %v2118, 2
    %v2120 = vmax.f32 %v2118, %v2119
    %v2121 = vrot.slane %v2120, 1
    %v2122 = vmax.f32 %v2120, %v2121
    %v2123 = vsel %vm1072, %v800, -inf
    %v2124 = vrot.slane %v2123, 4
    %v2125 = vmax.f32 %v2123, %v2124
    %v2126 = vrot.slane %v2125, 2
    %v2127 = vmax.f32 %v2125, %v2126
    %v2128 = vrot.slane %v2127, 1
    %v2129 = vmax.f32 %v2127, %v2128
    %v2130 = vsel %vm1072, %v801, -inf
    %v2131 = vrot.slane %v2130, 4
    %v2132 = vmax.f32 %v2130, %v2131
    %v2133 = vrot.slane %v2132, 2
    %v2134 = vmax.f32 %v2132, %v2133
    %v2135 = vrot.slane %v2134, 1
    %v2136 = vmax.f32 %v2134, %v2135
    %v2137 = vsel %vm1072, %v598, -inf
    %v2138 = vrot.slane %v2137, 4
    %v2139 = vmax.f32 %v2137, %v2138
    %v2140 = vrot.slane %v2139, 2
    %v2141 = vmax.f32 %v2139, %v2140
    %v2142 = vrot.slane %v2141, 1
    %v2143 = vmax.f32 %v2141, %v2142
    %v2144 = vsel %vm1072, %v802, -inf
    %v2145 = vrot.slane %v2144, 4
    %v2146 = vmax.f32 %v2144, %v2145
    %v2147 = vrot.slane %v2146, 2
    %v2148 = vmax.f32 %v2146, %v2147
    %v2149 = vrot.slane %v2148, 1
    %v2150 = vmax.f32 %v2148, %v2149
    %v2151 = vsel %vm1072, %v803, -inf
    %v2152 = vrot.slane %v2151, 4
    %v2153 = vmax.f32 %v2151, %v2152
    %v2154 = vrot.slane %v2153, 2
    %v2155 = vmax.f32 %v2153, %v2154
    %v2156 = vrot.slane %v2155, 1
    %v2157 = vmax.f32 %v2155, %v2156
    %v2158 = vsel %vm1072, %v804, -inf
    %v2159 = vrot.slane %v2158, 4
    %v2160 = vmax.f32 %v2158, %v2159
    %v2161 = vrot.slane %v2160, 2
    %v2162 = vmax.f32 %v2160, %v2161
    %v2163 = vrot.slane %v2162, 1
    %v2164 = vmax.f32 %v2162, %v2163
    %v2165 = vsel %vm1072, %v599, -inf
    %v2166 = vrot.slane %v2165, 4
    %v2167 = vmax.f32 %v2165, %v2166
    %v2168 = vrot.slane %v2167, 2
    %v2169 = vmax.f32 %v2167, %v2168
    %v2170 = vrot.slane %v2169, 1
    %v2171 = vmax.f32 %v2169, %v2170
    %v2172 = vsel %vm1072, %v805, -inf
    %v2173 = vrot.slane %v2172, 4
    %v2174 = vmax.f32 %v2172, %v2173
    %v2175 = vrot.slane %v2174, 2
    %v2176 = vmax.f32 %v2174, %v2175
    %v2177 = vrot.slane %v2176, 1
    %v2178 = vmax.f32 %v2176, %v2177
    %v2179 = vsel %vm1072, %v806, -inf
    %v2180 = vrot.slane %v2179, 4
    %v2181 = vmax.f32 %v2179, %v2180
    %v2182 = vrot.slane %v2181, 2
    %v2183 = vmax.f32 %v2181, %v2182
    %v2184 = vrot.slane %v2183, 1
    %v2185 = vmax.f32 %v2183, %v2184
    %v2186 = vsel %vm1072, %v807, -inf
    %v2187 = vrot.slane %v2186, 4
    %v2188 = vmax.f32 %v2186, %v2187
    %v2189 = vrot.slane %v2188, 2
    %v2190 = vmax.f32 %v2188, %v2189
    %v2191 = vrot.slane %v2190, 1
    %v2192 = vmax.f32 %v2190, %v2191
    %v2193 = vsel %vm1072, %v600, -inf
    %v2194 = vrot.slane %v2193, 4
    %v2195 = vmax.f32 %v2193, %v2194
    %v2196 = vrot.slane %v2195, 2
    %v2197 = vmax.f32 %v2195, %v2196
    %v2198 = vrot.slane %v2197, 1
    %v2199 = vmax.f32 %v2197, %v2198
    %v2200 = vsel %vm1072, %v808, -inf
    %v2201 = vrot.slane %v2200, 4
    %v2202 = vmax.f32 %v2200, %v2201
    %v2203 = vrot.slane %v2202, 2
    %v2204 = vmax.f32 %v2202, %v2203
    %v2205 = vrot.slane %v2204, 1
    %v2206 = vmax.f32 %v2204, %v2205
    %v2207 = vsel %vm1072, %v809, -inf
    %v2208 = vrot.slane %v2207, 4
    %v2209 = vmax.f32 %v2207, %v2208
    %v2210 = vrot.slane %v2209, 2
    %v2211 = vmax.f32 %v2209, %v2210
    %v2212 = vrot.slane %v2211, 1
    %v2213 = vmax.f32 %v2211, %v2212
    %v2214 = vsel %vm1072, %v810, -inf
    %v2215 = vrot.slane %v2214, 4
    %v2216 = vmax.f32 %v2214, %v2215
    %v2217 = vrot.slane %v2216, 2
    %v2218 = vmax.f32 %v2216, %v2217
    %v2219 = vrot.slane %v2218, 1
    %v2220 = vmax.f32 %v2218, %v2219
    %v2221 = vsel %vm1072, %v601, -inf
    %v2222 = vrot.slane %v2221, 4
    %v2223 = vmax.f32 %v2221, %v2222
    %v2224 = vrot.slane %v2223, 2
    %v2225 = vmax.f32 %v2223, %v2224
    %v2226 = vrot.slane %v2225, 1
    %v2227 = vmax.f32 %v2225, %v2226
    %v2228 = vsel %vm1072, %v811, -inf
    %v2229 = vrot.slane %v2228, 4
    %v2230 = vmax.f32 %v2228, %v2229
    %v2231 = vrot.slane %v2230, 2
    %v2232 = vmax.f32 %v2230, %v2231
    %v2233 = vrot.slane %v2232, 1
    %v2234 = vmax.f32 %v2232, %v2233
    %v2235 = vsel %vm1072, %v812, -inf
    %v2236 = vrot.slane %v2235, 4
    %v2237 = vmax.f32 %v2235, %v2236
    %v2238 = vrot.slane %v2237, 2
    %v2239 = vmax.f32 %v2237, %v2238
    %v2240 = vrot.slane %v2239, 1
    %v2241 = vmax.f32 %v2239, %v2240
    %v2242 = vsel %vm1072, %v813, -inf
    %v2243 = vrot.slane %v2242, 4
    %v2244 = vmax.f32 %v2242, %v2243
    %v2245 = vrot.slane %v2244, 2
    %v2246 = vmax.f32 %v2244, %v2245
    %v2247 = vrot.slane %v2246, 1
    %v2248 = vmax.f32 %v2246, %v2247
    %v2249 = vsel %vm1072, %v602, -inf
    %v2250 = vrot.slane %v2249, 4
    %v2251 = vmax.f32 %v2249, %v2250
    %v2252 = vrot.slane %v2251, 2
    %v2253 = vmax.f32 %v2251, %v2252
    %v2254 = vrot.slane %v2253, 1
    %v2255 = vmax.f32 %v2253, %v2254
    %v2256 = vsel %vm1072, %v814, -inf
    %v2257 = vrot.slane %v2256, 4
    %v2258 = vmax.f32 %v2256, %v2257
    %v2259 = vrot.slane %v2258, 2
    %v2260 = vmax.f32 %v2258, %v2259
    %v2261 = vrot.slane %v2260, 1
    %v2262 = vmax.f32 %v2260, %v2261
    %v2263 = vsel %vm1072, %v815, -inf
    %v2264 = vrot.slane %v2263, 4
    %v2265 = vmax.f32 %v2263, %v2264
    %v2266 = vrot.slane %v2265, 2
    %v2267 = vmax.f32 %v2265, %v2266
    %v2268 = vrot.slane %v2267, 1
    %v2269 = vmax.f32 %v2267, %v2268
    %v2270 = vsel %vm1072, %v816, -inf
    %v2271 = vrot.slane %v2270, 4
    %v2272 = vmax.f32 %v2270, %v2271
    %v2273 = vrot.slane %v2272, 2
    %v2274 = vmax.f32 %v2272, %v2273
    %v2275 = vrot.slane %v2274, 1
    %v2276 = vmax.f32 %v2274, %v2275
    %v2277 = vsel %vm1072, %v603, -inf
    %v2278 = vrot.slane %v2277, 4
    %v2279 = vmax.f32 %v2277, %v2278
    %v2280 = vrot.slane %v2279, 2
    %v2281 = vmax.f32 %v2279, %v2280
    %v2282 = vrot.slane %v2281, 1
    %v2283 = vmax.f32 %v2281, %v2282
    %v2284 = vsel %vm1072, %v817, -inf
    %v2285 = vrot.slane %v2284, 4
    %v2286 = vmax.f32 %v2284, %v2285
    %v2287 = vrot.slane %v2286, 2
    %v2288 = vmax.f32 %v2286, %v2287
    %v2289 = vrot.slane %v2288, 1
    %v2290 = vmax.f32 %v2288, %v2289
    %v2291 = vsel %vm1072, %v818, -inf
    %v2292 = vrot.slane %v2291, 4
    %v2293 = vmax.f32 %v2291, %v2292
    %v2294 = vrot.slane %v2293, 2
    %v2295 = vmax.f32 %v2293, %v2294
    %v2296 = vrot.slane %v2295, 1
    %v2297 = vmax.f32 %v2295, %v2296
    %v2298 = vsel %vm1072, %v819, -inf
    %v2299 = vrot.slane %v2298, 4
    %v2300 = vmax.f32 %v2298, %v2299
    %v2301 = vrot.slane %v2300, 2
    %v2302 = vmax.f32 %v2300, %v2301
    %v2303 = vrot.slane %v2302, 1
    %v2304 = vmax.f32 %v2302, %v2303
    %v2305 = vsel %vm1072, %v604, -inf
    %v2306 = vrot.slane %v2305, 4
    %v2307 = vmax.f32 %v2305, %v2306
    %v2308 = vrot.slane %v2307, 2
    %v2309 = vmax.f32 %v2307, %v2308
    %v2310 = vrot.slane %v2309, 1
    %v2311 = vmax.f32 %v2309, %v2310
    %v2312 = vsel %vm1072, %v820, -inf
    %v2313 = vrot.slane %v2312, 4
    %v2314 = vmax.f32 %v2312, %v2313
    %v2315 = vrot.slane %v2314, 2
    %v2316 = vmax.f32 %v2314, %v2315
    %v2317 = vrot.slane %v2316, 1
    %v2318 = vmax.f32 %v2316, %v2317
    %v2319 = vsel %vm1072, %v821, -inf
    %v2320 = vrot.slane %v2319, 4
    %v2321 = vmax.f32 %v2319, %v2320
    %v2322 = vrot.slane %v2321, 2
    %v2323 = vmax.f32 %v2321, %v2322
    %v2324 = vrot.slane %v2323, 1
    %v2325 = vmax.f32 %v2323, %v2324
    %v2326 = vsel %vm1072, %v822, -inf
    %v2327 = vrot.slane %v2326, 4
    %v2328 = vmax.f32 %v2326, %v2327
    %v2329 = vrot.slane %v2328, 2
    %v2330 = vmax.f32 %v2328, %v2329
    %v2331 = vrot.slane %v2330, 1
    %v2332 = vmax.f32 %v2330, %v2331
    %v2333 = vsel %vm1072, %v605, -inf
    %v2334 = vrot.slane %v2333, 4
    %v2335 = vmax.f32 %v2333, %v2334
    %v2336 = vrot.slane %v2335, 2
    %v2337 = vmax.f32 %v2335, %v2336
    %v2338 = vrot.slane %v2337, 1
    %v2339 = vmax.f32 %v2337, %v2338
    %v2340 = vsel %vm1072, %v823, -inf
    %v2341 = vrot.slane %v2340, 4
    %v2342 = vmax.f32 %v2340, %v2341
    %v2343 = vrot.slane %v2342, 2
    %v2344 = vmax.f32 %v2342, %v2343
    %v2345 = vrot.slane %v2344, 1
    %v2346 = vmax.f32 %v2344, %v2345
    %v2347 = vsel %vm1072, %v824, -inf
    %v2348 = vrot.slane %v2347, 4
    %v2349 = vmax.f32 %v2347, %v2348
    %v2350 = vrot.slane %v2349, 2
    %v2351 = vmax.f32 %v2349, %v2350
    %v2352 = vrot.slane %v2351, 1
    %v2353 = vmax.f32 %v2351, %v2352
    %v2354 = vsel %vm1072, %v825, -inf
    %v2355 = vrot.slane %v2354, 4
    %v2356 = vmax.f32 %v2354, %v2355
    %v2357 = vrot.slane %v2356, 2
    %v2358 = vmax.f32 %v2356, %v2357
    %v2359 = vrot.slane %v2358, 1
    %v2360 = vmax.f32 %v2358, %v2359
    %v2361 = vsel %vm1072, %v606, -inf
    %v2362 = vrot.slane %v2361, 4
    %v2363 = vmax.f32 %v2361, %v2362
    %v2364 = vrot.slane %v2363, 2
    %v2365 = vmax.f32 %v2363, %v2364
    %v2366 = vrot.slane %v2365, 1
    %v2367 = vmax.f32 %v2365, %v2366
    %v2368 = vsel %vm1072, %v826, -inf
    %v2369 = vrot.slane %v2368, 4
    %v2370 = vmax.f32 %v2368, %v2369
    %v2371 = vrot.slane %v2370, 2
    %v2372 = vmax.f32 %v2370, %v2371
    %v2373 = vrot.slane %v2372, 1
    %v2374 = vmax.f32 %v2372, %v2373
    %v2375 = vsel %vm1072, %v827, -inf
    %v2376 = vrot.slane %v2375, 4
    %v2377 = vmax.f32 %v2375, %v2376
    %v2378 = vrot.slane %v2377, 2
    %v2379 = vmax.f32 %v2377, %v2378
    %v2380 = vrot.slane %v2379, 1
    %v2381 = vmax.f32 %v2379, %v2380
    %v2382 = vsel %vm1072, %v828, -inf
    %v2383 = vrot.slane %v2382, 4
    %v2384 = vmax.f32 %v2382, %v2383
    %v2385 = vrot.slane %v2384, 2
    %v2386 = vmax.f32 %v2384, %v2385
    %v2387 = vrot.slane %v2386, 1
    %v2388 = vmax.f32 %v2386, %v2387
    %v2389 = vsel %vm1072, %v607, -inf
    %v2390 = vrot.slane %v2389, 4
    %v2391 = vmax.f32 %v2389, %v2390
    %v2392 = vrot.slane %v2391, 2
    %v2393 = vmax.f32 %v2391, %v2392
    %v2394 = vrot.slane %v2393, 1
    %v2395 = vmax.f32 %v2393, %v2394
    %v2396 = vsel %vm1072, %v829, -inf
    %v2397 = vrot.slane %v2396, 4
    %v2398 = vmax.f32 %v2396, %v2397
    %v2399 = vrot.slane %v2398, 2
    %v2400 = vmax.f32 %v2398, %v2399
    %v2401 = vrot.slane %v2400, 1
    %v2402 = vmax.f32 %v2400, %v2401
    %v2403 = vsel %vm1072, %v830, -inf
    %v2404 = vrot.slane %v2403, 4
    %v2405 = vmax.f32 %v2403, %v2404
    %v2406 = vrot.slane %v2405, 2
    %v2407 = vmax.f32 %v2405, %v2406
    %v2408 = vrot.slane %v2407, 1
    %v2409 = vmax.f32 %v2407, %v2408
    %v2410 = vsel %vm1072, %v831, -inf
    %v2411 = vrot.slane %v2410, 4
    %v2412 = vmax.f32 %v2410, %v2411
    %v2413 = vrot.slane %v2412, 2
    %v2414 = vmax.f32 %v2412, %v2413
    %v2415 = vrot.slane %v2414, 1
    %v2416 = vmax.f32 %v2414, %v2415
    %v2417 = vsel %vm1072, %v608, -inf
    %v2418 = vrot.slane %v2417, 4
    %v2419 = vmax.f32 %v2417, %v2418
    %v2420 = vrot.slane %v2419, 2
    %v2421 = vmax.f32 %v2419, %v2420
    %v2422 = vrot.slane %v2421, 1
    %v2423 = vmax.f32 %v2421, %v2422
    %v2424 = vsel %vm1072, %v832, -inf
    %v2425 = vrot.slane %v2424, 4
    %v2426 = vmax.f32 %v2424, %v2425
    %v2427 = vrot.slane %v2426, 2
    %v2428 = vmax.f32 %v2426, %v2427
    %v2429 = vrot.slane %v2428, 1
    %v2430 = vmax.f32 %v2428, %v2429
    %v2431 = vsel %vm1072, %v833, -inf
    %v2432 = vrot.slane %v2431, 4
    %v2433 = vmax.f32 %v2431, %v2432
    %v2434 = vrot.slane %v2433, 2
    %v2435 = vmax.f32 %v2433, %v2434
    %v2436 = vrot.slane %v2435, 1
    %v2437 = vmax.f32 %v2435, %v2436
    %v2438 = vsel %vm1072, %v834, -inf
    %v2439 = vrot.slane %v2438, 4
    %v2440 = vmax.f32 %v2438, %v2439
    %v2441 = vrot.slane %v2440, 2
    %v2442 = vmax.f32 %v2440, %v2441
    %v2443 = vrot.slane %v2442, 1
    %v2444 = vmax.f32 %v2442, %v2443
    %v2445 = vsel %vm1072, %v609, -inf
    %v2446 = vrot.slane %v2445, 4
    %v2447 = vmax.f32 %v2445, %v2446
    %v2448 = vrot.slane %v2447, 2
    %v2449 = vmax.f32 %v2447, %v2448
    %v2450 = vrot.slane %v2449, 1
    %v2451 = vmax.f32 %v2449, %v2450
    %v2452 = vsel %vm1072, %v835, -inf
    %v2453 = vrot.slane %v2452, 4
    %v2454 = vmax.f32 %v2452, %v2453
    %v2455 = vrot.slane %v2454, 2
    %v2456 = vmax.f32 %v2454, %v2455
    %v2457 = vrot.slane %v2456, 1
    %v2458 = vmax.f32 %v2456, %v2457
    %v2459 = vsel %vm1072, %v836, -inf
    %v2460 = vrot.slane %v2459, 4
    %v2461 = vmax.f32 %v2459, %v2460
    %v2462 = vrot.slane %v2461, 2
    %v2463 = vmax.f32 %v2461, %v2462
    %v2464 = vrot.slane %v2463, 1
    %v2465 = vmax.f32 %v2463, %v2464
    %v2466 = vsel %vm1072, %v837, -inf
    %v2467 = vrot.slane %v2466, 4
    %v2468 = vmax.f32 %v2466, %v2467
    %v2469 = vrot.slane %v2468, 2
    %v2470 = vmax.f32 %v2468, %v2469
    %v2471 = vrot.slane %v2470, 1
    %v2472 = vmax.f32 %v2470, %v2471
    %v2473 = vsel %vm1072, %v610, -inf
    %v2474 = vrot.slane %v2473, 4
    %v2475 = vmax.f32 %v2473, %v2474
    %v2476 = vrot.slane %v2475, 2
    %v2477 = vmax.f32 %v2475, %v2476
    %v2478 = vrot.slane %v2477, 1
    %v2479 = vmax.f32 %v2477, %v2478
    %v2480 = vsel %vm1072, %v838, -inf
    %v2481 = vrot.slane %v2480, 4
    %v2482 = vmax.f32 %v2480, %v2481
    %v2483 = vrot.slane %v2482, 2
    %v2484 = vmax.f32 %v2482, %v2483
    %v2485 = vrot.slane %v2484, 1
    %v2486 = vmax.f32 %v2484, %v2485
    %v2487 = vsel %vm1072, %v839, -inf
    %v2488 = vrot.slane %v2487, 4
    %v2489 = vmax.f32 %v2487, %v2488
    %v2490 = vrot.slane %v2489, 2
    %v2491 = vmax.f32 %v2489, %v2490
    %v2492 = vrot.slane %v2491, 1
    %v2493 = vmax.f32 %v2491, %v2492
    %v2494 = vsel %vm1072, %v840, -inf
    %v2495 = vrot.slane %v2494, 4
    %v2496 = vmax.f32 %v2494, %v2495
    %v2497 = vrot.slane %v2496, 2
    %v2498 = vmax.f32 %v2496, %v2497
    %v2499 = vrot.slane %v2498, 1
    %v2500 = vmax.f32 %v2498, %v2499
    %v2501 = vsel %vm1072, %v611, -inf
    %v2502 = vrot.slane %v2501, 4
    %v2503 = vmax.f32 %v2501, %v2502
    %v2504 = vrot.slane %v2503, 2
    %v2505 = vmax.f32 %v2503, %v2504
    %v2506 = vrot.slane %v2505, 1
    %v2507 = vmax.f32 %v2505, %v2506
    %v2508 = vsel %vm1072, %v841, -inf
    %v2509 = vrot.slane %v2508, 4
    %v2510 = vmax.f32 %v2508, %v2509
    %v2511 = vrot.slane %v2510, 2
    %v2512 = vmax.f32 %v2510, %v2511
    %v2513 = vrot.slane %v2512, 1
    %v2514 = vmax.f32 %v2512, %v2513
    %v2515 = vsel %vm1072, %v842, -inf
    %v2516 = vrot.slane %v2515, 4
    %v2517 = vmax.f32 %v2515, %v2516
    %v2518 = vrot.slane %v2517, 2
    %v2519 = vmax.f32 %v2517, %v2518
    %v2520 = vrot.slane %v2519, 1
    %v2521 = vmax.f32 %v2519, %v2520
    %v2522 = vsel %vm1072, %v843, -inf
    %v2523 = vrot.slane %v2522, 4
    %v2524 = vmax.f32 %v2522, %v2523
    %v2525 = vrot.slane %v2524, 2
    %v2526 = vmax.f32 %v2524, %v2525
    %v2527 = vrot.slane %v2526, 1
    %v2528 = vmax.f32 %v2526, %v2527
    %v2529 = vsel %vm1072, %v612, -inf
    %v2530 = vrot.slane %v2529, 4
    %v2531 = vmax.f32 %v2529, %v2530
    %v2532 = vrot.slane %v2531, 2
    %v2533 = vmax.f32 %v2531, %v2532
    %v2534 = vrot.slane %v2533, 1
    %v2535 = vmax.f32 %v2533, %v2534
    %v2536 = vsel %vm1072, %v844, -inf
    %v2537 = vrot.slane %v2536, 4
    %v2538 = vmax.f32 %v2536, %v2537
    %v2539 = vrot.slane %v2538, 2
    %v2540 = vmax.f32 %v2538, %v2539
    %v2541 = vrot.slane %v2540, 1
    %v2542 = vmax.f32 %v2540, %v2541
    %v2543 = vsel %vm1072, %v845, -inf
    %v2544 = vrot.slane %v2543, 4
    %v2545 = vmax.f32 %v2543, %v2544
    %v2546 = vrot.slane %v2545, 2
    %v2547 = vmax.f32 %v2545, %v2546
    %v2548 = vrot.slane %v2547, 1
    %v2549 = vmax.f32 %v2547, %v2548
    %v2550 = vsel %vm1072, %v846, -inf
    %v2551 = vrot.slane %v2550, 4
    %v2552 = vmax.f32 %v2550, %v2551
    %v2553 = vrot.slane %v2552, 2
    %v2554 = vmax.f32 %v2552, %v2553
    %v2555 = vrot.slane %v2554, 1
    %v2556 = vmax.f32 %v2554, %v2555
    %v2557 = vsel %vm1072, %v613, -inf
    %v2558 = vrot.slane %v2557, 4
    %v2559 = vmax.f32 %v2557, %v2558
    %v2560 = vrot.slane %v2559, 2
    %v2561 = vmax.f32 %v2559, %v2560
    %v2562 = vrot.slane %v2561, 1
    %v2563 = vmax.f32 %v2561, %v2562
    %v2564 = vsel %vm1072, %v847, -inf
    %v2565 = vrot.slane %v2564, 4
    %v2566 = vmax.f32 %v2564, %v2565
    %v2567 = vrot.slane %v2566, 2
    %v2568 = vmax.f32 %v2566, %v2567
    %v2569 = vrot.slane %v2568, 1
    %v2570 = vmax.f32 %v2568, %v2569
    %v2571 = vsel %vm1072, %v848, -inf
    %v2572 = vrot.slane %v2571, 4
    %v2573 = vmax.f32 %v2571, %v2572
    %v2574 = vrot.slane %v2573, 2
    %v2575 = vmax.f32 %v2573, %v2574
    %v2576 = vrot.slane %v2575, 1
    %v2577 = vmax.f32 %v2575, %v2576
    %v2578 = vsel %vm1072, %v849, -inf
    %v2579 = vrot.slane %v2578, 4
    %v2580 = vmax.f32 %v2578, %v2579
    %v2581 = vrot.slane %v2580, 2
    %v2582 = vmax.f32 %v2580, %v2581
    %v2583 = vrot.slane %v2582, 1
    %v2584 = vmax.f32 %v2582, %v2583
    %v2585 = vsel %vm1072, %v614, -inf
    %v2586 = vrot.slane %v2585, 4
    %v2587 = vmax.f32 %v2585, %v2586
    %v2588 = vrot.slane %v2587, 2
    %v2589 = vmax.f32 %v2587, %v2588
    %v2590 = vrot.slane %v2589, 1
    %v2591 = vmax.f32 %v2589, %v2590
    %v2592 = vsel %vm1072, %v850, -inf
    %v2593 = vrot.slane %v2592, 4
    %v2594 = vmax.f32 %v2592, %v2593
    %v2595 = vrot.slane %v2594, 2
    %v2596 = vmax.f32 %v2594, %v2595
    %v2597 = vrot.slane %v2596, 1
    %v2598 = vmax.f32 %v2596, %v2597
    %v2599 = vsel %vm1072, %v851, -inf
    %v2600 = vrot.slane %v2599, 4
    %v2601 = vmax.f32 %v2599, %v2600
    %v2602 = vrot.slane %v2601, 2
    %v2603 = vmax.f32 %v2601, %v2602
    %v2604 = vrot.slane %v2603, 1
    %v2605 = vmax.f32 %v2603, %v2604
    %v2606 = vsel %vm1072, %v852, -inf
    %v2607 = vrot.slane %v2606, 4
    %v2608 = vmax.f32 %v2606, %v2607
    %v2609 = vrot.slane %v2608, 2
    %v2610 = vmax.f32 %v2608, %v2609
    %v2611 = vrot.slane %v2610, 1
    %v2612 = vmax.f32 %v2610, %v2611
    %v2613 = vsel %vm1072, %v615, -inf
    %v2614 = vrot.slane %v2613, 4
    %v2615 = vmax.f32 %v2613, %v2614
    %v2616 = vrot.slane %v2615, 2
    %v2617 = vmax.f32 %v2615, %v2616
    %v2618 = vrot.slane %v2617, 1
    %v2619 = vmax.f32 %v2617, %v2618
    %v2620 = vsel %vm1072, %v853, -inf
    %v2621 = vrot.slane %v2620, 4
    %v2622 = vmax.f32 %v2620, %v2621
    %v2623 = vrot.slane %v2622, 2
    %v2624 = vmax.f32 %v2622, %v2623
    %v2625 = vrot.slane %v2624, 1
    %v2626 = vmax.f32 %v2624, %v2625
    %v2627 = vsel %vm1072, %v854, -inf
    %v2628 = vrot.slane %v2627, 4
    %v2629 = vmax.f32 %v2627, %v2628
    %v2630 = vrot.slane %v2629, 2
    %v2631 = vmax.f32 %v2629, %v2630
    %v2632 = vrot.slane %v2631, 1
    %v2633 = vmax.f32 %v2631, %v2632
    %v2634 = vsel %vm1072, %v855, -inf
    %v2635 = vrot.slane %v2634, 4
    %v2636 = vmax.f32 %v2634, %v2635
    %v2637 = vrot.slane %v2636, 2
    %v2638 = vmax.f32 %v2636, %v2637
    %v2639 = vrot.slane %v2638, 1
    %v2640 = vmax.f32 %v2638, %v2639
    %v2641 = vsel %vm1072, %v616, -inf
    %v2642 = vrot.slane %v2641, 4
    %v2643 = vmax.f32 %v2641, %v2642
    %v2644 = vrot.slane %v2643, 2
    %v2645 = vmax.f32 %v2643, %v2644
    %v2646 = vrot.slane %v2645, 1
    %v2647 = vmax.f32 %v2645, %v2646
    %v2648 = vsel %vm1072, %v856, -inf
    %v2649 = vrot.slane %v2648, 4
    %v2650 = vmax.f32 %v2648, %v2649
    %v2651 = vrot.slane %v2650, 2
    %v2652 = vmax.f32 %v2650, %v2651
    %v2653 = vrot.slane %v2652, 1
    %v2654 = vmax.f32 %v2652, %v2653
    %v2655 = vsel %vm1072, %v857, -inf
    %v2656 = vrot.slane %v2655, 4
    %v2657 = vmax.f32 %v2655, %v2656
    %v2658 = vrot.slane %v2657, 2
    %v2659 = vmax.f32 %v2657, %v2658
    %v2660 = vrot.slane %v2659, 1
    %v2661 = vmax.f32 %v2659, %v2660
    %v2662 = vsel %vm1072, %v858, -inf
    %v2663 = vrot.slane %v2662, 4
    %v2664 = vmax.f32 %v2662, %v2663
    %v2665 = vrot.slane %v2664, 2
    %v2666 = vmax.f32 %v2664, %v2665
    %v2667 = vrot.slane %v2666, 1
    %v2668 = vmax.f32 %v2666, %v2667
    %v2669 = vsel %vm1072, %v617, -inf
    %v2670 = vrot.slane %v2669, 4
    %v2671 = vmax.f32 %v2669, %v2670
    %v2672 = vrot.slane %v2671, 2
    %v2673 = vmax.f32 %v2671, %v2672
    %v2674 = vrot.slane %v2673, 1
    %v2675 = vmax.f32 %v2673, %v2674
    %v2676 = vsel %vm1072, %v859, -inf
    %v2677 = vrot.slane %v2676, 4
    %v2678 = vmax.f32 %v2676, %v2677
    %v2679 = vrot.slane %v2678, 2
    %v2680 = vmax.f32 %v2678, %v2679
    %v2681 = vrot.slane %v2680, 1
    %v2682 = vmax.f32 %v2680, %v2681
    %v2683 = vsel %vm1072, %v860, -inf
    %v2684 = vrot.slane %v2683, 4
    %v2685 = vmax.f32 %v2683, %v2684
    %v2686 = vrot.slane %v2685, 2
    %v2687 = vmax.f32 %v2685, %v2686
    %v2688 = vrot.slane %v2687, 1
    %v2689 = vmax.f32 %v2687, %v2688
    %v2690 = vsel %vm1072, %v861, -inf
    %v2691 = vrot.slane %v2690, 4
    %v2692 = vmax.f32 %v2690, %v2691
    %v2693 = vrot.slane %v2692, 2
    %v2694 = vmax.f32 %v2692, %v2693
    %v2695 = vrot.slane %v2694, 1
    %v2696 = vmax.f32 %v2694, %v2695
    %v2697 = vsel %vm1072, %v618, -inf
    %v2698 = vrot.slane %v2697, 4
    %v2699 = vmax.f32 %v2697, %v2698
    %v2700 = vrot.slane %v2699, 2
    %v2701 = vmax.f32 %v2699, %v2700
    %v2702 = vrot.slane %v2701, 1
    %v2703 = vmax.f32 %v2701, %v2702
    %v2704 = vsel %vm1072, %v862, -inf
    %v2705 = vrot.slane %v2704, 4
    %v2706 = vmax.f32 %v2704, %v2705
    %v2707 = vrot.slane %v2706, 2
    %v2708 = vmax.f32 %v2706, %v2707
    %v2709 = vrot.slane %v2708, 1
    %v2710 = vmax.f32 %v2708, %v2709
    %v2711 = vsel %vm1072, %v863, -inf
    %v2712 = vrot.slane %v2711, 4
    %v2713 = vmax.f32 %v2711, %v2712
    %v2714 = vrot.slane %v2713, 2
    %v2715 = vmax.f32 %v2713, %v2714
    %v2716 = vrot.slane %v2715, 1
    %v2717 = vmax.f32 %v2715, %v2716
    %v2718 = vsel %vm1072, %v864, -inf
    %v2719 = vrot.slane %v2718, 4
    %v2720 = vmax.f32 %v2718, %v2719
    %v2721 = vrot.slane %v2720, 2
    %v2722 = vmax.f32 %v2720, %v2721
    %v2723 = vrot.slane %v2722, 1
    %v2724 = vmax.f32 %v2722, %v2723
    %v2725 = vsel %vm1072, %v619, -inf
    %v2726 = vrot.slane %v2725, 4
    %v2727 = vmax.f32 %v2725, %v2726
    %v2728 = vrot.slane %v2727, 2
    %v2729 = vmax.f32 %v2727, %v2728
    %v2730 = vrot.slane %v2729, 1
    %v2731 = vmax.f32 %v2729, %v2730
    %v2732 = vsel %vm1072, %v865, -inf
    %v2733 = vrot.slane %v2732, 4
    %v2734 = vmax.f32 %v2732, %v2733
    %v2735 = vrot.slane %v2734, 2
    %v2736 = vmax.f32 %v2734, %v2735
    %v2737 = vrot.slane %v2736, 1
    %v2738 = vmax.f32 %v2736, %v2737
    %v2739 = vsel %vm1072, %v866, -inf
    %v2740 = vrot.slane %v2739, 4
    %v2741 = vmax.f32 %v2739, %v2740
    %v2742 = vrot.slane %v2741, 2
    %v2743 = vmax.f32 %v2741, %v2742
    %v2744 = vrot.slane %v2743, 1
    %v2745 = vmax.f32 %v2743, %v2744
    %v2746 = vsel %vm1072, %v867, -inf
    %v2747 = vrot.slane %v2746, 4
    %v2748 = vmax.f32 %v2746, %v2747
    %v2749 = vrot.slane %v2748, 2
    %v2750 = vmax.f32 %v2748, %v2749
    %v2751 = vrot.slane %v2750, 1
    %v2752 = vmax.f32 %v2750, %v2751
    %v2753 = vsel %vm1072, %v620, -inf
    %v2754 = vrot.slane %v2753, 4
    %v2755 = vmax.f32 %v2753, %v2754
    %v2756 = vrot.slane %v2755, 2
    %v2757 = vmax.f32 %v2755, %v2756
    %v2758 = vrot.slane %v2757, 1
    %v2759 = vmax.f32 %v2757, %v2758
    %v2760 = vsel %vm1072, %v868, -inf
    %v2761 = vrot.slane %v2760, 4
    %v2762 = vmax.f32 %v2760, %v2761
    %v2763 = vrot.slane %v2762, 2
    %v2764 = vmax.f32 %v2762, %v2763
    %v2765 = vrot.slane %v2764, 1
    %v2766 = vmax.f32 %v2764, %v2765
    %v2767 = vsel %vm1072, %v869, -inf
    %v2768 = vrot.slane %v2767, 4
    %v2769 = vmax.f32 %v2767, %v2768
    %v2770 = vrot.slane %v2769, 2
    %v2771 = vmax.f32 %v2769, %v2770
    %v2772 = vrot.slane %v2771, 1
    %v2773 = vmax.f32 %v2771, %v2772
    %v2774 = vsel %vm1072, %v870, -inf
    %v2775 = vrot.slane %v2774, 4
    %v2776 = vmax.f32 %v2774, %v2775
    %v2777 = vrot.slane %v2776, 2
    %v2778 = vmax.f32 %v2776, %v2777
    %v2779 = vrot.slane %v2778, 1
    %v2780 = vmax.f32 %v2778, %v2779
    %v2781 = vsel %vm1072, %v621, -inf
    %v2782 = vrot.slane %v2781, 4
    %v2783 = vmax.f32 %v2781, %v2782
    %v2784 = vrot.slane %v2783, 2
    %v2785 = vmax.f32 %v2783, %v2784
    %v2786 = vrot.slane %v2785, 1
    %v2787 = vmax.f32 %v2785, %v2786
    %v2788 = vsel %vm1072, %v871, -inf
    %v2789 = vrot.slane %v2788, 4
    %v2790 = vmax.f32 %v2788, %v2789
    %v2791 = vrot.slane %v2790, 2
    %v2792 = vmax.f32 %v2790, %v2791
    %v2793 = vrot.slane %v2792, 1
    %v2794 = vmax.f32 %v2792, %v2793
    %v2795 = vsel %vm1072, %v872, -inf
    %v2796 = vrot.slane %v2795, 4
    %v2797 = vmax.f32 %v2795, %v2796
    %v2798 = vrot.slane %v2797, 2
    %v2799 = vmax.f32 %v2797, %v2798
    %v2800 = vrot.slane %v2799, 1
    %v2801 = vmax.f32 %v2799, %v2800
    %v2802 = vsel %vm1072, %v873, -inf
    %v2803 = vrot.slane %v2802, 4
    %v2804 = vmax.f32 %v2802, %v2803
    %v2805 = vrot.slane %v2804, 2
    %v2806 = vmax.f32 %v2804, %v2805
    %v2807 = vrot.slane %v2806, 1
    %v2808 = vmax.f32 %v2806, %v2807
    %v2809 = vsel %vm1072, %v622, -inf
    %v2810 = vrot.slane %v2809, 4
    %v2811 = vmax.f32 %v2809, %v2810
    %v2812 = vrot.slane %v2811, 2
    %v2813 = vmax.f32 %v2811, %v2812
    %v2814 = vrot.slane %v2813, 1
    %v2815 = vmax.f32 %v2813, %v2814
    %v2816 = vsel %vm1072, %v874, -inf
    %v2817 = vrot.slane %v2816, 4
    %v2818 = vmax.f32 %v2816, %v2817
    %v2819 = vrot.slane %v2818, 2
    %v2820 = vmax.f32 %v2818, %v2819
    %v2821 = vrot.slane %v2820, 1
    %v2822 = vmax.f32 %v2820, %v2821
    %v2823 = vsel %vm1072, %v875, -inf
    %v2824 = vrot.slane %v2823, 4
    %v2825 = vmax.f32 %v2823, %v2824
    %v2826 = vrot.slane %v2825, 2
    %v2827 = vmax.f32 %v2825, %v2826
    %v2828 = vrot.slane %v2827, 1
    %v2829 = vmax.f32 %v2827, %v2828
    %v2830 = vsel %vm1072, %v876, -inf
    %v2831 = vrot.slane %v2830, 4
    %v2832 = vmax.f32 %v2830, %v2831
    %v2833 = vrot.slane %v2832, 2
    %v2834 = vmax.f32 %v2832, %v2833
    %v2835 = vrot.slane %v2834, 1
    %v2836 = vmax.f32 %v2834, %v2835
    %v2837 = vsel %vm1072, %v623, -inf
    %v2838 = vrot.slane %v2837, 4
    %v2839 = vmax.f32 %v2837, %v2838
    %v2840 = vrot.slane %v2839, 2
    %v2841 = vmax.f32 %v2839, %v2840
    %v2842 = vrot.slane %v2841, 1
    %v2843 = vmax.f32 %v2841, %v2842
    %v2844 = vsel %vm1072, %v877, -inf
    %v2845 = vrot.slane %v2844, 4
    %v2846 = vmax.f32 %v2844, %v2845
    %v2847 = vrot.slane %v2846, 2
    %v2848 = vmax.f32 %v2846, %v2847
    %v2849 = vrot.slane %v2848, 1
    %v2850 = vmax.f32 %v2848, %v2849
    %v2851 = vsel %vm1072, %v878, -inf
    %v2852 = vrot.slane %v2851, 4
    %v2853 = vmax.f32 %v2851, %v2852
    %v2854 = vrot.slane %v2853, 2
    %v2855 = vmax.f32 %v2853, %v2854
    %v2856 = vrot.slane %v2855, 1
    %v2857 = vmax.f32 %v2855, %v2856
    %v2858 = vsel %vm1072, %v879, -inf
    %v2859 = vrot.slane %v2858, 4
    %v2860 = vmax.f32 %v2858, %v2859
    %v2861 = vrot.slane %v2860, 2
    %v2862 = vmax.f32 %v2860, %v2861
    %v2863 = vrot.slane %v2862, 1
    %v2864 = vmax.f32 %v2862, %v2863
    %vm2865 = vcmask 261120
    %v2866 = vsel %vm2865, %v1079, -inf
    %v2867 = vsel %vm2865, %v1135, -inf
    %v2868 = vmax.f32 %v2866, %v2867
    %v2869 = vsel %vm2865, %v1086, -inf
    %v2870 = vsel %vm2865, %v1142, -inf
    %v2871 = vmax.f32 %v2869, %v2870
    %v2872 = vsel %vm2865, %v1093, -inf
    %v2873 = vsel %vm2865, %v1149, -inf
    %v2874 = vmax.f32 %v2872, %v2873
    %v2875 = vsel %vm2865, %v1100, -inf
    %v2876 = vsel %vm2865, %v1156, -inf
    %v2877 = vmax.f32 %v2875, %v2876
    %v2878 = vsel %vm2865, %v1107, -inf
    %v2879 = vsel %vm2865, %v1163, -inf
    %v2880 = vmax.f32 %v2878, %v2879
    %v2881 = vsel %vm2865, %v1114, -inf
    %v2882 = vsel %vm2865, %v1170, -inf
    %v2883 = vmax.f32 %v2881, %v2882
    %v2884 = vsel %vm2865, %v1121, -inf
    %v2885 = vsel %vm2865, %v1177, -inf
    %v2886 = vmax.f32 %v2884, %v2885
    %v2887 = vsel %vm2865, %v1128, -inf
    %v2888 = vsel %vm2865, %v1184, -inf
    %v2889 = vmax.f32 %v2887, %v2888
    %v2890 = vsel %vm2865, %v1191, -inf
    %v2891 = vsel %vm2865, %v1247, -inf
    %v2892 = vmax.f32 %v2890, %v2891
    %v2893 = vsel %vm2865, %v1198, -inf
    %v2894 = vsel %vm2865, %v1254, -inf
    %v2895 = vmax.f32 %v2893, %v2894
    %v2896 = vsel %vm2865, %v1205, -inf
    %v2897 = vsel %vm2865, %v1261, -inf
    %v2898 = vmax.f32 %v2896, %v2897
    %v2899 = vsel %vm2865, %v1212, -inf
    %v2900 = vsel %vm2865, %v1268, -inf
    %v2901 = vmax.f32 %v2899, %v2900
    %v2902 = vsel %vm2865, %v1219, -inf
    %v2903 = vsel %vm2865, %v1275, -inf
    %v2904 = vmax.f32 %v2902, %v2903
    %v2905 = vsel %vm2865, %v1226, -inf
    %v2906 = vsel %vm2865, %v1282, -inf
    %v2907 = vmax.f32 %v2905, %v2906
    %v2908 = vsel %vm2865, %v1233, -inf
    %v2909 = vsel %vm2865, %v1289, -inf
    %v2910 = vmax.f32 %v2908, %v2909
    %v2911 = vsel %vm2865, %v1240, -inf
    %v2912 = vsel %vm2865, %v1296, -inf
    %v2913 = vmax.f32 %v2911, %v2912
    %v2914 = vsel %vm2865, %v1303, -inf
    %v2915 = vsel %vm2865, %v1359, -inf
    %v2916 = vmax.f32 %v2914, %v2915
    %v2917 = vsel %vm2865, %v1310, -inf
    %v2918 = vsel %vm2865, %v1366, -inf
    %v2919 = vmax.f32 %v2917, %v2918
    %v2920 = vsel %vm2865, %v1317, -inf
    %v2921 = vsel %vm2865, %v1373, -inf
    %v2922 = vmax.f32 %v2920, %v2921
    %v2923 = vsel %vm2865, %v1324, -inf
    %v2924 = vsel %vm2865, %v1380, -inf
    %v2925 = vmax.f32 %v2923, %v2924
    %v2926 = vsel %vm2865, %v1331, -inf
    %v2927 = vsel %vm2865, %v1387, -inf
    %v2928 = vmax.f32 %v2926, %v2927
    %v2929 = vsel %vm2865, %v1338, -inf
    %v2930 = vsel %vm2865, %v1394, -inf
    %v2931 = vmax.f32 %v2929, %v2930
    %v2932 = vsel %vm2865, %v1345, -inf
    %v2933 = vsel %vm2865, %v1401, -inf
    %v2934 = vmax.f32 %v2932, %v2933
    %v2935 = vsel %vm2865, %v1352, -inf
    %v2936 = vsel %vm2865, %v1408, -inf
    %v2937 = vmax.f32 %v2935, %v2936
    %v2938 = vsel %vm2865, %v1415, -inf
    %v2939 = vsel %vm2865, %v1471, -inf
    %v2940 = vmax.f32 %v2938, %v2939
    %v2941 = vsel %vm2865, %v1422, -inf
    %v2942 = vsel %vm2865, %v1478, -inf
    %v2943 = vmax.f32 %v2941, %v2942
    %v2944 = vsel %vm2865, %v1429, -inf
    %v2945 = vsel %vm2865, %v1485, -inf
    %v2946 = vmax.f32 %v2944, %v2945
    %v2947 = vsel %vm2865, %v1436, -inf
    %v2948 = vsel %vm2865, %v1492, -inf
    %v2949 = vmax.f32 %v2947, %v2948
    %v2950 = vsel %vm2865, %v1443, -inf
    %v2951 = vsel %vm2865, %v1499, -inf
    %v2952 = vmax.f32 %v2950, %v2951
    %v2953 = vsel %vm2865, %v1450, -inf
    %v2954 = vsel %vm2865, %v1506, -inf
    %v2955 = vmax.f32 %v2953, %v2954
    %v2956 = vsel %vm2865, %v1457, -inf
    %v2957 = vsel %vm2865, %v1513, -inf
    %v2958 = vmax.f32 %v2956, %v2957
    %v2959 = vsel %vm2865, %v1464, -inf
    %v2960 = vsel %vm2865, %v1520, -inf
    %v2961 = vmax.f32 %v2959, %v2960
    %v2962 = vsel %vm2865, %v1527, -inf
    %v2963 = vsel %vm2865, %v1583, -inf
    %v2964 = vmax.f32 %v2962, %v2963
    %v2965 = vsel %vm2865, %v1534, -inf
    %v2966 = vsel %vm2865, %v1590, -inf
    %v2967 = vmax.f32 %v2965, %v2966
    %v2968 = vsel %vm2865, %v1541, -inf
    %v2969 = vsel %vm2865, %v1597, -inf
    %v2970 = vmax.f32 %v2968, %v2969
    %v2971 = vsel %vm2865, %v1548, -inf
    %v2972 = vsel %vm2865, %v1604, -inf
    %v2973 = vmax.f32 %v2971, %v2972
    %v2974 = vsel %vm2865, %v1555, -inf
    %v2975 = vsel %vm2865, %v1611, -inf
    %v2976 = vmax.f32 %v2974, %v2975
    %v2977 = vsel %vm2865, %v1562, -inf
    %v2978 = vsel %vm2865, %v1618, -inf
    %v2979 = vmax.f32 %v2977, %v2978
    %v2980 = vsel %vm2865, %v1569, -inf
    %v2981 = vsel %vm2865, %v1625, -inf
    %v2982 = vmax.f32 %v2980, %v2981
    %v2983 = vsel %vm2865, %v1576, -inf
    %v2984 = vsel %vm2865, %v1632, -inf
    %v2985 = vmax.f32 %v2983, %v2984
    %v2986 = vsel %vm2865, %v1639, -inf
    %v2987 = vsel %vm2865, %v1695, -inf
    %v2988 = vmax.f32 %v2986, %v2987
    %v2989 = vsel %vm2865, %v1646, -inf
    %v2990 = vsel %vm2865, %v1702, -inf
    %v2991 = vmax.f32 %v2989, %v2990
    %v2992 = vsel %vm2865, %v1653, -inf
    %v2993 = vsel %vm2865, %v1709, -inf
    %v2994 = vmax.f32 %v2992, %v2993
    %v2995 = vsel %vm2865, %v1660, -inf
    %v2996 = vsel %vm2865, %v1716, -inf
    %v2997 = vmax.f32 %v2995, %v2996
    %v2998 = vsel %vm2865, %v1667, -inf
    %v2999 = vsel %vm2865, %v1723, -inf
    %v3000 = vmax.f32 %v2998, %v2999
    %v3001 = vsel %vm2865, %v1674, -inf
    %v3002 = vsel %vm2865, %v1730, -inf
    %v3003 = vmax.f32 %v3001, %v3002
    %v3004 = vsel %vm2865, %v1681, -inf
    %v3005 = vsel %vm2865, %v1737, -inf
    %v3006 = vmax.f32 %v3004, %v3005
    %v3007 = vsel %vm2865, %v1688, -inf
    %v3008 = vsel %vm2865, %v1744, -inf
    %v3009 = vmax.f32 %v3007, %v3008
    %v3010 = vsel %vm2865, %v1751, -inf
    %v3011 = vsel %vm2865, %v1807, -inf
    %v3012 = vmax.f32 %v3010, %v3011
    %v3013 = vsel %vm2865, %v1758, -inf
    %v3014 = vsel %vm2865, %v1814, -inf
    %v3015 = vmax.f32 %v3013, %v3014
    %v3016 = vsel %vm2865, %v1765, -inf
    %v3017 = vsel %vm2865, %v1821, -inf
    %v3018 = vmax.f32 %v3016, %v3017
    %v3019 = vsel %vm2865, %v1772, -inf
    %v3020 = vsel %vm2865, %v1828, -inf
    %v3021 = vmax.f32 %v3019, %v3020
    %v3022 = vsel %vm2865, %v1779, -inf
    %v3023 = vsel %vm2865, %v1835, -inf
    %v3024 = vmax.f32 %v3022, %v3023
    %v3025 = vsel %vm2865, %v1786, -inf
    %v3026 = vsel %vm2865, %v1842, -inf
    %v3027 = vmax.f32 %v3025, %v3026
    %v3028 = vsel %vm2865, %v1793, -inf
    %v3029 = vsel %vm2865, %v1849, -inf
    %v3030 = vmax.f32 %v3028, %v3029
    %v3031 = vsel %vm2865, %v1800, -inf
    %v3032 = vsel %vm2865, %v1856, -inf
    %v3033 = vmax.f32 %v3031, %v3032
    %v3034 = vsel %vm2865, %v1863, -inf
    %v3035 = vsel %vm2865, %v1919, -inf
    %v3036 = vmax.f32 %v3034, %v3035
    %v3037 = vsel %vm2865, %v1870, -inf
    %v3038 = vsel %vm2865, %v1926, -inf
    %v3039 = vmax.f32 %v3037, %v3038
    %v3040 = vsel %vm2865, %v1877, -inf
    %v3041 = vsel %vm2865, %v1933, -inf
    %v3042 = vmax.f32 %v3040, %v3041
    %v3043 = vsel %vm2865, %v1884, -inf
    %v3044 = vsel %vm2865, %v1940, -inf
    %v3045 = vmax.f32 %v3043, %v3044
    %v3046 = vsel %vm2865, %v1891, -inf
    %v3047 = vsel %vm2865, %v1947, -inf
    %v3048 = vmax.f32 %v3046, %v3047
    %v3049 = vsel %vm2865, %v1898, -inf
    %v3050 = vsel %vm2865, %v1954, -inf
    %v3051 = vmax.f32 %v3049, %v3050
    %v3052 = vsel %vm2865, %v1905, -inf
    %v3053 = vsel %vm2865, %v1961, -inf
    %v3054 = vmax.f32 %v3052, %v3053
    %v3055 = vsel %vm2865, %v1912, -inf
    %v3056 = vsel %vm2865, %v1968, -inf
    %v3057 = vmax.f32 %v3055, %v3056
    %v3058 = vsel %vm2865, %v1975, -inf
    %v3059 = vsel %vm2865, %v2031, -inf
    %v3060 = vmax.f32 %v3058, %v3059
    %v3061 = vsel %vm2865, %v1982, -inf
    %v3062 = vsel %vm2865, %v2038, -inf
    %v3063 = vmax.f32 %v3061, %v3062
    %v3064 = vsel %vm2865, %v1989, -inf
    %v3065 = vsel %vm2865, %v2045, -inf
    %v3066 = vmax.f32 %v3064, %v3065
    %v3067 = vsel %vm2865, %v1996, -inf
    %v3068 = vsel %vm2865, %v2052, -inf
    %v3069 = vmax.f32 %v3067, %v3068
    %v3070 = vsel %vm2865, %v2003, -inf
    %v3071 = vsel %vm2865, %v2059, -inf
    %v3072 = vmax.f32 %v3070, %v3071
    %v3073 = vsel %vm2865, %v2010, -inf
    %v3074 = vsel %vm2865, %v2066, -inf
    %v3075 = vmax.f32 %v3073, %v3074
    %v3076 = vsel %vm2865, %v2017, -inf
    %v3077 = vsel %vm2865, %v2073, -inf
    %v3078 = vmax.f32 %v3076, %v3077
    %v3079 = vsel %vm2865, %v2024, -inf
    %v3080 = vsel %vm2865, %v2080, -inf
    %v3081 = vmax.f32 %v3079, %v3080
    %v3082 = vsel %vm2865, %v2087, -inf
    %v3083 = vsel %vm2865, %v2143, -inf
    %v3084 = vmax.f32 %v3082, %v3083
    %v3085 = vsel %vm2865, %v2094, -inf
    %v3086 = vsel %vm2865, %v2150, -inf
    %v3087 = vmax.f32 %v3085, %v3086
    %v3088 = vsel %vm2865, %v2101, -inf
    %v3089 = vsel %vm2865, %v2157, -inf
    %v3090 = vmax.f32 %v3088, %v3089
    %v3091 = vsel %vm2865, %v2108, -inf
    %v3092 = vsel %vm2865, %v2164, -inf
    %v3093 = vmax.f32 %v3091, %v3092
    %v3094 = vsel %vm2865, %v2115, -inf
    %v3095 = vsel %vm2865, %v2171, -inf
    %v3096 = vmax.f32 %v3094, %v3095
    %v3097 = vsel %vm2865, %v2122, -inf
    %v3098 = vsel %vm2865, %v2178, -inf
    %v3099 = vmax.f32 %v3097, %v3098
    %v3100 = vsel %vm2865, %v2129, -inf
    %v3101 = vsel %vm2865, %v2185, -inf
    %v3102 = vmax.f32 %v3100, %v3101
    %v3103 = vsel %vm2865, %v2136, -inf
    %v3104 = vsel %vm2865, %v2192, -inf
    %v3105 = vmax.f32 %v3103, %v3104
    %v3106 = vsel %vm2865, %v2199, -inf
    %v3107 = vsel %vm2865, %v2255, -inf
    %v3108 = vmax.f32 %v3106, %v3107
    %v3109 = vsel %vm2865, %v2206, -inf
    %v3110 = vsel %vm2865, %v2262, -inf
    %v3111 = vmax.f32 %v3109, %v3110
    %v3112 = vsel %vm2865, %v2213, -inf
    %v3113 = vsel %vm2865, %v2269, -inf
    %v3114 = vmax.f32 %v3112, %v3113
    %v3115 = vsel %vm2865, %v2220, -inf
    %v3116 = vsel %vm2865, %v2276, -inf
    %v3117 = vmax.f32 %v3115, %v3116
    %v3118 = vsel %vm2865, %v2227, -inf
    %v3119 = vsel %vm2865, %v2283, -inf
    %v3120 = vmax.f32 %v3118, %v3119
    %v3121 = vsel %vm2865, %v2234, -inf
    %v3122 = vsel %vm2865, %v2290, -inf
    %v3123 = vmax.f32 %v3121, %v3122
    %v3124 = vsel %vm2865, %v2241, -inf
    %v3125 = vsel %vm2865, %v2297, -inf
    %v3126 = vmax.f32 %v3124, %v3125
    %v3127 = vsel %vm2865, %v2248, -inf
    %v3128 = vsel %vm2865, %v2304, -inf
    %v3129 = vmax.f32 %v3127, %v3128
    %v3130 = vsel %vm2865, %v2311, -inf
    %v3131 = vsel %vm2865, %v2367, -inf
    %v3132 = vmax.f32 %v3130, %v3131
    %v3133 = vsel %vm2865, %v2318, -inf
    %v3134 = vsel %vm2865, %v2374, -inf
    %v3135 = vmax.f32 %v3133, %v3134
    %v3136 = vsel %vm2865, %v2325, -inf
    %v3137 = vsel %vm2865, %v2381, -inf
    %v3138 = vmax.f32 %v3136, %v3137
    %v3139 = vsel %vm2865, %v2332, -inf
    %v3140 = vsel %vm2865, %v2388, -inf
    %v3141 = vmax.f32 %v3139, %v3140
    %v3142 = vsel %vm2865, %v2339, -inf
    %v3143 = vsel %vm2865, %v2395, -inf
    %v3144 = vmax.f32 %v3142, %v3143
    %v3145 = vsel %vm2865, %v2346, -inf
    %v3146 = vsel %vm2865, %v2402, -inf
    %v3147 = vmax.f32 %v3145, %v3146
    %v3148 = vsel %vm2865, %v2353, -inf
    %v3149 = vsel %vm2865, %v2409, -inf
    %v3150 = vmax.f32 %v3148, %v3149
    %v3151 = vsel %vm2865, %v2360, -inf
    %v3152 = vsel %vm2865, %v2416, -inf
    %v3153 = vmax.f32 %v3151, %v3152
    %v3154 = vsel %vm2865, %v2423, -inf
    %v3155 = vsel %vm2865, %v2479, -inf
    %v3156 = vmax.f32 %v3154, %v3155
    %v3157 = vsel %vm2865, %v2430, -inf
    %v3158 = vsel %vm2865, %v2486, -inf
    %v3159 = vmax.f32 %v3157, %v3158
    %v3160 = vsel %vm2865, %v2437, -inf
    %v3161 = vsel %vm2865, %v2493, -inf
    %v3162 = vmax.f32 %v3160, %v3161
    %v3163 = vsel %vm2865, %v2444, -inf
    %v3164 = vsel %vm2865, %v2500, -inf
    %v3165 = vmax.f32 %v3163, %v3164
    %v3166 = vsel %vm2865, %v2451, -inf
    %v3167 = vsel %vm2865, %v2507, -inf
    %v3168 = vmax.f32 %v3166, %v3167
    %v3169 = vsel %vm2865, %v2458, -inf
    %v3170 = vsel %vm2865, %v2514, -inf
    %v3171 = vmax.f32 %v3169, %v3170
    %v3172 = vsel %vm2865, %v2465, -inf
    %v3173 = vsel %vm2865, %v2521, -inf
    %v3174 = vmax.f32 %v3172, %v3173
    %v3175 = vsel %vm2865, %v2472, -inf
    %v3176 = vsel %vm2865, %v2528, -inf
    %v3177 = vmax.f32 %v3175, %v3176
    %v3178 = vsel %vm2865, %v2535, -inf
    %v3179 = vsel %vm2865, %v2591, -inf
    %v3180 = vmax.f32 %v3178, %v3179
    %v3181 = vsel %vm2865, %v2542, -inf
    %v3182 = vsel %vm2865, %v2598, -inf
    %v3183 = vmax.f32 %v3181, %v3182
    %v3184 = vsel %vm2865, %v2549, -inf
    %v3185 = vsel %vm2865, %v2605, -inf
    %v3186 = vmax.f32 %v3184, %v3185
    %v3187 = vsel %vm2865, %v2556, -inf
    %v3188 = vsel %vm2865, %v2612, -inf
    %v3189 = vmax.f32 %v3187, %v3188
    %v3190 = vsel %vm2865, %v2563, -inf
    %v3191 = vsel %vm2865, %v2619, -inf
    %v3192 = vmax.f32 %v3190, %v3191
    %v3193 = vsel %vm2865, %v2570, -inf
    %v3194 = vsel %vm2865, %v2626, -inf
    %v3195 = vmax.f32 %v3193, %v3194
    %v3196 = vsel %vm2865, %v2577, -inf
    %v3197 = vsel %vm2865, %v2633, -inf
    %v3198 = vmax.f32 %v3196, %v3197
    %v3199 = vsel %vm2865, %v2584, -inf
    %v3200 = vsel %vm2865, %v2640, -inf
    %v3201 = vmax.f32 %v3199, %v3200
    %v3202 = vsel %vm2865, %v2647, -inf
    %v3203 = vsel %vm2865, %v2703, -inf
    %v3204 = vmax.f32 %v3202, %v3203
    %v3205 = vsel %vm2865, %v2654, -inf
    %v3206 = vsel %vm2865, %v2710, -inf
    %v3207 = vmax.f32 %v3205, %v3206
    %v3208 = vsel %vm2865, %v2661, -inf
    %v3209 = vsel %vm2865, %v2717, -inf
    %v3210 = vmax.f32 %v3208, %v3209
    %v3211 = vsel %vm2865, %v2668, -inf
    %v3212 = vsel %vm2865, %v2724, -inf
    %v3213 = vmax.f32 %v3211, %v3212
    %v3214 = vsel %vm2865, %v2675, -inf
    %v3215 = vsel %vm2865, %v2731, -inf
    %v3216 = vmax.f32 %v3214, %v3215
    %v3217 = vsel %vm2865, %v2682, -inf
    %v3218 = vsel %vm2865, %v2738, -inf
    %v3219 = vmax.f32 %v3217, %v3218
    %v3220 = vsel %vm2865, %v2689, -inf
    %v3221 = vsel %vm2865, %v2745, -inf
    %v3222 = vmax.f32 %v3220, %v3221
    %v3223 = vsel %vm2865, %v2696, -inf
    %v3224 = vsel %vm2865, %v2752, -inf
    %v3225 = vmax.f32 %v3223, %v3224
    %v3226 = vsel %vm2865, %v2759, -inf
    %v3227 = vsel %vm2865, %v2815, -inf
    %v3228 = vmax.f32 %v3226, %v3227
    %v3229 = vsel %vm2865, %v2766, -inf
    %v3230 = vsel %vm2865, %v2822, -inf
    %v3231 = vmax.f32 %v3229, %v3230
    %v3232 = vsel %vm2865, %v2773, -inf
    %v3233 = vsel %vm2865, %v2829, -inf
    %v3234 = vmax.f32 %v3232, %v3233
    %v3235 = vsel %vm2865, %v2780, -inf
    %v3236 = vsel %vm2865, %v2836, -inf
    %v3237 = vmax.f32 %v3235, %v3236
    %v3238 = vsel %vm2865, %v2787, -inf
    %v3239 = vsel %vm2865, %v2843, -inf
    %v3240 = vmax.f32 %v3238, %v3239
    %v3241 = vsel %vm2865, %v2794, -inf
    %v3242 = vsel %vm2865, %v2850, -inf
    %v3243 = vmax.f32 %v3241, %v3242
    %v3244 = vsel %vm2865, %v2801, -inf
    %v3245 = vsel %vm2865, %v2857, -inf
    %v3246 = vmax.f32 %v3244, %v3245
    %v3247 = vsel %vm2865, %v2808, -inf
    %v3248 = vsel %vm2865, %v2864, -inf
    %v3249 = vmax.f32 %v3247, %v3248
    %3250 = vst.msk [vmem:[#allocation2] sm:$0xff] %vm2865, 0.0
    %3251 = vst.msk [vmem:[#allocation2 + $0x8] sm:$0x3] %vm1072, 0.0
    %3252 = vst.msk [vmem:[#allocation2 + $0x10] sm:$0xff] %vm2865, 0.0
    %3253 = vst.msk [vmem:[#allocation2 + $0x18] sm:$0x3] %vm1072, 0.0
    %3254 = vst.msk [vmem:[#allocation2 + $0x20] sm:$0xff] %vm2865, 0.0
    %3255 = vst.msk [vmem:[#allocation2 + $0x28] sm:$0x3] %vm1072, 0.0
    %3256 = vst.msk [vmem:[#allocation2 + $0x30] sm:$0xff] %vm2865, 0.0
    %3257 = vst.msk [vmem:[#allocation2 + $0x38] sm:$0x3] %vm1072, 0.0
    %3258 = vst.msk [vmem:[#allocation2 + $0x40] sm:$0xff] %vm2865, 0.0
    %3259 = vst.msk [vmem:[#allocation2 + $0x48] sm:$0x3] %vm1072, 0.0
    %3260 = vst.msk [vmem:[#allocation2 + $0x50] sm:$0xff] %vm2865, 0.0
    %3261 = vst.msk [vmem:[#allocation2 + $0x58] sm:$0x3] %vm1072, 0.0
    %3262 = vst.msk [vmem:[#allocation2 + $0x60] sm:$0xff] %vm2865, 0.0
    %3263 = vst.msk [vmem:[#allocation2 + $0x68] sm:$0x3] %vm1072, 0.0
    %3264 = vst.msk [vmem:[#allocation2 + $0x70] sm:$0xff] %vm2865, 0.0
    %3265 = vst.msk [vmem:[#allocation2 + $0x78] sm:$0x3] %vm1072, 0.0
    %3266 = vst.msk [vmem:[#allocation2 + $0x80] sm:$0xff] %vm2865, 0.0
    %3267 = vst.msk [vmem:[#allocation2 + $0x88] sm:$0x3] %vm1072, 0.0
    %3268 = vst.msk [vmem:[#allocation2 + $0x90] sm:$0xff] %vm2865, 0.0
    %3269 = vst.msk [vmem:[#allocation2 + $0x98] sm:$0x3] %vm1072, 0.0
    %3270 = vst.msk [vmem:[#allocation2 + $0xa0] sm:$0xff] %vm2865, 0.0
    %3271 = vst.msk [vmem:[#allocation2 + $0xa8] sm:$0x3] %vm1072, 0.0
    %3272 = vst.msk [vmem:[#allocation2 + $0xb0] sm:$0xff] %vm2865, 0.0
    %3273 = vst.msk [vmem:[#allocation2 + $0xb8] sm:$0x3] %vm1072, 0.0
    %3274 = vst.msk [vmem:[#allocation2 + $0xc0] sm:$0xff] %vm2865, 0.0
    %3275 = vst.msk [vmem:[#allocation2 + $0xc8] sm:$0x3] %vm1072, 0.0
    %3276 = vst.msk [vmem:[#allocation2 + $0xd0] sm:$0xff] %vm2865, 0.0
    %3277 = vst.msk [vmem:[#allocation2 + $0xd8] sm:$0x3] %vm1072, 0.0
    %3278 = vst.msk [vmem:[#allocation2 + $0xe0] sm:$0xff] %vm2865, 0.0
    %3279 = vst.msk [vmem:[#allocation2 + $0xe8] sm:$0x3] %vm1072, 0.0
    %3280 = vst.msk [vmem:[#allocation2 + $0xf0] sm:$0xff] %vm2865, 0.0
    %3281 = vst.msk [vmem:[#allocation2 + $0xf8] sm:$0x3] %vm1072, 0.0
    %3282 = vst.msk [vmem:[#allocation2 + $0x100] sm:$0xff] %vm2865, 0.0
    %3283 = vst.msk [vmem:[#allocation2 + $0x108] sm:$0x3] %vm1072, 0.0
    %3284 = vst.msk [vmem:[#allocation2 + $0x110] sm:$0xff] %vm2865, 0.0
    %3285 = vst.msk [vmem:[#allocation2 + $0x118] sm:$0x3] %vm1072, 0.0
    %3286 = vst.msk [vmem:[#allocation2 + $0x120] sm:$0xff] %vm2865, 0.0
    %3287 = vst.msk [vmem:[#allocation2 + $0x128] sm:$0x3] %vm1072, 0.0
    %3288 = vst.msk [vmem:[#allocation2 + $0x130] sm:$0xff] %vm2865, 0.0
    %3289 = vst.msk [vmem:[#allocation2 + $0x138] sm:$0x3] %vm1072, 0.0
    %vm3418 = vcmask 1041409
    %v3419 = vsel %vm3418, %v2871, %v2868
    %vm3420 = vcmask 1042434
    %v3421 = vsel %vm3420, %v2874, %v3419
    %vm3422 = vcmask 1043459
    %v3423 = vsel %vm3422, %v2877, %v3421
    %vm3424 = vcmask 1044484
    %v3425 = vsel %vm3424, %v2880, %v3423
    %vm3426 = vcmask 1045509
    %v3427 = vsel %vm3426, %v2883, %v3425
    %vm3428 = vcmask 1046534
    %v3429 = vsel %vm3428, %v2886, %v3427
    %vm3430 = vcmask 1047559
    %v3431 = vsel %vm3430, %v2889, %v3429
    %v3432 = vsel %vm3418, %v2895, %v2892
    %v3433 = vsel %vm3420, %v2898, %v3432
    %v3434 = vsel %vm3422, %v2901, %v3433
    %v3435 = vsel %vm3424, %v2904, %v3434
    %v3436 = vsel %vm3426, %v2907, %v3435
    %v3437 = vsel %vm3428, %v2910, %v3436
    %v3438 = vsel %vm3430, %v2913, %v3437
    %v3439 = vsel %vm3418, %v2919, %v2916
    %v3440 = vsel %vm3420, %v2922, %v3439
    %v3441 = vsel %vm3422, %v2925, %v3440
    %v3442 = vsel %vm3424, %v2928, %v3441
    %v3443 = vsel %vm3426, %v2931, %v3442
    %v3444 = vsel %vm3428, %v2934, %v3443
    %v3445 = vsel %vm3430, %v2937, %v3444
    %v3446 = vsel %vm3418, %v2943, %v2940
    %v3447 = vsel %vm3420, %v2946, %v3446
    %v3448 = vsel %vm3422, %v2949, %v3447
    %v3449 = vsel %vm3424, %v2952, %v3448
    %v3450 = vsel %vm3426, %v2955, %v3449
    %v3451 = vsel %vm3428, %v2958, %v3450
    %v3452 = vsel %vm3430, %v2961, %v3451
    %v3453 = vsel %vm3418, %v2967, %v2964
    %v3454 = vsel %vm3420, %v2970, %v3453
    %v3455 = vsel %vm3422, %v2973, %v3454
    %v3456 = vsel %vm3424, %v2976, %v3455
    %v3457 = vsel %vm3426, %v2979, %v3456
    %v3458 = vsel %vm3428, %v2982, %v3457
    %v3459 = vsel %vm3430, %v2985, %v3458
    %v3460 = vsel %vm3418, %v2991, %v2988
    %v3461 = vsel %vm3420, %v2994, %v3460
    %v3462 = vsel %vm3422, %v2997, %v3461
    %v3463 = vsel %vm3424, %v3000, %v3462
    %v3464 = vsel %vm3426, %v3003, %v3463
    %v3465 = vsel %vm3428, %v3006, %v3464
    %v3466 = vsel %vm3430, %v3009, %v3465
    %v3467 = vsel %vm3418, %v3015, %v3012
    %v3468 = vsel %vm3420, %v3018, %v3467
    %v3469 = vsel %vm3422, %v3021, %v3468
    %v3470 = vsel %vm3424, %v3024, %v3469
    %v3471 = vsel %vm3426, %v3027, %v3470
    %v3472 = vsel %vm3428, %v3030, %v3471
    %v3473 = vsel %vm3430, %v3033, %v3472
    %v3474 = vsel %vm3418, %v3039, %v3036
    %v3475 = vsel %vm3420, %v3042, %v3474
    %v3476 = vsel %vm3422, %v3045, %v3475
    %v3477 = vsel %vm3424, %v3048, %v3476
    %v3478 = vsel %vm3426, %v3051, %v3477
    %v3479 = vsel %vm3428, %v3054, %v3478
    %v3480 = vsel %vm3430, %v3057, %v3479
    %v3481 = vsel %vm3418, %v3063, %v3060
    %v3482 = vsel %vm3420, %v3066, %v3481
    %v3483 = vsel %vm3422, %v3069, %v3482
    %v3484 = vsel %vm3424, %v3072, %v3483
    %v3485 = vsel %vm3426, %v3075, %v3484
    %v3486 = vsel %vm3428, %v3078, %v3485
    %v3487 = vsel %vm3430, %v3081, %v3486
    %v3488 = vsel %vm3418, %v3087, %v3084
    %v3489 = vsel %vm3420, %v3090, %v3488
    %v3490 = vsel %vm3422, %v3093, %v3489
    %v3491 = vsel %vm3424, %v3096, %v3490
    %v3492 = vsel %vm3426, %v3099, %v3491
    %v3493 = vsel %vm3428, %v3102, %v3492
    %v3494 = vsel %vm3430, %v3105, %v3493
    %v3495 = vsel %vm3418, %v3111, %v3108
    %v3496 = vsel %vm3420, %v3114, %v3495
    %v3497 = vsel %vm3422, %v3117, %v3496
    %v3498 = vsel %vm3424, %v3120, %v3497
    %v3499 = vsel %vm3426, %v3123, %v3498
    %v3500 = vsel %vm3428, %v3126, %v3499
    %v3501 = vsel %vm3430, %v3129, %v3500
    %v3502 = vsel %vm3418, %v3135, %v3132
    %v3503 = vsel %vm3420, %v3138, %v3502
    %v3504 = vsel %vm3422, %v3141, %v3503
    %v3505 = vsel %vm3424, %v3144, %v3504
    %v3506 = vsel %vm3426, %v3147, %v3505
    %v3507 = vsel %vm3428, %v3150, %v3506
    %v3508 = vsel %vm3430, %v3153, %v3507
    %v3509 = vsel %vm3418, %v3159, %v3156
    %v3510 = vsel %vm3420, %v3162, %v3509
    %v3511 = vsel %vm3422, %v3165, %v3510
    %v3512 = vsel %vm3424, %v3168, %v3511
    %v3513 = vsel %vm3426, %v3171, %v3512
    %v3514 = vsel %vm3428, %v3174, %v3513
    %v3515 = vsel %vm3430, %v3177, %v3514
    %v3516 = vsel %vm3418, %v3183, %v3180
    %v3517 = vsel %vm3420, %v3186, %v3516
    %v3518 = vsel %vm3422, %v3189, %v3517
    %v3519 = vsel %vm3424, %v3192, %v3518
    %v3520 = vsel %vm3426, %v3195, %v3519
    %v3521 = vsel %vm3428, %v3198, %v3520
    %v3522 = vsel %vm3430, %v3201, %v3521
    %v3523 = vsel %vm3418, %v3207, %v3204
    %v3524 = vsel %vm3420, %v3210, %v3523
    %v3525 = vsel %vm3422, %v3213, %v3524
    %v3526 = vsel %vm3424, %v3216, %v3525
    %v3527 = vsel %vm3426, %v3219, %v3526
    %v3528 = vsel %vm3428, %v3222, %v3527
    %v3529 = vsel %vm3430, %v3225, %v3528
    %v3530 = vsel %vm3418, %v3231, %v3228
    %v3531 = vsel %vm3420, %v3234, %v3530
    %v3532 = vsel %vm3422, %v3237, %v3531
    %v3533 = vsel %vm3424, %v3240, %v3532
    %v3534 = vsel %vm3426, %v3243, %v3533
    %v3535 = vsel %vm3428, %v3246, %v3534
    %v3536 = vsel %vm3430, %v3249, %v3535
    %s3553 = scalar_lea.vmem [#allocation2], 16
    %3554 = vst.msk [vmem:[%s3553 + $0x1] sm:$0xff] %vm2865, %v3431
    %3555 = vst.msk [vmem:[%s3553 + $0x11] sm:$0xff] %vm2865, %v3438
    %3556 = vst.msk [vmem:[%s3553 + $0x21] sm:$0xff] %vm2865, %v3445
    %3557 = vst.msk [vmem:[%s3553 + $0x31] sm:$0xff] %vm2865, %v3452
    %3558 = vst.msk [vmem:[%s3553 + $0x41] sm:$0xff] %vm2865, %v3459
    %3559 = vst.msk [vmem:[%s3553 + $0x51] sm:$0xff] %vm2865, %v3466
    %3560 = vst.msk [vmem:[%s3553 + $0x61] sm:$0xff] %vm2865, %v3473
    %3561 = vst.msk [vmem:[%s3553 + $0x71] sm:$0xff] %vm2865, %v3480
    %3562 = vst.msk [vmem:[%s3553 + $0xa1] sm:$0xff] %vm2865, %v3487
    %3563 = vst.msk [vmem:[%s3553 + $0xb1] sm:$0xff] %vm2865, %v3494
    %3564 = vst.msk [vmem:[%s3553 + $0xc1] sm:$0xff] %vm2865, %v3501
    %3565 = vst.msk [vmem:[%s3553 + $0xd1] sm:$0xff] %vm2865, %v3508
    %3566 = vst.msk [vmem:[%s3553 + $0xe1] sm:$0xff] %vm2865, %v3515
    %3567 = vst.msk [vmem:[%s3553 + $0xf1] sm:$0xff] %vm2865, %v3522
    %3568 = vst.msk [vmem:[%s3553 + $0x101] sm:$0xff] %vm2865, %v3529
    %3569 = vst.msk [vmem:[%s3553 + $0x111] sm:$0xff] %vm2865, %v3536
    %v3570 = vld [vmem:[#allocation2] sm:$0xff]
    %v3571 = vld [vmem:[#allocation2 + $0x8] sm:$0x3]
    %v3572 = vld [vmem:[#allocation2 + $0x10] sm:$0xff]
    %v3573 = vld [vmem:[#allocation2 + $0x18] sm:$0x3]
    %v3574 = vld [vmem:[#allocation2 + $0x20] sm:$0xff]
    %v3575 = vld [vmem:[#allocation2 + $0x28] sm:$0x3]
    %v3576 = vld [vmem:[#allocation2 + $0x30] sm:$0xff]
    %v3577 = vld [vmem:[#allocation2 + $0x38] sm:$0x3]
    %v3578 = vld [vmem:[#allocation2 + $0x40] sm:$0xff]
    %v3579 = vld [vmem:[#allocation2 + $0x48] sm:$0x3]
    %v3580 = vld [vmem:[#allocation2 + $0x50] sm:$0xff]
    %v3581 = vld [vmem:[#allocation2 + $0x58] sm:$0x3]
    %v3582 = vld [vmem:[#allocation2 + $0x60] sm:$0xff]
    %v3583 = vld [vmem:[#allocation2 + $0x68] sm:$0x3]
    %v3584 = vld [vmem:[#allocation2 + $0x70] sm:$0xff]
    %v3585 = vld [vmem:[#allocation2 + $0x78] sm:$0x3]
    %v3586 = vld [vmem:[#allocation2 + $0x80] sm:$0xff]
    %v3587 = vld [vmem:[#allocation2 + $0x88] sm:$0x3]
    %v3588 = vld [vmem:[#allocation2 + $0x90] sm:$0xff]
    %v3589 = vld [vmem:[#allocation2 + $0x98] sm:$0x3]
    %v3590 = vld [vmem:[#allocation2 + $0xa0] sm:$0xff]
    %v3591 = vld [vmem:[#allocation2 + $0xa8] sm:$0x3]
    %v3592 = vld [vmem:[#allocation2 + $0xb0] sm:$0xff]
    %v3593 = vld [vmem:[#allocation2 + $0xb8] sm:$0x3]
    %v3594 = vld [vmem:[#allocation2 + $0xc0] sm:$0xff]
    %v3595 = vld [vmem:[#allocation2 + $0xc8] sm:$0x3]
    %v3596 = vld [vmem:[#allocation2 + $0xd0] sm:$0xff]
    %v3597 = vld [vmem:[#allocation2 + $0xd8] sm:$0x3]
    %v3598 = vld [vmem:[#allocation2 + $0xe0] sm:$0xff]
    %v3599 = vld [vmem:[#allocation2 + $0xe8] sm:$0x3]
    %v3600 = vld [vmem:[#allocation2 + $0xf0] sm:$0xff]
    %v3601 = vld [vmem:[#allocation2 + $0xf8] sm:$0x3]
    %v3602 = vld [vmem:[#allocation2 + $0x100] sm:$0xff]
    %v3603 = vld [vmem:[#allocation2 + $0x108] sm:$0x3]
    %v3604 = vld [vmem:[#allocation2 + $0x110] sm:$0xff]
    %v3605 = vld [vmem:[#allocation2 + $0x118] sm:$0x3]
    %v3606 = vld [vmem:[#allocation2 + $0x120] sm:$0xff]
    %v3607 = vld [vmem:[#allocation2 + $0x128] sm:$0x3]
    %v3608 = vld [vmem:[#allocation2 + $0x130] sm:$0xff]
    %v3609 = vld [vmem:[#allocation2 + $0x138] sm:$0x3]
    %v3610 = vpack.c.bf16 %v3570, %v3570
    %v3611 = vpack.c.bf16 %v3572, %v3572
    %v3612 = vpack.c.bf16 %v3574, %v3574
    %v3613 = vpack.c.bf16 %v3576, %v3576
    %v3614 = vpack.c.bf16 %v3578, %v3578
    %v3615 = vpack.c.bf16 %v3580, %v3580
    %v3616 = vpack.c.bf16 %v3582, %v3582
    %v3617 = vpack.c.bf16 %v3584, %v3584
    %v3618 = vpack.c.bf16 %v3590, %v3590
    %v3619 = vpack.c.bf16 %v3592, %v3592
    %v3620 = vpack.c.bf16 %v3594, %v3594
    %v3621 = vpack.c.bf16 %v3596, %v3596
    %v3622 = vpack.c.bf16 %v3598, %v3598
    %v3623 = vpack.c.bf16 %v3600, %v3600
    %v3624 = vpack.c.bf16 %v3602, %v3602
    %v3625 = vpack.c.bf16 %v3604, %v3604
    %vm3626 = vcmask 257024
    %3627 = vst.msk [vmem:[#allocation5] sm:$0xf] %vm3626, %v3610
    %3628 = vst.msk [vmem:[#allocation5 + $0xc] sm:$0xf] %vm3626, %v3611
    %3629 = vst.msk [vmem:[#allocation5 + $0x18] sm:$0xf] %vm3626, %v3612
    %3630 = vst.msk [vmem:[#allocation5 + $0x24] sm:$0xf] %vm3626, %v3613
    %3631 = vst.msk [vmem:[#allocation5 + $0x30] sm:$0xf] %vm3626, %v3614
    %3632 = vst.msk [vmem:[#allocation5 + $0x3c] sm:$0xf] %vm3626, %v3615
    %3633 = vst.msk [vmem:[#allocation5 + $0x48] sm:$0xf] %vm3626, %v3616
    %3634 = vst.msk [vmem:[#allocation5 + $0x54] sm:$0xf] %vm3626, %v3617
    %3635 = vst.msk [vmem:[#allocation5 + $0x60] sm:$0xf] %vm3626, %v3618
    %3636 = vst.msk [vmem:[#allocation5 + $0x6c] sm:$0xf] %vm3626, %v3619
    %3637 = vst.msk [vmem:[#allocation5 + $0x78] sm:$0xf] %vm3626, %v3620
    %3638 = vst.msk [vmem:[#allocation5 + $0x84] sm:$0xf] %vm3626, %v3621
    %3639 = vst.msk [vmem:[#allocation5 + $0x90] sm:$0xf] %vm3626, %v3622
    %3640 = vst.msk [vmem:[#allocation5 + $0x9c] sm:$0xf] %vm3626, %v3623
    %3641 = vst.msk [vmem:[#allocation5 + $0xa8] sm:$0xf] %vm3626, %v3624
    %3642 = vst.msk [vmem:[#allocation5 + $0xb4] sm:$0xf] %vm3626, %v3625
    %vm3675 = vcmask 1046528
    %v3676 = vrot.slane %v3570, 1
    %v3677 = vrot.slane %v3571, 1
    %v3678 = vsel %vm3675, %v3676, %v3677
    %v3679 = vrot.slane %v3572, 1
    %v3680 = vrot.slane %v3573, 1
    %v3681 = vsel %vm3675, %v3679, %v3680
    %v3682 = vrot.slane %v3574, 1
    %v3683 = vrot.slane %v3575, 1
    %v3684 = vsel %vm3675, %v3682, %v3683
    %v3685 = vrot.slane %v3576, 1
    %v3686 = vrot.slane %v3577, 1
    %v3687 = vsel %vm3675, %v3685, %v3686
    %v3688 = vrot.slane %v3578, 1
    %v3689 = vrot.slane %v3579, 1
    %v3690 = vsel %vm3675, %v3688, %v3689
    %v3691 = vrot.slane %v3580, 1
    %v3692 = vrot.slane %v3581, 1
    %v3693 = vsel %vm3675, %v3691, %v3692
    %v3694 = vrot.slane %v3582, 1
    %v3695 = vrot.slane %v3583, 1
    %v3696 = vsel %vm3675, %v3694, %v3695
    %v3697 = vrot.slane %v3584, 1
    %v3698 = vrot.slane %v3585, 1
    %v3699 = vsel %vm3675, %v3697, %v3698
    %v3700 = vrot.slane %v3590, 1
    %v3701 = vrot.slane %v3591, 1
    %v3702 = vsel %vm3675, %v3700, %v3701
    %v3703 = vrot.slane %v3592, 1
    %v3704 = vrot.slane %v3593, 1
    %v3705 = vsel %vm3675, %v3703, %v3704
    %v3706 = vrot.slane %v3594, 1
    %v3707 = vrot.slane %v3595, 1
    %v3708 = vsel %vm3675, %v3706, %v3707
    %v3709 = vrot.slane %v3596, 1
    %v3710 = vrot.slane %v3597, 1
    %v3711 = vsel %vm3675, %v3709, %v3710
    %v3712 = vrot.slane %v3598, 1
    %v3713 = vrot.slane %v3599, 1
    %v3714 = vsel %vm3675, %v3712, %v3713
    %v3715 = vrot.slane %v3600, 1
    %v3716 = vrot.slane %v3601, 1
    %v3717 = vsel %vm3675, %v3715, %v3716
    %v3718 = vrot.slane %v3602, 1
    %v3719 = vrot.slane %v3603, 1
    %v3720 = vsel %vm3675, %v3718, %v3719
    %v3721 = vrot.slane %v3604, 1
    %v3722 = vrot.slane %v3605, 1
    %v3723 = vsel %vm3675, %v3721, %v3722
    %v3740 = vpack.c.bf16 %v3678, %v3678
    %v3741 = vpack.c.bf16 %v3681, %v3681
    %v3742 = vpack.c.bf16 %v3684, %v3684
    %v3743 = vpack.c.bf16 %v3687, %v3687
    %v3744 = vpack.c.bf16 %v3690, %v3690
    %v3745 = vpack.c.bf16 %v3693, %v3693
    %v3746 = vpack.c.bf16 %v3696, %v3696
    %v3747 = vpack.c.bf16 %v3699, %v3699
    %v3748 = vpack.c.bf16 %v3702, %v3702
    %v3749 = vpack.c.bf16 %v3705, %v3705
    %v3750 = vpack.c.bf16 %v3708, %v3708
    %v3751 = vpack.c.bf16 %v3711, %v3711
    %v3752 = vpack.c.bf16 %v3714, %v3714
    %v3753 = vpack.c.bf16 %v3717, %v3717
    %v3754 = vpack.c.bf16 %v3720, %v3720
    %v3755 = vpack.c.bf16 %v3723, %v3723
    %3772 = vrot.lane.b32.xlu0 %v3740, 32
    %v3773 = vpop.permute.xlu0 %3772
    %3774 = vrot.lane.b32.xlu0 %v3741, 32
    %v3775 = vpop.permute.xlu0 %3774
    %3776 = vrot.lane.b32.xlu0 %v3742, 32
    %v3777 = vpop.permute.xlu0 %3776
    %3778 = vrot.lane.b32.xlu0 %v3743, 32
    %v3779 = vpop.permute.xlu0 %3778
    %3780 = vrot.lane.b32.xlu0 %v3744, 32
    %v3781 = vpop.permute.xlu0 %3780
    %3782 = vrot.lane.b32.xlu0 %v3745, 32
    %v3783 = vpop.permute.xlu0 %3782
    %3784 = vrot.lane.b32.xlu0 %v3746, 32
    %v3785 = vpop.permute.xlu0 %3784
    %3786 = vrot.lane.b32.xlu0 %v3747, 32
    %v3787 = vpop.permute.xlu0 %3786
    %3788 = vrot.lane.b32.xlu0 %v3748, 32
    %v3789 = vpop.permute.xlu0 %3788
    %3790 = vrot.lane.b32.xlu0 %v3749, 32
    %v3791 = vpop.permute.xlu0 %3790
    %3792 = vrot.lane.b32.xlu0 %v3750, 32
    %v3793 = vpop.permute.xlu0 %3792
    %3794 = vrot.lane.b32.xlu0 %v3751, 32
    %v3795 = vpop.permute.xlu0 %3794
    %3796 = vrot.lane.b32.xlu0 %v3752, 32
    %v3797 = vpop.permute.xlu0 %3796
    %3798 = vrot.lane.b32.xlu0 %v3753, 32
    %v3799 = vpop.permute.xlu0 %3798
    %3800 = vrot.lane.b32.xlu0 %v3754, 32
    %v3801 = vpop.permute.xlu0 %3800
    %3802 = vrot.lane.b32.xlu0 %v3755, 32
    %v3803 = vpop.permute.xlu0 %3802
    %vm3820 = vcmask 519424
    %3821 = vst.msk [vmem:[#allocation5] sm:$0xf] %vm3820, %v3773
    %3822 = vst.msk [vmem:[#allocation5 + $0xc] sm:$0xf] %vm3820, %v3775
    %3823 = vst.msk [vmem:[#allocation5 + $0x18] sm:$0xf] %vm3820, %v3777
    %3824 = vst.msk [vmem:[#allocation5 + $0x24] sm:$0xf] %vm3820, %v3779
    %3825 = vst.msk [vmem:[#allocation5 + $0x30] sm:$0xf] %vm3820, %v3781
    %3826 = vst.msk [vmem:[#allocation5 + $0x3c] sm:$0xf] %vm3820, %v3783
    %3827 = vst.msk [vmem:[#allocation5 + $0x48] sm:$0xf] %vm3820, %v3785
    %3828 = vst.msk [vmem:[#allocation5 + $0x54] sm:$0xf] %vm3820, %v3787
    %3829 = vst.msk [vmem:[#allocation5 + $0x60] sm:$0xf] %vm3820, %v3789
    %3830 = vst.msk [vmem:[#allocation5 + $0x6c] sm:$0xf] %vm3820, %v3791
    %3831 = vst.msk [vmem:[#allocation5 + $0x78] sm:$0xf] %vm3820, %v3793
    %3832 = vst.msk [vmem:[#allocation5 + $0x84] sm:$0xf] %vm3820, %v3795
    %3833 = vst.msk [vmem:[#allocation5 + $0x90] sm:$0xf] %vm3820, %v3797
    %3834 = vst.msk [vmem:[#allocation5 + $0x9c] sm:$0xf] %vm3820, %v3799
    %3835 = vst.msk [vmem:[#allocation5 + $0xa8] sm:$0xf] %vm3820, %v3801
    %3836 = vst.msk [vmem:[#allocation5 + $0xb4] sm:$0xf] %vm3820, %v3803
    %vm3837 = vcmask 1045504
    %v3838 = vrot.slane %v3570, 2
    %v3839 = vrot.slane %v3571, 2
    %v3840 = vsel %vm3837, %v3838, %v3839
    %v3841 = vrot.slane %v3572, 2
    %v3842 = vrot.slane %v3573, 2
    %v3843 = vsel %vm3837, %v3841, %v3842
    %v3844 = vrot.slane %v3574, 2
    %v3845 = vrot.slane %v3575, 2
    %v3846 = vsel %vm3837, %v3844, %v3845
    %v3847 = vrot.slane %v3576, 2
    %v3848 = vrot.slane %v3577, 2
    %v3849 = vsel %vm3837, %v3847, %v3848
    %v3850 = vrot.slane %v3578, 2
    %v3851 = vrot.slane %v3579, 2
    %v3852 = vsel %vm3837, %v3850, %v3851
    %v3853 = vrot.slane %v3580, 2
    %v3854 = vrot.slane %v3581, 2
    %v3855 = vsel %vm3837, %v3853, %v3854
    %v3856 = vrot.slane %v3582, 2
    %v3857 = vrot.slane %v3583, 2
    %v3858 = vsel %vm3837, %v3856, %v3857
    %v3859 = vrot.slane %v3584, 2
    %v3860 = vrot.slane %v3585, 2
    %v3861 = vsel %vm3837, %v3859, %v3860
    %v3862 = vrot.slane %v3590, 2
    %v3863 = vrot.slane %v3591, 2
    %v3864 = vsel %vm3837, %v3862, %v3863
    %v3865 = vrot.slane %v3592, 2
    %v3866 = vrot.slane %v3593, 2
    %v3867 = vsel %vm3837, %v3865, %v3866
    %v3868 = vrot.slane %v3594, 2
    %v3869 = vrot.slane %v3595, 2
    %v3870 = vsel %vm3837, %v3868, %v3869
    %v3871 = vrot.slane %v3596, 2
    %v3872 = vrot.slane %v3597, 2
    %v3873 = vsel %vm3837, %v3871, %v3872
    %v3874 = vrot.slane %v3598, 2
    %v3875 = vrot.slane %v3599, 2
    %v3876 = vsel %vm3837, %v3874, %v3875
    %v3877 = vrot.slane %v3600, 2
    %v3878 = vrot.slane %v3601, 2
    %v3879 = vsel %vm3837, %v3877, %v3878
    %v3880 = vrot.slane %v3602, 2
    %v3881 = vrot.slane %v3603, 2
    %v3882 = vsel %vm3837, %v3880, %v3881
    %v3883 = vrot.slane %v3604, 2
    %v3884 = vrot.slane %v3605, 2
    %v3885 = vsel %vm3837, %v3883, %v3884
    %v3902 = vpack.c.bf16 %v3840, %v3840
    %v3903 = vpack.c.bf16 %v3843, %v3843
    %v3904 = vpack.c.bf16 %v3846, %v3846
    %v3905 = vpack.c.bf16 %v3849, %v3849
    %v3906 = vpack.c.bf16 %v3852, %v3852
    %v3907 = vpack.c.bf16 %v3855, %v3855
    %v3908 = vpack.c.bf16 %v3858, %v3858
    %v3909 = vpack.c.bf16 %v3861, %v3861
    %v3910 = vpack.c.bf16 %v3864, %v3864
    %v3911 = vpack.c.bf16 %v3867, %v3867
    %v3912 = vpack.c.bf16 %v3870, %v3870
    %v3913 = vpack.c.bf16 %v3873, %v3873
    %v3914 = vpack.c.bf16 %v3876, %v3876
    %v3915 = vpack.c.bf16 %v3879, %v3879
    %v3916 = vpack.c.bf16 %v3882, %v3882
    %v3917 = vpack.c.bf16 %v3885, %v3885
    %3934 = vrot.lane.b32.xlu0 %v3902, 64
    %v3935 = vpop.permute.xlu0 %3934
    %3936 = vrot.lane.b32.xlu0 %v3903, 64
    %v3937 = vpop.permute.xlu0 %3936
    %3938 = vrot.lane.b32.xlu0 %v3904, 64
    %v3939 = vpop.permute.xlu0 %3938
    %3940 = vrot.lane.b32.xlu0 %v3905, 64
    %v3941 = vpop.permute.xlu0 %3940
    %3942 = vrot.lane.b32.xlu0 %v3906, 64
    %v3943 = vpop.permute.xlu0 %3942
    %3944 = vrot.lane.b32.xlu0 %v3907, 64
    %v3945 = vpop.permute.xlu0 %3944
    %3946 = vrot.lane.b32.xlu0 %v3908, 64
    %v3947 = vpop.permute.xlu0 %3946
    %3948 = vrot.lane.b32.xlu0 %v3909, 64
    %v3949 = vpop.permute.xlu0 %3948
    %3950 = vrot.lane.b32.xlu0 %v3910, 64
    %v3951 = vpop.permute.xlu0 %3950
    %3952 = vrot.lane.b32.xlu0 %v3911, 64
    %v3953 = vpop.permute.xlu0 %3952
    %3954 = vrot.lane.b32.xlu0 %v3912, 64
    %v3955 = vpop.permute.xlu0 %3954
    %3956 = vrot.lane.b32.xlu0 %v3913, 64
    %v3957 = vpop.permute.xlu0 %3956
    %3958 = vrot.lane.b32.xlu0 %v3914, 64
    %v3959 = vpop.permute.xlu0 %3958
    %3960 = vrot.lane.b32.xlu0 %v3915, 64
    %v3961 = vpop.permute.xlu0 %3960
    %3962 = vrot.lane.b32.xlu0 %v3916, 64
    %v3963 = vpop.permute.xlu0 %3962
    %3964 = vrot.lane.b32.xlu0 %v3917, 64
    %v3965 = vpop.permute.xlu0 %3964
    %vm3982 = vcmask 781824
    %3983 = vst.msk [vmem:[#allocation5] sm:$0xf] %vm3982, %v3935
    %3984 = vst.msk [vmem:[#allocation5 + $0xc] sm:$0xf] %vm3982, %v3937
    %3985 = vst.msk [vmem:[#allocation5 + $0x18] sm:$0xf] %vm3982, %v3939
    %3986 = vst.msk [vmem:[#allocation5 + $0x24] sm:$0xf] %vm3982, %v3941
    %3987 = vst.msk [vmem:[#allocation5 + $0x30] sm:$0xf] %vm3982, %v3943
    %3988 = vst.msk [vmem:[#allocation5 + $0x3c] sm:$0xf] %vm3982, %v3945
    %3989 = vst.msk [vmem:[#allocation5 + $0x48] sm:$0xf] %vm3982, %v3947
    %3990 = vst.msk [vmem:[#allocation5 + $0x54] sm:$0xf] %vm3982, %v3949
    %3991 = vst.msk [vmem:[#allocation5 + $0x60] sm:$0xf] %vm3982, %v3951
    %3992 = vst.msk [vmem:[#allocation5 + $0x6c] sm:$0xf] %vm3982, %v3953
    %3993 = vst.msk [vmem:[#allocation5 + $0x78] sm:$0xf] %vm3982, %v3955
    %3994 = vst.msk [vmem:[#allocation5 + $0x84] sm:$0xf] %vm3982, %v3957
    %3995 = vst.msk [vmem:[#allocation5 + $0x90] sm:$0xf] %vm3982, %v3959
    %3996 = vst.msk [vmem:[#allocation5 + $0x9c] sm:$0xf] %vm3982, %v3961
    %3997 = vst.msk [vmem:[#allocation5 + $0xa8] sm:$0xf] %vm3982, %v3963
    %3998 = vst.msk [vmem:[#allocation5 + $0xb4] sm:$0xf] %vm3982, %v3965
    %v3999 = vpack.c.bf16 %v3586, %v3586
    %v4000 = vpack.c.bf16 %v3606, %v3606
    %4017 = vrot.lane.b32.xlu0 %v3611, 96
    %v4018 = vpop.permute.xlu0 %4017
    %4019 = vrot.lane.b32.xlu0 %v3612, 96
    %v4020 = vpop.permute.xlu0 %4019
    %4021 = vrot.lane.b32.xlu0 %v3613, 96
    %v4022 = vpop.permute.xlu0 %4021
    %4023 = vrot.lane.b32.xlu0 %v3614, 96
    %v4024 = vpop.permute.xlu0 %4023
    %4025 = vrot.lane.b32.xlu0 %v3615, 96
    %v4026 = vpop.permute.xlu0 %4025
    %4027 = vrot.lane.b32.xlu0 %v3616, 96
    %v4028 = vpop.permute.xlu0 %4027
    %4029 = vrot.lane.b32.xlu0 %v3617, 96
    %v4030 = vpop.permute.xlu0 %4029
    %4031 = vrot.lane.b32.xlu0 %v3999, 96
    %v4032 = vpop.permute.xlu0 %4031
    %4033 = vrot.lane.b32.xlu0 %v3619, 96
    %v4034 = vpop.permute.xlu0 %4033
    %4035 = vrot.lane.b32.xlu0 %v3620, 96
    %v4036 = vpop.permute.xlu0 %4035
    %4037 = vrot.lane.b32.xlu0 %v3621, 96
    %v4038 = vpop.permute.xlu0 %4037
    %4039 = vrot.lane.b32.xlu0 %v3622, 96
    %v4040 = vpop.permute.xlu0 %4039
    %4041 = vrot.lane.b32.xlu0 %v3623, 96
    %v4042 = vpop.permute.xlu0 %4041
    %4043 = vrot.lane.b32.xlu0 %v3624, 96
    %v4044 = vpop.permute.xlu0 %4043
    %4045 = vrot.lane.b32.xlu0 %v3625, 96
    %v4046 = vpop.permute.xlu0 %4045
    %4047 = vrot.lane.b32.xlu0 %v4000, 96
    %v4048 = vpop.permute.xlu0 %4047
    %vm4065 = vcmask 1044224
    %4066 = vst.msk [vmem:[#allocation5] sm:$0xf] %vm4065, %v4018
    %4067 = vst.msk [vmem:[#allocation5 + $0xc] sm:$0xf] %vm4065, %v4020
    %4068 = vst.msk [vmem:[#allocation5 + $0x18] sm:$0xf] %vm4065, %v4022
    %4069 = vst.msk [vmem:[#allocation5 + $0x24] sm:$0xf] %vm4065, %v4024
    %4070 = vst.msk [vmem:[#allocation5 + $0x30] sm:$0xf] %vm4065, %v4026
    %4071 = vst.msk [vmem:[#allocation5 + $0x3c] sm:$0xf] %vm4065, %v4028
    %4072 = vst.msk [vmem:[#allocation5 + $0x48] sm:$0xf] %vm4065, %v4030
    %4073 = vst.msk [vmem:[#allocation5 + $0x54] sm:$0xf] %vm4065, %v4032
    %4074 = vst.msk [vmem:[#allocation5 + $0x60] sm:$0xf] %vm4065, %v4034
    %4075 = vst.msk [vmem:[#allocation5 + $0x6c] sm:$0xf] %vm4065, %v4036
    %4076 = vst.msk [vmem:[#allocation5 + $0x78] sm:$0xf] %vm4065, %v4038
    %4077 = vst.msk [vmem:[#allocation5 + $0x84] sm:$0xf] %vm4065, %v4040
    %4078 = vst.msk [vmem:[#allocation5 + $0x90] sm:$0xf] %vm4065, %v4042
    %4079 = vst.msk [vmem:[#allocation5 + $0x9c] sm:$0xf] %vm4065, %v4044
    %4080 = vst.msk [vmem:[#allocation5 + $0xa8] sm:$0xf] %vm4065, %v4046
    %4081 = vst.msk [vmem:[#allocation5 + $0xb4] sm:$0xf] %vm4065, %v4048
    %v4086 = vrot.slane %v3586, 1
    %v4087 = vrot.slane %v3587, 1
    %v4088 = vsel %vm3675, %v4086, %v4087
    %v4089 = vrot.slane %v3606, 1
    %v4090 = vrot.slane %v3607, 1
    %v4091 = vsel %vm3675, %v4089, %v4090
    %v4094 = vpack.c.bf16 %v4088, %v4088
    %v4095 = vpack.c.bf16 %v4091, %v4091
    %4096 = vst.msk [vmem:[#allocation5 + $0x4] sm:$0xf] %vm3626, %v3741
    %4097 = vst.msk [vmem:[#allocation5 + $0x10] sm:$0xf] %vm3626, %v3742
    %4098 = vst.msk [vmem:[#allocation5 + $0x1c] sm:$0xf] %vm3626, %v3743
    %4099 = vst.msk [vmem:[#allocation5 + $0x28] sm:$0xf] %vm3626, %v3744
    %4100 = vst.msk [vmem:[#allocation5 + $0x34] sm:$0xf] %vm3626, %v3745
    %4101 = vst.msk [vmem:[#allocation5 + $0x40] sm:$0xf] %vm3626, %v3746
    %4102 = vst.msk [vmem:[#allocation5 + $0x4c] sm:$0xf] %vm3626, %v3747
    %4103 = vst.msk [vmem:[#allocation5 + $0x58] sm:$0xf] %vm3626, %v4094
    %4104 = vst.msk [vmem:[#allocation5 + $0x64] sm:$0xf] %vm3626, %v3749
    %4105 = vst.msk [vmem:[#allocation5 + $0x70] sm:$0xf] %vm3626, %v3750
    %4106 = vst.msk [vmem:[#allocation5 + $0x7c] sm:$0xf] %vm3626, %v3751
    %4107 = vst.msk [vmem:[#allocation5 + $0x88] sm:$0xf] %vm3626, %v3752
    %4108 = vst.msk [vmem:[#allocation5 + $0x94] sm:$0xf] %vm3626, %v3753
    %4109 = vst.msk [vmem:[#allocation5 + $0xa0] sm:$0xf] %vm3626, %v3754
    %4110 = vst.msk [vmem:[#allocation5 + $0xac] sm:$0xf] %vm3626, %v3755
    %4111 = vst.msk [vmem:[#allocation5 + $0xb8] sm:$0xf] %vm3626, %v4095
    %v4112 = vrot.slane %v3586, 2
    %v4113 = vrot.slane %v3587, 2
    %v4114 = vsel %vm3837, %v4112, %v4113
    %v4115 = vrot.slane %v3606, 2
    %v4116 = vrot.slane %v3607, 2
    %v4117 = vsel %vm3837, %v4115, %v4116
    %v4120 = vpack.c.bf16 %v4114, %v4114
    %v4121 = vpack.c.bf16 %v4117, %v4117
    %4124 = vrot.lane.b32.xlu0 %v3903, 32
    %v4125 = vpop.permute.xlu0 %4124
    %4126 = vrot.lane.b32.xlu0 %v3904, 32
    %v4127 = vpop.permute.xlu0 %4126
    %4128 = vrot.lane.b32.xlu0 %v3905, 32
    %v4129 = vpop.permute.xlu0 %4128
    %4130 = vrot.lane.b32.xlu0 %v3906, 32
    %v4131 = vpop.permute.xlu0 %4130
    %4132 = vrot.lane.b32.xlu0 %v3907, 32
    %v4133 = vpop.permute.xlu0 %4132
    %4134 = vrot.lane.b32.xlu0 %v3908, 32
    %v4135 = vpop.permute.xlu0 %4134
    %4136 = vrot.lane.b32.xlu0 %v3909, 32
    %v4137 = vpop.permute.xlu0 %4136
    %4138 = vrot.lane.b32.xlu0 %v4120, 32
    %v4139 = vpop.permute.xlu0 %4138
    %4140 = vrot.lane.b32.xlu0 %v3911, 32
    %v4141 = vpop.permute.xlu0 %4140
    %4142 = vrot.lane.b32.xlu0 %v3912, 32
    %v4143 = vpop.permute.xlu0 %4142
    %4144 = vrot.lane.b32.xlu0 %v3913, 32
    %v4145 = vpop.permute.xlu0 %4144
    %4146 = vrot.lane.b32.xlu0 %v3914, 32
    %v4147 = vpop.permute.xlu0 %4146
    %4148 = vrot.lane.b32.xlu0 %v3915, 32
    %v4149 = vpop.permute.xlu0 %4148
    %4150 = vrot.lane.b32.xlu0 %v3916, 32
    %v4151 = vpop.permute.xlu0 %4150
    %4152 = vrot.lane.b32.xlu0 %v3917, 32
    %v4153 = vpop.permute.xlu0 %4152
    %4154 = vrot.lane.b32.xlu0 %v4121, 32
    %v4155 = vpop.permute.xlu0 %4154
    %4172 = vst.msk [vmem:[#allocation5 + $0x4] sm:$0xf] %vm3820, %v4125
    %4173 = vst.msk [vmem:[#allocation5 + $0x10] sm:$0xf] %vm3820, %v4127
    %4174 = vst.msk [vmem:[#allocation5 + $0x1c] sm:$0xf] %vm3820, %v4129
    %4175 = vst.msk [vmem:[#allocation5 + $0x28] sm:$0xf] %vm3820, %v4131
    %4176 = vst.msk [vmem:[#allocation5 + $0x34] sm:$0xf] %vm3820, %v4133
    %4177 = vst.msk [vmem:[#allocation5 + $0x40] sm:$0xf] %vm3820, %v4135
    %4178 = vst.msk [vmem:[#allocation5 + $0x4c] sm:$0xf] %vm3820, %v4137
    %4179 = vst.msk [vmem:[#allocation5 + $0x58] sm:$0xf] %vm3820, %v4139
    %4180 = vst.msk [vmem:[#allocation5 + $0x64] sm:$0xf] %vm3820, %v4141
    %4181 = vst.msk [vmem:[#allocation5 + $0x70] sm:$0xf] %vm3820, %v4143
    %4182 = vst.msk [vmem:[#allocation5 + $0x7c] sm:$0xf] %vm3820, %v4145
    %4183 = vst.msk [vmem:[#allocation5 + $0x88] sm:$0xf] %vm3820, %v4147
    %4184 = vst.msk [vmem:[#allocation5 + $0x94] sm:$0xf] %vm3820, %v4149
    %4185 = vst.msk [vmem:[#allocation5 + $0xa0] sm:$0xf] %vm3820, %v4151
    %4186 = vst.msk [vmem:[#allocation5 + $0xac] sm:$0xf] %vm3820, %v4153
    %4187 = vst.msk [vmem:[#allocation5 + $0xb8] sm:$0xf] %vm3820, %v4155
    %v4188 = vpack.c.bf16 %v3588, %v3588
    %v4189 = vpack.c.bf16 %v3608, %v3608
    %4192 = vrot.lane.b32.xlu0 %v3612, 64
    %v4193 = vpop.permute.xlu0 %4192
    %4194 = vrot.lane.b32.xlu0 %v3613, 64
    %v4195 = vpop.permute.xlu0 %4194
    %4196 = vrot.lane.b32.xlu0 %v3614, 64
    %v4197 = vpop.permute.xlu0 %4196
    %4198 = vrot.lane.b32.xlu0 %v3615, 64
    %v4199 = vpop.permute.xlu0 %4198
    %4200 = vrot.lane.b32.xlu0 %v3616, 64
    %v4201 = vpop.permute.xlu0 %4200
    %4202 = vrot.lane.b32.xlu0 %v3617, 64
    %v4203 = vpop.permute.xlu0 %4202
    %4204 = vrot.lane.b32.xlu0 %v3999, 64
    %v4205 = vpop.permute.xlu0 %4204
    %4206 = vrot.lane.b32.xlu0 %v4188, 64
    %v4207 = vpop.permute.xlu0 %4206
    %4208 = vrot.lane.b32.xlu0 %v3620, 64
    %v4209 = vpop.permute.xlu0 %4208
    %4210 = vrot.lane.b32.xlu0 %v3621, 64
    %v4211 = vpop.permute.xlu0 %4210
    %4212 = vrot.lane.b32.xlu0 %v3622, 64
    %v4213 = vpop.permute.xlu0 %4212
    %4214 = vrot.lane.b32.xlu0 %v3623, 64
    %v4215 = vpop.permute.xlu0 %4214
    %4216 = vrot.lane.b32.xlu0 %v3624, 64
    %v4217 = vpop.permute.xlu0 %4216
    %4218 = vrot.lane.b32.xlu0 %v3625, 64
    %v4219 = vpop.permute.xlu0 %4218
    %4220 = vrot.lane.b32.xlu0 %v4000, 64
    %v4221 = vpop.permute.xlu0 %4220
    %4222 = vrot.lane.b32.xlu0 %v4189, 64
    %v4223 = vpop.permute.xlu0 %4222
    %4240 = vst.msk [vmem:[#allocation5 + $0x4] sm:$0xf] %vm3982, %v4193
    %4241 = vst.msk [vmem:[#allocation5 + $0x10] sm:$0xf] %vm3982, %v4195
    %4242 = vst.msk [vmem:[#allocation5 + $0x1c] sm:$0xf] %vm3982, %v4197
    %4243 = vst.msk [vmem:[#allocation5 + $0x28] sm:$0xf] %vm3982, %v4199
    %4244 = vst.msk [vmem:[#allocation5 + $0x34] sm:$0xf] %vm3982, %v4201
    %4245 = vst.msk [vmem:[#allocation5 + $0x40] sm:$0xf] %vm3982, %v4203
    %4246 = vst.msk [vmem:[#allocation5 + $0x4c] sm:$0xf] %vm3982, %v4205
    %4247 = vst.msk [vmem:[#allocation5 + $0x58] sm:$0xf] %vm3982, %v4207
    %4248 = vst.msk [vmem:[#allocation5 + $0x64] sm:$0xf] %vm3982, %v4209
    %4249 = vst.msk [vmem:[#allocation5 + $0x70] sm:$0xf] %vm3982, %v4211
    %4250 = vst.msk [vmem:[#allocation5 + $0x7c] sm:$0xf] %vm3982, %v4213
    %4251 = vst.msk [vmem:[#allocation5 + $0x88] sm:$0xf] %vm3982, %v4215
    %4252 = vst.msk [vmem:[#allocation5 + $0x94] sm:$0xf] %vm3982, %v4217
    %4253 = vst.msk [vmem:[#allocation5 + $0xa0] sm:$0xf] %vm3982, %v4219
    %4254 = vst.msk [vmem:[#allocation5 + $0xac] sm:$0xf] %vm3982, %v4221
    %4255 = vst.msk [vmem:[#allocation5 + $0xb8] sm:$0xf] %vm3982, %v4223
    %v4260 = vrot.slane %v3588, 1
    %v4261 = vrot.slane %v3589, 1
    %v4262 = vsel %vm3675, %v4260, %v4261
    %v4263 = vrot.slane %v3608, 1
    %v4264 = vrot.slane %v3609, 1
    %v4265 = vsel %vm3675, %v4263, %v4264
    %v4268 = vpack.c.bf16 %v4262, %v4262
    %v4269 = vpack.c.bf16 %v4265, %v4265
    %4274 = vrot.lane.b32.xlu0 %v3742, 96
    %v4275 = vpop.permute.xlu0 %4274
    %4276 = vrot.lane.b32.xlu0 %v3743, 96
    %v4277 = vpop.permute.xlu0 %4276
    %4278 = vrot.lane.b32.xlu0 %v3744, 96
    %v4279 = vpop.permute.xlu0 %4278
    %4280 = vrot.lane.b32.xlu0 %v3745, 96
    %v4281 = vpop.permute.xlu0 %4280
    %4282 = vrot.lane.b32.xlu0 %v3746, 96
    %v4283 = vpop.permute.xlu0 %4282
    %4284 = vrot.lane.b32.xlu0 %v3747, 96
    %v4285 = vpop.permute.xlu0 %4284
    %4286 = vrot.lane.b32.xlu0 %v4094, 96
    %v4287 = vpop.permute.xlu0 %4286
    %4288 = vrot.lane.b32.xlu0 %v4268, 96
    %v4289 = vpop.permute.xlu0 %4288
    %4290 = vrot.lane.b32.xlu0 %v3750, 96
    %v4291 = vpop.permute.xlu0 %4290
    %4292 = vrot.lane.b32.xlu0 %v3751, 96
    %v4293 = vpop.permute.xlu0 %4292
    %4294 = vrot.lane.b32.xlu0 %v3752, 96
    %v4295 = vpop.permute.xlu0 %4294
    %4296 = vrot.lane.b32.xlu0 %v3753, 96
    %v4297 = vpop.permute.xlu0 %4296
    %4298 = vrot.lane.b32.xlu0 %v3754, 96
    %v4299 = vpop.permute.xlu0 %4298
    %4300 = vrot.lane.b32.xlu0 %v3755, 96
    %v4301 = vpop.permute.xlu0 %4300
    %4302 = vrot.lane.b32.xlu0 %v4095, 96
    %v4303 = vpop.permute.xlu0 %4302
    %4304 = vrot.lane.b32.xlu0 %v4269, 96
    %v4305 = vpop.permute.xlu0 %4304
    %4322 = vst.msk [vmem:[#allocation5 + $0x4] sm:$0xf] %vm4065, %v4275
    %4323 = vst.msk [vmem:[#allocation5 + $0x10] sm:$0xf] %vm4065, %v4277
    %4324 = vst.msk [vmem:[#allocation5 + $0x1c] sm:$0xf] %vm4065, %v4279
    %4325 = vst.msk [vmem:[#allocation5 + $0x28] sm:$0xf] %vm4065, %v4281
    %4326 = vst.msk [vmem:[#allocation5 + $0x34] sm:$0xf] %vm4065, %v4283
    %4327 = vst.msk [vmem:[#allocation5 + $0x40] sm:$0xf] %vm4065, %v4285
    %4328 = vst.msk [vmem:[#allocation5 + $0x4c] sm:$0xf] %vm4065, %v4287
    %4329 = vst.msk [vmem:[#allocation5 + $0x58] sm:$0xf] %vm4065, %v4289
    %4330 = vst.msk [vmem:[#allocation5 + $0x64] sm:$0xf] %vm4065, %v4291
    %4331 = vst.msk [vmem:[#allocation5 + $0x70] sm:$0xf] %vm4065, %v4293
    %4332 = vst.msk [vmem:[#allocation5 + $0x7c] sm:$0xf] %vm4065, %v4295
    %4333 = vst.msk [vmem:[#allocation5 + $0x88] sm:$0xf] %vm4065, %v4297
    %4334 = vst.msk [vmem:[#allocation5 + $0x94] sm:$0xf] %vm4065, %v4299
    %4335 = vst.msk [vmem:[#allocation5 + $0xa0] sm:$0xf] %vm4065, %v4301
    %4336 = vst.msk [vmem:[#allocation5 + $0xac] sm:$0xf] %vm4065, %v4303
    %4337 = vst.msk [vmem:[#allocation5 + $0xb8] sm:$0xf] %vm4065, %v4305
    %v4338 = vrot.slane %v3588, 2
    %v4339 = vrot.slane %v3589, 2
    %v4340 = vsel %vm3837, %v4338, %v4339
    %v4341 = vrot.slane %v3608, 2
    %v4342 = vrot.slane %v3609, 2
    %v4343 = vsel %vm3837, %v4341, %v4342
    %v4346 = vpack.c.bf16 %v4340, %v4340
    %v4347 = vpack.c.bf16 %v4343, %v4343
    %4348 = vst.msk [vmem:[#allocation5 + $0x8] sm:$0xf] %vm3626, %v3904
    %4349 = vst.msk [vmem:[#allocation5 + $0x14] sm:$0xf] %vm3626, %v3905
    %4350 = vst.msk [vmem:[#allocation5 + $0x20] sm:$0xf] %vm3626, %v3906
    %4351 = vst.msk [vmem:[#allocation5 + $0x2c] sm:$0xf] %vm3626, %v3907
    %4352 = vst.msk [vmem:[#allocation5 + $0x38] sm:$0xf] %vm3626, %v3908
    %4353 = vst.msk [vmem:[#allocation5 + $0x44] sm:$0xf] %vm3626, %v3909
    %4354 = vst.msk [vmem:[#allocation5 + $0x50] sm:$0xf] %vm3626, %v4120
    %4355 = vst.msk [vmem:[#allocation5 + $0x5c] sm:$0xf] %vm3626, %v4346
    %4356 = vst.msk [vmem:[#allocation5 + $0x68] sm:$0xf] %vm3626, %v3912
    %4357 = vst.msk [vmem:[#allocation5 + $0x74] sm:$0xf] %vm3626, %v3913
    %4358 = vst.msk [vmem:[#allocation5 + $0x80] sm:$0xf] %vm3626, %v3914
    %4359 = vst.msk [vmem:[#allocation5 + $0x8c] sm:$0xf] %vm3626, %v3915
    %4360 = vst.msk [vmem:[#allocation5 + $0x98] sm:$0xf] %vm3626, %v3916
    %4361 = vst.msk [vmem:[#allocation5 + $0xa4] sm:$0xf] %vm3626, %v3917
    %4362 = vst.msk [vmem:[#allocation5 + $0xb0] sm:$0xf] %vm3626, %v4121
    %4363 = vst.msk [vmem:[#allocation5 + $0xbc] sm:$0xf] %vm3626, %v4347
    %v4364 = vld [vmem:[#allocation5] sm:$0xff]
    %v4365 = vld [vmem:[#allocation5 + $0x8] sm:$0xf]
    %v4366 = vld [vmem:[#allocation5 + $0xc] sm:$0xff]
    %v4367 = vld [vmem:[#allocation5 + $0x14] sm:$0xf]
    %v4368 = vld [vmem:[#allocation5 + $0x18] sm:$0xff]
    %v4369 = vld [vmem:[#allocation5 + $0x20] sm:$0xf]
    %v4370 = vld [vmem:[#allocation5 + $0x24] sm:$0xff]
    %v4371 = vld [vmem:[#allocation5 + $0x2c] sm:$0xf]
    %v4372 = vld [vmem:[#allocation5 + $0x30] sm:$0xff]
    %v4373 = vld [vmem:[#allocation5 + $0x38] sm:$0xf]
    %v4374 = vld [vmem:[#allocation5 + $0x3c] sm:$0xff]
    %v4375 = vld [vmem:[#allocation5 + $0x44] sm:$0xf]
    %v4376 = vld [vmem:[#allocation5 + $0x48] sm:$0xff]
    %v4377 = vld [vmem:[#allocation5 + $0x50] sm:$0xf]
    %v4378 = vld [vmem:[#allocation5 + $0x54] sm:$0xff]
    %v4379 = vld [vmem:[#allocation5 + $0x5c] sm:$0xf]
    %v4380 = vld [vmem:[#allocation5 + $0x60] sm:$0xff]
    %v4381 = vld [vmem:[#allocation5 + $0x68] sm:$0xf]
    %v4382 = vld [vmem:[#allocation5 + $0x6c] sm:$0xff]
    %v4383 = vld [vmem:[#allocation5 + $0x74] sm:$0xf]
    %v4384 = vld [vmem:[#allocation5 + $0x78] sm:$0xff]
    %v4385 = vld [vmem:[#allocation5 + $0x80] sm:$0xf]
    %v4386 = vld [vmem:[#allocation5 + $0x84] sm:$0xff]
    %v4387 = vld [vmem:[#allocation5 + $0x8c] sm:$0xf]
    %v4388 = vld [vmem:[#allocation5 + $0x90] sm:$0xff]
    %v4389 = vld [vmem:[#allocation5 + $0x98] sm:$0xf]
    %v4390 = vld [vmem:[#allocation5 + $0x9c] sm:$0xff]
    %v4391 = vld [vmem:[#allocation5 + $0xa4] sm:$0xf]
    %v4392 = vld [vmem:[#allocation5 + $0xa8] sm:$0xff]
    %v4393 = vld [vmem:[#allocation5 + $0xb0] sm:$0xf]
    %v4394 = vld [vmem:[#allocation5 + $0xb4] sm:$0xff]
    %v4395 = vld [vmem:[#allocation5 + $0xbc] sm:$0xf]
    %v4396 = vld [vmem:[%s3] sm:$0xf]
    %v4397 = vld [vmem:[%s3 + $0x4] sm:$0xf]
    %v4398 = vld [vmem:[%s3 + $0x8] sm:$0xf]
    %v4399 = vld [vmem:[%s3 + $0xc] sm:$0xf]
    %v4400 = vld [vmem:[%s3 + $0x10] sm:$0xf]
    %v4401 = vld [vmem:[%s3 + $0x14] sm:$0xf]
    %v4402 = vld [vmem:[%s3 + $0x18] sm:$0xf]
    %v4403 = vld [vmem:[%s3 + $0x1c] sm:$0xf]
    %v4404 = vld [vmem:[%s3 + $0x20] sm:$0xf]
    %v4405 = vld [vmem:[%s3 + $0x24] sm:$0xf]
    %v4406 = vld [vmem:[%s3 + $0x28] sm:$0xf]
    %v4407 = vld [vmem:[%s3 + $0x2c] sm:$0xf]
    %v4408 = vld [vmem:[%s3 + $0x30] sm:$0xf]
    %v4409 = vld [vmem:[%s3 + $0x34] sm:$0xf]
    %v4410 = vld [vmem:[%s3 + $0x38] sm:$0xf]
    %v4411 = vld [vmem:[%s3 + $0x3c] sm:$0xf]
    %v4412 = vld [vmem:[%s3 + $0x40] sm:$0xf]
    %v4413 = vld [vmem:[%s3 + $0x44] sm:$0xf]
    %v4414 = vld [vmem:[%s3 + $0x48] sm:$0xf]
    %v4415 = vld [vmem:[%s3 + $0x4c] sm:$0xf]
    %v4416 = vld [vmem:[%s3 + $0x50] sm:$0xf]
    %v4417 = vld [vmem:[%s3 + $0x54] sm:$0xf]
    %v4418 = vld [vmem:[%s3 + $0x58] sm:$0xf]
    %v4419 = vld [vmem:[%s3 + $0x5c] sm:$0xf]
    %v4420 = vld [vmem:[%s3 + $0x60] sm:$0xf]
    %v4421 = vld [vmem:[%s3 + $0x64] sm:$0xf]
    %v4422 = vld [vmem:[%s3 + $0x68] sm:$0xf]
    %v4423 = vld [vmem:[%s3 + $0x6c] sm:$0xf]
    %v4424 = vld [vmem:[%s3 + $0x70] sm:$0xf]
    %v4425 = vld [vmem:[%s3 + $0x74] sm:$0xf]
    %v4426 = vld [vmem:[%s3 + $0x78] sm:$0xf]
    %v4427 = vld [vmem:[%s3 + $0x7c] sm:$0xf]
    %v4428 = vld [vmem:[%s3 + $0x80] sm:$0xf]
    %v4429 = vld [vmem:[%s3 + $0x84] sm:$0xf]
    %v4430 = vld [vmem:[%s3 + $0x88] sm:$0xf]
    %v4431 = vld [vmem:[%s3 + $0x8c] sm:$0xf]
    %v4432 = vld [vmem:[%s4] sm:$0x1]
    %v4434 = vperm.slane %v4432, 0
    %v4468 = vunpack.c.l.b16 %v4364
    %v4469 = vunpack.c.h.b16 %v4364
    %v4470 = vunpack.c.l.b16 %v4365
    %v4471 = vunpack.c.l.b16 %v4366
    %v4472 = vunpack.c.h.b16 %v4366
    %v4473 = vunpack.c.l.b16 %v4367
    %v4474 = vunpack.c.l.b16 %v4368
    %v4475 = vunpack.c.h.b16 %v4368
    %v4476 = vunpack.c.l.b16 %v4369
    %v4477 = vunpack.c.l.b16 %v4370
    %v4478 = vunpack.c.h.b16 %v4370
    %v4479 = vunpack.c.l.b16 %v4371
    %v4480 = vunpack.c.l.b16 %v4372
    %v4481 = vunpack.c.h.b16 %v4372
    %v4482 = vunpack.c.l.b16 %v4373
    %v4483 = vunpack.c.l.b16 %v4374
    %v4484 = vunpack.c.h.b16 %v4374
    %v4485 = vunpack.c.l.b16 %v4375
    %v4486 = vunpack.c.l.b16 %v4376
    %v4487 = vunpack.c.h.b16 %v4376
    %v4488 = vunpack.c.l.b16 %v4377
    %v4489 = vunpack.c.l.b16 %v4378
    %v4490 = vunpack.c.h.b16 %v4378
    %v4491 = vunpack.c.l.b16 %v4379
    %v4492 = vunpack.c.l.b16 %v4380
    %v4493 = vunpack.c.h.b16 %v4380
    %v4494 = vunpack.c.l.b16 %v4381
    %v4495 = vunpack.c.l.b16 %v4382
    %v4496 = vunpack.c.h.b16 %v4382
    %v4497 = vunpack.c.l.b16 %v4383
    %v4498 = vunpack.c.l.b16 %v4384
    %v4499 = vunpack.c.h.b16 %v4384
    %v4500 = vunpack.c.l.b16 %v4385
    %v4501 = vunpack.c.l.b16 %v4386
    %v4502 = vunpack.c.h.b16 %v4386
    %v4503 = vunpack.c.l.b16 %v4387
    %v4504 = vunpack.c.l.b16 %v4388
    %v4505 = vunpack.c.h.b16 %v4388
    %v4506 = vunpack.c.l.b16 %v4389
    %v4507 = vunpack.c.l.b16 %v4390
    %v4508 = vunpack.c.h.b16 %v4390
    %v4509 = vunpack.c.l.b16 %v4391
    %v4510 = vunpack.c.l.b16 %v4392
    %v4511 = vunpack.c.h.b16 %v4392
    %v4512 = vunpack.c.l.b16 %v4393
    %v4513 = vunpack.c.l.b16 %v4394
    %v4514 = vunpack.c.h.b16 %v4394
    %v4515 = vunpack.c.l.b16 %v4395
    %v4516 = vpack.c.b16 %v4471, %v4468
    %v4517 = vpack.c.b16 %v4472, %v4469
    %v4518 = vpack.c.b16 %v4473, %v4470
    %v4519 = vpack.c.b16 %v4477, %v4474
    %v4520 = vpack.c.b16 %v4478, %v4475
    %v4521 = vpack.c.b16 %v4479, %v4476
    %v4522 = vpack.c.b16 %v4483, %v4480
    %v4523 = vpack.c.b16 %v4484, %v4481
    %v4524 = vpack.c.b16 %v4485, %v4482
    %v4525 = vpack.c.b16 %v4489, %v4486
    %v4526 = vpack.c.b16 %v4490, %v4487
    %v4527 = vpack.c.b16 %v4491, %v4488
    %v4528 = vpack.c.b16 %v4495, %v4492
    %v4529 = vpack.c.b16 %v4496, %v4493
    %v4530 = vpack.c.b16 %v4497, %v4494
    %v4531 = vpack.c.b16 %v4501, %v4498
    %v4532 = vpack.c.b16 %v4502, %v4499
    %v4533 = vpack.c.b16 %v4503, %v4500
    %v4534 = vpack.c.b16 %v4507, %v4504
    %v4535 = vpack.c.b16 %v4508, %v4505
    %v4536 = vpack.c.b16 %v4509, %v4506
    %v4537 = vpack.c.b16 %v4513, %v4510
    %v4538 = vpack.c.b16 %v4514, %v4511
    %v4539 = vpack.c.b16 %v4515, %v4512
    %v4592 = vunpack.c.l.b16 %v4396
    %v4593 = vunpack.c.l.b16 %v4397
    %v4594 = vunpack.c.l.b16 %v4398
    %v4595 = vunpack.c.l.b16 %v4399
    %v4596 = vunpack.c.l.b16 %v4400
    %v4597 = vunpack.c.l.b16 %v4401
    %v4598 = vunpack.c.l.b16 %v4402
    %v4599 = vunpack.c.l.b16 %v4403
    %v4600 = vunpack.c.l.b16 %v4404
    %v4601 = vunpack.c.l.b16 %v4405
    %v4602 = vunpack.c.l.b16 %v4406
    %v4603 = vunpack.c.l.b16 %v4407
    %v4604 = vunpack.c.l.b16 %v4408
    %v4605 = vunpack.c.l.b16 %v4409
    %v4606 = vunpack.c.l.b16 %v4410
    %v4607 = vunpack.c.l.b16 %v4411
    %v4608 = vunpack.c.l.b16 %v4412
    %v4609 = vunpack.c.l.b16 %v4413
    %v4610 = vunpack.c.l.b16 %v4414
    %v4611 = vunpack.c.l.b16 %v4415
    %v4612 = vunpack.c.l.b16 %v4416
    %v4613 = vunpack.c.l.b16 %v4417
    %v4614 = vunpack.c.l.b16 %v4418
    %v4615 = vunpack.c.l.b16 %v4419
    %v4616 = vunpack.c.l.b16 %v4420
    %v4617 = vunpack.c.l.b16 %v4421
    %v4618 = vunpack.c.l.b16 %v4422
    %v4619 = vunpack.c.l.b16 %v4423
    %v4620 = vunpack.c.l.b16 %v4424
    %v4621 = vunpack.c.l.b16 %v4425
    %v4622 = vunpack.c.l.b16 %v4426
    %v4623 = vunpack.c.l.b16 %v4427
    %v4624 = vunpack.c.l.b16 %v4428
    %v4625 = vunpack.c.l.b16 %v4429
    %v4626 = vunpack.c.l.b16 %v4430
    %v4627 = vunpack.c.l.b16 %v4431
    %v4628 = vpack.c.b16 %v4593, %v4592
    %v4629 = vpack.c.b16 %v4595, %v4594
    %v4630 = vpack.c.b16 %v4597, %v4596
    %v4631 = vpack.c.b16 %v4599, %v4598
    %v4632 = vpack.c.b16 %v4601, %v4600
    %v4633 = vpack.c.b16 %v4603, %v4602
    %v4634 = vpack.c.b16 %v4605, %v4604
    %v4635 = vpack.c.b16 %v4607, %v4606
    %v4636 = vpack.c.b16 %v4609, %v4608
    %v4637 = vpack.c.b16 %v4611, %v4610
    %v4638 = vpack.c.b16 %v4613, %v4612
    %v4639 = vpack.c.b16 %v4615, %v4614
    %v4640 = vpack.c.b16 %v4617, %v4616
    %v4641 = vpack.c.b16 %v4619, %v4618
    %v4642 = vpack.c.b16 %v4621, %v4620
    %v4643 = vpack.c.b16 %v4623, %v4622
    %v4644 = vpack.c.b16 %v4625, %v4624
    %v4645 = vpack.c.b16 %v4627, %v4626
    %v4665 = vsel %vm2865, %v4518, 0
    %v4668 = vsel %vm2865, %v4521, 0
    %v4671 = vsel %vm2865, %v4524, 0
    %v4674 = vsel %vm2865, %v4527, 0
    %v4677 = vsel %vm2865, %v4530, 0
    %v4680 = vsel %vm2865, %v4533, 0
    %v4683 = vsel %vm2865, %v4536, 0
    %v4686 = vsel %vm2865, %v4539, 0
    %4688 = vmatpush.bf16.msra.mxu0 %v4635
    %4689 = vmatpush.bf16.msra.mxu0 %v4634
    %4690 = vmatpush.bf16.msra.mxu0 %v4633
    %4691 = vmatpush.bf16.msra.mxu0 %v4632
    %4692 = vmatpush.bf16.msra.mxu0 %v4631
    %4693 = vmatpush.bf16.msra.mxu0 %v4630
    %4694 = vmatpush.bf16.msra.mxu0 %v4629
    %4695 = vmatpush.bf16.msra.mxu0 %v4628
    %4696 = vmatmul.bf16.gmra.mxu0 %v4516
    %v4697 = vpop.f32.mrf.mxu0
    %v4698 = vadd.f32 %v4434, %v4697
    %v4699 = vpop.f32.mrf.mxu0
    %v4700 = vadd.f32 %v4434, %v4699
    %4701 = vmatmul.bf16.gmra.mxu0 %v4519
    %v4702 = vpop.f32.mrf.mxu0
    %v4703 = vadd.f32 %v4434, %v4702
    %v4704 = vpop.f32.mrf.mxu0
    %v4705 = vadd.f32 %v4434, %v4704
    %4706 = vmatmul.bf16.gmra.mxu0 %v4522
    %v4707 = vpop.f32.mrf.mxu0
    %v4708 = vadd.f32 %v4434, %v4707
    %v4709 = vpop.f32.mrf.mxu0
    %v4710 = vadd.f32 %v4434, %v4709
    %4711 = vmatmul.bf16.gmra.mxu0 %v4525
    %v4712 = vpop.f32.mrf.mxu0
    %v4713 = vadd.f32 %v4434, %v4712
    %v4714 = vpop.f32.mrf.mxu0
    %v4715 = vadd.f32 %v4434, %v4714
    %4716 = vmatmul.bf16.gmra.mxu0 %v4528
    %v4717 = vpop.f32.mrf.mxu0
    %v4718 = vadd.f32 %v4434, %v4717
    %v4719 = vpop.f32.mrf.mxu0
    %v4720 = vadd.f32 %v4434, %v4719
    %4721 = vmatmul.bf16.gmra.mxu0 %v4531
    %v4722 = vpop.f32.mrf.mxu0
    %v4723 = vadd.f32 %v4434, %v4722
    %v4724 = vpop.f32.mrf.mxu0
    %v4725 = vadd.f32 %v4434, %v4724
    %4726 = vmatmul.bf16.gmra.mxu0 %v4534
    %v4727 = vpop.f32.mrf.mxu0
    %v4728 = vadd.f32 %v4434, %v4727
    %v4729 = vpop.f32.mrf.mxu0
    %v4730 = vadd.f32 %v4434, %v4729
    %4731 = vmatmul.bf16.gmra.mxu0 %v4537
    %v4732 = vpop.f32.mrf.mxu0
    %v4733 = vadd.f32 %v4434, %v4732
    %v4734 = vpop.f32.mrf.mxu0
    %v4735 = vadd.f32 %v4434, %v4734
    %4736 = vdwg.mxu0
    %4737 = vmatpush.bf16.msra.mxu0 %v4643
    %4738 = vmatpush.bf16.msra.mxu0 %v4642
    %4739 = vmatpush.bf16.msra.mxu0 %v4641
    %4740 = vmatpush.bf16.msra.mxu0 %v4640
    %4741 = vmatpush.bf16.msra.mxu0 %v4639
    %4742 = vmatpush.bf16.msra.mxu0 %v4638
    %4743 = vmatpush.bf16.msra.mxu0 %v4637
    %4744 = vmatpush.bf16.msra.mxu0 %v4636
    %4745 = vmatmul.bf16.gmra.mxu0 %v4517
    %v4746 = vpop.f32.mrf.mxu0
    %v4747 = vadd.f32 %v4698, %v4746
    %v4748 = vpop.f32.mrf.mxu0
    %v4749 = vadd.f32 %v4700, %v4748
    %4750 = vmatmul.bf16.gmra.mxu0 %v4520
    %v4751 = vpop.f32.mrf.mxu0
    %v4752 = vadd.f32 %v4703, %v4751
    %v4753 = vpop.f32.mrf.mxu0
    %v4754 = vadd.f32 %v4705, %v4753
    %4755 = vmatmul.bf16.gmra.mxu0 %v4523
    %v4756 = vpop.f32.mrf.mxu0
    %v4757 = vadd.f32 %v4708, %v4756
    %v4758 = vpop.f32.mrf.mxu0
    %v4759 = vadd.f32 %v4710, %v4758
    %4760 = vmatmul.bf16.gmra.mxu0 %v4526
    %v4761 = vpop.f32.mrf.mxu0
    %v4762 = vadd.f32 %v4713, %v4761
    %v4763 = vpop.f32.mrf.mxu0
    %v4764 = vadd.f32 %v4715, %v4763
    %4765 = vmatmul.bf16.gmra.mxu0 %v4529
    %v4766 = vpop.f32.mrf.mxu0
    %v4767 = vadd.f32 %v4718, %v4766
    %v4768 = vpop.f32.mrf.mxu0
    %v4769 = vadd.f32 %v4720, %v4768
    %4770 = vmatmul.bf16.gmra.mxu0 %v4532
    %v4771 = vpop.f32.mrf.mxu0
    %v4772 = vadd.f32 %v4723, %v4771
    %v4773 = vpop.f32.mrf.mxu0
    %v4774 = vadd.f32 %v4725, %v4773
    %4775 = vmatmul.bf16.gmra.mxu0 %v4535
    %v4776 = vpop.f32.mrf.mxu0
    %v4777 = vadd.f32 %v4728, %v4776
    %v4778 = vpop.f32.mrf.mxu0
    %v4779 = vadd.f32 %v4730, %v4778
    %4780 = vmatmul.bf16.gmra.mxu0 %v4538
    %v4781 = vpop.f32.mrf.mxu0
    %v4782 = vadd.f32 %v4733, %v4781
    %v4783 = vpop.f32.mrf.mxu0
    %v4784 = vadd.f32 %v4735, %v4783
    %4785 = vdwg.mxu0
    %4786 = vmatpush.bf16.msra.mxu0 0
    %4787 = vmatpush.bf16.msra.mxu0 0
    %4788 = vmatpush.bf16.msra.mxu0 0
    %4789 = vmatpush.bf16.msra.mxu0 0
    %4790 = vmatpush.bf16.msra.mxu0 0
    %4791 = vmatpush.bf16.msra.mxu0 0
    %4792 = vmatpush.bf16.msra.mxu0 %v4645
    %4793 = vmatpush.bf16.msra.mxu0 %v4644
    %4794 = vmatmul.bf16.gmra.mxu0 %v4665
    %v4795 = vpop.f32.mrf.mxu0
    %v4796 = vadd.f32 %v4747, %v4795
    %v4797 = vpop.f32.mrf.mxu0
    %v4798 = vadd.f32 %v4749, %v4797
    %4799 = vmatmul.bf16.gmra.mxu0 %v4668
    %v4800 = vpop.f32.mrf.mxu0
    %v4801 = vadd.f32 %v4752, %v4800
    %v4802 = vpop.f32.mrf.mxu0
    %v4803 = vadd.f32 %v4754, %v4802
    %4804 = vmatmul.bf16.gmra.mxu0 %v4671
    %v4805 = vpop.f32.mrf.mxu0
    %v4806 = vadd.f32 %v4757, %v4805
    %v4807 = vpop.f32.mrf.mxu0
    %v4808 = vadd.f32 %v4759, %v4807
    %4809 = vmatmul.bf16.gmra.mxu0 %v4674
    %v4810 = vpop.f32.mrf.mxu0
    %v4811 = vadd.f32 %v4762, %v4810
    %v4812 = vpop.f32.mrf.mxu0
    %v4813 = vadd.f32 %v4764, %v4812
    %4814 = vmatmul.bf16.gmra.mxu0 %v4677
    %v4815 = vpop.f32.mrf.mxu0
    %v4816 = vadd.f32 %v4767, %v4815
    %v4817 = vpop.f32.mrf.mxu0
    %v4818 = vadd.f32 %v4769, %v4817
    %4819 = vmatmul.bf16.gmra.mxu0 %v4680
    %v4820 = vpop.f32.mrf.mxu0
    %v4821 = vadd.f32 %v4772, %v4820
    %v4822 = vpop.f32.mrf.mxu0
    %v4823 = vadd.f32 %v4774, %v4822
    %4824 = vmatmul.bf16.gmra.mxu0 %v4683
    %v4825 = vpop.f32.mrf.mxu0
    %v4826 = vadd.f32 %v4777, %v4825
    %v4827 = vpop.f32.mrf.mxu0
    %v4828 = vadd.f32 %v4779, %v4827
    %4829 = vmatmul.bf16.gmra.mxu0 %v4686
    %v4830 = vpop.f32.mrf.mxu0
    %v4831 = vadd.f32 %v4782, %v4830
    %v4832 = vpop.f32.mrf.mxu0
    %v4833 = vadd.f32 %v4784, %v4832
    %4834 = vdwg.mxu0
    %v4835 = vmax.f32 %v4796, 0.0
    %v4836 = vmax.f32 %v4798, 0.0
    %v4837 = vmax.f32 %v4801, 0.0
    %v4838 = vmax.f32 %v4803, 0.0
    %v4839 = vmax.f32 %v4806, 0.0
    %v4840 = vmax.f32 %v4808, 0.0
    %v4841 = vmax.f32 %v4811, 0.0
    %v4842 = vmax.f32 %v4813, 0.0
    %v4843 = vmax.f32 %v4816, 0.0
    %v4844 = vmax.f32 %v4818, 0.0
    %v4845 = vmax.f32 %v4821, 0.0
    %v4846 = vmax.f32 %v4823, 0.0
    %v4847 = vmax.f32 %v4826, 0.0
    %v4848 = vmax.f32 %v4828, 0.0
    %v4849 = vmax.f32 %v4831, 0.0
    %v4850 = vmax.f32 %v4833, 0.0
    %v4867 = vrot.slane %v4835, 2
    %v4868 = vrot.slane %v4835, 4
    %v4869 = vrot.slane %v4835, 6
    %v4870 = vrot.slane %v4836, 2
    %v4871 = vrot.slane %v4836, 4
    %v4872 = vrot.slane %v4836, 6
    %v4873 = vrot.slane %v4837, 2
    %v4874 = vrot.slane %v4837, 4
    %v4875 = vrot.slane %v4837, 6
    %v4876 = vrot.slane %v4838, 2
    %v4877 = vrot.slane %v4838, 4
    %v4878 = vrot.slane %v4838, 6
    %v4879 = vrot.slane %v4839, 2
    %v4880 = vrot.slane %v4839, 4
    %v4881 = vrot.slane %v4839, 6
    %v4882 = vrot.slane %v4840, 2
    %v4883 = vrot.slane %v4840, 4
    %v4884 = vrot.slane %v4840, 6
    %v4885 = vrot.slane %v4841, 2
    %v4886 = vrot.slane %v4841, 4
    %v4887 = vrot.slane %v4841, 6
    %v4888 = vrot.slane %v4842, 2
    %v4889 = vrot.slane %v4842, 4
    %v4890 = vrot.slane %v4842, 6
    %v4891 = vrot.slane %v4843, 2
    %v4892 = vrot.slane %v4843, 4
    %v4893 = vrot.slane %v4843, 6
    %v4894 = vrot.slane %v4844, 2
    %v4895 = vrot.slane %v4844, 4
    %v4896 = vrot.slane %v4844, 6
    %v4897 = vrot.slane %v4845, 2
    %v4898 = vrot.slane %v4845, 4
    %v4899 = vrot.slane %v4845, 6
    %v4900 = vrot.slane %v4846, 2
    %v4901 = vrot.slane %v4846, 4
    %v4902 = vrot.slane %v4846, 6
    %v4903 = vrot.slane %v4847, 2
    %v4904 = vrot.slane %v4847, 4
    %v4905 = vrot.slane %v4847, 6
    %v4906 = vrot.slane %v4848, 2
    %v4907 = vrot.slane %v4848, 4
    %v4908 = vrot.slane %v4848, 6
    %v4909 = vrot.slane %v4849, 2
    %v4910 = vrot.slane %v4849, 4
    %v4911 = vrot.slane %v4849, 6
    %v4912 = vrot.slane %v4850, 2
    %v4913 = vrot.slane %v4850, 4
    %v4914 = vrot.slane %v4850, 6
    %vm4963 = vcmask 517120
    %v4964 = vsel %vm4963, %v4835, -inf
    %v4965 = vrot.slane %v4964, 4
    %v4966 = vmax.f32 %v4964, %v4965
    %v4967 = vrot.slane %v4966, 2
    %v4968 = vmax.f32 %v4966, %v4967
    %v4969 = vrot.slane %v4968, 1
    %v4970 = vmax.f32 %v4968, %v4969
    %v4971 = vsel %vm4963, %v4867, -inf
    %v4972 = vrot.slane %v4971, 4
    %v4973 = vmax.f32 %v4971, %v4972
    %v4974 = vrot.slane %v4973, 2
    %v4975 = vmax.f32 %v4973, %v4974
    %v4976 = vrot.slane %v4975, 1
    %v4977 = vmax.f32 %v4975, %v4976
    %v4978 = vsel %vm4963, %v4868, -inf
    %v4979 = vrot.slane %v4978, 4
    %v4980 = vmax.f32 %v4978, %v4979
    %v4981 = vrot.slane %v4980, 2
    %v4982 = vmax.f32 %v4980, %v4981
    %v4983 = vrot.slane %v4982, 1
    %v4984 = vmax.f32 %v4982, %v4983
    %v4985 = vsel %vm4963, %v4869, -inf
    %v4986 = vrot.slane %v4985, 4
    %v4987 = vmax.f32 %v4985, %v4986
    %v4988 = vrot.slane %v4987, 2
    %v4989 = vmax.f32 %v4987, %v4988
    %v4990 = vrot.slane %v4989, 1
    %v4991 = vmax.f32 %v4989, %v4990
    %v4992 = vsel %vm4963, %v4836, -inf
    %v4993 = vrot.slane %v4992, 4
    %v4994 = vmax.f32 %v4992, %v4993
    %v4995 = vrot.slane %v4994, 2
    %v4996 = vmax.f32 %v4994, %v4995
    %v4997 = vrot.slane %v4996, 1
    %v4998 = vmax.f32 %v4996, %v4997
    %v4999 = vsel %vm4963, %v4870, -inf
    %v5000 = vrot.slane %v4999, 4
    %v5001 = vmax.f32 %v4999, %v5000
    %v5002 = vrot.slane %v5001, 2
    %v5003 = vmax.f32 %v5001, %v5002
    %v5004 = vrot.slane %v5003, 1
    %v5005 = vmax.f32 %v5003, %v5004
    %v5006 = vsel %vm4963, %v4871, -inf
    %v5007 = vrot.slane %v5006, 4
    %v5008 = vmax.f32 %v5006, %v5007
    %v5009 = vrot.slane %v5008, 2
    %v5010 = vmax.f32 %v5008, %v5009
    %v5011 = vrot.slane %v5010, 1
    %v5012 = vmax.f32 %v5010, %v5011
    %v5013 = vsel %vm4963, %v4872, -inf
    %v5014 = vrot.slane %v5013, 4
    %v5015 = vmax.f32 %v5013, %v5014
    %v5016 = vrot.slane %v5015, 2
    %v5017 = vmax.f32 %v5015, %v5016
    %v5018 = vrot.slane %v5017, 1
    %v5019 = vmax.f32 %v5017, %v5018
    %v5020 = vsel %vm4963, %v4837, -inf
    %v5021 = vrot.slane %v5020, 4
    %v5022 = vmax.f32 %v5020, %v5021
    %v5023 = vrot.slane %v5022, 2
    %v5024 = vmax.f32 %v5022, %v5023
    %v5025 = vrot.slane %v5024, 1
    %v5026 = vmax.f32 %v5024, %v5025
    %v5027 = vsel %vm4963, %v4873, -inf
    %v5028 = vrot.slane %v5027, 4
    %v5029 = vmax.f32 %v5027, %v5028
    %v5030 = vrot.slane %v5029, 2
    %v5031 = vmax.f32 %v5029, %v5030
    %v5032 = vrot.slane %v5031, 1
    %v5033 = vmax.f32 %v5031, %v5032
    %v5034 = vsel %vm4963, %v4874, -inf
    %v5035 = vrot.slane %v5034, 4
    %v5036 = vmax.f32 %v5034, %v5035
    %v5037 = vrot.slane %v5036, 2
    %v5038 = vmax.f32 %v5036, %v5037
    %v5039 = vrot.slane %v5038, 1
    %v5040 = vmax.f32 %v5038, %v5039
    %v5041 = vsel %vm4963, %v4875, -inf
    %v5042 = vrot.slane %v5041, 4
    %v5043 = vmax.f32 %v5041, %v5042
    %v5044 = vrot.slane %v5043, 2
    %v5045 = vmax.f32 %v5043, %v5044
    %v5046 = vrot.slane %v5045, 1
    %v5047 = vmax.f32 %v5045, %v5046
    %v5048 = vsel %vm4963, %v4838, -inf
    %v5049 = vrot.slane %v5048, 4
    %v5050 = vmax.f32 %v5048, %v5049
    %v5051 = vrot.slane %v5050, 2
    %v5052 = vmax.f32 %v5050, %v5051
    %v5053 = vrot.slane %v5052, 1
    %v5054 = vmax.f32 %v5052, %v5053
    %v5055 = vsel %vm4963, %v4876, -inf
    %v5056 = vrot.slane %v5055, 4
    %v5057 = vmax.f32 %v5055, %v5056
    %v5058 = vrot.slane %v5057, 2
    %v5059 = vmax.f32 %v5057, %v5058
    %v5060 = vrot.slane %v5059, 1
    %v5061 = vmax.f32 %v5059, %v5060
    %v5062 = vsel %vm4963, %v4877, -inf
    %v5063 = vrot.slane %v5062, 4
    %v5064 = vmax.f32 %v5062, %v5063
    %v5065 = vrot.slane %v5064, 2
    %v5066 = vmax.f32 %v5064, %v5065
    %v5067 = vrot.slane %v5066, 1
    %v5068 = vmax.f32 %v5066, %v5067
    %v5069 = vsel %vm4963, %v4878, -inf
    %v5070 = vrot.slane %v5069, 4
    %v5071 = vmax.f32 %v5069, %v5070
    %v5072 = vrot.slane %v5071, 2
    %v5073 = vmax.f32 %v5071, %v5072
    %v5074 = vrot.slane %v5073, 1
    %v5075 = vmax.f32 %v5073, %v5074
    %v5076 = vsel %vm4963, %v4839, -inf
    %v5077 = vrot.slane %v5076, 4
    %v5078 = vmax.f32 %v5076, %v5077
    %v5079 = vrot.slane %v5078, 2
    %v5080 = vmax.f32 %v5078, %v5079
    %v5081 = vrot.slane %v5080, 1
    %v5082 = vmax.f32 %v5080, %v5081
    %v5083 = vsel %vm4963, %v4879, -inf
    %v5084 = vrot.slane %v5083, 4
    %v5085 = vmax.f32 %v5083, %v5084
    %v5086 = vrot.slane %v5085, 2
    %v5087 = vmax.f32 %v5085, %v5086
    %v5088 = vrot.slane %v5087, 1
    %v5089 = vmax.f32 %v5087, %v5088
    %v5090 = vsel %vm4963, %v4880, -inf
    %v5091 = vrot.slane %v5090, 4
    %v5092 = vmax.f32 %v5090, %v5091
    %v5093 = vrot.slane %v5092, 2
    %v5094 = vmax.f32 %v5092, %v5093
    %v5095 = vrot.slane %v5094, 1
    %v5096 = vmax.f32 %v5094, %v5095
    %v5097 = vsel %vm4963, %v4881, -inf
    %v5098 = vrot.slane %v5097, 4
    %v5099 = vmax.f32 %v5097, %v5098
    %v5100 = vrot.slane %v5099, 2
    %v5101 = vmax.f32 %v5099, %v5100
    %v5102 = vrot.slane %v5101, 1
    %v5103 = vmax.f32 %v5101, %v5102
    %v5104 = vsel %vm4963, %v4840, -inf
    %v5105 = vrot.slane %v5104, 4
    %v5106 = vmax.f32 %v5104, %v5105
    %v5107 = vrot.slane %v5106, 2
    %v5108 = vmax.f32 %v5106, %v5107
    %v5109 = vrot.slane %v5108, 1
    %v5110 = vmax.f32 %v5108, %v5109
    %v5111 = vsel %vm4963, %v4882, -inf
    %v5112 = vrot.slane %v5111, 4
    %v5113 = vmax.f32 %v5111, %v5112
    %v5114 = vrot.slane %v5113, 2
    %v5115 = vmax.f32 %v5113, %v5114
    %v5116 = vrot.slane %v5115, 1
    %v5117 = vmax.f32 %v5115, %v5116
    %v5118 = vsel %vm4963, %v4883, -inf
    %v5119 = vrot.slane %v5118, 4
    %v5120 = vmax.f32 %v5118, %v5119
    %v5121 = vrot.slane %v5120, 2
    %v5122 = vmax.f32 %v5120, %v5121
    %v5123 = vrot.slane %v5122, 1
    %v5124 = vmax.f32 %v5122, %v5123
    %v5125 = vsel %vm4963, %v4884, -inf
    %v5126 = vrot.slane %v5125, 4
    %v5127 = vmax.f32 %v5125, %v5126
    %v5128 = vrot.slane %v5127, 2
    %v5129 = vmax.f32 %v5127, %v5128
    %v5130 = vrot.slane %v5129, 1
    %v5131 = vmax.f32 %v5129, %v5130
    %v5132 = vsel %vm4963, %v4841, -inf
    %v5133 = vrot.slane %v5132, 4
    %v5134 = vmax.f32 %v5132, %v5133
    %v5135 = vrot.slane %v5134, 2
    %v5136 = vmax.f32 %v5134, %v5135
    %v5137 = vrot.slane %v5136, 1
    %v5138 = vmax.f32 %v5136, %v5137
    %v5139 = vsel %vm4963, %v4885, -inf
    %v5140 = vrot.slane %v5139, 4
    %v5141 = vmax.f32 %v5139, %v5140
    %v5142 = vrot.slane %v5141, 2
    %v5143 = vmax.f32 %v5141, %v5142
    %v5144 = vrot.slane %v5143, 1
    %v5145 = vmax.f32 %v5143, %v5144
    %v5146 = vsel %vm4963, %v4886, -inf
    %v5147 = vrot.slane %v5146, 4
    %v5148 = vmax.f32 %v5146, %v5147
    %v5149 = vrot.slane %v5148, 2
    %v5150 = vmax.f32 %v5148, %v5149
    %v5151 = vrot.slane %v5150, 1
    %v5152 = vmax.f32 %v5150, %v5151
    %v5153 = vsel %vm4963, %v4887, -inf
    %v5154 = vrot.slane %v5153, 4
    %v5155 = vmax.f32 %v5153, %v5154
    %v5156 = vrot.slane %v5155, 2
    %v5157 = vmax.f32 %v5155, %v5156
    %v5158 = vrot.slane %v5157, 1
    %v5159 = vmax.f32 %v5157, %v5158
    %v5160 = vsel %vm4963, %v4842, -inf
    %v5161 = vrot.slane %v5160, 4
    %v5162 = vmax.f32 %v5160, %v5161
    %v5163 = vrot.slane %v5162, 2
    %v5164 = vmax.f32 %v5162, %v5163
    %v5165 = vrot.slane %v5164, 1
    %v5166 = vmax.f32 %v5164, %v5165
    %v5167 = vsel %vm4963, %v4888, -inf
    %v5168 = vrot.slane %v5167, 4
    %v5169 = vmax.f32 %v5167, %v5168
    %v5170 = vrot.slane %v5169, 2
    %v5171 = vmax.f32 %v5169, %v5170
    %v5172 = vrot.slane %v5171, 1
    %v5173 = vmax.f32 %v5171, %v5172
    %v5174 = vsel %vm4963, %v4889, -inf
    %v5175 = vrot.slane %v5174, 4
    %v5176 = vmax.f32 %v5174, %v5175
    %v5177 = vrot.slane %v5176, 2
    %v5178 = vmax.f32 %v5176, %v5177
    %v5179 = vrot.slane %v5178, 1
    %v5180 = vmax.f32 %v5178, %v5179
    %v5181 = vsel %vm4963, %v4890, -inf
    %v5182 = vrot.slane %v5181, 4
    %v5183 = vmax.f32 %v5181, %v5182
    %v5184 = vrot.slane %v5183, 2
    %v5185 = vmax.f32 %v5183, %v5184
    %v5186 = vrot.slane %v5185, 1
    %v5187 = vmax.f32 %v5185, %v5186
    %v5188 = vsel %vm4963, %v4843, -inf
    %v5189 = vrot.slane %v5188, 4
    %v5190 = vmax.f32 %v5188, %v5189
    %v5191 = vrot.slane %v5190, 2
    %v5192 = vmax.f32 %v5190, %v5191
    %v5193 = vrot.slane %v5192, 1
    %v5194 = vmax.f32 %v5192, %v5193
    %v5195 = vsel %vm4963, %v4891, -inf
    %v5196 = vrot.slane %v5195, 4
    %v5197 = vmax.f32 %v5195, %v5196
    %v5198 = vrot.slane %v5197, 2
    %v5199 = vmax.f32 %v5197, %v5198
    %v5200 = vrot.slane %v5199, 1
    %v5201 = vmax.f32 %v5199, %v5200
    %v5202 = vsel %vm4963, %v4892, -inf
    %v5203 = vrot.slane %v5202, 4
    %v5204 = vmax.f32 %v5202, %v5203
    %v5205 = vrot.slane %v5204, 2
    %v5206 = vmax.f32 %v5204, %v5205
    %v5207 = vrot.slane %v5206, 1
    %v5208 = vmax.f32 %v5206, %v5207
    %v5209 = vsel %vm4963, %v4893, -inf
    %v5210 = vrot.slane %v5209, 4
    %v5211 = vmax.f32 %v5209, %v5210
    %v5212 = vrot.slane %v5211, 2
    %v5213 = vmax.f32 %v5211, %v5212
    %v5214 = vrot.slane %v5213, 1
    %v5215 = vmax.f32 %v5213, %v5214
    %v5216 = vsel %vm4963, %v4844, -inf
    %v5217 = vrot.slane %v5216, 4
    %v5218 = vmax.f32 %v5216, %v5217
    %v5219 = vrot.slane %v5218, 2
    %v5220 = vmax.f32 %v5218, %v5219
    %v5221 = vrot.slane %v5220, 1
    %v5222 = vmax.f32 %v5220, %v5221
    %v5223 = vsel %vm4963, %v4894, -inf
    %v5224 = vrot.slane %v5223, 4
    %v5225 = vmax.f32 %v5223, %v5224
    %v5226 = vrot.slane %v5225, 2
    %v5227 = vmax.f32 %v5225, %v5226
    %v5228 = vrot.slane %v5227, 1
    %v5229 = vmax.f32 %v5227, %v5228
    %v5230 = vsel %vm4963, %v4895, -inf
    %v5231 = vrot.slane %v5230, 4
    %v5232 = vmax.f32 %v5230, %v5231
    %v5233 = vrot.slane %v5232, 2
    %v5234 = vmax.f32 %v5232, %v5233
    %v5235 = vrot.slane %v5234, 1
    %v5236 = vmax.f32 %v5234, %v5235
    %v5237 = vsel %vm4963, %v4896, -inf
    %v5238 = vrot.slane %v5237, 4
    %v5239 = vmax.f32 %v5237, %v5238
    %v5240 = vrot.slane %v5239, 2
    %v5241 = vmax.f32 %v5239, %v5240
    %v5242 = vrot.slane %v5241, 1
    %v5243 = vmax.f32 %v5241, %v5242
    %v5244 = vsel %vm4963, %v4845, -inf
    %v5245 = vrot.slane %v5244, 4
    %v5246 = vmax.f32 %v5244, %v5245
    %v5247 = vrot.slane %v5246, 2
    %v5248 = vmax.f32 %v5246, %v5247
    %v5249 = vrot.slane %v5248, 1
    %v5250 = vmax.f32 %v5248, %v5249
    %v5251 = vsel %vm4963, %v4897, -inf
    %v5252 = vrot.slane %v5251, 4
    %v5253 = vmax.f32 %v5251, %v5252
    %v5254 = vrot.slane %v5253, 2
    %v5255 = vmax.f32 %v5253, %v5254
    %v5256 = vrot.slane %v5255, 1
    %v5257 = vmax.f32 %v5255, %v5256
    %v5258 = vsel %vm4963, %v4898, -inf
    %v5259 = vrot.slane %v5258, 4
    %v5260 = vmax.f32 %v5258, %v5259
    %v5261 = vrot.slane %v5260, 2
    %v5262 = vmax.f32 %v5260, %v5261
    %v5263 = vrot.slane %v5262, 1
    %v5264 = vmax.f32 %v5262, %v5263
    %v5265 = vsel %vm4963, %v4899, -inf
    %v5266 = vrot.slane %v5265, 4
    %v5267 = vmax.f32 %v5265, %v5266
    %v5268 = vrot.slane %v5267, 2
    %v5269 = vmax.f32 %v5267, %v5268
    %v5270 = vrot.slane %v5269, 1
    %v5271 = vmax.f32 %v5269, %v5270
    %v5272 = vsel %vm4963, %v4846, -inf
    %v5273 = vrot.slane %v5272, 4
    %v5274 = vmax.f32 %v5272, %v5273
    %v5275 = vrot.slane %v5274, 2
    %v5276 = vmax.f32 %v5274, %v5275
    %v5277 = vrot.slane %v5276, 1
    %v5278 = vmax.f32 %v5276, %v5277
    %v5279 = vsel %vm4963, %v4900, -inf
    %v5280 = vrot.slane %v5279, 4
    %v5281 = vmax.f32 %v5279, %v5280
    %v5282 = vrot.slane %v5281, 2
    %v5283 = vmax.f32 %v5281, %v5282
    %v5284 = vrot.slane %v5283, 1
    %v5285 = vmax.f32 %v5283, %v5284
    %v5286 = vsel %vm4963, %v4901, -inf
    %v5287 = vrot.slane %v5286, 4
    %v5288 = vmax.f32 %v5286, %v5287
    %v5289 = vrot.slane %v5288, 2
    %v5290 = vmax.f32 %v5288, %v5289
    %v5291 = vrot.slane %v5290, 1
    %v5292 = vmax.f32 %v5290, %v5291
    %v5293 = vsel %vm4963, %v4902, -inf
    %v5294 = vrot.slane %v5293, 4
    %v5295 = vmax.f32 %v5293, %v5294
    %v5296 = vrot.slane %v5295, 2
    %v5297 = vmax.f32 %v5295, %v5296
    %v5298 = vrot.slane %v5297, 1
    %v5299 = vmax.f32 %v5297, %v5298
    %v5300 = vsel %vm4963, %v4847, -inf
    %v5301 = vrot.slane %v5300, 4
    %v5302 = vmax.f32 %v5300, %v5301
    %v5303 = vrot.slane %v5302, 2
    %v5304 = vmax.f32 %v5302, %v5303
    %v5305 = vrot.slane %v5304, 1
    %v5306 = vmax.f32 %v5304, %v5305
    %v5307 = vsel %vm4963, %v4903, -inf
    %v5308 = vrot.slane %v5307, 4
    %v5309 = vmax.f32 %v5307, %v5308
    %v5310 = vrot.slane %v5309, 2
    %v5311 = vmax.f32 %v5309, %v5310
    %v5312 = vrot.slane %v5311, 1
    %v5313 = vmax.f32 %v5311, %v5312
    %v5314 = vsel %vm4963, %v4904, -inf
    %v5315 = vrot.slane %v5314, 4
    %v5316 = vmax.f32 %v5314, %v5315
    %v5317 = vrot.slane %v5316, 2
    %v5318 = vmax.f32 %v5316, %v5317
    %v5319 = vrot.slane %v5318, 1
    %v5320 = vmax.f32 %v5318, %v5319
    %v5321 = vsel %vm4963, %v4905, -inf
    %v5322 = vrot.slane %v5321, 4
    %v5323 = vmax.f32 %v5321, %v5322
    %v5324 = vrot.slane %v5323, 2
    %v5325 = vmax.f32 %v5323, %v5324
    %v5326 = vrot.slane %v5325, 1
    %v5327 = vmax.f32 %v5325, %v5326
    %v5328 = vsel %vm4963, %v4848, -inf
    %v5329 = vrot.slane %v5328, 4
    %v5330 = vmax.f32 %v5328, %v5329
    %v5331 = vrot.slane %v5330, 2
    %v5332 = vmax.f32 %v5330, %v5331
    %v5333 = vrot.slane %v5332, 1
    %v5334 = vmax.f32 %v5332, %v5333
    %v5335 = vsel %vm4963, %v4906, -inf
    %v5336 = vrot.slane %v5335, 4
    %v5337 = vmax.f32 %v5335, %v5336
    %v5338 = vrot.slane %v5337, 2
    %v5339 = vmax.f32 %v5337, %v5338
    %v5340 = vrot.slane %v5339, 1
    %v5341 = vmax.f32 %v5339, %v5340
    %v5342 = vsel %vm4963, %v4907, -inf
    %v5343 = vrot.slane %v5342, 4
    %v5344 = vmax.f32 %v5342, %v5343
    %v5345 = vrot.slane %v5344, 2
    %v5346 = vmax.f32 %v5344, %v5345
    %v5347 = vrot.slane %v5346, 1
    %v5348 = vmax.f32 %v5346, %v5347
    %v5349 = vsel %vm4963, %v4908, -inf
    %v5350 = vrot.slane %v5349, 4
    %v5351 = vmax.f32 %v5349, %v5350
    %v5352 = vrot.slane %v5351, 2
    %v5353 = vmax.f32 %v5351, %v5352
    %v5354 = vrot.slane %v5353, 1
    %v5355 = vmax.f32 %v5353, %v5354
    %v5356 = vsel %vm4963, %v4849, -inf
    %v5357 = vrot.slane %v5356, 4
    %v5358 = vmax.f32 %v5356, %v5357
    %v5359 = vrot.slane %v5358, 2
    %v5360 = vmax.f32 %v5358, %v5359
    %v5361 = vrot.slane %v5360, 1
    %v5362 = vmax.f32 %v5360, %v5361
    %v5363 = vsel %vm4963, %v4909, -inf
    %v5364 = vrot.slane %v5363, 4
    %v5365 = vmax.f32 %v5363, %v5364
    %v5366 = vrot.slane %v5365, 2
    %v5367 = vmax.f32 %v5365, %v5366
    %v5368 = vrot.slane %v5367, 1
    %v5369 = vmax.f32 %v5367, %v5368
    %v5370 = vsel %vm4963, %v4910, -inf
    %v5371 = vrot.slane %v5370, 4
    %v5372 = vmax.f32 %v5370, %v5371
    %v5373 = vrot.slane %v5372, 2
    %v5374 = vmax.f32 %v5372, %v5373
    %v5375 = vrot.slane %v5374, 1
    %v5376 = vmax.f32 %v5374, %v5375
    %v5377 = vsel %vm4963, %v4911, -inf
    %v5378 = vrot.slane %v5377, 4
    %v5379 = vmax.f32 %v5377, %v5378
    %v5380 = vrot.slane %v5379, 2
    %v5381 = vmax.f32 %v5379, %v5380
    %v5382 = vrot.slane %v5381, 1
    %v5383 = vmax.f32 %v5381, %v5382
    %v5384 = vsel %vm4963, %v4850, -inf
    %v5385 = vrot.slane %v5384, 4
    %v5386 = vmax.f32 %v5384, %v5385
    %v5387 = vrot.slane %v5386, 2
    %v5388 = vmax.f32 %v5386, %v5387
    %v5389 = vrot.slane %v5388, 1
    %v5390 = vmax.f32 %v5388, %v5389
    %v5391 = vsel %vm4963, %v4912, -inf
    %v5392 = vrot.slane %v5391, 4
    %v5393 = vmax.f32 %v5391, %v5392
    %v5394 = vrot.slane %v5393, 2
    %v5395 = vmax.f32 %v5393, %v5394
    %v5396 = vrot.slane %v5395, 1
    %v5397 = vmax.f32 %v5395, %v5396
    %v5398 = vsel %vm4963, %v4913, -inf
    %v5399 = vrot.slane %v5398, 4
    %v5400 = vmax.f32 %v5398, %v5399
    %v5401 = vrot.slane %v5400, 2
    %v5402 = vmax.f32 %v5400, %v5401
    %v5403 = vrot.slane %v5402, 1
    %v5404 = vmax.f32 %v5402, %v5403
    %v5405 = vsel %vm4963, %v4914, -inf
    %v5406 = vrot.slane %v5405, 4
    %v5407 = vmax.f32 %v5405, %v5406
    %v5408 = vrot.slane %v5407, 2
    %v5409 = vmax.f32 %v5407, %v5408
    %v5410 = vrot.slane %v5409, 1
    %v5411 = vmax.f32 %v5409, %v5410
    %vm5412 = vcmask 523264
    %v5413 = vsel %vm5412, %v4970, -inf
    %v5414 = vsel %vm5412, %v4998, -inf
    %v5415 = vmax.f32 %v5413, %v5414
    %v5416 = vsel %vm5412, %v4977, -inf
    %v5417 = vsel %vm5412, %v5005, -inf
    %v5418 = vmax.f32 %v5416, %v5417
    %v5419 = vsel %vm5412, %v4984, -inf
    %v5420 = vsel %vm5412, %v5012, -inf
    %v5421 = vmax.f32 %v5419, %v5420
    %v5422 = vsel %vm5412, %v4991, -inf
    %v5423 = vsel %vm5412, %v5019, -inf
    %v5424 = vmax.f32 %v5422, %v5423
    %v5425 = vsel %vm5412, %v5026, -inf
    %v5426 = vsel %vm5412, %v5054, -inf
    %v5427 = vmax.f32 %v5425, %v5426
    %v5428 = vsel %vm5412, %v5033, -inf
    %v5429 = vsel %vm5412, %v5061, -inf
    %v5430 = vmax.f32 %v5428, %v5429
    %v5431 = vsel %vm5412, %v5040, -inf
    %v5432 = vsel %vm5412, %v5068, -inf
    %v5433 = vmax.f32 %v5431, %v5432
    %v5434 = vsel %vm5412, %v5047, -inf
    %v5435 = vsel %vm5412, %v5075, -inf
    %v5436 = vmax.f32 %v5434, %v5435
    %v5437 = vsel %vm5412, %v5082, -inf
    %v5438 = vsel %vm5412, %v5110, -inf
    %v5439 = vmax.f32 %v5437, %v5438
    %v5440 = vsel %vm5412, %v5089, -inf
    %v5441 = vsel %vm5412, %v5117, -inf
    %v5442 = vmax.f32 %v5440, %v5441
    %v5443 = vsel %vm5412, %v5096, -inf
    %v5444 = vsel %vm5412, %v5124, -inf
    %v5445 = vmax.f32 %v5443, %v5444
    %v5446 = vsel %vm5412, %v5103, -inf
    %v5447 = vsel %vm5412, %v5131, -inf
    %v5448 = vmax.f32 %v5446, %v5447
    %v5449 = vsel %vm5412, %v5138, -inf
    %v5450 = vsel %vm5412, %v5166, -inf
    %v5451 = vmax.f32 %v5449, %v5450
    %v5452 = vsel %vm5412, %v5145, -inf
    %v5453 = vsel %vm5412, %v5173, -inf
    %v5454 = vmax.f32 %v5452, %v5453
    %v5455 = vsel %vm5412, %v5152, -inf
    %v5456 = vsel %vm5412, %v5180, -inf
    %v5457 = vmax.f32 %v5455, %v5456
    %v5458 = vsel %vm5412, %v5159, -inf
    %v5459 = vsel %vm5412, %v5187, -inf
    %v5460 = vmax.f32 %v5458, %v5459
    %v5461 = vsel %vm5412, %v5194, -inf
    %v5462 = vsel %vm5412, %v5222, -inf
    %v5463 = vmax.f32 %v5461, %v5462
    %v5464 = vsel %vm5412, %v5201, -inf
    %v5465 = vsel %vm5412, %v5229, -inf
    %v5466 = vmax.f32 %v5464, %v5465
    %v5467 = vsel %vm5412, %v5208, -inf
    %v5468 = vsel %vm5412, %v5236, -inf
    %v5469 = vmax.f32 %v5467, %v5468
    %v5470 = vsel %vm5412, %v5215, -inf
    %v5471 = vsel %vm5412, %v5243, -inf
    %v5472 = vmax.f32 %v5470, %v5471
    %v5473 = vsel %vm5412, %v5250, -inf
    %v5474 = vsel %vm5412, %v5278, -inf
    %v5475 = vmax.f32 %v5473, %v5474
    %v5476 = vsel %vm5412, %v5257, -inf
    %v5477 = vsel %vm5412, %v5285, -inf
    %v5478 = vmax.f32 %v5476, %v5477
    %v5479 = vsel %vm5412, %v5264, -inf
    %v5480 = vsel %vm5412, %v5292, -inf
    %v5481 = vmax.f32 %v5479, %v5480
    %v5482 = vsel %vm5412, %v5271, -inf
    %v5483 = vsel %vm5412, %v5299, -inf
    %v5484 = vmax.f32 %v5482, %v5483
    %v5485 = vsel %vm5412, %v5306, -inf
    %v5486 = vsel %vm5412, %v5334, -inf
    %v5487 = vmax.f32 %v5485, %v5486
    %v5488 = vsel %vm5412, %v5313, -inf
    %v5489 = vsel %vm5412, %v5341, -inf
    %v5490 = vmax.f32 %v5488, %v5489
    %v5491 = vsel %vm5412, %v5320, -inf
    %v5492 = vsel %vm5412, %v5348, -inf
    %v5493 = vmax.f32 %v5491, %v5492
    %v5494 = vsel %vm5412, %v5327, -inf
    %v5495 = vsel %vm5412, %v5355, -inf
    %v5496 = vmax.f32 %v5494, %v5495
    %v5497 = vsel %vm5412, %v5362, -inf
    %v5498 = vsel %vm5412, %v5390, -inf
    %v5499 = vmax.f32 %v5497, %v5498
    %v5500 = vsel %vm5412, %v5369, -inf
    %v5501 = vsel %vm5412, %v5397, -inf
    %v5502 = vmax.f32 %v5500, %v5501
    %v5503 = vsel %vm5412, %v5376, -inf
    %v5504 = vsel %vm5412, %v5404, -inf
    %v5505 = vmax.f32 %v5503, %v5504
    %v5506 = vsel %vm5412, %v5383, -inf
    %v5507 = vsel %vm5412, %v5411, -inf
    %v5508 = vmax.f32 %v5506, %v5507
    %vm5509 = vcmask 521216
    %5510 = vst.msk [vmem:[#allocation3] sm:$0x3f] %vm5509, 0.0
    %5511 = vst.msk [vmem:[#allocation3 + $0x8] sm:$0x3f] %vm5509, 0.0
    %5512 = vst.msk [vmem:[#allocation3 + $0x10] sm:$0x3f] %vm5509, 0.0
    %5513 = vst.msk [vmem:[#allocation3 + $0x18] sm:$0x3f] %vm5509, 0.0
    %5514 = vst.msk [vmem:[#allocation3 + $0x20] sm:$0x3f] %vm5509, 0.0
    %5515 = vst.msk [vmem:[#allocation3 + $0x28] sm:$0x3f] %vm5509, 0.0
    %5516 = vst.msk [vmem:[#allocation3 + $0x30] sm:$0x3f] %vm5509, 0.0
    %5517 = vst.msk [vmem:[#allocation3 + $0x38] sm:$0x3f] %vm5509, 0.0
    %5518 = vst.msk [vmem:[#allocation3 + $0x40] sm:$0x3f] %vm5509, 0.0
    %5519 = vst.msk [vmem:[#allocation3 + $0x48] sm:$0x3f] %vm5509, 0.0
    %5520 = vst.msk [vmem:[#allocation3 + $0x50] sm:$0x3f] %vm5509, 0.0
    %5521 = vst.msk [vmem:[#allocation3 + $0x58] sm:$0x3f] %vm5509, 0.0
    %v5554 = vsel %vm3418, %v5418, %v5415
    %v5555 = vsel %vm3420, %v5421, %v5554
    %v5556 = vsel %vm3422, %v5424, %v5555
    %v5557 = vsel %vm3418, %v5430, %v5427
    %v5558 = vsel %vm3420, %v5433, %v5557
    %v5559 = vsel %vm3422, %v5436, %v5558
    %v5560 = vsel %vm3418, %v5442, %v5439
    %v5561 = vsel %vm3420, %v5445, %v5560
    %v5562 = vsel %vm3422, %v5448, %v5561
    %v5563 = vsel %vm3418, %v5454, %v5451
    %v5564 = vsel %vm3420, %v5457, %v5563
    %v5565 = vsel %vm3422, %v5460, %v5564
    %v5566 = vsel %vm3418, %v5466, %v5463
    %v5567 = vsel %vm3420, %v5469, %v5566
    %v5568 = vsel %vm3422, %v5472, %v5567
    %v5569 = vsel %vm3418, %v5478, %v5475
    %v5570 = vsel %vm3420, %v5481, %v5569
    %v5571 = vsel %vm3422, %v5484, %v5570
    %v5572 = vsel %vm3418, %v5490, %v5487
    %v5573 = vsel %vm3420, %v5493, %v5572
    %v5574 = vsel %vm3422, %v5496, %v5573
    %v5575 = vsel %vm3418, %v5502, %v5499
    %v5576 = vsel %vm3420, %v5505, %v5575
    %v5577 = vsel %vm3422, %v5508, %v5576
    %s5586 = scalar_lea.vmem [#allocation3], 8
    %vm5587 = vcmask 519168
    %5588 = vst.msk [vmem:[%s5586 + $0x1] sm:$0xf] %vm5587, %v5556
    %5589 = vst.msk [vmem:[%s5586 + $0x9] sm:$0xf] %vm5587, %v5559
    %5590 = vst.msk [vmem:[%s5586 + $0x11] sm:$0xf] %vm5587, %v5562
    %5591 = vst.msk [vmem:[%s5586 + $0x19] sm:$0xf] %vm5587, %v5565
    %5592 = vst.msk [vmem:[%s5586 + $0x31] sm:$0xf] %vm5587, %v5568
    %5593 = vst.msk [vmem:[%s5586 + $0x39] sm:$0xf] %vm5587, %v5571
    %5594 = vst.msk [vmem:[%s5586 + $0x41] sm:$0xf] %vm5587, %v5574
    %5595 = vst.msk [vmem:[%s5586 + $0x49] sm:$0xf] %vm5587, %v5577
    %v5596 = vld [vmem:[#allocation3] sm:$0x3f]
    %v5597 = vld [vmem:[#allocation3 + $0x8] sm:$0x3f]
    %v5598 = vld [vmem:[#allocation3 + $0x10] sm:$0x3f]
    %v5599 = vld [vmem:[#allocation3 + $0x18] sm:$0x3f]
    %v5600 = vld [vmem:[#allocation3 + $0x20] sm:$0x3f]
    %v5601 = vld [vmem:[#allocation3 + $0x28] sm:$0x3f]
    %v5602 = vld [vmem:[#allocation3 + $0x30] sm:$0x3f]
    %v5603 = vld [vmem:[#allocation3 + $0x38] sm:$0x3f]
    %v5604 = vld [vmem:[#allocation3 + $0x40] sm:$0x3f]
    %v5605 = vld [vmem:[#allocation3 + $0x48] sm:$0x3f]
    %v5606 = vld [vmem:[#allocation3 + $0x50] sm:$0x3f]
    %v5607 = vld [vmem:[#allocation3 + $0x58] sm:$0x3f]
    %5616 = vst [vmem:[#allocation1] ss:$2 sm:$0xff] %v5596
    %s5617 = scalar_lea.vmem [#allocation1], 1
    %5618 = vst [vmem:[%s5617] ss:$2 sm:$0xff] %v5597
    %s5619 = scalar_lea.vmem [#allocation1], 16
    %5620 = vst [vmem:[%s5619] ss:$2 sm:$0xff] %v5598
    %s5621 = scalar_lea.vmem [#allocation1], 17
    %5622 = vst [vmem:[%s5621] ss:$2 sm:$0xff] %v5599
    %s5623 = scalar_lea.vmem [#allocation1], 32
    %5624 = vst [vmem:[%s5623] ss:$2 sm:$0xff] %v5602
    %s5625 = scalar_lea.vmem [#allocation1], 33
    %5626 = vst [vmem:[%s5625] ss:$2 sm:$0xff] %v5603
    %s5627 = scalar_lea.vmem [#allocation1], 48
    %5628 = vst [vmem:[%s5627] ss:$2 sm:$0xff] %v5604
    %s5629 = scalar_lea.vmem [#allocation1], 49
    %5630 = vst [vmem:[%s5629] ss:$2 sm:$0xff] %v5605
    %v5631 = vld.sshfl [vmem:[#allocation1] sm:$0xff pattern:$0x75316420]
    %v5632 = vld.sshfl [vmem:[#allocation1 + $0x10] sm:$0xff pattern:$0x75316420]
    %v5633 = vld.sshfl [vmem:[#allocation1 + $0x20] sm:$0xff pattern:$0x75316420]
    %v5634 = vld.sshfl [vmem:[#allocation1 + $0x30] sm:$0xff pattern:$0x75316420]
    %v5639 = vpack.c.bf16 %v5631, %v5631
    %v5640 = vpack.c.bf16 %v5632, %v5632
    %v5641 = vpack.c.bf16 %v5633, %v5633
    %v5642 = vpack.c.bf16 %v5634, %v5634
    %5643 = vst.msk [vmem:[#allocation6] sm:$0xf] %vm5587, %v5639
    %5644 = vst.msk [vmem:[#allocation6 + $0x14] sm:$0xf] %vm5587, %v5640
    %5645 = vst.msk [vmem:[#allocation6 + $0x28] sm:$0xf] %vm5587, %v5641
    %5646 = vst.msk [vmem:[#allocation6 + $0x3c] sm:$0xf] %vm5587, %v5642
    %v5647 = vrot.slane %v5596, 4
    %v5648 = vrot.slane %v5597, 4
    %v5649 = vrot.slane %v5598, 4
    %v5650 = vrot.slane %v5599, 4
    %v5651 = vrot.slane %v5602, 4
    %v5652 = vrot.slane %v5603, 4
    %v5653 = vrot.slane %v5604, 4
    %v5654 = vrot.slane %v5605, 4
    %vm5655 = vcmask 1042432
    %vm5656 = vcmask 1046532
    %vm5657 = vmor %vm5655, %vm5656
    %v5658 = vrot.slane %v5596, 5
    %v5659 = vrot.slane %v5658, 4
    %v5660 = vrot.slane %v5647, 5
    %v5661 = vsel %vm5657, %v5659, %v5660
    %v5662 = vrot.slane %v5597, 5
    %v5663 = vrot.slane %v5662, 4
    %v5664 = vrot.slane %v5648, 5
    %v5665 = vsel %vm5657, %v5663, %v5664
    %v5666 = vrot.slane %v5598, 5
    %v5667 = vrot.slane %v5666, 4
    %v5668 = vrot.slane %v5649, 5
    %v5669 = vsel %vm5657, %v5667, %v5668
    %v5670 = vrot.slane %v5599, 5
    %v5671 = vrot.slane %v5670, 4
    %v5672 = vrot.slane %v5650, 5
    %v5673 = vsel %vm5657, %v5671, %v5672
    %v5674 = vrot.slane %v5602, 5
    %v5675 = vrot.slane %v5674, 4
    %v5676 = vrot.slane %v5651, 5
    %v5677 = vsel %vm5657, %v5675, %v5676
    %v5678 = vrot.slane %v5603, 5
    %v5679 = vrot.slane %v5678, 4
    %v5680 = vrot.slane %v5652, 5
    %v5681 = vsel %vm5657, %v5679, %v5680
    %v5682 = vrot.slane %v5604, 5
    %v5683 = vrot.slane %v5682, 4
    %v5684 = vrot.slane %v5653, 5
    %v5685 = vsel %vm5657, %v5683, %v5684
    %v5686 = vrot.slane %v5605, 5
    %v5687 = vrot.slane %v5686, 4
    %v5688 = vrot.slane %v5654, 5
    %v5689 = vsel %vm5657, %v5687, %v5688
    %5690 = vst [vmem:[#allocation1] ss:$2 sm:$0xff] %v5661
    %s5691 = scalar_lea.vmem [#allocation1], 1
    %5692 = vst [vmem:[%s5691] ss:$2 sm:$0xff] %v5665
    %s5693 = scalar_lea.vmem [#allocation1], 16
    %5694 = vst [vmem:[%s5693] ss:$2 sm:$0xff] %v5669
    %s5695 = scalar_lea.vmem [#allocation1], 17
    %5696 = vst [vmem:[%s5695] ss:$2 sm:$0xff] %v5673
    %s5697 = scalar_lea.vmem [#allocation1], 32
    %5698 = vst [vmem:[%s5697] ss:$2 sm:$0xff] %v5677
    %s5699 = scalar_lea.vmem [#allocation1], 33
    %5700 = vst [vmem:[%s5699] ss:$2 sm:$0xff] %v5681
    %s5701 = scalar_lea.vmem [#allocation1], 48
    %5702 = vst [vmem:[%s5701] ss:$2 sm:$0xff] %v5685
    %s5703 = scalar_lea.vmem [#allocation1], 49
    %5704 = vst [vmem:[%s5703] ss:$2 sm:$0xff] %v5689
    %v5705 = vld.sshfl [vmem:[#allocation1] sm:$0xff pattern:$0x75316420]
    %v5706 = vld.sshfl [vmem:[#allocation1 + $0x10] sm:$0xff pattern:$0x75316420]
    %v5707 = vld.sshfl [vmem:[#allocation1 + $0x20] sm:$0xff pattern:$0x75316420]
    %v5708 = vld.sshfl [vmem:[#allocation1 + $0x30] sm:$0xff pattern:$0x75316420]
    %v5713 = vpack.c.bf16 %v5705, %v5705
    %v5714 = vpack.c.bf16 %v5706, %v5706
    %v5715 = vpack.c.bf16 %v5707, %v5707
    %v5716 = vpack.c.bf16 %v5708, %v5708
    %5721 = vrot.lane.b32.xlu0 %v5713, 64
    %v5722 = vpop.permute.xlu0 %5721
    %5723 = vrot.lane.b32.xlu0 %v5714, 64
    %v5724 = vpop.permute.xlu0 %5723
    %5725 = vrot.lane.b32.xlu0 %v5715, 64
    %v5726 = vpop.permute.xlu0 %5725
    %5727 = vrot.lane.b32.xlu0 %v5716, 64
    %v5728 = vpop.permute.xlu0 %5727
    %vm5733 = vcmask 1043968
    %5734 = vst.msk [vmem:[#allocation6] sm:$0xf] %vm5733, %v5722
    %5735 = vst.msk [vmem:[#allocation6 + $0x14] sm:$0xf] %vm5733, %v5724
    %5736 = vst.msk [vmem:[#allocation6 + $0x28] sm:$0xf] %vm5733, %v5726
    %5737 = vst.msk [vmem:[#allocation6 + $0x3c] sm:$0xf] %vm5733, %v5728
    %vm5738 = vcmask 1041408
    %vm5739 = vcmask 1045508
    %vm5740 = vmor %vm5738, %vm5739
    %v5741 = vrot.slane %v5596, 6
    %v5742 = vrot.slane %v5741, 4
    %v5743 = vrot.slane %v5647, 6
    %v5744 = vsel %vm5740, %v5742, %v5743
    %v5745 = vrot.slane %v5597, 6
    %v5746 = vrot.slane %v5745, 4
    %v5747 = vrot.slane %v5648, 6
    %v5748 = vsel %vm5740, %v5746, %v5747
    %v5749 = vrot.slane %v5598, 6
    %v5750 = vrot.slane %v5749, 4
    %v5751 = vrot.slane %v5649, 6
    %v5752 = vsel %vm5740, %v5750, %v5751
    %v5753 = vrot.slane %v5599, 6
    %v5754 = vrot.slane %v5753, 4
    %v5755 = vrot.slane %v5650, 6
    %v5756 = vsel %vm5740, %v5754, %v5755
    %v5757 = vrot.slane %v5602, 6
    %v5758 = vrot.slane %v5757, 4
    %v5759 = vrot.slane %v5651, 6
    %v5760 = vsel %vm5740, %v5758, %v5759
    %v5761 = vrot.slane %v5603, 6
    %v5762 = vrot.slane %v5761, 4
    %v5763 = vrot.slane %v5652, 6
    %v5764 = vsel %vm5740, %v5762, %v5763
    %v5765 = vrot.slane %v5604, 6
    %v5766 = vrot.slane %v5765, 4
    %v5767 = vrot.slane %v5653, 6
    %v5768 = vsel %vm5740, %v5766, %v5767
    %v5769 = vrot.slane %v5605, 6
    %v5770 = vrot.slane %v5769, 4
    %v5771 = vrot.slane %v5654, 6
    %v5772 = vsel %vm5740, %v5770, %v5771
    %5773 = vst [vmem:[#allocation1] ss:$2 sm:$0xff] %v5744
    %s5774 = scalar_lea.vmem [#allocation1], 1
    %5775 = vst [vmem:[%s5774] ss:$2 sm:$0xff] %v5748
    %s5776 = scalar_lea.vmem [#allocation1], 16
    %5777 = vst [vmem:[%s5776] ss:$2 sm:$0xff] %v5752
    %s5778 = scalar_lea.vmem [#allocation1], 17
    %5779 = vst [vmem:[%s5778] ss:$2 sm:$0xff] %v5756
    %s5780 = scalar_lea.vmem [#allocation1], 32
    %5781 = vst [vmem:[%s5780] ss:$2 sm:$0xff] %v5760
    %s5782 = scalar_lea.vmem [#allocation1], 33
    %5783 = vst [vmem:[%s5782] ss:$2 sm:$0xff] %v5764
    %s5784 = scalar_lea.vmem [#allocation1], 48
    %5785 = vst [vmem:[%s5784] ss:$2 sm:$0xff] %v5768
    %s5786 = scalar_lea.vmem [#allocation1], 49
    %5787 = vst [vmem:[%s5786] ss:$2 sm:$0xff] %v5772
    %v5788 = vld.sshfl [vmem:[#allocation1] sm:$0xff pattern:$0x75316420]
    %v5789 = vld.sshfl [vmem:[#allocation1 + $0x10] sm:$0xff pattern:$0x75316420]
    %v5790 = vld.sshfl [vmem:[#allocation1 + $0x20] sm:$0xff pattern:$0x75316420]
    %v5791 = vld.sshfl [vmem:[#allocation1 + $0x30] sm:$0xff pattern:$0x75316420]
    %v5796 = vpack.c.bf16 %v5788, %v5788
    %v5797 = vpack.c.bf16 %v5789, %v5789
    %v5798 = vpack.c.bf16 %v5790, %v5790
    %v5799 = vpack.c.bf16 %v5791, %v5791
    %5800 = vst.msk [vmem:[#allocation6 + $0x4] sm:$0xf] %vm5587, %v5796
    %5801 = vst.msk [vmem:[#allocation6 + $0x18] sm:$0xf] %vm5587, %v5797
    %5802 = vst.msk [vmem:[#allocation6 + $0x2c] sm:$0xf] %vm5587, %v5798
    %5803 = vst.msk [vmem:[#allocation6 + $0x40] sm:$0xf] %vm5587, %v5799
    %5806 = vst [vmem:[#allocation1] ss:$2 sm:$0xff] %v5597
    %s5807 = scalar_lea.vmem [#allocation1], 1
    %5808 = vst [vmem:[%s5807] ss:$2 sm:$0xff] %v5598
    %s5809 = scalar_lea.vmem [#allocation1], 16
    %5810 = vst [vmem:[%s5809] ss:$2 sm:$0xff] %v5599
    %s5811 = scalar_lea.vmem [#allocation1], 17
    %5812 = vst [vmem:[%s5811] ss:$2 sm:$0xff] %v5600
    %s5813 = scalar_lea.vmem [#allocation1], 32
    %5814 = vst [vmem:[%s5813] ss:$2 sm:$0xff] %v5603
    %s5815 = scalar_lea.vmem [#allocation1], 33
    %5816 = vst [vmem:[%s5815] ss:$2 sm:$0xff] %v5604
    %s5817 = scalar_lea.vmem [#allocation1], 48
    %5818 = vst [vmem:[%s5817] ss:$2 sm:$0xff] %v5605
    %s5819 = scalar_lea.vmem [#allocation1], 49
    %5820 = vst [vmem:[%s5819] ss:$2 sm:$0xff] %v5606
    %v5821 = vld.sshfl [vmem:[#allocation1] sm:$0xff pattern:$0x75316420]
    %v5822 = vld.sshfl [vmem:[#allocation1 + $0x10] sm:$0xff pattern:$0x75316420]
    %v5823 = vld.sshfl [vmem:[#allocation1 + $0x20] sm:$0xff pattern:$0x75316420]
    %v5824 = vld.sshfl [vmem:[#allocation1 + $0x30] sm:$0xff pattern:$0x75316420]
    %v5829 = vpack.c.bf16 %v5821, %v5821
    %v5830 = vpack.c.bf16 %v5822, %v5822
    %v5831 = vpack.c.bf16 %v5823, %v5823
    %v5832 = vpack.c.bf16 %v5824, %v5824
    %5837 = vrot.lane.b32.xlu0 %v5829, 64
    %v5838 = vpop.permute.xlu0 %5837
    %5839 = vrot.lane.b32.xlu0 %v5830, 64
    %v5840 = vpop.permute.xlu0 %5839
    %5841 = vrot.lane.b32.xlu0 %v5831, 64
    %v5842 = vpop.permute.xlu0 %5841
    %5843 = vrot.lane.b32.xlu0 %v5832, 64
    %v5844 = vpop.permute.xlu0 %5843
    %5849 = vst.msk [vmem:[#allocation6 + $0x4] sm:$0xf] %vm5733, %v5838
    %5850 = vst.msk [vmem:[#allocation6 + $0x18] sm:$0xf] %vm5733, %v5840
    %5851 = vst.msk [vmem:[#allocation6 + $0x2c] sm:$0xf] %vm5733, %v5842
    %5852 = vst.msk [vmem:[#allocation6 + $0x40] sm:$0xf] %vm5733, %v5844
    %v5853 = vrot.slane %v5600, 4
    %v5854 = vrot.slane %v5606, 4
    %v5855 = vrot.slane %v5600, 5
    %v5856 = vrot.slane %v5855, 4
    %v5857 = vrot.slane %v5853, 5
    %v5858 = vsel %vm5657, %v5856, %v5857
    %v5859 = vrot.slane %v5606, 5
    %v5860 = vrot.slane %v5859, 4
    %v5861 = vrot.slane %v5854, 5
    %v5862 = vsel %vm5657, %v5860, %v5861
    %5863 = vst [vmem:[#allocation1] ss:$2 sm:$0xff] %v5665
    %s5864 = scalar_lea.vmem [#allocation1], 1
    %5865 = vst [vmem:[%s5864] ss:$2 sm:$0xff] %v5669
    %s5866 = scalar_lea.vmem [#allocation1], 16
    %5867 = vst [vmem:[%s5866] ss:$2 sm:$0xff] %v5673
    %s5868 = scalar_lea.vmem [#allocation1], 17
    %5869 = vst [vmem:[%s5868] ss:$2 sm:$0xff] %v5858
    %s5870 = scalar_lea.vmem [#allocation1], 32
    %5871 = vst [vmem:[%s5870] ss:$2 sm:$0xff] %v5681
    %s5872 = scalar_lea.vmem [#allocation1], 33
    %5873 = vst [vmem:[%s5872] ss:$2 sm:$0xff] %v5685
    %s5874 = scalar_lea.vmem [#allocation1], 48
    %5875 = vst [vmem:[%s5874] ss:$2 sm:$0xff] %v5689
    %s5876 = scalar_lea.vmem [#allocation1], 49
    %5877 = vst [vmem:[%s5876] ss:$2 sm:$0xff] %v5862
    %v5878 = vld.sshfl [vmem:[#allocation1] sm:$0xff pattern:$0x75316420]
    %v5879 = vld.sshfl [vmem:[#allocation1 + $0x10] sm:$0xff pattern:$0x75316420]
    %v5880 = vld.sshfl [vmem:[#allocation1 + $0x20] sm:$0xff pattern:$0x75316420]
    %v5881 = vld.sshfl [vmem:[#allocation1 + $0x30] sm:$0xff pattern:$0x75316420]
    %v5886 = vpack.c.bf16 %v5878, %v5878
    %v5887 = vpack.c.bf16 %v5879, %v5879
    %v5888 = vpack.c.bf16 %v5880, %v5880
    %v5889 = vpack.c.bf16 %v5881, %v5881
    %5890 = vst.msk [vmem:[#allocation6 + $0x8] sm:$0xf] %vm5587, %v5886
    %5891 = vst.msk [vmem:[#allocation6 + $0x1c] sm:$0xf] %vm5587, %v5887
    %5892 = vst.msk [vmem:[#allocation6 + $0x30] sm:$0xf] %vm5587, %v5888
    %5893 = vst.msk [vmem:[#allocation6 + $0x44] sm:$0xf] %vm5587, %v5889
    %v5894 = vrot.slane %v5600, 6
    %v5895 = vrot.slane %v5894, 4
    %v5896 = vrot.slane %v5853, 6
    %v5897 = vsel %vm5740, %v5895, %v5896
    %v5898 = vrot.slane %v5606, 6
    %v5899 = vrot.slane %v5898, 4
    %v5900 = vrot.slane %v5854, 6
    %v5901 = vsel %vm5740, %v5899, %v5900
    %5902 = vst [vmem:[#allocation1] ss:$2 sm:$0xff] %v5748
    %s5903 = scalar_lea.vmem [#allocation1], 1
    %5904 = vst [vmem:[%s5903] ss:$2 sm:$0xff] %v5752
    %s5905 = scalar_lea.vmem [#allocation1], 16
    %5906 = vst [vmem:[%s5905] ss:$2 sm:$0xff] %v5756
    %s5907 = scalar_lea.vmem [#allocation1], 17
    %5908 = vst [vmem:[%s5907] ss:$2 sm:$0xff] %v5897
    %s5909 = scalar_lea.vmem [#allocation1], 32
    %5910 = vst [vmem:[%s5909] ss:$2 sm:$0xff] %v5764
    %s5911 = scalar_lea.vmem [#allocation1], 33
    %5912 = vst [vmem:[%s5911] ss:$2 sm:$0xff] %v5768
    %s5913 = scalar_lea.vmem [#allocation1], 48
    %5914 = vst [vmem:[%s5913] ss:$2 sm:$0xff] %v5772
    %s5915 = scalar_lea.vmem [#allocation1], 49
    %5916 = vst [vmem:[%s5915] ss:$2 sm:$0xff] %v5901
    %v5917 = vld.sshfl [vmem:[#allocation1] sm:$0xff pattern:$0x75316420]
    %v5918 = vld.sshfl [vmem:[#allocation1 + $0x10] sm:$0xff pattern:$0x75316420]
    %v5919 = vld.sshfl [vmem:[#allocation1 + $0x20] sm:$0xff pattern:$0x75316420]
    %v5920 = vld.sshfl [vmem:[#allocation1 + $0x30] sm:$0xff pattern:$0x75316420]
    %v5925 = vpack.c.bf16 %v5917, %v5917
    %v5926 = vpack.c.bf16 %v5918, %v5918
    %v5927 = vpack.c.bf16 %v5919, %v5919
    %v5928 = vpack.c.bf16 %v5920, %v5920
    %5933 = vrot.lane.b32.xlu0 %v5925, 64
    %v5934 = vpop.permute.xlu0 %5933
    %5935 = vrot.lane.b32.xlu0 %v5926, 64
    %v5936 = vpop.permute.xlu0 %5935
    %5937 = vrot.lane.b32.xlu0 %v5927, 64
    %v5938 = vpop.permute.xlu0 %5937
    %5939 = vrot.lane.b32.xlu0 %v5928, 64
    %v5940 = vpop.permute.xlu0 %5939
    %5945 = vst.msk [vmem:[#allocation6 + $0x8] sm:$0xf] %vm5733, %v5934
    %5946 = vst.msk [vmem:[#allocation6 + $0x1c] sm:$0xf] %vm5733, %v5936
    %5947 = vst.msk [vmem:[#allocation6 + $0x30] sm:$0xf] %vm5733, %v5938
    %5948 = vst.msk [vmem:[#allocation6 + $0x44] sm:$0xf] %vm5733, %v5940
    %5951 = vst [vmem:[#allocation1] ss:$2 sm:$0xff] %v5598
    %s5952 = scalar_lea.vmem [#allocation1], 1
    %5953 = vst [vmem:[%s5952] ss:$2 sm:$0xff] %v5599
    %s5954 = scalar_lea.vmem [#allocation1], 16
    %5955 = vst [vmem:[%s5954] ss:$2 sm:$0xff] %v5600
    %s5956 = scalar_lea.vmem [#allocation1], 17
    %5957 = vst [vmem:[%s5956] ss:$2 sm:$0xff] %v5601
    %s5958 = scalar_lea.vmem [#allocation1], 32
    %5959 = vst [vmem:[%s5958] ss:$2 sm:$0xff] %v5604
    %s5960 = scalar_lea.vmem [#allocation1], 33
    %5961 = vst [vmem:[%s5960] ss:$2 sm:$0xff] %v5605
    %s5962 = scalar_lea.vmem [#allocation1], 48
    %5963 = vst [vmem:[%s5962] ss:$2 sm:$0xff] %v5606
    %s5964 = scalar_lea.vmem [#allocation1], 49
    %5965 = vst [vmem:[%s5964] ss:$2 sm:$0xff] %v5607
    %v5966 = vld.sshfl [vmem:[#allocation1] sm:$0xff pattern:$0x75316420]
    %v5967 = vld.sshfl [vmem:[#allocation1 + $0x10] sm:$0xff pattern:$0x75316420]
    %v5968 = vld.sshfl [vmem:[#allocation1 + $0x20] sm:$0xff pattern:$0x75316420]
    %v5969 = vld.sshfl [vmem:[#allocation1 + $0x30] sm:$0xff pattern:$0x75316420]
    %v5974 = vpack.c.bf16 %v5966, %v5966
    %v5975 = vpack.c.bf16 %v5967, %v5967
    %v5976 = vpack.c.bf16 %v5968, %v5968
    %v5977 = vpack.c.bf16 %v5969, %v5969
    %5978 = vst.msk [vmem:[#allocation6 + $0xc] sm:$0xf] %vm5587, %v5974
    %5979 = vst.msk [vmem:[#allocation6 + $0x20] sm:$0xf] %vm5587, %v5975
    %5980 = vst.msk [vmem:[#allocation6 + $0x34] sm:$0xf] %vm5587, %v5976
    %5981 = vst.msk [vmem:[#allocation6 + $0x48] sm:$0xf] %vm5587, %v5977
    %v5982 = vrot.slane %v5601, 4
    %v5983 = vrot.slane %v5607, 4
    %v5984 = vrot.slane %v5601, 5
    %v5985 = vrot.slane %v5984, 4
    %v5986 = vrot.slane %v5982, 5
    %v5987 = vsel %vm5657, %v5985, %v5986
    %v5988 = vrot.slane %v5607, 5
    %v5989 = vrot.slane %v5988, 4
    %v5990 = vrot.slane %v5983, 5
    %v5991 = vsel %vm5657, %v5989, %v5990
    %5992 = vst [vmem:[#allocation1] ss:$2 sm:$0xff] %v5669
    %s5993 = scalar_lea.vmem [#allocation1], 1
    %5994 = vst [vmem:[%s5993] ss:$2 sm:$0xff] %v5673
    %s5995 = scalar_lea.vmem [#allocation1], 16
    %5996 = vst [vmem:[%s5995] ss:$2 sm:$0xff] %v5858
    %s5997 = scalar_lea.vmem [#allocation1], 17
    %5998 = vst [vmem:[%s5997] ss:$2 sm:$0xff] %v5987
    %s5999 = scalar_lea.vmem [#allocation1], 32
    %6000 = vst [vmem:[%s5999] ss:$2 sm:$0xff] %v5685
    %s6001 = scalar_lea.vmem [#allocation1], 33
    %6002 = vst [vmem:[%s6001] ss:$2 sm:$0xff] %v5689
    %s6003 = scalar_lea.vmem [#allocation1], 48
    %6004 = vst [vmem:[%s6003] ss:$2 sm:$0xff] %v5862
    %s6005 = scalar_lea.vmem [#allocation1], 49
    %6006 = vst [vmem:[%s6005] ss:$2 sm:$0xff] %v5991
    %v6007 = vld.sshfl [vmem:[#allocation1] sm:$0xff pattern:$0x75316420]
    %v6008 = vld.sshfl [vmem:[#allocation1 + $0x10] sm:$0xff pattern:$0x75316420]
    %v6009 = vld.sshfl [vmem:[#allocation1 + $0x20] sm:$0xff pattern:$0x75316420]
    %v6010 = vld.sshfl [vmem:[#allocation1 + $0x30] sm:$0xff pattern:$0x75316420]
    %v6015 = vpack.c.bf16 %v6007, %v6007
    %v6016 = vpack.c.bf16 %v6008, %v6008
    %v6017 = vpack.c.bf16 %v6009, %v6009
    %v6018 = vpack.c.bf16 %v6010, %v6010
    %6023 = vrot.lane.b32.xlu0 %v6015, 64
    %v6024 = vpop.permute.xlu0 %6023
    %6025 = vrot.lane.b32.xlu0 %v6016, 64
    %v6026 = vpop.permute.xlu0 %6025
    %6027 = vrot.lane.b32.xlu0 %v6017, 64
    %v6028 = vpop.permute.xlu0 %6027
    %6029 = vrot.lane.b32.xlu0 %v6018, 64
    %v6030 = vpop.permute.xlu0 %6029
    %6035 = vst.msk [vmem:[#allocation6 + $0xc] sm:$0xf] %vm5733, %v6024
    %6036 = vst.msk [vmem:[#allocation6 + $0x20] sm:$0xf] %vm5733, %v6026
    %6037 = vst.msk [vmem:[#allocation6 + $0x34] sm:$0xf] %vm5733, %v6028
    %6038 = vst.msk [vmem:[#allocation6 + $0x48] sm:$0xf] %vm5733, %v6030
    %v6039 = vrot.slane %v5601, 6
    %v6040 = vrot.slane %v6039, 4
    %v6041 = vrot.slane %v5982, 6
    %v6042 = vsel %vm5740, %v6040, %v6041
    %v6043 = vrot.slane %v5607, 6
    %v6044 = vrot.slane %v6043, 4
    %v6045 = vrot.slane %v5983, 6
    %v6046 = vsel %vm5740, %v6044, %v6045
    %6047 = vst [vmem:[#allocation1] ss:$2 sm:$0xff] %v5752
    %s6048 = scalar_lea.vmem [#allocation1], 1
    %6049 = vst [vmem:[%s6048] ss:$2 sm:$0xff] %v5756
    %s6050 = scalar_lea.vmem [#allocation1], 16
    %6051 = vst [vmem:[%s6050] ss:$2 sm:$0xff] %v5897
    %s6052 = scalar_lea.vmem [#allocation1], 17
    %6053 = vst [vmem:[%s6052] ss:$2 sm:$0xff] %v6042
    %s6054 = scalar_lea.vmem [#allocation1], 32
    %6055 = vst [vmem:[%s6054] ss:$2 sm:$0xff] %v5768
    %s6056 = scalar_lea.vmem [#allocation1], 33
    %6057 = vst [vmem:[%s6056] ss:$2 sm:$0xff] %v5772
    %s6058 = scalar_lea.vmem [#allocation1], 48
    %6059 = vst [vmem:[%s6058] ss:$2 sm:$0xff] %v5901
    %s6060 = scalar_lea.vmem [#allocation1], 49
    %6061 = vst [vmem:[%s6060] ss:$2 sm:$0xff] %v6046
    %v6062 = vld.sshfl [vmem:[#allocation1] sm:$0xff pattern:$0x75316420]
    %v6063 = vld.sshfl [vmem:[#allocation1 + $0x10] sm:$0xff pattern:$0x75316420]
    %v6064 = vld.sshfl [vmem:[#allocation1 + $0x20] sm:$0xff pattern:$0x75316420]
    %v6065 = vld.sshfl [vmem:[#allocation1 + $0x30] sm:$0xff pattern:$0x75316420]
    %v6070 = vpack.c.bf16 %v6062, %v6062
    %v6071 = vpack.c.bf16 %v6063, %v6063
    %v6072 = vpack.c.bf16 %v6064, %v6064
    %v6073 = vpack.c.bf16 %v6065, %v6065
    %6074 = vst.msk [vmem:[#allocation6 + $0x10] sm:$0xf] %vm5587, %v6070
    %6075 = vst.msk [vmem:[#allocation6 + $0x24] sm:$0xf] %vm5587, %v6071
    %6076 = vst.msk [vmem:[#allocation6 + $0x38] sm:$0xf] %vm5587, %v6072
    %6077 = vst.msk [vmem:[#allocation6 + $0x4c] sm:$0xf] %vm5587, %v6073
    %v6078 = vld [vmem:[#allocation6] sm:$0xff]
    %v6079 = vld [vmem:[#allocation6 + $0x8] sm:$0xff]
    %v6080 = vld [vmem:[#allocation6 + $0x10] sm:$0xf]
    %v6081 = vld [vmem:[#allocation6 + $0x14] sm:$0xff]
    %v6082 = vld [vmem:[#allocation6 + $0x1c] sm:$0xff]
    %v6083 = vld [vmem:[#allocation6 + $0x24] sm:$0xf]
    %v6084 = vld [vmem:[#allocation6 + $0x28] sm:$0xff]
    %v6085 = vld [vmem:[#allocation6 + $0x30] sm:$0xff]
    %v6086 = vld [vmem:[#allocation6 + $0x38] sm:$0xf]
    %v6087 = vld [vmem:[#allocation6 + $0x3c] sm:$0xff]
    %v6088 = vld [vmem:[#allocation6 + $0x44] sm:$0xff]
    %v6089 = vld [vmem:[#allocation6 + $0x4c] sm:$0xf]
    %v6090 = vld [vmem:[%s5] sm:$0xf]
    %v6091 = vld [vmem:[%s5 + $0x4] sm:$0xf]
    %v6092 = vld [vmem:[%s5 + $0x8] sm:$0xf]
    %v6093 = vld [vmem:[%s5 + $0xc] sm:$0xf]
    %v6094 = vld [vmem:[%s5 + $0x10] sm:$0xf]
    %v6095 = vld [vmem:[%s5 + $0x14] sm:$0xf]
    %v6096 = vld [vmem:[%s5 + $0x18] sm:$0xf]
    %v6097 = vld [vmem:[%s5 + $0x1c] sm:$0xf]
    %v6098 = vld [vmem:[%s5 + $0x20] sm:$0xf]
    %v6099 = vld [vmem:[%s5 + $0x24] sm:$0xf]
    %v6100 = vld [vmem:[%s5 + $0x28] sm:$0xf]
    %v6101 = vld [vmem:[%s5 + $0x2c] sm:$0xf]
    %v6102 = vld [vmem:[%s5 + $0x30] sm:$0xf]
    %v6103 = vld [vmem:[%s5 + $0x34] sm:$0xf]
    %v6104 = vld [vmem:[%s5 + $0x38] sm:$0xf]
    %v6105 = vld [vmem:[%s5 + $0x3c] sm:$0xf]
    %v6106 = vld [vmem:[%s5 + $0x40] sm:$0xf]
    %v6107 = vld [vmem:[%s5 + $0x44] sm:$0xf]
    %v6108 = vld [vmem:[%s5 + $0x48] sm:$0xf]
    %v6109 = vld [vmem:[%s5 + $0x4c] sm:$0xf]
    %v6110 = vld [vmem:[%s5 + $0x50] sm:$0xf]
    %v6111 = vld [vmem:[%s5 + $0x54] sm:$0xf]
    %v6112 = vld [vmem:[%s5 + $0x58] sm:$0xf]
    %v6113 = vld [vmem:[%s5 + $0x5c] sm:$0xf]
    %v6114 = vld [vmem:[%s5 + $0x60] sm:$0xf]
    %v6115 = vld [vmem:[%s5 + $0x64] sm:$0xf]
    %v6116 = vld [vmem:[%s5 + $0x68] sm:$0xf]
    %v6117 = vld [vmem:[%s5 + $0x6c] sm:$0xf]
    %v6118 = vld [vmem:[%s5 + $0x70] sm:$0xf]
    %v6119 = vld [vmem:[%s5 + $0x74] sm:$0xf]
    %v6120 = vld [vmem:[%s5 + $0x78] sm:$0xf]
    %v6121 = vld [vmem:[%s5 + $0x7c] sm:$0xf]
    %v6122 = vld [vmem:[%s5 + $0x80] sm:$0xf]
    %v6123 = vld [vmem:[%s5 + $0x84] sm:$0xf]
    %v6124 = vld [vmem:[%s5 + $0x88] sm:$0xf]
    %v6125 = vld [vmem:[%s5 + $0x8c] sm:$0xf]
    %v6126 = vld [vmem:[%s5 + $0x90] sm:$0xf]
    %v6127 = vld [vmem:[%s5 + $0x94] sm:$0xf]
    %v6128 = vld [vmem:[%s5 + $0x98] sm:$0xf]
    %v6129 = vld [vmem:[%s5 + $0x9c] sm:$0xf]
    %v6130 = vld [vmem:[%s5 + $0xa0] sm:$0xf]
    %v6131 = vld [vmem:[%s5 + $0xa4] sm:$0xf]
    %v6132 = vld [vmem:[%s5 + $0xa8] sm:$0xf]
    %v6133 = vld [vmem:[%s5 + $0xac] sm:$0xf]
    %v6134 = vld [vmem:[%s5 + $0xb0] sm:$0xf]
    %v6135 = vld [vmem:[%s5 + $0xb4] sm:$0xf]
    %v6136 = vld [vmem:[%s5 + $0xb8] sm:$0xf]
    %v6137 = vld [vmem:[%s5 + $0xbc] sm:$0xf]
    %v6138 = vld [vmem:[%s5 + $0xc0] sm:$0xf]
    %v6139 = vld [vmem:[%s5 + $0xc4] sm:$0xf]
    %v6140 = vld [vmem:[%s5 + $0xc8] sm:$0xf]
    %v6141 = vld [vmem:[%s5 + $0xcc] sm:$0xf]
    %v6142 = vld [vmem:[%s5 + $0xd0] sm:$0xf]
    %v6143 = vld [vmem:[%s5 + $0xd4] sm:$0xf]
    %v6144 = vld [vmem:[%s5 + $0xd8] sm:$0xf]
    %v6145 = vld [vmem:[%s5 + $0xdc] sm:$0xf]
    %v6146 = vld [vmem:[%s5 + $0xe0] sm:$0xf]
    %v6147 = vld [vmem:[%s5 + $0xe4] sm:$0xf]
    %v6148 = vld [vmem:[%s5 + $0xe8] sm:$0xf]
    %v6149 = vld [vmem:[%s5 + $0xec] sm:$0xf]
    %v6150 = vld [vmem:[%s5 + $0xf0] sm:$0xf]
    %v6151 = vld [vmem:[%s5 + $0xf4] sm:$0xf]
    %v6152 = vld [vmem:[%s5 + $0xf8] sm:$0xf]
    %v6153 = vld [vmem:[%s5 + $0xfc] sm:$0xf]
    %v6154 = vld [vmem:[%s5 + $0x100] sm:$0xf]
    %v6155 = vld [vmem:[%s5 + $0x104] sm:$0xf]
    %v6156 = vld [vmem:[%s5 + $0x108] sm:$0xf]
    %v6157 = vld [vmem:[%s5 + $0x10c] sm:$0xf]
    %v6158 = vld [vmem:[%s5 + $0x110] sm:$0xf]
    %v6159 = vld [vmem:[%s5 + $0x114] sm:$0xf]
    %v6160 = vld [vmem:[%s5 + $0x118] sm:$0xf]
    %v6161 = vld [vmem:[%s5 + $0x11c] sm:$0xf]
    %v6162 = vld [vmem:[%s6] sm:$0x1]
    %v6164 = vperm.slane %v6162, 0
    %v6178 = vunpack.c.l.b16 %v6078
    %v6179 = vunpack.c.h.b16 %v6078
    %v6180 = vunpack.c.l.b16 %v6079
    %v6181 = vunpack.c.h.b16 %v6079
    %v6182 = vunpack.c.l.b16 %v6080
    %v6183 = vunpack.c.l.b16 %v6081
    %v6184 = vunpack.c.h.b16 %v6081
    %v6185 = vunpack.c.l.b16 %v6082
    %v6186 = vunpack.c.h.b16 %v6082
    %v6187 = vunpack.c.l.b16 %v6083
    %v6188 = vunpack.c.l.b16 %v6084
    %v6189 = vunpack.c.h.b16 %v6084
    %v6190 = vunpack.c.l.b16 %v6085
    %v6191 = vunpack.c.h.b16 %v6085
    %v6192 = vunpack.c.l.b16 %v6086
    %v6193 = vunpack.c.l.b16 %v6087
    %v6194 = vunpack.c.h.b16 %v6087
    %v6195 = vunpack.c.l.b16 %v6088
    %v6196 = vunpack.c.h.b16 %v6088
    %v6197 = vunpack.c.l.b16 %v6089
    %v6198 = vpack.c.b16 %v6183, %v6178
    %v6199 = vpack.c.b16 %v6184, %v6179
    %v6200 = vpack.c.b16 %v6185, %v6180
    %v6201 = vpack.c.b16 %v6186, %v6181
    %v6202 = vpack.c.b16 %v6187, %v6182
    %v6203 = vpack.c.b16 %v6193, %v6188
    %v6204 = vpack.c.b16 %v6194, %v6189
    %v6205 = vpack.c.b16 %v6195, %v6190
    %v6206 = vpack.c.b16 %v6196, %v6191
    %v6207 = vpack.c.b16 %v6197, %v6192
    %v6288 = vunpack.c.l.b16 %v6090
    %v6289 = vunpack.c.l.b16 %v6091
    %v6290 = vunpack.c.l.b16 %v6092
    %v6291 = vunpack.c.l.b16 %v6093
    %v6292 = vunpack.c.l.b16 %v6094
    %v6293 = vunpack.c.l.b16 %v6095
    %v6294 = vunpack.c.l.b16 %v6096
    %v6295 = vunpack.c.l.b16 %v6097
    %v6296 = vunpack.c.l.b16 %v6098
    %v6297 = vunpack.c.l.b16 %v6099
    %v6298 = vunpack.c.l.b16 %v6100
    %v6299 = vunpack.c.l.b16 %v6101
    %v6300 = vunpack.c.l.b16 %v6102
    %v6301 = vunpack.c.l.b16 %v6103
    %v6302 = vunpack.c.l.b16 %v6104
    %v6303 = vunpack.c.l.b16 %v6105
    %v6304 = vunpack.c.l.b16 %v6106
    %v6305 = vunpack.c.l.b16 %v6107
    %v6306 = vunpack.c.l.b16 %v6108
    %v6307 = vunpack.c.l.b16 %v6109
    %v6308 = vunpack.c.l.b16 %v6110
    %v6309 = vunpack.c.l.b16 %v6111
    %v6310 = vunpack.c.l.b16 %v6112
    %v6311 = vunpack.c.l.b16 %v6113
    %v6312 = vunpack.c.l.b16 %v6114
    %v6313 = vunpack.c.l.b16 %v6115
    %v6314 = vunpack.c.l.b16 %v6116
    %v6315 = vunpack.c.l.b16 %v6117
    %v6316 = vunpack.c.l.b16 %v6118
    %v6317 = vunpack.c.l.b16 %v6119
    %v6318 = vunpack.c.l.b16 %v6120
    %v6319 = vunpack.c.l.b16 %v6121
    %v6320 = vunpack.c.l.b16 %v6122
    %v6321 = vunpack.c.l.b16 %v6123
    %v6322 = vunpack.c.l.b16 %v6124
    %v6323 = vunpack.c.l.b16 %v6125
    %v6324 = vunpack.c.l.b16 %v6126
    %v6325 = vunpack.c.l.b16 %v6127
    %v6326 = vunpack.c.l.b16 %v6128
    %v6327 = vunpack.c.l.b16 %v6129
    %v6328 = vunpack.c.l.b16 %v6130
    %v6329 = vunpack.c.l.b16 %v6131
    %v6330 = vunpack.c.l.b16 %v6132
    %v6331 = vunpack.c.l.b16 %v6133
    %v6332 = vunpack.c.l.b16 %v6134
    %v6333 = vunpack.c.l.b16 %v6135
    %v6334 = vunpack.c.l.b16 %v6136
    %v6335 = vunpack.c.l.b16 %v6137
    %v6336 = vunpack.c.l.b16 %v6138
    %v6337 = vunpack.c.l.b16 %v6139
    %v6338 = vunpack.c.l.b16 %v6140
    %v6339 = vunpack.c.l.b16 %v6141
    %v6340 = vunpack.c.l.b16 %v6142
    %v6341 = vunpack.c.l.b16 %v6143
    %v6342 = vunpack.c.l.b16 %v6144
    %v6343 = vunpack.c.l.b16 %v6145
    %v6344 = vunpack.c.l.b16 %v6146
    %v6345 = vunpack.c.l.b16 %v6147
    %v6346 = vunpack.c.l.b16 %v6148
    %v6347 = vunpack.c.l.b16 %v6149
    %v6348 = vunpack.c.l.b16 %v6150
    %v6349 = vunpack.c.l.b16 %v6151
    %v6350 = vunpack.c.l.b16 %v6152
    %v6351 = vunpack.c.l.b16 %v6153
    %v6352 = vunpack.c.l.b16 %v6154
    %v6353 = vunpack.c.l.b16 %v6155
    %v6354 = vunpack.c.l.b16 %v6156
    %v6355 = vunpack.c.l.b16 %v6157
    %v6356 = vunpack.c.l.b16 %v6158
    %v6357 = vunpack.c.l.b16 %v6159
    %v6358 = vunpack.c.l.b16 %v6160
    %v6359 = vunpack.c.l.b16 %v6161
    %v6360 = vpack.c.b16 %v6289, %v6288
    %v6361 = vpack.c.b16 %v6291, %v6290
    %v6362 = vpack.c.b16 %v6293, %v6292
    %v6363 = vpack.c.b16 %v6295, %v6294
    %v6364 = vpack.c.b16 %v6297, %v6296
    %v6365 = vpack.c.b16 %v6299, %v6298
    %v6366 = vpack.c.b16 %v6301, %v6300
    %v6367 = vpack.c.b16 %v6303, %v6302
    %v6368 = vpack.c.b16 %v6305, %v6304
    %v6369 = vpack.c.b16 %v6307, %v6306
    %v6370 = vpack.c.b16 %v6309, %v6308
    %v6371 = vpack.c.b16 %v6311, %v6310
    %v6372 = vpack.c.b16 %v6313, %v6312
    %v6373 = vpack.c.b16 %v6315, %v6314
    %v6374 = vpack.c.b16 %v6317, %v6316
    %v6375 = vpack.c.b16 %v6319, %v6318
    %v6376 = vpack.c.b16 %v6321, %v6320
    %v6377 = vpack.c.b16 %v6323, %v6322
    %v6378 = vpack.c.b16 %v6325, %v6324
    %v6379 = vpack.c.b16 %v6327, %v6326
    %v6380 = vpack.c.b16 %v6329, %v6328
    %v6381 = vpack.c.b16 %v6331, %v6330
    %v6382 = vpack.c.b16 %v6333, %v6332
    %v6383 = vpack.c.b16 %v6335, %v6334
    %v6384 = vpack.c.b16 %v6337, %v6336
    %v6385 = vpack.c.b16 %v6339, %v6338
    %v6386 = vpack.c.b16 %v6341, %v6340
    %v6387 = vpack.c.b16 %v6343, %v6342
    %v6388 = vpack.c.b16 %v6345, %v6344
    %v6389 = vpack.c.b16 %v6347, %v6346
    %v6390 = vpack.c.b16 %v6349, %v6348
    %v6391 = vpack.c.b16 %v6351, %v6350
    %v6392 = vpack.c.b16 %v6353, %v6352
    %v6393 = vpack.c.b16 %v6355, %v6354
    %v6394 = vpack.c.b16 %v6357, %v6356
    %v6395 = vpack.c.b16 %v6359, %v6358
    %v6433 = vsel %vm5412, %v6202, 0
    %v6436 = vsel %vm5412, %v6207, 0
    %6438 = vmatpush.bf16.msra.mxu0 %v6367
    %6439 = vmatpush.bf16.msra.mxu0 %v6366
    %6440 = vmatpush.bf16.msra.mxu0 %v6365
    %6441 = vmatpush.bf16.msra.mxu0 %v6364
    %6442 = vmatpush.bf16.msra.mxu0 %v6363
    %6443 = vmatpush.bf16.msra.mxu0 %v6362
    %6444 = vmatpush.bf16.msra.mxu0 %v6361
    %6445 = vmatpush.bf16.msra.mxu0 %v6360
    %6446 = vmatmul.bf16.gmra.mxu0 %v6198
    %v6447 = vpop.f32.mrf.mxu0
    %v6448 = vadd.f32 %v6164, %v6447
    %v6449 = vpop.f32.mrf.mxu0
    %v6450 = vadd.f32 %v6164, %v6449
    %6451 = vmatmul.bf16.gmra.mxu0 %v6203
    %v6452 = vpop.f32.mrf.mxu0
    %v6453 = vadd.f32 %v6164, %v6452
    %v6454 = vpop.f32.mrf.mxu0
    %v6455 = vadd.f32 %v6164, %v6454
    %6456 = vdwg.mxu0
    %6457 = vmatpush.bf16.msra.mxu0 %v6375
    %6458 = vmatpush.bf16.msra.mxu0 %v6374
    %6459 = vmatpush.bf16.msra.mxu0 %v6373
    %6460 = vmatpush.bf16.msra.mxu0 %v6372
    %6461 = vmatpush.bf16.msra.mxu0 %v6371
    %6462 = vmatpush.bf16.msra.mxu0 %v6370
    %6463 = vmatpush.bf16.msra.mxu0 %v6369
    %6464 = vmatpush.bf16.msra.mxu0 %v6368
    %6465 = vmatmul.bf16.gmra.mxu0 %v6199
    %v6466 = vpop.f32.mrf.mxu0
    %v6467 = vadd.f32 %v6448, %v6466
    %v6468 = vpop.f32.mrf.mxu0
    %v6469 = vadd.f32 %v6450, %v6468
    %6470 = vmatmul.bf16.gmra.mxu0 %v6204
    %v6471 = vpop.f32.mrf.mxu0
    %v6472 = vadd.f32 %v6453, %v6471
    %v6473 = vpop.f32.mrf.mxu0
    %v6474 = vadd.f32 %v6455, %v6473
    %6475 = vdwg.mxu0
    %6476 = vmatpush.bf16.msra.mxu0 %v6383
    %6477 = vmatpush.bf16.msra.mxu0 %v6382
    %6478 = vmatpush.bf16.msra.mxu0 %v6381
    %6479 = vmatpush.bf16.msra.mxu0 %v6380
    %6480 = vmatpush.bf16.msra.mxu0 %v6379
    %6481 = vmatpush.bf16.msra.mxu0 %v6378
    %6482 = vmatpush.bf16.msra.mxu0 %v6377
    %6483 = vmatpush.bf16.msra.mxu0 %v6376
    %6484 = vmatmul.bf16.gmra.mxu0 %v6200
    %v6485 = vpop.f32.mrf.mxu0
    %v6486 = vadd.f32 %v6467, %v6485
    %v6487 = vpop.f32.mrf.mxu0
    %v6488 = vadd.f32 %v6469, %v6487
    %6489 = vmatmul.bf16.gmra.mxu0 %v6205
    %v6490 = vpop.f32.mrf.mxu0
    %v6491 = vadd.f32 %v6472, %v6490
    %v6492 = vpop.f32.mrf.mxu0
    %v6493 = vadd.f32 %v6474, %v6492
    %6494 = vdwg.mxu0
    %6495 = vmatpush.bf16.msra.mxu0 %v6391
    %6496 = vmatpush.bf16.msra.mxu0 %v6390
    %6497 = vmatpush.bf16.msra.mxu0 %v6389
    %6498 = vmatpush.bf16.msra.mxu0 %v6388
    %6499 = vmatpush.bf16.msra.mxu0 %v6387
    %6500 = vmatpush.bf16.msra.mxu0 %v6386
    %6501 = vmatpush.bf16.msra.mxu0 %v6385
    %6502 = vmatpush.bf16.msra.mxu0 %v6384
    %6503 = vmatmul.bf16.gmra.mxu0 %v6201
    %v6504 = vpop.f32.mrf.mxu0
    %v6505 = vadd.f32 %v6486, %v6504
    %v6506 = vpop.f32.mrf.mxu0
    %v6507 = vadd.f32 %v6488, %v6506
    %6508 = vmatmul.bf16.gmra.mxu0 %v6206
    %v6509 = vpop.f32.mrf.mxu0
    %v6510 = vadd.f32 %v6491, %v6509
    %v6511 = vpop.f32.mrf.mxu0
    %v6512 = vadd.f32 %v6493, %v6511
    %6513 = vdwg.mxu0
    %6514 = vmatpush.bf16.msra.mxu0 0
    %6515 = vmatpush.bf16.msra.mxu0 0
    %6516 = vmatpush.bf16.msra.mxu0 0
    %6517 = vmatpush.bf16.msra.mxu0 0
    %6518 = vmatpush.bf16.msra.mxu0 %v6395
    %6519 = vmatpush.bf16.msra.mxu0 %v6394
    %6520 = vmatpush.bf16.msra.mxu0 %v6393
    %6521 = vmatpush.bf16.msra.mxu0 %v6392
    %6522 = vmatmul.bf16.gmra.mxu0 %v6433
    %v6523 = vpop.f32.mrf.mxu0
    %v6524 = vadd.f32 %v6505, %v6523
    %v6525 = vpop.f32.mrf.mxu0
    %v6526 = vadd.f32 %v6507, %v6525
    %6527 = vmatmul.bf16.gmra.mxu0 %v6436
    %v6528 = vpop.f32.mrf.mxu0
    %v6529 = vadd.f32 %v6510, %v6528
    %v6530 = vpop.f32.mrf.mxu0
    %v6531 = vadd.f32 %v6512, %v6530
    %6532 = vdwg.mxu0
    %v6533 = vmax.f32 %v6524, 0.0
    %v6534 = vmax.f32 %v6526, 0.0
    %v6535 = vmax.f32 %v6529, 0.0
    %v6536 = vmax.f32 %v6531, 0.0
    %v6541 = vrot.slane %v6533, 2
    %v6542 = vrot.slane %v6533, 4
    %v6543 = vrot.slane %v6533, 6
    %v6544 = vrot.slane %v6534, 2
    %v6545 = vrot.slane %v6534, 4
    %v6546 = vrot.slane %v6534, 6
    %v6547 = vrot.slane %v6535, 2
    %v6548 = vrot.slane %v6535, 4
    %v6549 = vrot.slane %v6535, 6
    %v6550 = vrot.slane %v6536, 2
    %v6551 = vrot.slane %v6536, 4
    %v6552 = vrot.slane %v6536, 6
    %v6565 = vsel %vm5738, %v6533, -inf
    %v6566 = vrot.slane %v6565, 4
    %v6567 = vmax.f32 %v6565, %v6566
    %v6568 = vrot.slane %v6567, 2
    %v6569 = vmax.f32 %v6567, %v6568
    %v6570 = vrot.slane %v6569, 1
    %v6571 = vmax.f32 %v6569, %v6570
    %v6572 = vsel %vm5738, %v6541, -inf
    %v6573 = vrot.slane %v6572, 4
    %v6574 = vmax.f32 %v6572, %v6573
    %v6575 = vrot.slane %v6574, 2
    %v6576 = vmax.f32 %v6574, %v6575
    %v6577 = vrot.slane %v6576, 1
    %v6578 = vmax.f32 %v6576, %v6577
    %v6579 = vsel %vm5738, %v6542, -inf
    %v6580 = vrot.slane %v6579, 4
    %v6581 = vmax.f32 %v6579, %v6580
    %v6582 = vrot.slane %v6581, 2
    %v6583 = vmax.f32 %v6581, %v6582
    %v6584 = vrot.slane %v6583, 1
    %v6585 = vmax.f32 %v6583, %v6584
    %v6586 = vsel %vm5738, %v6543, -inf
    %v6587 = vrot.slane %v6586, 4
    %v6588 = vmax.f32 %v6586, %v6587
    %v6589 = vrot.slane %v6588, 2
    %v6590 = vmax.f32 %v6588, %v6589
    %v6591 = vrot.slane %v6590, 1
    %v6592 = vmax.f32 %v6590, %v6591
    %v6593 = vsel %vm5738, %v6534, -inf
    %v6594 = vrot.slane %v6593, 4
    %v6595 = vmax.f32 %v6593, %v6594
    %v6596 = vrot.slane %v6595, 2
    %v6597 = vmax.f32 %v6595, %v6596
    %v6598 = vrot.slane %v6597, 1
    %v6599 = vmax.f32 %v6597, %v6598
    %v6600 = vsel %vm5738, %v6544, -inf
    %v6601 = vrot.slane %v6600, 4
    %v6602 = vmax.f32 %v6600, %v6601
    %v6603 = vrot.slane %v6602, 2
    %v6604 = vmax.f32 %v6602, %v6603
    %v6605 = vrot.slane %v6604, 1
    %v6606 = vmax.f32 %v6604, %v6605
    %v6607 = vsel %vm5738, %v6545, -inf
    %v6608 = vrot.slane %v6607, 4
    %v6609 = vmax.f32 %v6607, %v6608
    %v6610 = vrot.slane %v6609, 2
    %v6611 = vmax.f32 %v6609, %v6610
    %v6612 = vrot.slane %v6611, 1
    %v6613 = vmax.f32 %v6611, %v6612
    %v6614 = vsel %vm5738, %v6546, -inf
    %v6615 = vrot.slane %v6614, 4
    %v6616 = vmax.f32 %v6614, %v6615
    %v6617 = vrot.slane %v6616, 2
    %v6618 = vmax.f32 %v6616, %v6617
    %v6619 = vrot.slane %v6618, 1
    %v6620 = vmax.f32 %v6618, %v6619
    %v6621 = vsel %vm5738, %v6535, -inf
    %v6622 = vrot.slane %v6621, 4
    %v6623 = vmax.f32 %v6621, %v6622
    %v6624 = vrot.slane %v6623, 2
    %v6625 = vmax.f32 %v6623, %v6624
    %v6626 = vrot.slane %v6625, 1
    %v6627 = vmax.f32 %v6625, %v6626
    %v6628 = vsel %vm5738, %v6547, -inf
    %v6629 = vrot.slane %v6628, 4
    %v6630 = vmax.f32 %v6628, %v6629
    %v6631 = vrot.slane %v6630, 2
    %v6632 = vmax.f32 %v6630, %v6631
    %v6633 = vrot.slane %v6632, 1
    %v6634 = vmax.f32 %v6632, %v6633
    %v6635 = vsel %vm5738, %v6548, -inf
    %v6636 = vrot.slane %v6635, 4
    %v6637 = vmax.f32 %v6635, %v6636
    %v6638 = vrot.slane %v6637, 2
    %v6639 = vmax.f32 %v6637, %v6638
    %v6640 = vrot.slane %v6639, 1
    %v6641 = vmax.f32 %v6639, %v6640
    %v6642 = vsel %vm5738, %v6549, -inf
    %v6643 = vrot.slane %v6642, 4
    %v6644 = vmax.f32 %v6642, %v6643
    %v6645 = vrot.slane %v6644, 2
    %v6646 = vmax.f32 %v6644, %v6645
    %v6647 = vrot.slane %v6646, 1
    %v6648 = vmax.f32 %v6646, %v6647
    %v6649 = vsel %vm5738, %v6536, -inf
    %v6650 = vrot.slane %v6649, 4
    %v6651 = vmax.f32 %v6649, %v6650
    %v6652 = vrot.slane %v6651, 2
    %v6653 = vmax.f32 %v6651, %v6652
    %v6654 = vrot.slane %v6653, 1
    %v6655 = vmax.f32 %v6653, %v6654
    %v6656 = vsel %vm5738, %v6550, -inf
    %v6657 = vrot.slane %v6656, 4
    %v6658 = vmax.f32 %v6656, %v6657
    %v6659 = vrot.slane %v6658, 2
    %v6660 = vmax.f32 %v6658, %v6659
    %v6661 = vrot.slane %v6660, 1
    %v6662 = vmax.f32 %v6660, %v6661
    %v6663 = vsel %vm5738, %v6551, -inf
    %v6664 = vrot.slane %v6663, 4
    %v6665 = vmax.f32 %v6663, %v6664
    %v6666 = vrot.slane %v6665, 2
    %v6667 = vmax.f32 %v6665, %v6666
    %v6668 = vrot.slane %v6667, 1
    %v6669 = vmax.f32 %v6667, %v6668
    %v6670 = vsel %vm5738, %v6552, -inf
    %v6671 = vrot.slane %v6670, 4
    %v6672 = vmax.f32 %v6670, %v6671
    %v6673 = vrot.slane %v6672, 2
    %v6674 = vmax.f32 %v6672, %v6673
    %v6675 = vrot.slane %v6674, 1
    %v6676 = vmax.f32 %v6674, %v6675
    %v6677 = vmax.f32 %v6571, %v6585
    %v6678 = vmax.f32 %v6578, %v6592
    %v6679 = vmax.f32 %v6599, %v6613
    %v6680 = vmax.f32 %v6606, %v6620
    %v6681 = vmax.f32 %v6627, %v6641
    %v6682 = vmax.f32 %v6634, %v6648
    %v6683 = vmax.f32 %v6655, %v6669
    %v6684 = vmax.f32 %v6662, %v6676
    %6685 = vst [vmem:[#allocation4] sm:$0xf] 0.0
    %6686 = vst [vmem:[#allocation4 + $0x4] sm:$0xf] 0.0
    %6687 = vst [vmem:[#allocation4 + $0x8] sm:$0xf] 0.0
    %6688 = vst [vmem:[#allocation4 + $0xc] sm:$0xf] 0.0
    %6689 = vst [vmem:[#allocation4 + $0x10] sm:$0xf] 0.0
    %6690 = vst [vmem:[#allocation4 + $0x14] sm:$0xf] 0.0
    %6691 = vst [vmem:[#allocation4 + $0x18] sm:$0xf] 0.0
    %6692 = vst [vmem:[#allocation4 + $0x1c] sm:$0xf] 0.0
    %v6701 = vsel %vm3418, %v6678, %v6677
    %v6702 = vsel %vm3418, %v6680, %v6679
    %v6703 = vsel %vm3418, %v6682, %v6681
    %v6704 = vsel %vm3418, %v6684, %v6683
    %s6709 = scalar_lea.vmem [#allocation4], 4
    %6710 = vst [vmem:[%s6709 + $0x1] sm:$0x3] %v6701
    %6711 = vst [vmem:[%s6709 + $0x5] sm:$0x3] %v6702
    %6712 = vst [vmem:[%s6709 + $0x11] sm:$0x3] %v6703
    %6713 = vst [vmem:[%s6709 + $0x15] sm:$0x3] %v6704
    %v6714 = vld [vmem:[#allocation4] sm:$0xf]
    %v6715 = vld [vmem:[#allocation4 + $0x4] sm:$0xf]
    %v6716 = vld [vmem:[#allocation4 + $0x8] sm:$0xf]
    %v6717 = vld [vmem:[#allocation4 + $0xc] sm:$0xf]
    %v6718 = vld [vmem:[#allocation4 + $0x10] sm:$0xf]
    %v6719 = vld [vmem:[#allocation4 + $0x14] sm:$0xf]
    %v6720 = vld [vmem:[#allocation4 + $0x18] sm:$0xf]
    %v6721 = vld [vmem:[#allocation4 + $0x1c] sm:$0xf]
    %6726 = vst [vmem:[#allocation1] ss:$4 sm:$0xff] %v6714
    %s6727 = scalar_lea.vmem [#allocation1], 1
    %6728 = vst [vmem:[%s6727] ss:$4 sm:$0xff] %v6715
    %s6729 = scalar_lea.vmem [#allocation1], 2
    %6730 = vst [vmem:[%s6729] ss:$4 sm:$0xff] %v6718
    %s6731 = scalar_lea.vmem [#allocation1], 3
    %6732 = vst [vmem:[%s6731] ss:$4 sm:$0xff] %v6719
    %v6733 = vld.sshfl [vmem:[#allocation1] sm:$0xff pattern:$0x73625140]
    %v6735 = vpack.c.bf16 %v6733, %v6733
    %6736 = vst [vmem:[#allocation7] sm:$0xf] %v6735
    %v6737 = vrot.slane %v6714, 2
    %v6738 = vrot.slane %v6715, 2
    %v6739 = vrot.slane %v6718, 2
    %v6740 = vrot.slane %v6719, 2
    %vm6741 = vcmask 1040384
    %vm6742 = vmor %vm6741, %vm3420
    %vm6743 = vmor %vm6742, %vm3424
    %vm6744 = vmor %vm6743, %vm3428
    %v6745 = vrot.slane %v6714, 7
    %v6746 = vrot.slane %v6745, 2
    %v6747 = vrot.slane %v6737, 7
    %v6748 = vsel %vm6744, %v6746, %v6747
    %v6749 = vrot.slane %v6715, 7
    %v6750 = vrot.slane %v6749, 2
    %v6751 = vrot.slane %v6738, 7
    %v6752 = vsel %vm6744, %v6750, %v6751
    %v6753 = vrot.slane %v6718, 7
    %v6754 = vrot.slane %v6753, 2
    %v6755 = vrot.slane %v6739, 7
    %v6756 = vsel %vm6744, %v6754, %v6755
    %v6757 = vrot.slane %v6719, 7
    %v6758 = vrot.slane %v6757, 2
    %v6759 = vrot.slane %v6740, 7
    %v6760 = vsel %vm6744, %v6758, %v6759
    %6761 = vst [vmem:[#allocation1] ss:$4 sm:$0xff] %v6748
    %s6762 = scalar_lea.vmem [#allocation1], 1
    %6763 = vst [vmem:[%s6762] ss:$4 sm:$0xff] %v6752
    %s6764 = scalar_lea.vmem [#allocation1], 2
    %6765 = vst [vmem:[%s6764] ss:$4 sm:$0xff] %v6756
    %s6766 = scalar_lea.vmem [#allocation1], 3
    %6767 = vst [vmem:[%s6766] ss:$4 sm:$0xff] %v6760
    %v6768 = vld.sshfl [vmem:[#allocation1] sm:$0xff pattern:$0x73625140]
    %v6770 = vpack.c.bf16 %v6768, %v6768
    %6771 = vst [vmem:[#allocation7 + $0x4] sm:$0xf] %v6770
    %6772 = vst.sshfl [vmem:[#allocation1] sm:$0xff pattern:$0x73625140] %v6714
    %s6773 = scalar_lea.vmem [#allocation1], 1
    %v6774 = vld [vmem:[%s6773] ss:$4 sm:$0xff]
    %6775 = vst.sshfl [vmem:[#allocation1 + $0x20] sm:$0xff pattern:$0x73625140] %v6715
    %s6776 = scalar_lea.vmem [#allocation1], 33
    %v6777 = vld [vmem:[%s6776] ss:$4 sm:$0xff]
    %6778 = vst.sshfl [vmem:[#allocation1] sm:$0xff pattern:$0x73625140] %v6718
    %v6779 = vld [vmem:[%s6773] ss:$4 sm:$0xff]
    %6780 = vst.sshfl [vmem:[#allocation1 + $0x20] sm:$0xff pattern:$0x73625140] %v6719
    %v6781 = vld [vmem:[%s6776] ss:$4 sm:$0xff]
    %6782 = vst [vmem:[#allocation1] ss:$4 sm:$0xff] %v6774
    %s6783 = scalar_lea.vmem [#allocation1], 1
    %6784 = vst [vmem:[%s6783] ss:$4 sm:$0xff] %v6777
    %s6785 = scalar_lea.vmem [#allocation1], 2
    %6786 = vst [vmem:[%s6785] ss:$4 sm:$0xff] %v6779
    %s6787 = scalar_lea.vmem [#allocation1], 3
    %6788 = vst [vmem:[%s6787] ss:$4 sm:$0xff] %v6781
    %v6789 = vld.sshfl [vmem:[#allocation1] sm:$0xff pattern:$0x73625140]
    %v6791 = vpack.c.bf16 %v6789, %v6789
    %6792 = vst [vmem:[#allocation7 + $0x8] sm:$0xf] %v6791
    %6795 = vst [vmem:[#allocation1] ss:$4 sm:$0xff] %v6715
    %s6796 = scalar_lea.vmem [#allocation1], 1
    %6797 = vst [vmem:[%s6796] ss:$4 sm:$0xff] %v6716
    %s6798 = scalar_lea.vmem [#allocation1], 2
    %6799 = vst [vmem:[%s6798] ss:$4 sm:$0xff] %v6719
    %s6800 = scalar_lea.vmem [#allocation1], 3
    %6801 = vst [vmem:[%s6800] ss:$4 sm:$0xff] %v6720
    %v6802 = vld.sshfl [vmem:[#allocation1] sm:$0xff pattern:$0x73625140]
    %v6804 = vpack.c.bf16 %v6802, %v6802
    %6805 = vst [vmem:[#allocation7 + $0xc] sm:$0xf] %v6804
    %v6806 = vrot.slane %v6716, 2
    %v6807 = vrot.slane %v6720, 2
    %v6808 = vrot.slane %v6716, 7
    %v6809 = vrot.slane %v6808, 2
    %v6810 = vrot.slane %v6806, 7
    %v6811 = vsel %vm6744, %v6809, %v6810
    %v6812 = vrot.slane %v6720, 7
    %v6813 = vrot.slane %v6812, 2
    %v6814 = vrot.slane %v6807, 7
    %v6815 = vsel %vm6744, %v6813, %v6814
    %6816 = vst [vmem:[#allocation1] ss:$4 sm:$0xff] %v6752
    %s6817 = scalar_lea.vmem [#allocation1], 1
    %6818 = vst [vmem:[%s6817] ss:$4 sm:$0xff] %v6811
    %s6819 = scalar_lea.vmem [#allocation1], 2
    %6820 = vst [vmem:[%s6819] ss:$4 sm:$0xff] %v6760
    %s6821 = scalar_lea.vmem [#allocation1], 3
    %6822 = vst [vmem:[%s6821] ss:$4 sm:$0xff] %v6815
    %v6823 = vld.sshfl [vmem:[#allocation1] sm:$0xff pattern:$0x73625140]
    %v6825 = vpack.c.bf16 %v6823, %v6823
    %6826 = vst [vmem:[#allocation7 + $0x10] sm:$0xf] %v6825
    %6827 = vst.sshfl [vmem:[#allocation1] sm:$0xff pattern:$0x73625140] %v6715
    %s6828 = scalar_lea.vmem [#allocation1], 1
    %v6829 = vld [vmem:[%s6828] ss:$4 sm:$0xff]
    %6830 = vst.sshfl [vmem:[#allocation1 + $0x20] sm:$0xff pattern:$0x73625140] %v6716
    %s6831 = scalar_lea.vmem [#allocation1], 33
    %v6832 = vld [vmem:[%s6831] ss:$4 sm:$0xff]
    %6833 = vst.sshfl [vmem:[#allocation1] sm:$0xff pattern:$0x73625140] %v6719
    %v6834 = vld [vmem:[%s6828] ss:$4 sm:$0xff]
    %6835 = vst.sshfl [vmem:[#allocation1 + $0x20] sm:$0xff pattern:$0x73625140] %v6720
    %v6836 = vld [vmem:[%s6831] ss:$4 sm:$0xff]
    %6837 = vst [vmem:[#allocation1] ss:$4 sm:$0xff] %v6829
    %s6838 = scalar_lea.vmem [#allocation1], 1
    %6839 = vst [vmem:[%s6838] ss:$4 sm:$0xff] %v6832
    %s6840 = scalar_lea.vmem [#allocation1], 2
    %6841 = vst [vmem:[%s6840] ss:$4 sm:$0xff] %v6834
    %s6842 = scalar_lea.vmem [#allocation1], 3
    %6843 = vst [vmem:[%s6842] ss:$4 sm:$0xff] %v6836
    %v6844 = vld.sshfl [vmem:[#allocation1] sm:$0xff pattern:$0x73625140]
    %v6846 = vpack.c.bf16 %v6844, %v6844
    %6847 = vst [vmem:[#allocation7 + $0x14] sm:$0xf] %v6846
    %6850 = vst [vmem:[#allocation1] ss:$4 sm:$0xff] %v6716
    %s6851 = scalar_lea.vmem [#allocation1], 1
    %6852 = vst [vmem:[%s6851] ss:$4 sm:$0xff] %v6717
    %s6853 = scalar_lea.vmem [#allocation1], 2
    %6854 = vst [vmem:[%s6853] ss:$4 sm:$0xff] %v6720
    %s6855 = scalar_lea.vmem [#allocation1], 3
    %6856 = vst [vmem:[%s6855] ss:$4 sm:$0xff] %v6721
    %v6857 = vld.sshfl [vmem:[#allocation1] sm:$0xff pattern:$0x73625140]
    %v6859 = vpack.c.bf16 %v6857, %v6857
    %6860 = vst [vmem:[#allocation7 + $0x18] sm:$0xf] %v6859
    %v6861 = vrot.slane %v6717, 2
    %v6862 = vrot.slane %v6721, 2
    %v6863 = vrot.slane %v6717, 7
    %v6864 = vrot.slane %v6863, 2
    %v6865 = vrot.slane %v6861, 7
    %v6866 = vsel %vm6744, %v6864, %v6865
    %v6867 = vrot.slane %v6721, 7
    %v6868 = vrot.slane %v6867, 2
    %v6869 = vrot.slane %v6862, 7
    %v6870 = vsel %vm6744, %v6868, %v6869
    %6871 = vst [vmem:[#allocation1] ss:$4 sm:$0xff] %v6811
    %s6872 = scalar_lea.vmem [#allocation1], 1
    %6873 = vst [vmem:[%s6872] ss:$4 sm:$0xff] %v6866
    %s6874 = scalar_lea.vmem [#allocation1], 2
    %6875 = vst [vmem:[%s6874] ss:$4 sm:$0xff] %v6815
    %s6876 = scalar_lea.vmem [#allocation1], 3
    %6877 = vst [vmem:[%s6876] ss:$4 sm:$0xff] %v6870
    %v6878 = vld.sshfl [vmem:[#allocation1] sm:$0xff pattern:$0x73625140]
    %v6880 = vpack.c.bf16 %v6878, %v6878
    %6881 = vst [vmem:[#allocation7 + $0x1c] sm:$0xf] %v6880
    %6882 = vst.sshfl [vmem:[#allocation1] sm:$0xff pattern:$0x73625140] %v6716
    %s6883 = scalar_lea.vmem [#allocation1], 1
    %v6884 = vld [vmem:[%s6883] ss:$4 sm:$0xff]
    %6885 = vst.sshfl [vmem:[#allocation1 + $0x20] sm:$0xff pattern:$0x73625140] %v6717
    %s6886 = scalar_lea.vmem [#allocation1], 33
    %v6887 = vld [vmem:[%s6886] ss:$4 sm:$0xff]
    %6888 = vst.sshfl [vmem:[#allocation1] sm:$0xff pattern:$0x73625140] %v6720
    %v6889 = vld [vmem:[%s6883] ss:$4 sm:$0xff]
    %6890 = vst.sshfl [vmem:[#allocation1 + $0x20] sm:$0xff pattern:$0x73625140] %v6721
    %v6891 = vld [vmem:[%s6886] ss:$4 sm:$0xff]
    %6892 = vst [vmem:[#allocation1] ss:$4 sm:$0xff] %v6884
    %s6893 = scalar_lea.vmem [#allocation1], 1
    %6894 = vst [vmem:[%s6893] ss:$4 sm:$0xff] %v6887
    %s6895 = scalar_lea.vmem [#allocation1], 2
    %6896 = vst [vmem:[%s6895] ss:$4 sm:$0xff] %v6889
    %s6897 = scalar_lea.vmem [#allocation1], 3
    %6898 = vst [vmem:[%s6897] ss:$4 sm:$0xff] %v6891
    %v6899 = vld.sshfl [vmem:[#allocation1] sm:$0xff pattern:$0x73625140]
    %v6901 = vpack.c.bf16 %v6899, %v6899
    %6902 = vst [vmem:[#allocation7 + $0x20] sm:$0xf] %v6901
    %v6903 = vld [vmem:[#allocation7] sm:$0xff]
    %v6904 = vld [vmem:[#allocation7 + $0x8] sm:$0xff]
    %v6905 = vld [vmem:[#allocation7 + $0x10] sm:$0xff]
    %v6906 = vld [vmem:[#allocation7 + $0x18] sm:$0xff]
    %v6907 = vld [vmem:[#allocation7 + $0x20] sm:$0xf]
    %v6908 = vld [vmem:[%s7] sm:$0xff]
    %v6909 = vld [vmem:[%s7 + $0x8] sm:$0xff]
    %v6910 = vld [vmem:[%s7 + $0x10] sm:$0xff]
    %v6911 = vld [vmem:[%s7 + $0x18] sm:$0xff]
    %v6912 = vld [vmem:[%s7 + $0x20] sm:$0xff]
    %v6913 = vld [vmem:[%s7 + $0x28] sm:$0xff]
    %v6914 = vld [vmem:[%s7 + $0x30] sm:$0xff]
    %v6915 = vld [vmem:[%s7 + $0x38] sm:$0xff]
    %v6916 = vld [vmem:[%s7 + $0x40] sm:$0xff]
    %v6917 = vld [vmem:[%s7 + $0x48] sm:$0xff]
    %v6918 = vld [vmem:[%s7 + $0x50] sm:$0xff]
    %v6919 = vld [vmem:[%s7 + $0x58] sm:$0xff]
    %v6920 = vld [vmem:[%s7 + $0x60] sm:$0xff]
    %v6921 = vld [vmem:[%s7 + $0x68] sm:$0xff]
    %v6922 = vld [vmem:[%s7 + $0x70] sm:$0xff]
    %v6923 = vld [vmem:[%s7 + $0x78] sm:$0xff]
    %v6924 = vld [vmem:[%s7 + $0x80] sm:$0xff]
    %v6925 = vld [vmem:[%s7 + $0x88] sm:$0xff]
    %v6926 = vld [vmem:[%s7 + $0x90] sm:$0xff]
    %v6927 = vld [vmem:[%s7 + $0x98] sm:$0xff]
    %v6928 = vld [vmem:[%s7 + $0xa0] sm:$0xff]
    %v6929 = vld [vmem:[%s7 + $0xa8] sm:$0xff]
    %v6930 = vld [vmem:[%s7 + $0xb0] sm:$0xff]
    %v6931 = vld [vmem:[%s7 + $0xb8] sm:$0xff]
    %v6932 = vld [vmem:[%s7 + $0xc0] sm:$0xff]
    %v6933 = vld [vmem:[%s7 + $0xc8] sm:$0xff]
    %v6934 = vld [vmem:[%s7 + $0xd0] sm:$0xff]
    %v6935 = vld [vmem:[%s7 + $0xd8] sm:$0xff]
    %v6936 = vld [vmem:[%s7 + $0xe0] sm:$0xff]
    %v6937 = vld [vmem:[%s7 + $0xe8] sm:$0xff]
    %v6938 = vld [vmem:[%s7 + $0xf0] sm:$0xff]
    %v6939 = vld [vmem:[%s7 + $0xf8] sm:$0xff]
    %v6940 = vld [vmem:[%s7 + $0x100] sm:$0xff]
    %v6941 = vld [vmem:[%s7 + $0x108] sm:$0xff]
    %v6942 = vld [vmem:[%s7 + $0x110] sm:$0xff]
    %v6943 = vld [vmem:[%s7 + $0x118] sm:$0xff]
    %v6944 = vld [vmem:[%s7 + $0x120] sm:$0xff]
    %v6945 = vld [vmem:[%s7 + $0x128] sm:$0xff]
    %v6946 = vld [vmem:[%s7 + $0x130] sm:$0xff]
    %v6947 = vld [vmem:[%s7 + $0x138] sm:$0xff]
    %v6948 = vld [vmem:[%s7 + $0x140] sm:$0xff]
    %v6949 = vld [vmem:[%s7 + $0x148] sm:$0xff]
    %v6950 = vld [vmem:[%s7 + $0x150] sm:$0xff]
    %v6951 = vld [vmem:[%s7 + $0x158] sm:$0xff]
    %v6952 = vld [vmem:[%s7 + $0x160] sm:$0xff]
    %v6953 = vld [vmem:[%s7 + $0x168] sm:$0xff]
    %v6954 = vld [vmem:[%s7 + $0x170] sm:$0xff]
    %v6955 = vld [vmem:[%s7 + $0x178] sm:$0xff]
    %v6956 = vld [vmem:[%s7 + $0x180] sm:$0xff]
    %v6957 = vld [vmem:[%s7 + $0x188] sm:$0xff]
    %v6958 = vld [vmem:[%s7 + $0x190] sm:$0xff]
    %v6959 = vld [vmem:[%s7 + $0x198] sm:$0xff]
    %v6960 = vld [vmem:[%s7 + $0x1a0] sm:$0xff]
    %v6961 = vld [vmem:[%s7 + $0x1a8] sm:$0xff]
    %v6962 = vld [vmem:[%s7 + $0x1b0] sm:$0xff]
    %v6963 = vld [vmem:[%s7 + $0x1b8] sm:$0xff]
    %v6964 = vld [vmem:[%s7 + $0x1c0] sm:$0xff]
    %v6965 = vld [vmem:[%s7 + $0x1c8] sm:$0xff]
    %v6966 = vld [vmem:[%s7 + $0x1d0] sm:$0xff]
    %v6967 = vld [vmem:[%s7 + $0x1d8] sm:$0xff]
    %v6968 = vld [vmem:[%s7 + $0x1e0] sm:$0xff]
    %v6969 = vld [vmem:[%s7 + $0x1e8] sm:$0xff]
    %v6970 = vld [vmem:[%s7 + $0x1f0] sm:$0xff]
    %v6971 = vld [vmem:[%s7 + $0x1f8] sm:$0xff]
    %v6972 = vld [vmem:[%s7 + $0x200] sm:$0xff]
    %v6973 = vld [vmem:[%s7 + $0x208] sm:$0xff]
    %v6974 = vld [vmem:[%s7 + $0x210] sm:$0xff]
    %v6975 = vld [vmem:[%s7 + $0x218] sm:$0xff]
    %v6976 = vld [vmem:[%s7 + $0x220] sm:$0xff]
    %v6977 = vld [vmem:[%s7 + $0x228] sm:$0xff]
    %v6978 = vld [vmem:[%s7 + $0x230] sm:$0xff]
    %v6979 = vld [vmem:[%s7 + $0x238] sm:$0xff]
    %v6980 = vld [vmem:[%s7 + $0x240] sm:$0xff]
    %v6981 = vld [vmem:[%s7 + $0x248] sm:$0xff]
    %v6982 = vld [vmem:[%s7 + $0x250] sm:$0xff]
    %v6983 = vld [vmem:[%s7 + $0x258] sm:$0xff]
    %v6984 = vld [vmem:[%s7 + $0x260] sm:$0xff]
    %v6985 = vld [vmem:[%s7 + $0x268] sm:$0xff]
    %v6986 = vld [vmem:[%s7 + $0x270] sm:$0xff]
    %v6987 = vld [vmem:[%s7 + $0x278] sm:$0xff]
    %v6988 = vld [vmem:[%s7 + $0x280] sm:$0xff]
    %v6989 = vld [vmem:[%s7 + $0x288] sm:$0xff]
    %v6990 = vld [vmem:[%s7 + $0x290] sm:$0xff]
    %v6991 = vld [vmem:[%s7 + $0x298] sm:$0xff]
    %v6992 = vld [vmem:[%s7 + $0x2a0] sm:$0xff]
    %v6993 = vld [vmem:[%s7 + $0x2a8] sm:$0xff]
    %v6994 = vld [vmem:[%s7 + $0x2b0] sm:$0xff]
    %v6995 = vld [vmem:[%s7 + $0x2b8] sm:$0xff]
    %v6996 = vld [vmem:[%s7 + $0x2c0] sm:$0xff]
    %v6997 = vld [vmem:[%s7 + $0x2c8] sm:$0xff]
    %v6998 = vld [vmem:[%s7 + $0x2d0] sm:$0xff]
    %v6999 = vld [vmem:[%s7 + $0x2d8] sm:$0xff]
    %v7000 = vld [vmem:[%s7 + $0x2e0] sm:$0xff]
    %v7001 = vld [vmem:[%s7 + $0x2e8] sm:$0xff]
    %v7002 = vld [vmem:[%s7 + $0x2f0] sm:$0xff]
    %v7003 = vld [vmem:[%s7 + $0x2f8] sm:$0xff]
    %v7004 = vld [vmem:[%s7 + $0x300] sm:$0xff]
    %v7005 = vld [vmem:[%s7 + $0x308] sm:$0xff]
    %v7006 = vld [vmem:[%s7 + $0x310] sm:$0xff]
    %v7007 = vld [vmem:[%s7 + $0x318] sm:$0xff]
    %v7008 = vld [vmem:[%s7 + $0x320] sm:$0xff]
    %v7009 = vld [vmem:[%s7 + $0x328] sm:$0xff]
    %v7010 = vld [vmem:[%s7 + $0x330] sm:$0xff]
    %v7011 = vld [vmem:[%s7 + $0x338] sm:$0xff]
    %v7012 = vld [vmem:[%s7 + $0x340] sm:$0xff]
    %v7013 = vld [vmem:[%s7 + $0x348] sm:$0xff]
    %v7014 = vld [vmem:[%s7 + $0x350] sm:$0xff]
    %v7015 = vld [vmem:[%s7 + $0x358] sm:$0xff]
    %v7016 = vld [vmem:[%s7 + $0x360] sm:$0xff]
    %v7017 = vld [vmem:[%s7 + $0x368] sm:$0xff]
    %v7018 = vld [vmem:[%s7 + $0x370] sm:$0xff]
    %v7019 = vld [vmem:[%s7 + $0x378] sm:$0xff]
    %v7020 = vld [vmem:[%s7 + $0x380] sm:$0xff]
    %v7021 = vld [vmem:[%s7 + $0x388] sm:$0xff]
    %v7022 = vld [vmem:[%s7 + $0x390] sm:$0xff]
    %v7023 = vld [vmem:[%s7 + $0x398] sm:$0xff]
    %v7024 = vld [vmem:[%s7 + $0x3a0] sm:$0xff]
    %v7025 = vld [vmem:[%s7 + $0x3a8] sm:$0xff]
    %v7026 = vld [vmem:[%s7 + $0x3b0] sm:$0xff]
    %v7027 = vld [vmem:[%s7 + $0x3b8] sm:$0xff]
    %v7028 = vld [vmem:[%s7 + $0x3c0] sm:$0xff]
    %v7029 = vld [vmem:[%s7 + $0x3c8] sm:$0xff]
    %v7030 = vld [vmem:[%s7 + $0x3d0] sm:$0xff]
    %v7031 = vld [vmem:[%s7 + $0x3d8] sm:$0xff]
    %v7032 = vld [vmem:[%s7 + $0x3e0] sm:$0xff]
    %v7033 = vld [vmem:[%s7 + $0x3e8] sm:$0xff]
    %v7034 = vld [vmem:[%s7 + $0x3f0] sm:$0xff]
    %v7035 = vld [vmem:[%s7 + $0x3f8] sm:$0xff]
    %v7036 = vld [vmem:[%s7 + $0x400] sm:$0xff]
    %v7037 = vld [vmem:[%s7 + $0x408] sm:$0xff]
    %v7038 = vld [vmem:[%s7 + $0x410] sm:$0xff]
    %v7039 = vld [vmem:[%s7 + $0x418] sm:$0xff]
    %v7040 = vld [vmem:[%s7 + $0x420] sm:$0xff]
    %v7041 = vld [vmem:[%s7 + $0x428] sm:$0xff]
    %v7042 = vld [vmem:[%s7 + $0x430] sm:$0xff]
    %v7043 = vld [vmem:[%s7 + $0x438] sm:$0xff]
    %v7044 = vld [vmem:[%s7 + $0x440] sm:$0xff]
    %v7045 = vld [vmem:[%s7 + $0x448] sm:$0xff]
    %v7046 = vld [vmem:[%s7 + $0x450] sm:$0xff]
    %v7047 = vld [vmem:[%s7 + $0x458] sm:$0xff]
    %v7048 = vld [vmem:[%s7 + $0x460] sm:$0xff]
    %v7049 = vld [vmem:[%s7 + $0x468] sm:$0xff]
    %v7050 = vld [vmem:[%s7 + $0x470] sm:$0xff]
    %v7051 = vld [vmem:[%s7 + $0x478] sm:$0xff]
    %v7052 = vld [vmem:[%s8] sm:$0x3]
    %v7054 = vperm.slane %v7052, 0
    %v7055 = vperm.slane %v7052, 1
    %v7063 = vunpack.c.l.b16 %v6903
    %v7064 = vunpack.c.h.b16 %v6903
    %v7065 = vunpack.c.l.b16 %v6904
    %v7066 = vunpack.c.h.b16 %v6904
    %v7067 = vunpack.c.l.b16 %v6905
    %v7068 = vunpack.c.h.b16 %v6905
    %v7069 = vunpack.c.l.b16 %v6906
    %v7070 = vunpack.c.h.b16 %v6906
    %v7071 = vunpack.c.l.b16 %v6907
    %v7072 = vpack.c.b16 %v7063, %v7063
    %v7073 = vpack.c.b16 %v7064, %v7064
    %v7074 = vpack.c.b16 %v7065, %v7065
    %v7075 = vpack.c.b16 %v7066, %v7066
    %v7076 = vpack.c.b16 %v7067, %v7067
    %v7077 = vpack.c.b16 %v7068, %v7068
    %v7078 = vpack.c.b16 %v7069, %v7069
    %v7079 = vpack.c.b16 %v7070, %v7070
    %v7080 = vpack.c.b16 %v7071, %v7071
    %v7234 = vunpack.c.l.b16 %v6908
    %v7235 = vunpack.c.h.b16 %v6908
    %v7236 = vunpack.c.l.b16 %v6909
    %v7237 = vunpack.c.h.b16 %v6909
    %v7238 = vunpack.c.l.b16 %v6910
    %v7239 = vunpack.c.h.b16 %v6910
    %v7240 = vunpack.c.l.b16 %v6911
    %v7241 = vunpack.c.h.b16 %v6911
    %v7242 = vunpack.c.l.b16 %v6912
    %v7243 = vunpack.c.h.b16 %v6912
    %v7244 = vunpack.c.l.b16 %v6913
    %v7245 = vunpack.c.h.b16 %v6913
    %v7246 = vunpack.c.l.b16 %v6914
    %v7247 = vunpack.c.h.b16 %v6914
    %v7248 = vunpack.c.l.b16 %v6915
    %v7249 = vunpack.c.h.b16 %v6915
    %v7250 = vunpack.c.l.b16 %v6916
    %v7251 = vunpack.c.h.b16 %v6916
    %v7252 = vunpack.c.l.b16 %v6917
    %v7253 = vunpack.c.h.b16 %v6917
    %v7254 = vunpack.c.l.b16 %v6918
    %v7255 = vunpack.c.h.b16 %v6918
    %v7256 = vunpack.c.l.b16 %v6919
    %v7257 = vunpack.c.h.b16 %v6919
    %v7258 = vunpack.c.l.b16 %v6920
    %v7259 = vunpack.c.h.b16 %v6920
    %v7260 = vunpack.c.l.b16 %v6921
    %v7261 = vunpack.c.h.b16 %v6921
    %v7262 = vunpack.c.l.b16 %v6922
    %v7263 = vunpack.c.h.b16 %v6922
    %v7264 = vunpack.c.l.b16 %v6923
    %v7265 = vunpack.c.h.b16 %v6923
    %v7266 = vunpack.c.l.b16 %v6924
    %v7267 = vunpack.c.h.b16 %v6924
    %v7268 = vunpack.c.l.b16 %v6925
    %v7269 = vunpack.c.h.b16 %v6925
    %v7270 = vunpack.c.l.b16 %v6926
    %v7271 = vunpack.c.h.b16 %v6926
    %v7272 = vunpack.c.l.b16 %v6927
    %v7273 = vunpack.c.h.b16 %v6927
    %v7274 = vunpack.c.l.b16 %v6928
    %v7275 = vunpack.c.h.b16 %v6928
    %v7276 = vunpack.c.l.b16 %v6929
    %v7277 = vunpack.c.h.b16 %v6929
    %v7278 = vunpack.c.l.b16 %v6930
    %v7279 = vunpack.c.h.b16 %v6930
    %v7280 = vunpack.c.l.b16 %v6931
    %v7281 = vunpack.c.h.b16 %v6931
    %v7282 = vunpack.c.l.b16 %v6932
    %v7283 = vunpack.c.h.b16 %v6932
    %v7284 = vunpack.c.l.b16 %v6933
    %v7285 = vunpack.c.h.b16 %v6933
    %v7286 = vunpack.c.l.b16 %v6934
    %v7287 = vunpack.c.h.b16 %v6934
    %v7288 = vunpack.c.l.b16 %v6935
    %v7289 = vunpack.c.h.b16 %v6935
    %v7290 = vunpack.c.l.b16 %v6936
    %v7291 = vunpack.c.h.b16 %v6936
    %v7292 = vunpack.c.l.b16 %v6937
    %v7293 = vunpack.c.h.b16 %v6937
    %v7294 = vunpack.c.l.b16 %v6938
    %v7295 = vunpack.c.h.b16 %v6938
    %v7296 = vunpack.c.l.b16 %v6939
    %v7297 = vunpack.c.h.b16 %v6939
    %v7298 = vunpack.c.l.b16 %v6940
    %v7299 = vunpack.c.h.b16 %v6940
    %v7300 = vunpack.c.l.b16 %v6941
    %v7301 = vunpack.c.h.b16 %v6941
    %v7302 = vunpack.c.l.b16 %v6942
    %v7303 = vunpack.c.h.b16 %v6942
    %v7304 = vunpack.c.l.b16 %v6943
    %v7305 = vunpack.c.h.b16 %v6943
    %v7306 = vunpack.c.l.b16 %v6944
    %v7307 = vunpack.c.h.b16 %v6944
    %v7308 = vunpack.c.l.b16 %v6945
    %v7309 = vunpack.c.h.b16 %v6945
    %v7310 = vunpack.c.l.b16 %v6946
    %v7311 = vunpack.c.h.b16 %v6946
    %v7312 = vunpack.c.l.b16 %v6947
    %v7313 = vunpack.c.h.b16 %v6947
    %v7314 = vunpack.c.l.b16 %v6948
    %v7315 = vunpack.c.h.b16 %v6948
    %v7316 = vunpack.c.l.b16 %v6949
    %v7317 = vunpack.c.h.b16 %v6949
    %v7318 = vunpack.c.l.b16 %v6950
    %v7319 = vunpack.c.h.b16 %v6950
    %v7320 = vunpack.c.l.b16 %v6951
    %v7321 = vunpack.c.h.b16 %v6951
    %v7322 = vunpack.c.l.b16 %v6952
    %v7323 = vunpack.c.h.b16 %v6952
    %v7324 = vunpack.c.l.b16 %v6953
    %v7325 = vunpack.c.h.b16 %v6953
    %v7326 = vunpack.c.l.b16 %v6954
    %v7327 = vunpack.c.h.b16 %v6954
    %v7328 = vunpack.c.l.b16 %v6955
    %v7329 = vunpack.c.h.b16 %v6955
    %v7330 = vunpack.c.l.b16 %v6956
    %v7331 = vunpack.c.h.b16 %v6956
    %v7332 = vunpack.c.l.b16 %v6957
    %v7333 = vunpack.c.h.b16 %v6957
    %v7334 = vunpack.c.l.b16 %v6958
    %v7335 = vunpack.c.h.b16 %v6958
    %v7336 = vunpack.c.l.b16 %v6959
    %v7337 = vunpack.c.h.b16 %v6959
    %v7338 = vunpack.c.l.b16 %v6960
    %v7339 = vunpack.c.h.b16 %v6960
    %v7340 = vunpack.c.l.b16 %v6961
    %v7341 = vunpack.c.h.b16 %v6961
    %v7342 = vunpack.c.l.b16 %v6962
    %v7343 = vunpack.c.h.b16 %v6962
    %v7344 = vunpack.c.l.b16 %v6963
    %v7345 = vunpack.c.h.b16 %v6963
    %v7346 = vunpack.c.l.b16 %v6964
    %v7347 = vunpack.c.h.b16 %v6964
    %v7348 = vunpack.c.l.b16 %v6965
    %v7349 = vunpack.c.h.b16 %v6965
    %v7350 = vunpack.c.l.b16 %v6966
    %v7351 = vunpack.c.h.b16 %v6966
    %v7352 = vunpack.c.l.b16 %v6967
    %v7353 = vunpack.c.h.b16 %v6967
    %v7354 = vunpack.c.l.b16 %v6968
    %v7355 = vunpack.c.h.b16 %v6968
    %v7356 = vunpack.c.l.b16 %v6969
    %v7357 = vunpack.c.h.b16 %v6969
    %v7358 = vunpack.c.l.b16 %v6970
    %v7359 = vunpack.c.h.b16 %v6970
    %v7360 = vunpack.c.l.b16 %v6971
    %v7361 = vunpack.c.h.b16 %v6971
    %v7362 = vunpack.c.l.b16 %v6972
    %v7363 = vunpack.c.h.b16 %v6972
    %v7364 = vunpack.c.l.b16 %v6973
    %v7365 = vunpack.c.h.b16 %v6973
    %v7366 = vunpack.c.l.b16 %v6974
    %v7367 = vunpack.c.h.b16 %v6974
    %v7368 = vunpack.c.l.b16 %v6975
    %v7369 = vunpack.c.h.b16 %v6975
    %v7370 = vunpack.c.l.b16 %v6976
    %v7371 = vunpack.c.h.b16 %v6976
    %v7372 = vunpack.c.l.b16 %v6977
    %v7373 = vunpack.c.h.b16 %v6977
    %v7374 = vunpack.c.l.b16 %v6978
    %v7375 = vunpack.c.h.b16 %v6978
    %v7376 = vunpack.c.l.b16 %v6979
    %v7377 = vunpack.c.h.b16 %v6979
    %v7378 = vunpack.c.l.b16 %v6980
    %v7379 = vunpack.c.h.b16 %v6980
    %v7380 = vunpack.c.l.b16 %v6981
    %v7381 = vunpack.c.h.b16 %v6981
    %v7382 = vunpack.c.l.b16 %v6982
    %v7383 = vunpack.c.h.b16 %v6982
    %v7384 = vunpack.c.l.b16 %v6983
    %v7385 = vunpack.c.h.b16 %v6983
    %v7386 = vunpack.c.l.b16 %v6984
    %v7387 = vunpack.c.h.b16 %v6984
    %v7388 = vunpack.c.l.b16 %v6985
    %v7389 = vunpack.c.h.b16 %v6985
    %v7390 = vunpack.c.l.b16 %v6986
    %v7391 = vunpack.c.h.b16 %v6986
    %v7392 = vunpack.c.l.b16 %v6987
    %v7393 = vunpack.c.h.b16 %v6987
    %v7394 = vunpack.c.l.b16 %v6988
    %v7395 = vunpack.c.h.b16 %v6988
    %v7396 = vunpack.c.l.b16 %v6989
    %v7397 = vunpack.c.h.b16 %v6989
    %v7398 = vunpack.c.l.b16 %v6990
    %v7399 = vunpack.c.h.b16 %v6990
    %v7400 = vunpack.c.l.b16 %v6991
    %v7401 = vunpack.c.h.b16 %v6991
    %v7402 = vunpack.c.l.b16 %v6992
    %v7403 = vunpack.c.h.b16 %v6992
    %v7404 = vunpack.c.l.b16 %v6993
    %v7405 = vunpack.c.h.b16 %v6993
    %v7406 = vunpack.c.l.b16 %v6994
    %v7407 = vunpack.c.h.b16 %v6994
    %v7408 = vunpack.c.l.b16 %v6995
    %v7409 = vunpack.c.h.b16 %v6995
    %v7410 = vunpack.c.l.b16 %v6996
    %v7411 = vunpack.c.h.b16 %v6996
    %v7412 = vunpack.c.l.b16 %v6997
    %v7413 = vunpack.c.h.b16 %v6997
    %v7414 = vunpack.c.l.b16 %v6998
    %v7415 = vunpack.c.h.b16 %v6998
    %v7416 = vunpack.c.l.b16 %v6999
    %v7417 = vunpack.c.h.b16 %v6999
    %v7418 = vunpack.c.l.b16 %v7000
    %v7419 = vunpack.c.h.b16 %v7000
    %v7420 = vunpack.c.l.b16 %v7001
    %v7421 = vunpack.c.h.b16 %v7001
    %v7422 = vunpack.c.l.b16 %v7002
    %v7423 = vunpack.c.h.b16 %v7002
    %v7424 = vunpack.c.l.b16 %v7003
    %v7425 = vunpack.c.h.b16 %v7003
    %v7426 = vunpack.c.l.b16 %v7004
    %v7427 = vunpack.c.h.b16 %v7004
    %v7428 = vunpack.c.l.b16 %v7005
    %v7429 = vunpack.c.h.b16 %v7005
    %v7430 = vunpack.c.l.b16 %v7006
    %v7431 = vunpack.c.h.b16 %v7006
    %v7432 = vunpack.c.l.b16 %v7007
    %v7433 = vunpack.c.h.b16 %v7007
    %v7434 = vunpack.c.l.b16 %v7008
    %v7435 = vunpack.c.h.b16 %v7008
    %v7436 = vunpack.c.l.b16 %v7009
    %v7437 = vunpack.c.h.b16 %v7009
    %v7438 = vunpack.c.l.b16 %v7010
    %v7439 = vunpack.c.h.b16 %v7010
    %v7440 = vunpack.c.l.b16 %v7011
    %v7441 = vunpack.c.h.b16 %v7011
    %v7442 = vunpack.c.l.b16 %v7012
    %v7443 = vunpack.c.h.b16 %v7012
    %v7444 = vunpack.c.l.b16 %v7013
    %v7445 = vunpack.c.h.b16 %v7013
    %v7446 = vunpack.c.l.b16 %v7014
    %v7447 = vunpack.c.h.b16 %v7014
    %v7448 = vunpack.c.l.b16 %v7015
    %v7449 = vunpack.c.h.b16 %v7015
    %v7450 = vunpack.c.l.b16 %v7016
    %v7451 = vunpack.c.h.b16 %v7016
    %v7452 = vunpack.c.l.b16 %v7017
    %v7453 = vunpack.c.h.b16 %v7017
    %v7454 = vunpack.c.l.b16 %v7018
    %v7455 = vunpack.c.h.b16 %v7018
    %v7456 = vunpack.c.l.b16 %v7019
    %v7457 = vunpack.c.h.b16 %v7019
    %v7458 = vunpack.c.l.b16 %v7020
    %v7459 = vunpack.c.h.b16 %v7020
    %v7460 = vunpack.c.l.b16 %v7021
    %v7461 = vunpack.c.h.b16 %v7021
    %v7462 = vunpack.c.l.b16 %v7022
    %v7463 = vunpack.c.h.b16 %v7022
    %v7464 = vunpack.c.l.b16 %v7023
    %v7465 = vunpack.c.h.b16 %v7023
    %v7466 = vunpack.c.l.b16 %v7024
    %v7467 = vunpack.c.h.b16 %v7024
    %v7468 = vunpack.c.l.b16 %v7025
    %v7469 = vunpack.c.h.b16 %v7025
    %v7470 = vunpack.c.l.b16 %v7026
    %v7471 = vunpack.c.h.b16 %v7026
    %v7472 = vunpack.c.l.b16 %v7027
    %v7473 = vunpack.c.h.b16 %v7027
    %v7474 = vunpack.c.l.b16 %v7028
    %v7475 = vunpack.c.h.b16 %v7028
    %v7476 = vunpack.c.l.b16 %v7029
    %v7477 = vunpack.c.h.b16 %v7029
    %v7478 = vunpack.c.l.b16 %v7030
    %v7479 = vunpack.c.h.b16 %v7030
    %v7480 = vunpack.c.l.b16 %v7031
    %v7481 = vunpack.c.h.b16 %v7031
    %v7482 = vunpack.c.l.b16 %v7032
    %v7483 = vunpack.c.h.b16 %v7032
    %v7484 = vunpack.c.l.b16 %v7033
    %v7485 = vunpack.c.h.b16 %v7033
    %v7486 = vunpack.c.l.b16 %v7034
    %v7487 = vunpack.c.h.b16 %v7034
    %v7488 = vunpack.c.l.b16 %v7035
    %v7489 = vunpack.c.h.b16 %v7035
    %v7490 = vunpack.c.l.b16 %v7036
    %v7491 = vunpack.c.h.b16 %v7036
    %v7492 = vunpack.c.l.b16 %v7037
    %v7493 = vunpack.c.h.b16 %v7037
    %v7494 = vunpack.c.l.b16 %v7038
    %v7495 = vunpack.c.h.b16 %v7038
    %v7496 = vunpack.c.l.b16 %v7039
    %v7497 = vunpack.c.h.b16 %v7039
    %v7498 = vunpack.c.l.b16 %v7040
    %v7499 = vunpack.c.h.b16 %v7040
    %v7500 = vunpack.c.l.b16 %v7041
    %v7501 = vunpack.c.h.b16 %v7041
    %v7502 = vunpack.c.l.b16 %v7042
    %v7503 = vunpack.c.h.b16 %v7042
    %v7504 = vunpack.c.l.b16 %v7043
    %v7505 = vunpack.c.h.b16 %v7043
    %v7506 = vunpack.c.l.b16 %v7044
    %v7507 = vunpack.c.h.b16 %v7044
    %v7508 = vunpack.c.l.b16 %v7045
    %v7509 = vunpack.c.h.b16 %v7045
    %v7510 = vunpack.c.l.b16 %v7046
    %v7511 = vunpack.c.h.b16 %v7046
    %v7512 = vunpack.c.l.b16 %v7047
    %v7513 = vunpack.c.h.b16 %v7047
    %v7514 = vunpack.c.l.b16 %v7048
    %v7515 = vunpack.c.h.b16 %v7048
    %v7516 = vunpack.c.l.b16 %v7049
    %v7517 = vunpack.c.h.b16 %v7049
    %v7518 = vunpack.c.l.b16 %v7050
    %v7519 = vunpack.c.h.b16 %v7050
    %v7520 = vunpack.c.l.b16 %v7051
    %v7521 = vunpack.c.h.b16 %v7051
    %v7522 = vpack.c.b16 %v7236, %v7234
    %v7523 = vpack.c.b16 %v7237, %v7235
    %v7524 = vpack.c.b16 %v7240, %v7238
    %v7525 = vpack.c.b16 %v7241, %v7239
    %v7526 = vpack.c.b16 %v7244, %v7242
    %v7527 = vpack.c.b16 %v7245, %v7243
    %v7528 = vpack.c.b16 %v7248, %v7246
    %v7529 = vpack.c.b16 %v7249, %v7247
    %v7530 = vpack.c.b16 %v7252, %v7250
    %v7531 = vpack.c.b16 %v7253, %v7251
    %v7532 = vpack.c.b16 %v7256, %v7254
    %v7533 = vpack.c.b16 %v7257, %v7255
    %v7534 = vpack.c.b16 %v7260, %v7258
    %v7535 = vpack.c.b16 %v7261, %v7259
    %v7536 = vpack.c.b16 %v7264, %v7262
    %v7537 = vpack.c.b16 %v7265, %v7263
    %v7538 = vpack.c.b16 %v7268, %v7266
    %v7539 = vpack.c.b16 %v7269, %v7267
    %v7540 = vpack.c.b16 %v7272, %v7270
    %v7541 = vpack.c.b16 %v7273, %v7271
    %v7542 = vpack.c.b16 %v7276, %v7274
    %v7543 = vpack.c.b16 %v7277, %v7275
    %v7544 = vpack.c.b16 %v7280, %v7278
    %v7545 = vpack.c.b16 %v7281, %v7279
    %v7546 = vpack.c.b16 %v7284, %v7282
    %v7547 = vpack.c.b16 %v7285, %v7283
    %v7548 = vpack.c.b16 %v7288, %v7286
    %v7549 = vpack.c.b16 %v7289, %v7287
    %v7550 = vpack.c.b16 %v7292, %v7290
    %v7551 = vpack.c.b16 %v7293, %v7291
    %v7552 = vpack.c.b16 %v7296, %v7294
    %v7553 = vpack.c.b16 %v7297, %v7295
    %v7554 = vpack.c.b16 %v7300, %v7298
    %v7555 = vpack.c.b16 %v7301, %v7299
    %v7556 = vpack.c.b16 %v7304, %v7302
    %v7557 = vpack.c.b16 %v7305, %v7303
    %v7558 = vpack.c.b16 %v7308, %v7306
    %v7559 = vpack.c.b16 %v7309, %v7307
    %v7560 = vpack.c.b16 %v7312, %v7310
    %v7561 = vpack.c.b16 %v7313, %v7311
    %v7562 = vpack.c.b16 %v7316, %v7314
    %v7563 = vpack.c.b16 %v7317, %v7315
    %v7564 = vpack.c.b16 %v7320, %v7318
    %v7565 = vpack.c.b16 %v7321, %v7319
    %v7566 = vpack.c.b16 %v7324, %v7322
    %v7567 = vpack.c.b16 %v7325, %v7323
    %v7568 = vpack.c.b16 %v7328, %v7326
    %v7569 = vpack.c.b16 %v7329, %v7327
    %v7570 = vpack.c.b16 %v7332, %v7330
    %v7571 = vpack.c.b16 %v7333, %v7331
    %v7572 = vpack.c.b16 %v7336, %v7334
    %v7573 = vpack.c.b16 %v7337, %v7335
    %v7574 = vpack.c.b16 %v7340, %v7338
    %v7575 = vpack.c.b16 %v7341, %v7339
    %v7576 = vpack.c.b16 %v7344, %v7342
    %v7577 = vpack.c.b16 %v7345, %v7343
    %v7578 = vpack.c.b16 %v7348, %v7346
    %v7579 = vpack.c.b16 %v7349, %v7347
    %v7580 = vpack.c.b16 %v7352, %v7350
    %v7581 = vpack.c.b16 %v7353, %v7351
    %v7582 = vpack.c.b16 %v7356, %v7354
    %v7583 = vpack.c.b16 %v7357, %v7355
    %v7584 = vpack.c.b16 %v7360, %v7358
    %v7585 = vpack.c.b16 %v7361, %v7359
    %v7586 = vpack.c.b16 %v7364, %v7362
    %v7587 = vpack.c.b16 %v7365, %v7363
    %v7588 = vpack.c.b16 %v7368, %v7366
    %v7589 = vpack.c.b16 %v7369, %v7367
    %v7590 = vpack.c.b16 %v7372, %v7370
    %v7591 = vpack.c.b16 %v7373, %v7371
    %v7592 = vpack.c.b16 %v7376, %v7374
    %v7593 = vpack.c.b16 %v7377, %v7375
    %v7594 = vpack.c.b16 %v7380, %v7378
    %v7595 = vpack.c.b16 %v7381, %v7379
    %v7596 = vpack.c.b16 %v7384, %v7382
    %v7597 = vpack.c.b16 %v7385, %v7383
    %v7598 = vpack.c.b16 %v7388, %v7386
    %v7599 = vpack.c.b16 %v7389, %v7387
    %v7600 = vpack.c.b16 %v7392, %v7390
    %v7601 = vpack.c.b16 %v7393, %v7391
    %v7602 = vpack.c.b16 %v7396, %v7394
    %v7603 = vpack.c.b16 %v7397, %v7395
    %v7604 = vpack.c.b16 %v7400, %v7398
    %v7605 = vpack.c.b16 %v7401, %v7399
    %v7606 = vpack.c.b16 %v7404, %v7402
    %v7607 = vpack.c.b16 %v7405, %v7403
    %v7608 = vpack.c.b16 %v7408, %v7406
    %v7609 = vpack.c.b16 %v7409, %v7407
    %v7610 = vpack.c.b16 %v7412, %v7410
    %v7611 = vpack.c.b16 %v7413, %v7411
    %v7612 = vpack.c.b16 %v7416, %v7414
    %v7613 = vpack.c.b16 %v7417, %v7415
    %v7614 = vpack.c.b16 %v7420, %v7418
    %v7615 = vpack.c.b16 %v7421, %v7419
    %v7616 = vpack.c.b16 %v7424, %v7422
    %v7617 = vpack.c.b16 %v7425, %v7423
    %v7618 = vpack.c.b16 %v7428, %v7426
    %v7619 = vpack.c.b16 %v7429, %v7427
    %v7620 = vpack.c.b16 %v7432, %v7430
    %v7621 = vpack.c.b16 %v7433, %v7431
    %v7622 = vpack.c.b16 %v7436, %v7434
    %v7623 = vpack.c.b16 %v7437, %v7435
    %v7624 = vpack.c.b16 %v7440, %v7438
    %v7625 = vpack.c.b16 %v7441, %v7439
    %v7626 = vpack.c.b16 %v7444, %v7442
    %v7627 = vpack.c.b16 %v7445, %v7443
    %v7628 = vpack.c.b16 %v7448, %v7446
    %v7629 = vpack.c.b16 %v7449, %v7447
    %v7630 = vpack.c.b16 %v7452, %v7450
    %v7631 = vpack.c.b16 %v7453, %v7451
    %v7632 = vpack.c.b16 %v7456, %v7454
    %v7633 = vpack.c.b16 %v7457, %v7455
    %v7634 = vpack.c.b16 %v7460, %v7458
    %v7635 = vpack.c.b16 %v7461, %v7459
    %v7636 = vpack.c.b16 %v7464, %v7462
    %v7637 = vpack.c.b16 %v7465, %v7463
    %v7638 = vpack.c.b16 %v7468, %v7466
    %v7639 = vpack.c.b16 %v7469, %v7467
    %v7640 = vpack.c.b16 %v7472, %v7470
    %v7641 = vpack.c.b16 %v7473, %v7471
    %v7642 = vpack.c.b16 %v7476, %v7474
    %v7643 = vpack.c.b16 %v7477, %v7475
    %v7644 = vpack.c.b16 %v7480, %v7478
    %v7645 = vpack.c.b16 %v7481, %v7479
    %v7646 = vpack.c.b16 %v7484, %v7482
    %v7647 = vpack.c.b16 %v7485, %v7483
    %v7648 = vpack.c.b16 %v7488, %v7486
    %v7649 = vpack.c.b16 %v7489, %v7487
    %v7650 = vpack.c.b16 %v7492, %v7490
    %v7651 = vpack.c.b16 %v7493, %v7491
    %v7652 = vpack.c.b16 %v7496, %v7494
    %v7653 = vpack.c.b16 %v7497, %v7495
    %v7654 = vpack.c.b16 %v7500, %v7498
    %v7655 = vpack.c.b16 %v7501, %v7499
    %v7656 = vpack.c.b16 %v7504, %v7502
    %v7657 = vpack.c.b16 %v7505, %v7503
    %v7658 = vpack.c.b16 %v7508, %v7506
    %v7659 = vpack.c.b16 %v7509, %v7507
    %v7660 = vpack.c.b16 %v7512, %v7510
    %v7661 = vpack.c.b16 %v7513, %v7511
    %v7662 = vpack.c.b16 %v7516, %v7514
    %v7663 = vpack.c.b16 %v7517, %v7515
    %v7664 = vpack.c.b16 %v7520, %v7518
    %v7665 = vpack.c.b16 %v7521, %v7519
    %7810 = vmatpush.bf16.msra.mxu0 %v7536
    %7811 = vmatpush.bf16.msra.mxu0 %v7534
    %7812 = vmatpush.bf16.msra.mxu0 %v7532
    %7813 = vmatpush.bf16.msra.mxu0 %v7530
    %7814 = vmatpush.bf16.msra.mxu0 %v7528
    %7815 = vmatpush.bf16.msra.mxu0 %v7526
    %7816 = vmatpush.bf16.msra.mxu0 %v7524
    %7817 = vmatpush.bf16.msra.mxu0 %v7522
    %7818 = vmatmul.bf16.gmra.mxu0 %v7072
    %v7819 = vpop.f32.mrf.mxu0
    %v7820 = vadd.f32 %v7054, %v7819
    %v7821 = vpop.f32.mrf.mxu0
    %7822 = vdwg.mxu0
    %7823 = vmatpush.bf16.msra.mxu0 %v7552
    %7824 = vmatpush.bf16.msra.mxu0 %v7550
    %7825 = vmatpush.bf16.msra.mxu0 %v7548
    %7826 = vmatpush.bf16.msra.mxu0 %v7546
    %7827 = vmatpush.bf16.msra.mxu0 %v7544
    %7828 = vmatpush.bf16.msra.mxu0 %v7542
    %7829 = vmatpush.bf16.msra.mxu0 %v7540
    %7830 = vmatpush.bf16.msra.mxu0 %v7538
    %7831 = vmatmul.bf16.gmra.mxu0 %v7073
    %v7832 = vpop.f32.mrf.mxu0
    %v7833 = vadd.f32 %v7820, %v7832
    %v7834 = vpop.f32.mrf.mxu0
    %7835 = vdwg.mxu0
    %7836 = vmatpush.bf16.msra.mxu0 %v7568
    %7837 = vmatpush.bf16.msra.mxu0 %v7566
    %7838 = vmatpush.bf16.msra.mxu0 %v7564
    %7839 = vmatpush.bf16.msra.mxu0 %v7562
    %7840 = vmatpush.bf16.msra.mxu0 %v7560
    %7841 = vmatpush.bf16.msra.mxu0 %v7558
    %7842 = vmatpush.bf16.msra.mxu0 %v7556
    %7843 = vmatpush.bf16.msra.mxu0 %v7554
    %7844 = vmatmul.bf16.gmra.mxu0 %v7074
    %v7845 = vpop.f32.mrf.mxu0
    %v7846 = vadd.f32 %v7833, %v7845
    %v7847 = vpop.f32.mrf.mxu0
    %7848 = vdwg.mxu0
    %7849 = vmatpush.bf16.msra.mxu0 %v7584
    %7850 = vmatpush.bf16.msra.mxu0 %v7582
    %7851 = vmatpush.bf16.msra.mxu0 %v7580
    %7852 = vmatpush.bf16.msra.mxu0 %v7578
    %7853 = vmatpush.bf16.msra.mxu0 %v7576
    %7854 = vmatpush.bf16.msra.mxu0 %v7574
    %7855 = vmatpush.bf16.msra.mxu0 %v7572
    %7856 = vmatpush.bf16.msra.mxu0 %v7570
    %7857 = vmatmul.bf16.gmra.mxu0 %v7075
    %v7858 = vpop.f32.mrf.mxu0
    %v7859 = vadd.f32 %v7846, %v7858
    %v7860 = vpop.f32.mrf.mxu0
    %7861 = vdwg.mxu0
    %7862 = vmatpush.bf16.msra.mxu0 %v7600
    %7863 = vmatpush.bf16.msra.mxu0 %v7598
    %7864 = vmatpush.bf16.msra.mxu0 %v7596
    %7865 = vmatpush.bf16.msra.mxu0 %v7594
    %7866 = vmatpush.bf16.msra.mxu0 %v7592
    %7867 = vmatpush.bf16.msra.mxu0 %v7590
    %7868 = vmatpush.bf16.msra.mxu0 %v7588
    %7869 = vmatpush.bf16.msra.mxu0 %v7586
    %7870 = vmatmul.bf16.gmra.mxu0 %v7076
    %v7871 = vpop.f32.mrf.mxu0
    %v7872 = vadd.f32 %v7859, %v7871
    %v7873 = vpop.f32.mrf.mxu0
    %7874 = vdwg.mxu0
    %7875 = vmatpush.bf16.msra.mxu0 %v7616
    %7876 = vmatpush.bf16.msra.mxu0 %v7614
    %7877 = vmatpush.bf16.msra.mxu0 %v7612
    %7878 = vmatpush.bf16.msra.mxu0 %v7610
    %7879 = vmatpush.bf16.msra.mxu0 %v7608
    %7880 = vmatpush.bf16.msra.mxu0 %v7606
    %7881 = vmatpush.bf16.msra.mxu0 %v7604
    %7882 = vmatpush.bf16.msra.mxu0 %v7602
    %7883 = vmatmul.bf16.gmra.mxu0 %v7077
    %v7884 = vpop.f32.mrf.mxu0
    %v7885 = vadd.f32 %v7872, %v7884
    %v7886 = vpop.f32.mrf.mxu0
    %7887 = vdwg.mxu0
    %7888 = vmatpush.bf16.msra.mxu0 %v7632
    %7889 = vmatpush.bf16.msra.mxu0 %v7630
    %7890 = vmatpush.bf16.msra.mxu0 %v7628
    %7891 = vmatpush.bf16.msra.mxu0 %v7626
    %7892 = vmatpush.bf16.msra.mxu0 %v7624
    %7893 = vmatpush.bf16.msra.mxu0 %v7622
    %7894 = vmatpush.bf16.msra.mxu0 %v7620
    %7895 = vmatpush.bf16.msra.mxu0 %v7618
    %7896 = vmatmul.bf16.gmra.mxu0 %v7078
    %v7897 = vpop.f32.mrf.mxu0
    %v7898 = vadd.f32 %v7885, %v7897
    %v7899 = vpop.f32.mrf.mxu0
    %7900 = vdwg.mxu0
    %7901 = vmatpush.bf16.msra.mxu0 %v7648
    %7902 = vmatpush.bf16.msra.mxu0 %v7646
    %7903 = vmatpush.bf16.msra.mxu0 %v7644
    %7904 = vmatpush.bf16.msra.mxu0 %v7642
    %7905 = vmatpush.bf16.msra.mxu0 %v7640
    %7906 = vmatpush.bf16.msra.mxu0 %v7638
    %7907 = vmatpush.bf16.msra.mxu0 %v7636
    %7908 = vmatpush.bf16.msra.mxu0 %v7634
    %7909 = vmatmul.bf16.gmra.mxu0 %v7079
    %v7910 = vpop.f32.mrf.mxu0
    %v7911 = vadd.f32 %v7898, %v7910
    %v7912 = vpop.f32.mrf.mxu0
    %7913 = vdwg.mxu0
    %7914 = vmatpush.bf16.msra.mxu0 %v7664
    %7915 = vmatpush.bf16.msra.mxu0 %v7662
    %7916 = vmatpush.bf16.msra.mxu0 %v7660
    %7917 = vmatpush.bf16.msra.mxu0 %v7658
    %7918 = vmatpush.bf16.msra.mxu0 %v7656
    %7919 = vmatpush.bf16.msra.mxu0 %v7654
    %7920 = vmatpush.bf16.msra.mxu0 %v7652
    %7921 = vmatpush.bf16.msra.mxu0 %v7650
    %7922 = vmatmul.bf16.gmra.mxu0 %v7080
    %v7923 = vpop.f32.mrf.mxu0
    %v7924 = vadd.f32 %v7911, %v7923
    %v7925 = vpop.f32.mrf.mxu0
    %7926 = vdwg.mxu0
    %7927 = vmatpush.bf16.msra.mxu0 %v7537
    %7928 = vmatpush.bf16.msra.mxu0 %v7535
    %7929 = vmatpush.bf16.msra.mxu0 %v7533
    %7930 = vmatpush.bf16.msra.mxu0 %v7531
    %7931 = vmatpush.bf16.msra.mxu0 %v7529
    %7932 = vmatpush.bf16.msra.mxu0 %v7527
    %7933 = vmatpush.bf16.msra.mxu0 %v7525
    %7934 = vmatpush.bf16.msra.mxu0 %v7523
    %7935 = vmatmul.bf16.gmra.mxu0 %v7072
    %v7936 = vpop.f32.mrf.mxu0
    %v7937 = vadd.f32 %v7055, %v7936
    %v7938 = vpop.f32.mrf.mxu0
    %7939 = vdwg.mxu0
    %7940 = vmatpush.bf16.msra.mxu0 %v7553
    %7941 = vmatpush.bf16.msra.mxu0 %v7551
    %7942 = vmatpush.bf16.msra.mxu0 %v7549
    %7943 = vmatpush.bf16.msra.mxu0 %v7547
    %7944 = vmatpush.bf16.msra.mxu0 %v7545
    %7945 = vmatpush.bf16.msra.mxu0 %v7543
    %7946 = vmatpush.bf16.msra.mxu0 %v7541
    %7947 = vmatpush.bf16.msra.mxu0 %v7539
    %7948 = vmatmul.bf16.gmra.mxu0 %v7073
    %v7949 = vpop.f32.mrf.mxu0
    %v7950 = vadd.f32 %v7937, %v7949
    %v7951 = vpop.f32.mrf.mxu0
    %7952 = vdwg.mxu0
    %7953 = vmatpush.bf16.msra.mxu0 %v7569
    %7954 = vmatpush.bf16.msra.mxu0 %v7567
    %7955 = vmatpush.bf16.msra.mxu0 %v7565
    %7956 = vmatpush.bf16.msra.mxu0 %v7563
    %7957 = vmatpush.bf16.msra.mxu0 %v7561
    %7958 = vmatpush.bf16.msra.mxu0 %v7559
    %7959 = vmatpush.bf16.msra.mxu0 %v7557
    %7960 = vmatpush.bf16.msra.mxu0 %v7555
    %7961 = vmatmul.bf16.gmra.mxu0 %v7074
    %v7962 = vpop.f32.mrf.mxu0
    %v7963 = vadd.f32 %v7950, %v7962
    %v7964 = vpop.f32.mrf.mxu0
    %7965 = vdwg.mxu0
    %7966 = vmatpush.bf16.msra.mxu0 %v7585
    %7967 = vmatpush.bf16.msra.mxu0 %v7583
    %7968 = vmatpush.bf16.msra.mxu0 %v7581
    %7969 = vmatpush.bf16.msra.mxu0 %v7579
    %7970 = vmatpush.bf16.msra.mxu0 %v7577
    %7971 = vmatpush.bf16.msra.mxu0 %v7575
    %7972 = vmatpush.bf16.msra.mxu0 %v7573
    %7973 = vmatpush.bf16.msra.mxu0 %v7571
    %7974 = vmatmul.bf16.gmra.mxu0 %v7075
    %v7975 = vpop.f32.mrf.mxu0
    %v7976 = vadd.f32 %v7963, %v7975
    %v7977 = vpop.f32.mrf.mxu0
    %7978 = vdwg.mxu0
    %7979 = vmatpush.bf16.msra.mxu0 %v7601
    %7980 = vmatpush.bf16.msra.mxu0 %v7599
    %7981 = vmatpush.bf16.msra.mxu0 %v7597
    %7982 = vmatpush.bf16.msra.mxu0 %v7595
    %7983 = vmatpush.bf16.msra.mxu0 %v7593
    %7984 = vmatpush.bf16.msra.mxu0 %v7591
    %7985 = vmatpush.bf16.msra.mxu0 %v7589
    %7986 = vmatpush.bf16.msra.mxu0 %v7587
    %7987 = vmatmul.bf16.gmra.mxu0 %v7076
    %v7988 = vpop.f32.mrf.mxu0
    %v7989 = vadd.f32 %v7976, %v7988
    %v7990 = vpop.f32.mrf.mxu0
    %7991 = vdwg.mxu0
    %7992 = vmatpush.bf16.msra.mxu0 %v7617
    %7993 = vmatpush.bf16.msra.mxu0 %v7615
    %7994 = vmatpush.bf16.msra.mxu0 %v7613
    %7995 = vmatpush.bf16.msra.mxu0 %v7611
    %7996 = vmatpush.bf16.msra.mxu0 %v7609
    %7997 = vmatpush.bf16.msra.mxu0 %v7607
    %7998 = vmatpush.bf16.msra.mxu0 %v7605
    %7999 = vmatpush.bf16.msra.mxu0 %v7603
    %8000 = vmatmul.bf16.gmra.mxu0 %v7077
    %v8001 = vpop.f32.mrf.mxu0
    %v8002 = vadd.f32 %v7989, %v8001
    %v8003 = vpop.f32.mrf.mxu0
    %8004 = vdwg.mxu0
    %8005 = vmatpush.bf16.msra.mxu0 %v7633
    %8006 = vmatpush.bf16.msra.mxu0 %v7631
    %8007 = vmatpush.bf16.msra.mxu0 %v7629
    %8008 = vmatpush.bf16.msra.mxu0 %v7627
    %8009 = vmatpush.bf16.msra.mxu0 %v7625
    %8010 = vmatpush.bf16.msra.mxu0 %v7623
    %8011 = vmatpush.bf16.msra.mxu0 %v7621
    %8012 = vmatpush.bf16.msra.mxu0 %v7619
    %8013 = vmatmul.bf16.gmra.mxu0 %v7078
    %v8014 = vpop.f32.mrf.mxu0
    %v8015 = vadd.f32 %v8002, %v8014
    %v8016 = vpop.f32.mrf.mxu0
    %8017 = vdwg.mxu0
    %8018 = vmatpush.bf16.msra.mxu0 %v7649
    %8019 = vmatpush.bf16.msra.mxu0 %v7647
    %8020 = vmatpush.bf16.msra.mxu0 %v7645
    %8021 = vmatpush.bf16.msra.mxu0 %v7643
    %8022 = vmatpush.bf16.msra.mxu0 %v7641
    %8023 = vmatpush.bf16.msra.mxu0 %v7639
    %8024 = vmatpush.bf16.msra.mxu0 %v7637
    %8025 = vmatpush.bf16.msra.mxu0 %v7635
    %8026 = vmatmul.bf16.gmra.mxu0 %v7079
    %v8027 = vpop.f32.mrf.mxu0
    %v8028 = vadd.f32 %v8015, %v8027
    %v8029 = vpop.f32.mrf.mxu0
    %8030 = vdwg.mxu0
    %8031 = vmatpush.bf16.msra.mxu0 %v7665
    %8032 = vmatpush.bf16.msra.mxu0 %v7663
    %8033 = vmatpush.bf16.msra.mxu0 %v7661
    %8034 = vmatpush.bf16.msra.mxu0 %v7659
    %8035 = vmatpush.bf16.msra.mxu0 %v7657
    %8036 = vmatpush.bf16.msra.mxu0 %v7655
    %8037 = vmatpush.bf16.msra.mxu0 %v7653
    %8038 = vmatpush.bf16.msra.mxu0 %v7651
    %8039 = vmatmul.bf16.gmra.mxu0 %v7080
    %v8040 = vpop.f32.mrf.mxu0
    %v8041 = vadd.f32 %v8028, %v8040
    %v8042 = vpop.f32.mrf.mxu0
    %8043 = vdwg.mxu0
    %v8044 = vmax.f32 %v7924, 0.0
    %v8045 = vmax.f32 %v8041, 0.0
    %v8048 = vrot.slane %v8045, 6
    %v8049 = vsel %vm5738, %v8044, %v8048
    %vm8050 = vcmask 1043458
    %v8051 = vsel %vm8050, %v8044, %v8048
    %v8052 = vrot.slane %v8051, 2
    %v8053 = vsel %vm5739, %v8044, %v8048
    %v8054 = vrot.slane %v8053, 4
    %v8055 = vsel %vm3837, %v8048, %v8044
    %v8056 = vrot.slane %v8055, 6
    %8057 = vst [vmem:[#allocation1] ss:$4 sm:$0xff] %v8049
    %v8058 = vld.sshfl [vmem:[#allocation1] sm:$0xff pattern:$0x73625140]
    %v8059 = vld.sshfl [vmem:[#allocation1 + $0x8] sm:$0xff pattern:$0x73625140]
    %s8060 = scalar_lea.vmem [#allocation1], 32
    %8061 = vst [vmem:[%s8060] ss:$4 sm:$0xff] %v8052
    %v8062 = vld.sshfl [vmem:[#allocation1 + $0x20] sm:$0xff pattern:$0x73625140]
    %v8063 = vld.sshfl [vmem:[#allocation1 + $0x28] sm:$0xff pattern:$0x73625140]
    %8064 = vst [vmem:[#allocation1] ss:$4 sm:$0xff] %v8054
    %v8065 = vld.sshfl [vmem:[#allocation1] sm:$0xff pattern:$0x73625140]
    %v8066 = vld.sshfl [vmem:[#allocation1 + $0x8] sm:$0xff pattern:$0x73625140]
    %8067 = vst [vmem:[%s8060] ss:$4 sm:$0xff] %v8056
    %v8068 = vld.sshfl [vmem:[#allocation1 + $0x20] sm:$0xff pattern:$0x73625140]
    %v8069 = vld.sshfl [vmem:[#allocation1 + $0x28] sm:$0xff pattern:$0x73625140]
    %v8078 = vsel %vm5738, %v8058, -inf
    %v8079 = vrot.slane %v8078, 4
    %v8080 = vmax.f32 %v8078, %v8079
    %v8081 = vrot.slane %v8080, 2
    %v8082 = vmax.f32 %v8080, %v8081
    %v8083 = vrot.slane %v8082, 1
    %v8084 = vmax.f32 %v8082, %v8083
    %v8085 = vsel %vm5738, %v8059, -inf
    %v8086 = vrot.slane %v8085, 4
    %v8087 = vmax.f32 %v8085, %v8086
    %v8088 = vrot.slane %v8087, 2
    %v8089 = vmax.f32 %v8087, %v8088
    %v8090 = vrot.slane %v8089, 1
    %v8091 = vmax.f32 %v8089, %v8090
    %v8092 = vsel %vm5738, %v8062, -inf
    %v8093 = vrot.slane %v8092, 4
    %v8094 = vmax.f32 %v8092, %v8093
    %v8095 = vrot.slane %v8094, 2
    %v8096 = vmax.f32 %v8094, %v8095
    %v8097 = vrot.slane %v8096, 1
    %v8098 = vmax.f32 %v8096, %v8097
    %v8099 = vsel %vm5738, %v8063, -inf
    %v8100 = vrot.slane %v8099, 4
    %v8101 = vmax.f32 %v8099, %v8100
    %v8102 = vrot.slane %v8101, 2
    %v8103 = vmax.f32 %v8101, %v8102
    %v8104 = vrot.slane %v8103, 1
    %v8105 = vmax.f32 %v8103, %v8104
    %v8106 = vsel %vm5738, %v8065, -inf
    %v8107 = vrot.slane %v8106, 4
    %v8108 = vmax.f32 %v8106, %v8107
    %v8109 = vrot.slane %v8108, 2
    %v8110 = vmax.f32 %v8108, %v8109
    %v8111 = vrot.slane %v8110, 1
    %v8112 = vmax.f32 %v8110, %v8111
    %v8113 = vsel %vm5738, %v8066, -inf
    %v8114 = vrot.slane %v8113, 4
    %v8115 = vmax.f32 %v8113, %v8114
    %v8116 = vrot.slane %v8115, 2
    %v8117 = vmax.f32 %v8115, %v8116
    %v8118 = vrot.slane %v8117, 1
    %v8119 = vmax.f32 %v8117, %v8118
    %v8120 = vsel %vm5738, %v8068, -inf
    %v8121 = vrot.slane %v8120, 4
    %v8122 = vmax.f32 %v8120, %v8121
    %v8123 = vrot.slane %v8122, 2
    %v8124 = vmax.f32 %v8122, %v8123
    %v8125 = vrot.slane %v8124, 1
    %v8126 = vmax.f32 %v8124, %v8125
    %v8127 = vsel %vm5738, %v8069, -inf
    %v8128 = vrot.slane %v8127, 4
    %v8129 = vmax.f32 %v8127, %v8128
    %v8130 = vrot.slane %v8129, 2
    %v8131 = vmax.f32 %v8129, %v8130
    %v8132 = vrot.slane %v8131, 1
    %v8133 = vmax.f32 %v8131, %v8132
    %v8134 = vmax.f32 %v8084, %v8098
    %v8135 = vmax.f32 %v8091, %v8105
    %v8136 = vmax.f32 %v8112, %v8126
    %v8137 = vmax.f32 %v8119, %v8133
    %v8138 = vpack.c.bf16 %v8134, %v8134
    %v8139 = vpack.c.bf16 %v8135, %v8135
    %v8140 = vpack.c.bf16 %v8136, %v8136
    %v8141 = vpack.c.bf16 %v8137, %v8137
    %v8142 = vld [vmem:[%s9] sm:$0xff]
    %v8143 = vld [vmem:[%s9 + $0x8] sm:$0xff]
    %v8144 = vld [vmem:[%s9 + $0x10] sm:$0xff]
    %v8145 = vld [vmem:[%s9 + $0x18] sm:$0xff]
    %v8146 = vld [vmem:[%s9 + $0x20] sm:$0xff]
    %v8147 = vld [vmem:[%s9 + $0x28] sm:$0xff]
    %v8148 = vld [vmem:[%s9 + $0x30] sm:$0xff]
    %v8149 = vld [vmem:[%s9 + $0x38] sm:$0xff]
    %v8150 = vld [vmem:[%s9 + $0x40] sm:$0xff]
    %v8151 = vld [vmem:[%s9 + $0x48] sm:$0xff]
    %v8152 = vld [vmem:[%s9 + $0x50] sm:$0xff]
    %v8153 = vld [vmem:[%s9 + $0x58] sm:$0xff]
    %v8154 = vld [vmem:[%s9 + $0x60] sm:$0xff]
    %v8155 = vld [vmem:[%s9 + $0x68] sm:$0xff]
    %v8156 = vld [vmem:[%s9 + $0x70] sm:$0xff]
    %v8157 = vld [vmem:[%s9 + $0x78] sm:$0xff]
    %v8158 = vld [vmem:[%s9 + $0x80] sm:$0xff]
    %v8159 = vld [vmem:[%s9 + $0x88] sm:$0xff]
    %v8160 = vld [vmem:[%s9 + $0x90] sm:$0xff]
    %v8161 = vld [vmem:[%s9 + $0x98] sm:$0xff]
    %v8162 = vld [vmem:[%s9 + $0xa0] sm:$0xff]
    %v8163 = vld [vmem:[%s9 + $0xa8] sm:$0xff]
    %v8164 = vld [vmem:[%s9 + $0xb0] sm:$0xff]
    %v8165 = vld [vmem:[%s9 + $0xb8] sm:$0xff]
    %v8166 = vld [vmem:[%s9 + $0xc0] sm:$0xff]
    %v8167 = vld [vmem:[%s9 + $0xc8] sm:$0xff]
    %v8168 = vld [vmem:[%s9 + $0xd0] sm:$0xff]
    %v8169 = vld [vmem:[%s9 + $0xd8] sm:$0xff]
    %v8170 = vld [vmem:[%s9 + $0xe0] sm:$0xff]
    %v8171 = vld [vmem:[%s9 + $0xe8] sm:$0xff]
    %v8172 = vld [vmem:[%s9 + $0xf0] sm:$0xff]
    %v8173 = vld [vmem:[%s9 + $0xf8] sm:$0xff]
    %v8174 = vld [vmem:[%s10] sm:$0x3]
    %v8176 = vperm.slane %v8174, 0
    %v8177 = vperm.slane %v8174, 1
    %v8184 = vunpack.c.l.b16 %v8138
    %v8185 = vunpack.c.l.b16 %v8139
    %v8186 = vunpack.c.l.b16 %v8140
    %v8187 = vunpack.c.l.b16 %v8141
    %v8188 = vsel %vm3418, %v8186, %v8184
    %v8189 = vsel %vm3418, %v8187, %v8185
    %v8190 = vpack.c.b16 %v8188, %v8188
    %v8191 = vpack.c.b16 %v8189, %v8189
    %v8226 = vunpack.c.l.b16 %v8142
    %v8227 = vunpack.c.h.b16 %v8142
    %v8228 = vunpack.c.l.b16 %v8143
    %v8229 = vunpack.c.h.b16 %v8143
    %v8230 = vunpack.c.l.b16 %v8144
    %v8231 = vunpack.c.h.b16 %v8144
    %v8232 = vunpack.c.l.b16 %v8145
    %v8233 = vunpack.c.h.b16 %v8145
    %v8234 = vunpack.c.l.b16 %v8146
    %v8235 = vunpack.c.h.b16 %v8146
    %v8236 = vunpack.c.l.b16 %v8147
    %v8237 = vunpack.c.h.b16 %v8147
    %v8238 = vunpack.c.l.b16 %v8148
    %v8239 = vunpack.c.h.b16 %v8148
    %v8240 = vunpack.c.l.b16 %v8149
    %v8241 = vunpack.c.h.b16 %v8149
    %v8242 = vunpack.c.l.b16 %v8150
    %v8243 = vunpack.c.h.b16 %v8150
    %v8244 = vunpack.c.l.b16 %v8151
    %v8245 = vunpack.c.h.b16 %v8151
    %v8246 = vunpack.c.l.b16 %v8152
    %v8247 = vunpack.c.h.b16 %v8152
    %v8248 = vunpack.c.l.b16 %v8153
    %v8249 = vunpack.c.h.b16 %v8153
    %v8250 = vunpack.c.l.b16 %v8154
    %v8251 = vunpack.c.h.b16 %v8154
    %v8252 = vunpack.c.l.b16 %v8155
    %v8253 = vunpack.c.h.b16 %v8155
    %v8254 = vunpack.c.l.b16 %v8156
    %v8255 = vunpack.c.h.b16 %v8156
    %v8256 = vunpack.c.l.b16 %v8157
    %v8257 = vunpack.c.h.b16 %v8157
    %v8258 = vunpack.c.l.b16 %v8158
    %v8259 = vunpack.c.h.b16 %v8158
    %v8260 = vunpack.c.l.b16 %v8159
    %v8261 = vunpack.c.h.b16 %v8159
    %v8262 = vunpack.c.l.b16 %v8160
    %v8263 = vunpack.c.h.b16 %v8160
    %v8264 = vunpack.c.l.b16 %v8161
    %v8265 = vunpack.c.h.b16 %v8161
    %v8266 = vunpack.c.l.b16 %v8162
    %v8267 = vunpack.c.h.b16 %v8162
    %v8268 = vunpack.c.l.b16 %v8163
    %v8269 = vunpack.c.h.b16 %v8163
    %v8270 = vunpack.c.l.b16 %v8164
    %v8271 = vunpack.c.h.b16 %v8164
    %v8272 = vunpack.c.l.b16 %v8165
    %v8273 = vunpack.c.h.b16 %v8165
    %v8274 = vunpack.c.l.b16 %v8166
    %v8275 = vunpack.c.h.b16 %v8166
    %v8276 = vunpack.c.l.b16 %v8167
    %v8277 = vunpack.c.h.b16 %v8167
    %v8278 = vunpack.c.l.b16 %v8168
    %v8279 = vunpack.c.h.b16 %v8168
    %v8280 = vunpack.c.l.b16 %v8169
    %v8281 = vunpack.c.h.b16 %v8169
    %v8282 = vunpack.c.l.b16 %v8170
    %v8283 = vunpack.c.h.b16 %v8170
    %v8284 = vunpack.c.l.b16 %v8171
    %v8285 = vunpack.c.h.b16 %v8171
    %v8286 = vunpack.c.l.b16 %v8172
    %v8287 = vunpack.c.h.b16 %v8172
    %v8288 = vunpack.c.l.b16 %v8173
    %v8289 = vunpack.c.h.b16 %v8173
    %v8290 = vpack.c.b16 %v8228, %v8226
    %v8291 = vpack.c.b16 %v8229, %v8227
    %v8292 = vpack.c.b16 %v8232, %v8230
    %v8293 = vpack.c.b16 %v8233, %v8231
    %v8294 = vpack.c.b16 %v8236, %v8234
    %v8295 = vpack.c.b16 %v8237, %v8235
    %v8296 = vpack.c.b16 %v8240, %v8238
    %v8297 = vpack.c.b16 %v8241, %v8239
    %v8298 = vpack.c.b16 %v8244, %v8242
    %v8299 = vpack.c.b16 %v8245, %v8243
    %v8300 = vpack.c.b16 %v8248, %v8246
    %v8301 = vpack.c.b16 %v8249, %v8247
    %v8302 = vpack.c.b16 %v8252, %v8250
    %v8303 = vpack.c.b16 %v8253, %v8251
    %v8304 = vpack.c.b16 %v8256, %v8254
    %v8305 = vpack.c.b16 %v8257, %v8255
    %v8306 = vpack.c.b16 %v8260, %v8258
    %v8307 = vpack.c.b16 %v8261, %v8259
    %v8308 = vpack.c.b16 %v8264, %v8262
    %v8309 = vpack.c.b16 %v8265, %v8263
    %v8310 = vpack.c.b16 %v8268, %v8266
    %v8311 = vpack.c.b16 %v8269, %v8267
    %v8312 = vpack.c.b16 %v8272, %v8270
    %v8313 = vpack.c.b16 %v8273, %v8271
    %v8314 = vpack.c.b16 %v8276, %v8274
    %v8315 = vpack.c.b16 %v8277, %v8275
    %v8316 = vpack.c.b16 %v8280, %v8278
    %v8317 = vpack.c.b16 %v8281, %v8279
    %v8318 = vpack.c.b16 %v8284, %v8282
    %v8319 = vpack.c.b16 %v8285, %v8283
    %v8320 = vpack.c.b16 %v8288, %v8286
    %v8321 = vpack.c.b16 %v8289, %v8287
    %8354 = vmatpush.bf16.msra.mxu0 %v8304
    %8355 = vmatpush.bf16.msra.mxu0 %v8302
    %8356 = vmatpush.bf16.msra.mxu0 %v8300
    %8357 = vmatpush.bf16.msra.mxu0 %v8298
    %8358 = vmatpush.bf16.msra.mxu0 %v8296
    %8359 = vmatpush.bf16.msra.mxu0 %v8294
    %8360 = vmatpush.bf16.msra.mxu0 %v8292
    %8361 = vmatpush.bf16.msra.mxu0 %v8290
    %8362 = vmatmul.bf16.gmra.mxu0 %v8190
    %v8363 = vpop.f32.mrf.mxu0
    %v8364 = vadd.f32 %v8176, %v8363
    %v8365 = vpop.f32.mrf.mxu0
    %8366 = vdwg.mxu0
    %8367 = vmatpush.bf16.msra.mxu0 %v8320
    %8368 = vmatpush.bf16.msra.mxu0 %v8318
    %8369 = vmatpush.bf16.msra.mxu0 %v8316
    %8370 = vmatpush.bf16.msra.mxu0 %v8314
    %8371 = vmatpush.bf16.msra.mxu0 %v8312
    %8372 = vmatpush.bf16.msra.mxu0 %v8310
    %8373 = vmatpush.bf16.msra.mxu0 %v8308
    %8374 = vmatpush.bf16.msra.mxu0 %v8306
    %8375 = vmatmul.bf16.gmra.mxu0 %v8191
    %v8376 = vpop.f32.mrf.mxu0
    %v8377 = vadd.f32 %v8364, %v8376
    %v8378 = vpop.f32.mrf.mxu0
    %8379 = vdwg.mxu0
    %8380 = vmatpush.bf16.msra.mxu0 %v8305
    %8381 = vmatpush.bf16.msra.mxu0 %v8303
    %8382 = vmatpush.bf16.msra.mxu0 %v8301
    %8383 = vmatpush.bf16.msra.mxu0 %v8299
    %8384 = vmatpush.bf16.msra.mxu0 %v8297
    %8385 = vmatpush.bf16.msra.mxu0 %v8295
    %8386 = vmatpush.bf16.msra.mxu0 %v8293
    %8387 = vmatpush.bf16.msra.mxu0 %v8291
    %8388 = vmatmul.bf16.gmra.mxu0 %v8190
    %v8389 = vpop.f32.mrf.mxu0
    %v8390 = vadd.f32 %v8177, %v8389
    %v8391 = vpop.f32.mrf.mxu0
    %8392 = vdwg.mxu0
    %8393 = vmatpush.bf16.msra.mxu0 %v8321
    %8394 = vmatpush.bf16.msra.mxu0 %v8319
    %8395 = vmatpush.bf16.msra.mxu0 %v8317
    %8396 = vmatpush.bf16.msra.mxu0 %v8315
    %8397 = vmatpush.bf16.msra.mxu0 %v8313
    %8398 = vmatpush.bf16.msra.mxu0 %v8311
    %8399 = vmatpush.bf16.msra.mxu0 %v8309
    %8400 = vmatpush.bf16.msra.mxu0 %v8307
    %8401 = vmatmul.bf16.gmra.mxu0 %v8191
    %v8402 = vpop.f32.mrf.mxu0
    %v8403 = vadd.f32 %v8390, %v8402
    %v8404 = vpop.f32.mrf.mxu0
    %8405 = vdwg.mxu0
    %v8406 = vmax.f32 %v8377, 0.0
    %v8407 = vmax.f32 %v8403, 0.0
    %v8408 = vpack.c.bf16 %v8406, %v8406
    %v8409 = vpack.c.bf16 %v8407, %v8407
    %v8410 = vld [vmem:[%s11] sm:$0xf]
    %v8411 = vld [vmem:[%s11 + $0x4] sm:$0xf]
    %v8412 = vld [vmem:[%s11 + $0x8] sm:$0xf]
    %v8413 = vld [vmem:[%s11 + $0xc] sm:$0xf]
    %v8414 = vld [vmem:[%s11 + $0x10] sm:$0xf]
    %v8415 = vld [vmem:[%s11 + $0x14] sm:$0xf]
    %v8416 = vld [vmem:[%s11 + $0x18] sm:$0xf]
    %v8417 = vld [vmem:[%s11 + $0x1c] sm:$0xf]
    %v8418 = vld [vmem:[%s11 + $0x20] sm:$0xf]
    %v8419 = vld [vmem:[%s11 + $0x24] sm:$0xf]
    %v8420 = vld [vmem:[%s11 + $0x28] sm:$0xf]
    %v8421 = vld [vmem:[%s11 + $0x2c] sm:$0xf]
    %v8422 = vld [vmem:[%s11 + $0x30] sm:$0xf]
    %v8423 = vld [vmem:[%s11 + $0x34] sm:$0xf]
    %v8424 = vld [vmem:[%s11 + $0x38] sm:$0xf]
    %v8425 = vld [vmem:[%s11 + $0x3c] sm:$0xf]
    %v8426 = vld [vmem:[%s11 + $0x40] sm:$0xf]
    %v8427 = vld [vmem:[%s11 + $0x44] sm:$0xf]
    %v8428 = vld [vmem:[%s11 + $0x48] sm:$0xf]
    %v8429 = vld [vmem:[%s11 + $0x4c] sm:$0xf]
    %v8430 = vld [vmem:[%s11 + $0x50] sm:$0xf]
    %v8431 = vld [vmem:[%s11 + $0x54] sm:$0xf]
    %v8432 = vld [vmem:[%s11 + $0x58] sm:$0xf]
    %v8433 = vld [vmem:[%s11 + $0x5c] sm:$0xf]
    %v8434 = vld [vmem:[%s11 + $0x60] sm:$0xf]
    %v8435 = vld [vmem:[%s11 + $0x64] sm:$0xf]
    %v8436 = vld [vmem:[%s11 + $0x68] sm:$0xf]
    %v8437 = vld [vmem:[%s11 + $0x6c] sm:$0xf]
    %v8438 = vld [vmem:[%s11 + $0x70] sm:$0xf]
    %v8439 = vld [vmem:[%s11 + $0x74] sm:$0xf]
    %v8440 = vld [vmem:[%s11 + $0x78] sm:$0xf]
    %v8441 = vld [vmem:[%s11 + $0x7c] sm:$0xf]
    %v8442 = vld [vmem:[%s12] sm:$0x1]
    %v8444 = vperm.slane %v8442, 0
    %v8478 = vunpack.c.l.b16 %v8410
    %v8479 = vunpack.c.l.b16 %v8411
    %v8480 = vunpack.c.l.b16 %v8412
    %v8481 = vunpack.c.l.b16 %v8413
    %v8482 = vunpack.c.l.b16 %v8414
    %v8483 = vunpack.c.l.b16 %v8415
    %v8484 = vunpack.c.l.b16 %v8416
    %v8485 = vunpack.c.l.b16 %v8417
    %v8486 = vunpack.c.l.b16 %v8418
    %v8487 = vunpack.c.l.b16 %v8419
    %v8488 = vunpack.c.l.b16 %v8420
    %v8489 = vunpack.c.l.b16 %v8421
    %v8490 = vunpack.c.l.b16 %v8422
    %v8491 = vunpack.c.l.b16 %v8423
    %v8492 = vunpack.c.l.b16 %v8424
    %v8493 = vunpack.c.l.b16 %v8425
    %v8494 = vunpack.c.l.b16 %v8426
    %v8495 = vunpack.c.l.b16 %v8427
    %v8496 = vunpack.c.l.b16 %v8428
    %v8497 = vunpack.c.l.b16 %v8429
    %v8498 = vunpack.c.l.b16 %v8430
    %v8499 = vunpack.c.l.b16 %v8431
    %v8500 = vunpack.c.l.b16 %v8432
    %v8501 = vunpack.c.l.b16 %v8433
    %v8502 = vunpack.c.l.b16 %v8434
    %v8503 = vunpack.c.l.b16 %v8435
    %v8504 = vunpack.c.l.b16 %v8436
    %v8505 = vunpack.c.l.b16 %v8437
    %v8506 = vunpack.c.l.b16 %v8438
    %v8507 = vunpack.c.l.b16 %v8439
    %v8508 = vunpack.c.l.b16 %v8440
    %v8509 = vunpack.c.l.b16 %v8441
    %v8510 = vpack.c.b16 %v8479, %v8478
    %v8511 = vpack.c.b16 %v8481, %v8480
    %v8512 = vpack.c.b16 %v8483, %v8482
    %v8513 = vpack.c.b16 %v8485, %v8484
    %v8514 = vpack.c.b16 %v8487, %v8486
    %v8515 = vpack.c.b16 %v8489, %v8488
    %v8516 = vpack.c.b16 %v8491, %v8490
    %v8517 = vpack.c.b16 %v8493, %v8492
    %v8518 = vpack.c.b16 %v8495, %v8494
    %v8519 = vpack.c.b16 %v8497, %v8496
    %v8520 = vpack.c.b16 %v8499, %v8498
    %v8521 = vpack.c.b16 %v8501, %v8500
    %v8522 = vpack.c.b16 %v8503, %v8502
    %v8523 = vpack.c.b16 %v8505, %v8504
    %v8524 = vpack.c.b16 %v8507, %v8506
    %v8525 = vpack.c.b16 %v8509, %v8508
    %8542 = vmatpush.bf16.msra.mxu0 %v8517
    %8543 = vmatpush.bf16.msra.mxu0 %v8516
    %8544 = vmatpush.bf16.msra.mxu0 %v8515
    %8545 = vmatpush.bf16.msra.mxu0 %v8514
    %8546 = vmatpush.bf16.msra.mxu0 %v8513
    %8547 = vmatpush.bf16.msra.mxu0 %v8512
    %8548 = vmatpush.bf16.msra.mxu0 %v8511
    %8549 = vmatpush.bf16.msra.mxu0 %v8510
    %8550 = vmatmul.bf16.gmra.mxu0 %v8408
    %v8551 = vpop.f32.mrf.mxu0
    %v8552 = vadd.f32 %v8444, %v8551
    %v8553 = vpop.f32.mrf.mxu0
    %8554 = vdwg.mxu0
    %8555 = vmatpush.bf16.msra.mxu0 %v8525
    %8556 = vmatpush.bf16.msra.mxu0 %v8524
    %8557 = vmatpush.bf16.msra.mxu0 %v8523
    %8558 = vmatpush.bf16.msra.mxu0 %v8522
    %8559 = vmatpush.bf16.msra.mxu0 %v8521
    %8560 = vmatpush.bf16.msra.mxu0 %v8520
    %8561 = vmatpush.bf16.msra.mxu0 %v8519
    %8562 = vmatpush.bf16.msra.mxu0 %v8518
    %8563 = vmatmul.bf16.gmra.mxu0 %v8409
    %v8564 = vpop.f32.mrf.mxu0
    %v8565 = vadd.f32 %v8552, %v8564
    %v8566 = vpop.f32.mrf.mxu0
    %8567 = vdwg.mxu0
    %v8568 = vmax.f32 %v8565, 0.0
    %v8569 = vpack.c.bf16 %v8568, %v8568
    %v8570 = vld [vmem:[%s13] sm:$0xf]
    %v8571 = vld [vmem:[%s13 + $0x4] sm:$0xf]
    %v8572 = vld [vmem:[%s13 + $0x8] sm:$0xf]
    %v8573 = vld [vmem:[%s13 + $0xc] sm:$0xf]
    %v8574 = vld [vmem:[%s13 + $0x10] sm:$0xf]
    %v8575 = vld [vmem:[%s13 + $0x14] sm:$0xf]
    %v8576 = vld [vmem:[%s13 + $0x18] sm:$0xf]
    %v8577 = vld [vmem:[%s13 + $0x1c] sm:$0xf]
    %v8578 = vld [vmem:[%s13 + $0x20] sm:$0xf]
    %v8579 = vld [vmem:[%s13 + $0x24] sm:$0xf]
    %v8580 = vld [vmem:[%s13 + $0x28] sm:$0xf]
    %v8581 = vld [vmem:[%s13 + $0x2c] sm:$0xf]
    %v8582 = vld [vmem:[%s13 + $0x30] sm:$0xf]
    %v8583 = vld [vmem:[%s13 + $0x34] sm:$0xf]
    %v8584 = vld [vmem:[%s13 + $0x38] sm:$0xf]
    %v8585 = vld [vmem:[%s13 + $0x3c] sm:$0xf]
    %v8586 = vld [vmem:[%s14] sm:$0x1]
    %v8588 = vperm.slane %v8586, 0
    %v8606 = vunpack.c.l.b16 %v8570
    %v8607 = vunpack.c.l.b16 %v8571
    %v8608 = vunpack.c.l.b16 %v8572
    %v8609 = vunpack.c.l.b16 %v8573
    %v8610 = vunpack.c.l.b16 %v8574
    %v8611 = vunpack.c.l.b16 %v8575
    %v8612 = vunpack.c.l.b16 %v8576
    %v8613 = vunpack.c.l.b16 %v8577
    %v8614 = vunpack.c.l.b16 %v8578
    %v8615 = vunpack.c.l.b16 %v8579
    %v8616 = vunpack.c.l.b16 %v8580
    %v8617 = vunpack.c.l.b16 %v8581
    %v8618 = vunpack.c.l.b16 %v8582
    %v8619 = vunpack.c.l.b16 %v8583
    %v8620 = vunpack.c.l.b16 %v8584
    %v8621 = vunpack.c.l.b16 %v8585
    %v8622 = vpack.c.b16 %v8607, %v8606
    %v8623 = vpack.c.b16 %v8609, %v8608
    %v8624 = vpack.c.b16 %v8611, %v8610
    %v8625 = vpack.c.b16 %v8613, %v8612
    %v8626 = vpack.c.b16 %v8615, %v8614
    %v8627 = vpack.c.b16 %v8617, %v8616
    %v8628 = vpack.c.b16 %v8619, %v8618
    %v8629 = vpack.c.b16 %v8621, %v8620
    %8638 = vmatpush.bf16.msra.mxu0 %v8629
    %8639 = vmatpush.bf16.msra.mxu0 %v8628
    %8640 = vmatpush.bf16.msra.mxu0 %v8627
    %8641 = vmatpush.bf16.msra.mxu0 %v8626
    %8642 = vmatpush.bf16.msra.mxu0 %v8625
    %8643 = vmatpush.bf16.msra.mxu0 %v8624
    %8644 = vmatpush.bf16.msra.mxu0 %v8623
    %8645 = vmatpush.bf16.msra.mxu0 %v8622
    %8646 = vmatmul.bf16.gmra.mxu0 %v8569
    %v8647 = vpop.f32.mrf.mxu0
    %v8648 = vadd.f32 %v8588, %v8647
    %v8649 = vpop.f32.mrf.mxu0
    %8650 = vdwg.mxu0
    %8651 = vst [vmem:[#allocation8] sm:$0x3] %v8648
    // Predicated region
    $region62: #{cnn_forward.1} parent=1 // pred_check
      _
    $region63: #{cnn_forward.1} parent=1 // pred_check_branch
      %8653 = sbr.rel (0) target = $region65
    $region64: #{cnn_forward.1} parent=1 // pred_region
      %8655 = vsyncadd [#allocation9], 0
      %s8657 = sshll.u32 [#allocation8], 4
      %s8658 = int_to_ptr.vmem [resolvable:$true] %s8657
      %s8659 = sshll.u32 %s15, 4
      %s8660 = int_to_ptr.hbm [resolvable:$true] %s8659
      %8662 = dma.vmem_to_hbm [thread:$0]  %s8658, 32, %s8660, [#allocation9]
    $region65: #{cnn_forward.1} parent=1 // pred_fallthru
      _
    // Predicated region
    $region66: #{cnn_forward.1} parent=1 // pred_check
      _
    $region67: #{cnn_forward.1} parent=1 // pred_check_branch
      %8664 = sbr.rel (0) target = $region69
    $region68: #{cnn_forward.1} parent=1 // pred_region
      %8666 = dma.done [#allocation9], 32
    $region69: #{cnn_forward.1} parent=1 // pred_fallthru
      _
    %8667 = vsyncpa [#allocation9], 1

</llo_original>
